<compile_context>
chip_gen: v7x
topology: tpu7x:2x2x1
jax: 0.10.0
libtpu: 0.0.40
codegen_flags: <defaults>
</compile_context>

<pallas_src>
import jax
import jax.numpy as jnp
from jax.experimental import pallas as pl
from jax.experimental.pallas import tpu as pltpu


def _res_catconv_kernel(x_ref, cond_ref, w_ref, b_ref, heat_ref, mask_ref):
    # Blocks:
    #   x_ref    : (1, Cx, R, L)   VMEM  input x_t slab (native dtype)
    #   cond_ref : (1, Cc, R, L)   VMEM  cond slab
    #   w_ref    : (K, Ch+Cm)      SMEM  stacked [posenet ; folded segnet] weights (f32)
    #   b_ref    : (B, Ch+Cm)      SMEM  per-batch effective bias (timestep folded in)
    #   heat_ref : (1, Ch, R, L)   VMEM  posenet output
    #   mask_ref : (1, Cm, R, L)   VMEM  segnet output
    b = pl.program_id(0)

    n_x = x_ref.shape[1]
    n_cond = cond_ref.shape[1]
    n_heat = heat_ref.shape[1]
    n_mask = mask_ref.shape[1]
    n_in = n_x + n_cond

    # Dense (R, L) input slabs, cast once to f32 (exact accumulation dtype).
    slabs = ([x_ref[0, k].astype(jnp.float32) for k in range(n_x)]
             + [cond_ref[0, k].astype(jnp.float32) for k in range(n_cond)])

    def accumulate(c):
        # Scalar-splat FMAs: acc = bias[b,c] + sum_k w[k,c] * slab_k   (exact f32, VALU only)
        acc = slabs[0] * w_ref[0, c] + b_ref[b, c]
        for k in range(1, n_in):
            acc = acc + slabs[k] * w_ref[k, c]
        return acc

    for c in range(n_heat):
        heat_ref[0, c] = accumulate(c).astype(heat_ref.dtype)
    for c in range(n_mask):
        mask_ref[0, c] = accumulate(n_heat + c).astype(mask_ref.dtype)


def res_catconv_forward(x_t, t, cond, data, params, *, tile=32768, lanes=512,
                        out_dtype=jnp.bfloat16):
    """x_t: (B,Cx,H,W)  t: (B,)  cond: (B,Cc,H,W)  data['gt_heat']: list of arrays."""
    B, Cx, H, W = x_t.shape
    _, Cc, _, _ = cond.shape
    HW = H * W

    # Lane-dense layout: (B, C, HW) -> (B, C, HW//L, L), L a multiple of 128.
    L = lanes
    while L > 128 and HW % L != 0:
        L //= 2
    assert L >= 128 and L % 128 == 0 and HW % L == 0, "spatial size must tile 128 lanes"
    rows = HW // L

    tile = min(tile, HW)
    assert tile % L == 0 and HW % tile == 0, "tile must evenly divide the spatial extent"
    tr = tile // L                                     # rows per grid step
    assert tr % 8 == 0 or tr == rows, "rows-per-step must be sublane-dense"

    f32 = jnp.float32
    wp = params["wp"].astype(f32)   # (Ch, Cx+Cc+1)
    bp = params["bp"].astype(f32)   # (Ch,)
    ws = params["ws"].astype(f32)   # (Cm, Cx+Cc+1+Ch)
    bs = params["bs"].astype(f32)   # (Cm,)
    Ch, Cm = wp.shape[0], ws.shape[0]
    K = Cx + Cc

    # Split conv weights exactly the way torch.cat orders the channels.
    wp_xc, wpt = wp[:, :K], wp[:, K]          # (Ch,K), (Ch,)   -> x|cond cols, t col
    ws_xc, wst = ws[:, :K], ws[:, K]          # (Cm,K), (Cm,)
    wsh = ws[:, K + 1:]                       # (Cm, Ch)        -> heat cols

    # Fold segnet through the LINEAR posenet (weight algebra, done once, tiny):
    #   mask = (ws_xc + wsh@wp_xc)@[x;c] + (wst + wsh@wpt)*t + (bs + wsh@bp)
    # Explicit broadcast-sums keep this exact f32 (no MXU default-precision rounding).
    ws_eff_xc = ws_xc + (wsh[:, :, None] * wp_xc[None, :, :]).sum(axis=1)   # (Cm, K)
    wst_eff = wst + (wsh * wpt[None, :]).sum(axis=1)                        # (Cm,)
    bs_eff = bs + (wsh * bp[None, :]).sum(axis=1)                           # (Cm,)

    # SMEM scalars: weights with the long axis last, per-batch bias with t folded in.
    w_stack = jnp.concatenate([wp_xc, ws_eff_xc], axis=0).T                 # (K, Ch+Cm)
    tf = t.astype(f32)
    bias_heat = bp[None, :] + tf[:, None] * wpt[None, :]                    # (B, Ch)
    bias_mask = bs_eff[None, :] + tf[:, None] * wst_eff[None, :]            # (B, Cm)
    bias_all = jnp.concatenate([bias_heat, bias_mask], axis=1)              # (B, Ch+Cm)

    # Dense slabs: free row-major reinterpretation, keeps native input dtype.
    x_f = x_t.reshape(B, Cx, rows, L)
    c_f = cond.reshape(B, Cc, rows, L)

    out_isz = jnp.dtype(out_dtype).itemsize
    bytes_accessed = int(x_f.size * x_f.dtype.itemsize
                         + c_f.size * c_f.dtype.itemsize
                         + w_stack.size * 4 + bias_all.size * 4
                         + B * (Ch + Cm) * HW * out_isz)
    cost = pl.CostEstimate(flops=2 * B * HW * (Ch + Cm) * K,
                           transcendentals=0,
                           bytes_accessed=bytes_accessed)

    heat_f, mask_f = pl.pallas_call(
        _res_catconv_kernel,
        out_shape=(jax.ShapeDtypeStruct((B, Ch, rows, L), out_dtype),
                   jax.ShapeDtypeStruct((B, Cm, rows, L), out_dtype)),
        grid_spec=pltpu.PrefetchScalarGridSpec(
            num_scalar_prefetch=0,
            grid=(B, rows // tr),
            in_specs=[
                pl.BlockSpec((1, Cx, tr, L), lambda b, j: (b, 0, j, 0)),
                pl.BlockSpec((1, Cc, tr, L), lambda b, j: (b, 0, j, 0)),
                pl.BlockSpec(memory_space=pltpu.MemorySpace.SMEM),   # weights (K, Ch+Cm)
                pl.BlockSpec(memory_space=pltpu.MemorySpace.SMEM),   # bias    (B, Ch+Cm)
            ],
            out_specs=(
                pl.BlockSpec((1, Ch, tr, L), lambda b, j: (b, 0, j, 0)),
                pl.BlockSpec((1, Cm, tr, L), lambda b, j: (b, 0, j, 0)),
            ),
        ),
        compiler_params=pltpu.CompilerParams(
            dimension_semantics=("parallel", "parallel")),
        cost_estimate=cost,
    )(x_f, c_f, w_stack, bias_all)

    partialheat = [heat_f.reshape(B, Ch, H, W)]   # posenet output (list, like hourglass stacks)
    pre_mask = [mask_f.reshape(B, Cm, H, W)]      # segnet output (list; [-1] used below)
    input_heat = data["gt_heat"][-1]

    return dict(mask=pre_mask[-1], heatmap=input_heat,
                premask=pre_mask, preheat=partialheat)


def _reference_forward(x_t, t, cond, params):
    """Pure-JAX reference of the same synthetic forward (exact f32, no MXU dots)."""
    B, Cx, H, W = x_t.shape
    t_b = jnp.broadcast_to(t[:, None, None, None], (B, 1, H, W)).astype(jnp.float32)
    x_cat = jnp.concatenate([x_t.astype(jnp.float32),
                             cond.astype(jnp.float32), t_b], axis=1)          # (B, Cin, H, W)
    heat = ((params["wp"][None, :, :, None, None] * x_cat[:, None, :, :, :]).sum(axis=2)
            + params["bp"][None, :, None, None])
    x_cat2 = jnp.concatenate([x_cat, heat], axis=1)
    mask = ((params["ws"][None, :, :, None, None] * x_cat2[:, None, :, :, :]).sum(axis=2)
            + params["bs"][None, :, None, None])
    return heat, mask


if __name__ == "__main__":
    key = jax.random.PRNGKey(0)
    kx, kc, kt, kw1, kb1, kw2, kb2, kg = jax.random.split(key, 8)

    # Spatial size 256 is hard-coded by the module's t.expand(..., 256, 256).
    B, Cx, Cc, H, W = 2, 1, 3, 256, 256
    Ch, Cm = 16, 1                      # synthetic posenet / segnet output channels
    Cin = Cx + Cc + 1

    x_t = jax.random.normal(kx, (B, Cx, H, W), jnp.float32)
    cond = jax.random.normal(kc, (B, Cc, H, W), jnp.float32)
    t = jax.random.uniform(kt, (B,), jnp.float32)
    data = {"gt_heat": [jax.random.normal(kg, (B, Ch, 64, 64), jnp.float32)]}

    params = dict(
        wp=0.1 * jax.random.normal(kw1, (Ch, Cin), jnp.float32),
        bp=0.1 * jax.random.normal(kb1, (Ch,), jnp.float32),
        ws=0.1 * jax.random.normal(kw2, (Cm, Cin + Ch), jnp.float32),
        bs=0.1 * jax.random.normal(kb2, (Cm,), jnp.float32),
    )

    ref_heat, ref_mask = _reference_forward(x_t, t, cond, params)

    # 1) f32-output run: tight numerical check (kernel math is exact f32 on the VPU).
    out32 = res_catconv_forward(x_t, t, cond, data, params, out_dtype=jnp.float32)
    jax.block_until_ready(out32)
    assert jnp.allclose(out32["preheat"][-1], ref_heat, rtol=1e-5, atol=1e-5)
    assert jnp.allclose(out32["mask"], ref_mask, rtol=1e-5, atol=1e-5)

    # 2) default bf16-output run (lower HBM traffic): bf16-level tolerance.
    out = res_catconv_forward(x_t, t, cond, data, params)
    jax.block_until_ready(out)
    assert jnp.allclose(out["preheat"][-1].astype(jnp.float32), ref_heat,
                        rtol=1e-2, atol=1e-2)
    assert jnp.allclose(out["mask"].astype(jnp.float32), ref_mask,
                        rtol=1e-2, atol=1e-2)
    assert out["heatmap"].shape == (B, Ch, 64, 64)
    assert out["premask"][-1] is out["mask"]

    # 3) smaller-tile variant (the v7x sweep knob) to confirm tiling correctness.
    out_small = res_catconv_forward(x_t, t, cond, data, params, tile=8192,
                                    out_dtype=jnp.float32)
    jax.block_until_ready(out_small)
    assert jnp.allclose(out_small["mask"], ref_mask, rtol=1e-5, atol=1e-5)

    print("KERNEL_OK")
</pallas_src>

<mosaic_0001>
module attributes {stable_mosaic.version = 11 : i64} {
  func.func @_res_catconv_kernel(%arg0: i32, %arg1: i32, %arg2: memref<1x1x64x512xf32, #tpu.memory_space<vmem>>, %arg3: memref<1x3x64x512xf32, #tpu.memory_space<vmem>>, %arg4: memref<4x17xf32, #tpu.memory_space<smem>>, %arg5: memref<2x17xf32, #tpu.memory_space<smem>>, %arg6: memref<1x16x64x512xf32, #tpu.memory_space<vmem>>, %arg7: memref<1x1x64x512xf32, #tpu.memory_space<vmem>>) attributes {dimension_semantics = [#tpu.dimension_semantics<parallel>, #tpu.dimension_semantics<parallel>], iteration_bounds = array<i64: 2, 2>, scalar_prefetch = 0 : i64, scratch_operands = 0 : i64, tpu.core_type = #tpu.core_type<tc>, window_params = [{transform_indices = @transform_0, window_bounds = array<i64: 1, 1, 64, 512>}, {transform_indices = @transform_1, window_bounds = array<i64: 1, 3, 64, 512>}, {transform_indices = @transform_2, window_bounds = array<i64: 4, 17>}, {transform_indices = @transform_3, window_bounds = array<i64: 2, 17>}, {transform_indices = @transform_4, window_bounds = array<i64: 1, 16, 64, 512>}, {transform_indices = @transform_5, window_bounds = array<i64: 1, 1, 64, 512>}]} {
    %c0 = arith.constant 0 : index
    %c0_0 = arith.constant 0 : index
    %c0_1 = arith.constant 0 : index
    %c0_2 = arith.constant 0 : index
    %0 = vector.load %arg2[%c0, %c0_0, %c0_1, %c0_2] : memref<1x1x64x512xf32, #tpu.memory_space<vmem>>, vector<1x1x64x512xf32>
    %1 = vector.shape_cast %0 : vector<1x1x64x512xf32> to vector<64x512xf32>
    %c0_3 = arith.constant 0 : index
    %c0_4 = arith.constant 0 : index
    %c0_5 = arith.constant 0 : index
    %c0_6 = arith.constant 0 : index
    %2 = vector.load %arg3[%c0_3, %c0_4, %c0_5, %c0_6] : memref<1x3x64x512xf32, #tpu.memory_space<vmem>>, vector<1x1x64x512xf32>
    %3 = vector.shape_cast %2 : vector<1x1x64x512xf32> to vector<64x512xf32>
    %c0_7 = arith.constant 0 : index
    %c1 = arith.constant 1 : index
    %c0_8 = arith.constant 0 : index
    %c0_9 = arith.constant 0 : index
    %4 = vector.load %arg3[%c0_7, %c1, %c0_8, %c0_9] : memref<1x3x64x512xf32, #tpu.memory_space<vmem>>, vector<1x1x64x512xf32>
    %5 = vector.shape_cast %4 : vector<1x1x64x512xf32> to vector<64x512xf32>
    %c0_10 = arith.constant 0 : index
    %c2 = arith.constant 2 : index
    %c0_11 = arith.constant 0 : index
    %c0_12 = arith.constant 0 : index
    %6 = vector.load %arg3[%c0_10, %c2, %c0_11, %c0_12] : memref<1x3x64x512xf32, #tpu.memory_space<vmem>>, vector<1x1x64x512xf32>
    %7 = vector.shape_cast %6 : vector<1x1x64x512xf32> to vector<64x512xf32>
    %c0_13 = arith.constant 0 : index
    %c0_14 = arith.constant 0 : index
    %8 = memref.load %arg4[%c0_13, %c0_14] : memref<4x17xf32, #tpu.memory_space<smem>>
    %9 = vector.broadcast %8 : f32 to vector<64x512xf32>
    %10 = arith.mulf %1, %9 : vector<64x512xf32>
    %11 = arith.index_cast %arg0 : i32 to index
    %c0_15 = arith.constant 0 : index
    %12 = memref.load %arg5[%11, %c0_15] : memref<2x17xf32, #tpu.memory_space<smem>>
    %13 = vector.broadcast %12 : f32 to vector<64x512xf32>
    %14 = arith.addf %10, %13 : vector<64x512xf32>
    %c1_16 = arith.constant 1 : index
    %c0_17 = arith.constant 0 : index
    %15 = memref.load %arg4[%c1_16, %c0_17] : memref<4x17xf32, #tpu.memory_space<smem>>
    %16 = vector.broadcast %15 : f32 to vector<64x512xf32>
    %17 = arith.mulf %3, %16 : vector<64x512xf32>
    %18 = arith.addf %14, %17 : vector<64x512xf32>
    %c2_18 = arith.constant 2 : index
    %c0_19 = arith.constant 0 : index
    %19 = memref.load %arg4[%c2_18, %c0_19] : memref<4x17xf32, #tpu.memory_space<smem>>
    %20 = vector.broadcast %19 : f32 to vector<64x512xf32>
    %21 = arith.mulf %5, %20 : vector<64x512xf32>
    %22 = arith.addf %18, %21 : vector<64x512xf32>
    %c3 = arith.constant 3 : index
    %c0_20 = arith.constant 0 : index
    %23 = memref.load %arg4[%c3, %c0_20] : memref<4x17xf32, #tpu.memory_space<smem>>
    %24 = vector.broadcast %23 : f32 to vector<64x512xf32>
    %25 = arith.mulf %7, %24 : vector<64x512xf32>
    %26 = arith.addf %22, %25 : vector<64x512xf32>
    %c0_21 = arith.constant 0 : index
    %c0_22 = arith.constant 0 : index
    %c0_23 = arith.constant 0 : index
    %c0_24 = arith.constant 0 : index
    %27 = vector.load %arg6[%c0_21, %c0_22, %c0_23, %c0_24] : memref<1x16x64x512xf32, #tpu.memory_space<vmem>>, vector<1x1x64x512xf32>
    %28 = vector.shape_cast %27 : vector<1x1x64x512xf32> to vector<64x512xf32>
    %29 = vector.shape_cast %26 : vector<64x512xf32> to vector<1x1x64x512xf32>
    tpu.vector_store %arg6[%c0_21, %c0_22, %c0_23, %c0_24], %29 {strides = array<i32>} : memref<1x16x64x512xf32, #tpu.memory_space<vmem>>, vector<1x1x64x512xf32>,
    %c0_25 = arith.constant 0 : index
    %c1_26 = arith.constant 1 : index
    %30 = memref.load %arg4[%c0_25, %c1_26] : memref<4x17xf32, #tpu.memory_space<smem>>
    %31 = vector.broadcast %30 : f32 to vector<64x512xf32>
    %32 = arith.mulf %1, %31 : vector<64x512xf32>
    %33 = arith.index_cast %arg0 : i32 to index
    %c1_27 = arith.constant 1 : index
    %34 = memref.load %arg5[%33, %c1_27] : memref<2x17xf32, #tpu.memory_space<smem>>
    %35 = vector.broadcast %34 : f32 to vector<64x512xf32>
    %36 = arith.addf %32, %35 : vector<64x512xf32>
    %c1_28 = arith.constant 1 : index
    %c1_29 = arith.constant 1 : index
    %37 = memref.load %arg4[%c1_28, %c1_29] : memref<4x17xf32, #tpu.memory_space<smem>>
    %38 = vector.broadcast %37 : f32 to vector<64x512xf32>
    %39 = arith.mulf %3, %38 : vector<64x512xf32>
    %40 = arith.addf %36, %39 : vector<64x512xf32>
    %c2_30 = arith.constant 2 : index
    %c1_31 = arith.constant 1 : index
    %41 = memref.load %arg4[%c2_30, %c1_31] : memref<4x17xf32, #tpu.memory_space<smem>>
    %42 = vector.broadcast %41 : f32 to vector<64x512xf32>
    %43 = arith.mulf %5, %42 : vector<64x512xf32>
    %44 = arith.addf %40, %43 : vector<64x512xf32>
    %c3_32 = arith.constant 3 : index
    %c1_33 = arith.constant 1 : index
    %45 = memref.load %arg4[%c3_32, %c1_33] : memref<4x17xf32, #tpu.memory_space<smem>>
    %46 = vector.broadcast %45 : f32 to vector<64x512xf32>
    %47 = arith.mulf %7, %46 : vector<64x512xf32>
    %48 = arith.addf %44, %47 : vector<64x512xf32>
    %c0_34 = arith.constant 0 : index
    %c1_35 = arith.constant 1 : index
    %c0_36 = arith.constant 0 : index
    %c0_37 = arith.constant 0 : index
    %49 = vector.load %arg6[%c0_34, %c1_35, %c0_36, %c0_37] : memref<1x16x64x512xf32, #tpu.memory_space<vmem>>, vector<1x1x64x512xf32>
    %50 = vector.shape_cast %49 : vector<1x1x64x512xf32> to vector<64x512xf32>
    %51 = vector.shape_cast %48 : vector<64x512xf32> to vector<1x1x64x512xf32>
    tpu.vector_store %arg6[%c0_34, %c1_35, %c0_36, %c0_37], %51 {strides = array<i32>} : memref<1x16x64x512xf32, #tpu.memory_space<vmem>>, vector<1x1x64x512xf32>,
    %c0_38 = arith.constant 0 : index
    %c2_39 = arith.constant 2 : index
    %52 = memref.load %arg4[%c0_38, %c2_39] : memref<4x17xf32, #tpu.memory_space<smem>>
    %53 = vector.broadcast %52 : f32 to vector<64x512xf32>
    %54 = arith.mulf %1, %53 : vector<64x512xf32>
    %55 = arith.index_cast %arg0 : i32 to index
    %c2_40 = arith.constant 2 : index
    %56 = memref.load %arg5[%55, %c2_40] : memref<2x17xf32, #tpu.memory_space<smem>>
    %57 = vector.broadcast %56 : f32 to vector<64x512xf32>
    %58 = arith.addf %54, %57 : vector<64x512xf32>
    %c1_41 = arith.constant 1 : index
    %c2_42 = arith.constant 2 : index
    %59 = memref.load %arg4[%c1_41, %c2_42] : memref<4x17xf32, #tpu.memory_space<smem>>
    %60 = vector.broadcast %59 : f32 to vector<64x512xf32>
    %61 = arith.mulf %3, %60 : vector<64x512xf32>
    %62 = arith.addf %58, %61 : vector<64x512xf32>
    %c2_43 = arith.constant 2 : index
    %c2_44 = arith.constant 2 : index
    %63 = memref.load %arg4[%c2_43, %c2_44] : memref<4x17xf32, #tpu.memory_space<smem>>
    %64 = vector.broadcast %63 : f32 to vector<64x512xf32>
    %65 = arith.mulf %5, %64 : vector<64x512xf32>
    %66 = arith.addf %62, %65 : vector<64x512xf32>
    %c3_45 = arith.constant 3 : index
    %c2_46 = arith.constant 2 : index
    %67 = memref.load %arg4[%c3_45, %c2_46] : memref<4x17xf32, #tpu.memory_space<smem>>
    %68 = vector.broadcast %67 : f32 to vector<64x512xf32>
    %69 = arith.mulf %7, %68 : vector<64x512xf32>
    %70 = arith.addf %66, %69 : vector<64x512xf32>
    %c0_47 = arith.constant 0 : index
    %c2_48 = arith.constant 2 : index
    %c0_49 = arith.constant 0 : index
    %c0_50 = arith.constant 0 : index
    %71 = vector.load %arg6[%c0_47, %c2_48, %c0_49, %c0_50] : memref<1x16x64x512xf32, #tpu.memory_space<vmem>>, vector<1x1x64x512xf32>
    %72 = vector.shape_cast %71 : vector<1x1x64x512xf32> to vector<64x512xf32>
    %73 = vector.shape_cast %70 : vector<64x512xf32> to vector<1x1x64x512xf32>
    tpu.vector_store %arg6[%c0_47, %c2_48, %c0_49, %c0_50], %73 {strides = array<i32>} : memref<1x16x64x512xf32, #tpu.memory_space<vmem>>, vector<1x1x64x512xf32>,
    %c0_51 = arith.constant 0 : index
    %c3_52 = arith.constant 3 : index
    %74 = memref.load %arg4[%c0_51, %c3_52] : memref<4x17xf32, #tpu.memory_space<smem>>
    %75 = vector.broadcast %74 : f32 to vector<64x512xf32>
    %76 = arith.mulf %1, %75 : vector<64x512xf32>
    %77 = arith.index_cast %arg0 : i32 to index
    %c3_53 = arith.constant 3 : index
    %78 = memref.load %arg5[%77, %c3_53] : memref<2x17xf32, #tpu.memory_space<smem>>
    %79 = vector.broadcast %78 : f32 to vector<64x512xf32>
    %80 = arith.addf %76, %79 : vector<64x512xf32>
    %c1_54 = arith.constant 1 : index
    %c3_55 = arith.constant 3 : index
    %81 = memref.load %arg4[%c1_54, %c3_55] : memref<4x17xf32, #tpu.memory_space<smem>>
    %82 = vector.broadcast %81 : f32 to vector<64x512xf32>
    %83 = arith.mulf %3, %82 : vector<64x512xf32>
    %84 = arith.addf %80, %83 : vector<64x512xf32>
    %c2_56 = arith.constant 2 : index
    %c3_57 = arith.constant 3 : index
    %85 = memref.load %arg4[%c2_56, %c3_57] : memref<4x17xf32, #tpu.memory_space<smem>>
    %86 = vector.broadcast %85 : f32 to vector<64x512xf32>
    %87 = arith.mulf %5, %86 : vector<64x512xf32>
    %88 = arith.addf %84, %87 : vector<64x512xf32>
    %c3_58 = arith.constant 3 : index
    %c3_59 = arith.constant 3 : index
    %89 = memref.load %arg4[%c3_58, %c3_59] : memref<4x17xf32, #tpu.memory_space<smem>>
    %90 = vector.broadcast %89 : f32 to vector<64x512xf32>
    %91 = arith.mulf %7, %90 : vector<64x512xf32>
    %92 = arith.addf %88, %91 : vector<64x512xf32>
    %c0_60 = arith.constant 0 : index
    %c3_61 = arith.constant 3 : index
    %c0_62 = arith.constant 0 : index
    %c0_63 = arith.constant 0 : index
    %93 = vector.load %arg6[%c0_60, %c3_61, %c0_62, %c0_63] : memref<1x16x64x512xf32, #tpu.memory_space<vmem>>, vector<1x1x64x512xf32>
    %94 = vector.shape_cast %93 : vector<1x1x64x512xf32> to vector<64x512xf32>
    %95 = vector.shape_cast %92 : vector<64x512xf32> to vector<1x1x64x512xf32>
    tpu.vector_store %arg6[%c0_60, %c3_61, %c0_62, %c0_63], %95 {strides = array<i32>} : memref<1x16x64x512xf32, #tpu.memory_space<vmem>>, vector<1x1x64x512xf32>,
    %c0_64 = arith.constant 0 : index
    %c4 = arith.constant 4 : index
    %96 = memref.load %arg4[%c0_64, %c4] : memref<4x17xf32, #tpu.memory_space<smem>>
    %97 = vector.broadcast %96 : f32 to vector<64x512xf32>
    %98 = arith.mulf %1, %97 : vector<64x512xf32>
    %99 = arith.index_cast %arg0 : i32 to index
    %c4_65 = arith.constant 4 : index
    %100 = memref.load %arg5[%99, %c4_65] : memref<2x17xf32, #tpu.memory_space<smem>>
    %101 = vector.broadcast %100 : f32 to vector<64x512xf32>
    %102 = arith.addf %98, %101 : vector<64x512xf32>
    %c1_66 = arith.constant 1 : index
    %c4_67 = arith.constant 4 : index
    %103 = memref.load %arg4[%c1_66, %c4_67] : memref<4x17xf32, #tpu.memory_space<smem>>
    %104 = vector.broadcast %103 : f32 to vector<64x512xf32>
    %105 = arith.mulf %3, %104 : vector<64x512xf32>
    %106 = arith.addf %102, %105 : vector<64x512xf32>
    %c2_68 = arith.constant 2 : index
    %c4_69 = arith.constant 4 : index
    %107 = memref.load %arg4[%c2_68, %c4_69] : memref<4x17xf32, #tpu.memory_space<smem>>
    %108 = vector.broadcast %107 : f32 to vector<64x512xf32>
    %109 = arith.mulf %5, %108 : vector<64x512xf32>
    %110 = arith.addf %106, %109 : vector<64x512xf32>
    %c3_70 = arith.constant 3 : index
    %c4_71 = arith.constant 4 : index
    %111 = memref.load %arg4[%c3_70, %c4_71] : memref<4x17xf32, #tpu.memory_space<smem>>
    %112 = vector.broadcast %111 : f32 to vector<64x512xf32>
    %113 = arith.mulf %7, %112 : vector<64x512xf32>
    %114 = arith.addf %110, %113 : vector<64x512xf32>
    %c0_72 = arith.constant 0 : index
    %c4_73 = arith.constant 4 : index
    %c0_74 = arith.constant 0 : index
    %c0_75 = arith.constant 0 : index
    %115 = vector.load %arg6[%c0_72, %c4_73, %c0_74, %c0_75] : memref<1x16x64x512xf32, #tpu.memory_space<vmem>>, vector<1x1x64x512xf32>
    %116 = vector.shape_cast %115 : vector<1x1x64x512xf32> to vector<64x512xf32>
    %117 = vector.shape_cast %114 : vector<64x512xf32> to vector<1x1x64x512xf32>
    tpu.vector_store %arg6[%c0_72, %c4_73, %c0_74, %c0_75], %117 {strides = array<i32>} : memref<1x16x64x512xf32, #tpu.memory_space<vmem>>, vector<1x1x64x512xf32>,
    %c0_76 = arith.constant 0 : index
    %c5 = arith.constant 5 : index
    %118 = memref.load %arg4[%c0_76, %c5] : memref<4x17xf32, #tpu.memory_space<smem>>
    %119 = vector.broadcast %118 : f32 to vector<64x512xf32>
    %120 = arith.mulf %1, %119 : vector<64x512xf32>
    %121 = arith.index_cast %arg0 : i32 to index
    %c5_77 = arith.constant 5 : index
    %122 = memref.load %arg5[%121, %c5_77] : memref<2x17xf32, #tpu.memory_space<smem>>
    %123 = vector.broadcast %122 : f32 to vector<64x512xf32>
    %124 = arith.addf %120, %123 : vector<64x512xf32>
    %c1_78 = arith.constant 1 : index
    %c5_79 = arith.constant 5 : index
    %125 = memref.load %arg4[%c1_78, %c5_79] : memref<4x17xf32, #tpu.memory_space<smem>>
    %126 = vector.broadcast %125 : f32 to vector<64x512xf32>
    %127 = arith.mulf %3, %126 : vector<64x512xf32>
    %128 = arith.addf %124, %127 : vector<64x512xf32>
    %c2_80 = arith.constant 2 : index
    %c5_81 = arith.constant 5 : index
    %129 = memref.load %arg4[%c2_80, %c5_81] : memref<4x17xf32, #tpu.memory_space<smem>>
    %130 = vector.broadcast %129 : f32 to vector<64x512xf32>
    %131 = arith.mulf %5, %130 : vector<64x512xf32>
    %132 = arith.addf %128, %131 : vector<64x512xf32>
    %c3_82 = arith.constant 3 : index
    %c5_83 = arith.constant 5 : index
    %133 = memref.load %arg4[%c3_82, %c5_83] : memref<4x17xf32, #tpu.memory_space<smem>>
    %134 = vector.broadcast %133 : f32 to vector<64x512xf32>
    %135 = arith.mulf %7, %134 : vector<64x512xf32>
    %136 = arith.addf %132, %135 : vector<64x512xf32>
    %c0_84 = arith.constant 0 : index
    %c5_85 = arith.constant 5 : index
    %c0_86 = arith.constant 0 : index
    %c0_87 = arith.constant 0 : index
    %137 = vector.load %arg6[%c0_84, %c5_85, %c0_86, %c0_87] : memref<1x16x64x512xf32, #tpu.memory_space<vmem>>, vector<1x1x64x512xf32>
    %138 = vector.shape_cast %137 : vector<1x1x64x512xf32> to vector<64x512xf32>
    %139 = vector.shape_cast %136 : vector<64x512xf32> to vector<1x1x64x512xf32>
    tpu.vector_store %arg6[%c0_84, %c5_85, %c0_86, %c0_87], %139 {strides = array<i32>} : memref<1x16x64x512xf32, #tpu.memory_space<vmem>>, vector<1x1x64x512xf32>,
    %c0_88 = arith.constant 0 : index
    %c6 = arith.constant 6 : index
    %140 = memref.load %arg4[%c0_88, %c6] : memref<4x17xf32, #tpu.memory_space<smem>>
    %141 = vector.broadcast %140 : f32 to vector<64x512xf32>
    %142 = arith.mulf %1, %141 : vector<64x512xf32>
    %143 = arith.index_cast %arg0 : i32 to index
    %c6_89 = arith.constant 6 : index
    %144 = memref.load %arg5[%143, %c6_89] : memref<2x17xf32, #tpu.memory_space<smem>>
    %145 = vector.broadcast %144 : f32 to vector<64x512xf32>
    %146 = arith.addf %142, %145 : vector<64x512xf32>
    %c1_90 = arith.constant 1 : index
    %c6_91 = arith.constant 6 : index
    %147 = memref.load %arg4[%c1_90, %c6_91] : memref<4x17xf32, #tpu.memory_space<smem>>
    %148 = vector.broadcast %147 : f32 to vector<64x512xf32>
    %149 = arith.mulf %3, %148 : vector<64x512xf32>
    %150 = arith.addf %146, %149 : vector<64x512xf32>
    %c2_92 = arith.constant 2 : index
    %c6_93 = arith.constant 6 : index
    %151 = memref.load %arg4[%c2_92, %c6_93] : memref<4x17xf32, #tpu.memory_space<smem>>
    %152 = vector.broadcast %151 : f32 to vector<64x512xf32>
    %153 = arith.mulf %5, %152 : vector<64x512xf32>
    %154 = arith.addf %150, %153 : vector<64x512xf32>
    %c3_94 = arith.constant 3 : index
    %c6_95 = arith.constant 6 : index
    %155 = memref.load %arg4[%c3_94, %c6_95] : memref<4x17xf32, #tpu.memory_space<smem>>
    %156 = vector.broadcast %155 : f32 to vector<64x512xf32>
    %157 = arith.mulf %7, %156 : vector<64x512xf32>
    %158 = arith.addf %154, %157 : vector<64x512xf32>
    %c0_96 = arith.constant 0 : index
    %c6_97 = arith.constant 6 : index
    %c0_98 = arith.constant 0 : index
    %c0_99 = arith.constant 0 : index
    %159 = vector.load %arg6[%c0_96, %c6_97, %c0_98, %c0_99] : memref<1x16x64x512xf32, #tpu.memory_space<vmem>>, vector<1x1x64x512xf32>
    %160 = vector.shape_cast %159 : vector<1x1x64x512xf32> to vector<64x512xf32>
    %161 = vector.shape_cast %158 : vector<64x512xf32> to vector<1x1x64x512xf32>
    tpu.vector_store %arg6[%c0_96, %c6_97, %c0_98, %c0_99], %161 {strides = array<i32>} : memref<1x16x64x512xf32, #tpu.memory_space<vmem>>, vector<1x1x64x512xf32>,
    %c0_100 = arith.constant 0 : index
    %c7 = arith.constant 7 : index
    %162 = memref.load %arg4[%c0_100, %c7] : memref<4x17xf32, #tpu.memory_space<smem>>
    %163 = vector.broadcast %162 : f32 to vector<64x512xf32>
    %164 = arith.mulf %1, %163 : vector<64x512xf32>
    %165 = arith.index_cast %arg0 : i32 to index
    %c7_101 = arith.constant 7 : index
    %166 = memref.load %arg5[%165, %c7_101] : memref<2x17xf32, #tpu.memory_space<smem>>
    %167 = vector.broadcast %166 : f32 to vector<64x512xf32>
    %168 = arith.addf %164, %167 : vector<64x512xf32>
    %c1_102 = arith.constant 1 : index
    %c7_103 = arith.constant 7 : index
    %169 = memref.load %arg4[%c1_102, %c7_103] : memref<4x17xf32, #tpu.memory_space<smem>>
    %170 = vector.broadcast %169 : f32 to vector<64x512xf32>
    %171 = arith.mulf %3, %170 : vector<64x512xf32>
    %172 = arith.addf %168, %171 : vector<64x512xf32>
    %c2_104 = arith.constant 2 : index
    %c7_105 = arith.constant 7 : index
    %173 = memref.load %arg4[%c2_104, %c7_105] : memref<4x17xf32, #tpu.memory_space<smem>>
    %174 = vector.broadcast %173 : f32 to vector<64x512xf32>
    %175 = arith.mulf %5, %174 : vector<64x512xf32>
    %176 = arith.addf %172, %175 : vector<64x512xf32>
    %c3_106 = arith.constant 3 : index
    %c7_107 = arith.constant 7 : index
    %177 = memref.load %arg4[%c3_106, %c7_107] : memref<4x17xf32, #tpu.memory_space<smem>>
    %178 = vector.broadcast %177 : f32 to vector<64x512xf32>
    %179 = arith.mulf %7, %178 : vector<64x512xf32>
    %180 = arith.addf %176, %179 : vector<64x512xf32>
    %c0_108 = arith.constant 0 : index
    %c7_109 = arith.constant 7 : index
    %c0_110 = arith.constant 0 : index
    %c0_111 = arith.constant 0 : index
    %181 = vector.load %arg6[%c0_108, %c7_109, %c0_110, %c0_111] : memref<1x16x64x512xf32, #tpu.memory_space<vmem>>, vector<1x1x64x512xf32>
    %182 = vector.shape_cast %181 : vector<1x1x64x512xf32> to vector<64x512xf32>
    %183 = vector.shape_cast %180 : vector<64x512xf32> to vector<1x1x64x512xf32>
    tpu.vector_store %arg6[%c0_108, %c7_109, %c0_110, %c0_111], %183 {strides = array<i32>} : memref<1x16x64x512xf32, #tpu.memory_space<vmem>>, vector<1x1x64x512xf32>,
    %c0_112 = arith.constant 0 : index
    %c8 = arith.constant 8 : index
    %184 = memref.load %arg4[%c0_112, %c8] : memref<4x17xf32, #tpu.memory_space<smem>>
    %185 = vector.broadcast %184 : f32 to vector<64x512xf32>
    %186 = arith.mulf %1, %185 : vector<64x512xf32>
    %187 = arith.index_cast %arg0 : i32 to index
    %c8_113 = arith.constant 8 : index
    %188 = memref.load %arg5[%187, %c8_113] : memref<2x17xf32, #tpu.memory_space<smem>>
    %189 = vector.broadcast %188 : f32 to vector<64x512xf32>
    %190 = arith.addf %186, %189 : vector<64x512xf32>
    %c1_114 = arith.constant 1 : index
    %c8_115 = arith.constant 8 : index
    %191 = memref.load %arg4[%c1_114, %c8_115] : memref<4x17xf32, #tpu.memory_space<smem>>
    %192 = vector.broadcast %191 : f32 to vector<64x512xf32>
    %193 = arith.mulf %3, %192 : vector<64x512xf32>
    %194 = arith.addf %190, %193 : vector<64x512xf32>
    %c2_116 = arith.constant 2 : index
    %c8_117 = arith.constant 8 : index
    %195 = memref.load %arg4[%c2_116, %c8_117] : memref<4x17xf32, #tpu.memory_space<smem>>
    %196 = vector.broadcast %195 : f32 to vector<64x512xf32>
    %197 = arith.mulf %5, %196 : vector<64x512xf32>
    %198 = arith.addf %194, %197 : vector<64x512xf32>
    %c3_118 = arith.constant 3 : index
    %c8_119 = arith.constant 8 : index
    %199 = memref.load %arg4[%c3_118, %c8_119] : memref<4x17xf32, #tpu.memory_space<smem>>
    %200 = vector.broadcast %199 : f32 to vector<64x512xf32>
    %201 = arith.mulf %7, %200 : vector<64x512xf32>
    %202 = arith.addf %198, %201 : vector<64x512xf32>
    %c0_120 = arith.constant 0 : index
    %c8_121 = arith.constant 8 : index
    %c0_122 = arith.constant 0 : index
    %c0_123 = arith.constant 0 : index
    %203 = vector.load %arg6[%c0_120, %c8_121, %c0_122, %c0_123] : memref<1x16x64x512xf32, #tpu.memory_space<vmem>>, vector<1x1x64x512xf32>
    %204 = vector.shape_cast %203 : vector<1x1x64x512xf32> to vector<64x512xf32>
    %205 = vector.shape_cast %202 : vector<64x512xf32> to vector<1x1x64x512xf32>
    tpu.vector_store %arg6[%c0_120, %c8_121, %c0_122, %c0_123], %205 {strides = array<i32>} : memref<1x16x64x512xf32, #tpu.memory_space<vmem>>, vector<1x1x64x512xf32>,
    %c0_124 = arith.constant 0 : index
    %c9 = arith.constant 9 : index
    %206 = memref.load %arg4[%c0_124, %c9] : memref<4x17xf32, #tpu.memory_space<smem>>
    %207 = vector.broadcast %206 : f32 to vector<64x512xf32>
    %208 = arith.mulf %1, %207 : vector<64x512xf32>
    %209 = arith.index_cast %arg0 : i32 to index
    %c9_125 = arith.constant 9 : index
    %210 = memref.load %arg5[%209, %c9_125] : memref<2x17xf32, #tpu.memory_space<smem>>
    %211 = vector.broadcast %210 : f32 to vector<64x512xf32>
    %212 = arith.addf %208, %211 : vector<64x512xf32>
    %c1_126 = arith.constant 1 : index
    %c9_127 = arith.constant 9 : index
    %213 = memref.load %arg4[%c1_126, %c9_127] : memref<4x17xf32, #tpu.memory_space<smem>>
    %214 = vector.broadcast %213 : f32 to vector<64x512xf32>
    %215 = arith.mulf %3, %214 : vector<64x512xf32>
    %216 = arith.addf %212, %215 : vector<64x512xf32>
    %c2_128 = arith.constant 2 : index
    %c9_129 = arith.constant 9 : index
    %217 = memref.load %arg4[%c2_128, %c9_129] : memref<4x17xf32, #tpu.memory_space<smem>>
    %218 = vector.broadcast %217 : f32 to vector<64x512xf32>
    %219 = arith.mulf %5, %218 : vector<64x512xf32>
    %220 = arith.addf %216, %219 : vector<64x512xf32>
    %c3_130 = arith.constant 3 : index
    %c9_131 = arith.constant 9 : index
    %221 = memref.load %arg4[%c3_130, %c9_131] : memref<4x17xf32, #tpu.memory_space<smem>>
    %222 = vector.broadcast %221 : f32 to vector<64x512xf32>
    %223 = arith.mulf %7, %222 : vector<64x512xf32>
    %224 = arith.addf %220, %223 : vector<64x512xf32>
    %c0_132 = arith.constant 0 : index
    %c9_133 = arith.constant 9 : index
    %c0_134 = arith.constant 0 : index
    %c0_135 = arith.constant 0 : index
    %225 = vector.load %arg6[%c0_132, %c9_133, %c0_134, %c0_135] : memref<1x16x64x512xf32, #tpu.memory_space<vmem>>, vector<1x1x64x512xf32>
    %226 = vector.shape_cast %225 : vector<1x1x64x512xf32> to vector<64x512xf32>
    %227 = vector.shape_cast %224 : vector<64x512xf32> to vector<1x1x64x512xf32>
    tpu.vector_store %arg6[%c0_132, %c9_133, %c0_134, %c0_135], %227 {strides = array<i32>} : memref<1x16x64x512xf32, #tpu.memory_space<vmem>>, vector<1x1x64x512xf32>,
    %c0_136 = arith.constant 0 : index
    %c10 = arith.constant 10 : index
    %228 = memref.load %arg4[%c0_136, %c10] : memref<4x17xf32, #tpu.memory_space<smem>>
    %229 = vector.broadcast %228 : f32 to vector<64x512xf32>
    %230 = arith.mulf %1, %229 : vector<64x512xf32>
    %231 = arith.index_cast %arg0 : i32 to index
    %c10_137 = arith.constant 10 : index
    %232 = memref.load %arg5[%231, %c10_137] : memref<2x17xf32, #tpu.memory_space<smem>>
    %233 = vector.broadcast %232 : f32 to vector<64x512xf32>
    %234 = arith.addf %230, %233 : vector<64x512xf32>
    %c1_138 = arith.constant 1 : index
    %c10_139 = arith.constant 10 : index
    %235 = memref.load %arg4[%c1_138, %c10_139] : memref<4x17xf32, #tpu.memory_space<smem>>
    %236 = vector.broadcast %235 : f32 to vector<64x512xf32>
    %237 = arith.mulf %3, %236 : vector<64x512xf32>
    %238 = arith.addf %234, %237 : vector<64x512xf32>
    %c2_140 = arith.constant 2 : index
    %c10_141 = arith.constant 10 : index
    %239 = memref.load %arg4[%c2_140, %c10_141] : memref<4x17xf32, #tpu.memory_space<smem>>
    %240 = vector.broadcast %239 : f32 to vector<64x512xf32>
    %241 = arith.mulf %5, %240 : vector<64x512xf32>
    %242 = arith.addf %238, %241 : vector<64x512xf32>
    %c3_142 = arith.constant 3 : index
    %c10_143 = arith.constant 10 : index
    %243 = memref.load %arg4[%c3_142, %c10_143] : memref<4x17xf32, #tpu.memory_space<smem>>
    %244 = vector.broadcast %243 : f32 to vector<64x512xf32>
    %245 = arith.mulf %7, %244 : vector<64x512xf32>
    %246 = arith.addf %242, %245 : vector<64x512xf32>
    %c0_144 = arith.constant 0 : index
    %c10_145 = arith.constant 10 : index
    %c0_146 = arith.constant 0 : index
    %c0_147 = arith.constant 0 : index
    %247 = vector.load %arg6[%c0_144, %c10_145, %c0_146, %c0_147] : memref<1x16x64x512xf32, #tpu.memory_space<vmem>>, vector<1x1x64x512xf32>
    %248 = vector.shape_cast %247 : vector<1x1x64x512xf32> to vector<64x512xf32>
    %249 = vector.shape_cast %246 : vector<64x512xf32> to vector<1x1x64x512xf32>
    tpu.vector_store %arg6[%c0_144, %c10_145, %c0_146, %c0_147], %249 {strides = array<i32>} : memref<1x16x64x512xf32, #tpu.memory_space<vmem>>, vector<1x1x64x512xf32>,
    %c0_148 = arith.constant 0 : index
    %c11 = arith.constant 11 : index
    %250 = memref.load %arg4[%c0_148, %c11] : memref<4x17xf32, #tpu.memory_space<smem>>
    %251 = vector.broadcast %250 : f32 to vector<64x512xf32>
    %252 = arith.mulf %1, %251 : vector<64x512xf32>
    %253 = arith.index_cast %arg0 : i32 to index
    %c11_149 = arith.constant 11 : index
    %254 = memref.load %arg5[%253, %c11_149] : memref<2x17xf32, #tpu.memory_space<smem>>
    %255 = vector.broadcast %254 : f32 to vector<64x512xf32>
    %256 = arith.addf %252, %255 : vector<64x512xf32>
    %c1_150 = arith.constant 1 : index
    %c11_151 = arith.constant 11 : index
    %257 = memref.load %arg4[%c1_150, %c11_151] : memref<4x17xf32, #tpu.memory_space<smem>>
    %258 = vector.broadcast %257 : f32 to vector<64x512xf32>
    %259 = arith.mulf %3, %258 : vector<64x512xf32>
    %260 = arith.addf %256, %259 : vector<64x512xf32>
    %c2_152 = arith.constant 2 : index
    %c11_153 = arith.constant 11 : index
    %261 = memref.load %arg4[%c2_152, %c11_153] : memref<4x17xf32, #tpu.memory_space<smem>>
    %262 = vector.broadcast %261 : f32 to vector<64x512xf32>
    %263 = arith.mulf %5, %262 : vector<64x512xf32>
    %264 = arith.addf %260, %263 : vector<64x512xf32>
    %c3_154 = arith.constant 3 : index
    %c11_155 = arith.constant 11 : index
    %265 = memref.load %arg4[%c3_154, %c11_155] : memref<4x17xf32, #tpu.memory_space<smem>>
    %266 = vector.broadcast %265 : f32 to vector<64x512xf32>
    %267 = arith.mulf %7, %266 : vector<64x512xf32>
    %268 = arith.addf %264, %267 : vector<64x512xf32>
    %c0_156 = arith.constant 0 : index
    %c11_157 = arith.constant 11 : index
    %c0_158 = arith.constant 0 : index
    %c0_159 = arith.constant 0 : index
    %269 = vector.load %arg6[%c0_156, %c11_157, %c0_158, %c0_159] : memref<1x16x64x512xf32, #tpu.memory_space<vmem>>, vector<1x1x64x512xf32>
    %270 = vector.shape_cast %269 : vector<1x1x64x512xf32> to vector<64x512xf32>
    %271 = vector.shape_cast %268 : vector<64x512xf32> to vector<1x1x64x512xf32>
    tpu.vector_store %arg6[%c0_156, %c11_157, %c0_158, %c0_159], %271 {strides = array<i32>} : memref<1x16x64x512xf32, #tpu.memory_space<vmem>>, vector<1x1x64x512xf32>,
    %c0_160 = arith.constant 0 : index
    %c12 = arith.constant 12 : index
    %272 = memref.load %arg4[%c0_160, %c12] : memref<4x17xf32, #tpu.memory_space<smem>>
    %273 = vector.broadcast %272 : f32 to vector<64x512xf32>
    %274 = arith.mulf %1, %273 : vector<64x512xf32>
    %275 = arith.index_cast %arg0 : i32 to index
    %c12_161 = arith.constant 12 : index
    %276 = memref.load %arg5[%275, %c12_161] : memref<2x17xf32, #tpu.memory_space<smem>>
    %277 = vector.broadcast %276 : f32 to vector<64x512xf32>
    %278 = arith.addf %274, %277 : vector<64x512xf32>
    %c1_162 = arith.constant 1 : index
    %c12_163 = arith.constant 12 : index
    %279 = memref.load %arg4[%c1_162, %c12_163] : memref<4x17xf32, #tpu.memory_space<smem>>
    %280 = vector.broadcast %279 : f32 to vector<64x512xf32>
    %281 = arith.mulf %3, %280 : vector<64x512xf32>
    %282 = arith.addf %278, %281 : vector<64x512xf32>
    %c2_164 = arith.constant 2 : index
    %c12_165 = arith.constant 12 : index
    %283 = memref.load %arg4[%c2_164, %c12_165] : memref<4x17xf32, #tpu.memory_space<smem>>
    %284 = vector.broadcast %283 : f32 to vector<64x512xf32>
    %285 = arith.mulf %5, %284 : vector<64x512xf32>
    %286 = arith.addf %282, %285 : vector<64x512xf32>
    %c3_166 = arith.constant 3 : index
    %c12_167 = arith.constant 12 : index
    %287 = memref.load %arg4[%c3_166, %c12_167] : memref<4x17xf32, #tpu.memory_space<smem>>
    %288 = vector.broadcast %287 : f32 to vector<64x512xf32>
    %289 = arith.mulf %7, %288 : vector<64x512xf32>
    %290 = arith.addf %286, %289 : vector<64x512xf32>
    %c0_168 = arith.constant 0 : index
    %c12_169 = arith.constant 12 : index
    %c0_170 = arith.constant 0 : index
    %c0_171 = arith.constant 0 : index
    %291 = vector.load %arg6[%c0_168, %c12_169, %c0_170, %c0_171] : memref<1x16x64x512xf32, #tpu.memory_space<vmem>>, vector<1x1x64x512xf32>
    %292 = vector.shape_cast %291 : vector<1x1x64x512xf32> to vector<64x512xf32>
    %293 = vector.shape_cast %290 : vector<64x512xf32> to vector<1x1x64x512xf32>
    tpu.vector_store %arg6[%c0_168, %c12_169, %c0_170, %c0_171], %293 {strides = array<i32>} : memref<1x16x64x512xf32, #tpu.memory_space<vmem>>, vector<1x1x64x512xf32>,
    %c0_172 = arith.constant 0 : index
    %c13 = arith.constant 13 : index
    %294 = memref.load %arg4[%c0_172, %c13] : memref<4x17xf32, #tpu.memory_space<smem>>
    %295 = vector.broadcast %294 : f32 to vector<64x512xf32>
    %296 = arith.mulf %1, %295 : vector<64x512xf32>
    %297 = arith.index_cast %arg0 : i32 to index
    %c13_173 = arith.constant 13 : index
    %298 = memref.load %arg5[%297, %c13_173] : memref<2x17xf32, #tpu.memory_space<smem>>
    %299 = vector.broadcast %298 : f32 to vector<64x512xf32>
    %300 = arith.addf %296, %299 : vector<64x512xf32>
    %c1_174 = arith.constant 1 : index
    %c13_175 = arith.constant 13 : index
    %301 = memref.load %arg4[%c1_174, %c13_175] : memref<4x17xf32, #tpu.memory_space<smem>>
    %302 = vector.broadcast %301 : f32 to vector<64x512xf32>
    %303 = arith.mulf %3, %302 : vector<64x512xf32>
    %304 = arith.addf %300, %303 : vector<64x512xf32>
    %c2_176 = arith.constant 2 : index
    %c13_177 = arith.constant 13 : index
    %305 = memref.load %arg4[%c2_176, %c13_177] : memref<4x17xf32, #tpu.memory_space<smem>>
    %306 = vector.broadcast %305 : f32 to vector<64x512xf32>
    %307 = arith.mulf %5, %306 : vector<64x512xf32>
    %308 = arith.addf %304, %307 : vector<64x512xf32>
    %c3_178 = arith.constant 3 : index
    %c13_179 = arith.constant 13 : index
    %309 = memref.load %arg4[%c3_178, %c13_179] : memref<4x17xf32, #tpu.memory_space<smem>>
    %310 = vector.broadcast %309 : f32 to vector<64x512xf32>
    %311 = arith.mulf %7, %310 : vector<64x512xf32>
    %312 = arith.addf %308, %311 : vector<64x512xf32>
    %c0_180 = arith.constant 0 : index
    %c13_181 = arith.constant 13 : index
    %c0_182 = arith.constant 0 : index
    %c0_183 = arith.constant 0 : index
    %313 = vector.load %arg6[%c0_180, %c13_181, %c0_182, %c0_183] : memref<1x16x64x512xf32, #tpu.memory_space<vmem>>, vector<1x1x64x512xf32>
    %314 = vector.shape_cast %313 : vector<1x1x64x512xf32> to vector<64x512xf32>
    %315 = vector.shape_cast %312 : vector<64x512xf32> to vector<1x1x64x512xf32>
    tpu.vector_store %arg6[%c0_180, %c13_181, %c0_182, %c0_183], %315 {strides = array<i32>} : memref<1x16x64x512xf32, #tpu.memory_space<vmem>>, vector<1x1x64x512xf32>,
    %c0_184 = arith.constant 0 : index
    %c14 = arith.constant 14 : index
    %316 = memref.load %arg4[%c0_184, %c14] : memref<4x17xf32, #tpu.memory_space<smem>>
    %317 = vector.broadcast %316 : f32 to vector<64x512xf32>
    %318 = arith.mulf %1, %317 : vector<64x512xf32>
    %319 = arith.index_cast %arg0 : i32 to index
    %c14_185 = arith.constant 14 : index
    %320 = memref.load %arg5[%319, %c14_185] : memref<2x17xf32, #tpu.memory_space<smem>>
    %321 = vector.broadcast %320 : f32 to vector<64x512xf32>
    %322 = arith.addf %318, %321 : vector<64x512xf32>
    %c1_186 = arith.constant 1 : index
    %c14_187 = arith.constant 14 : index
    %323 = memref.load %arg4[%c1_186, %c14_187] : memref<4x17xf32, #tpu.memory_space<smem>>
    %324 = vector.broadcast %323 : f32 to vector<64x512xf32>
    %325 = arith.mulf %3, %324 : vector<64x512xf32>
    %326 = arith.addf %322, %325 : vector<64x512xf32>
    %c2_188 = arith.constant 2 : index
    %c14_189 = arith.constant 14 : index
    %327 = memref.load %arg4[%c2_188, %c14_189] : memref<4x17xf32, #tpu.memory_space<smem>>
    %328 = vector.broadcast %327 : f32 to vector<64x512xf32>
    %329 = arith.mulf %5, %328 : vector<64x512xf32>
    %330 = arith.addf %326, %329 : vector<64x512xf32>
    %c3_190 = arith.constant 3 : index
    %c14_191 = arith.constant 14 : index
    %331 = memref.load %arg4[%c3_190, %c14_191] : memref<4x17xf32, #tpu.memory_space<smem>>
    %332 = vector.broadcast %331 : f32 to vector<64x512xf32>
    %333 = arith.mulf %7, %332 : vector<64x512xf32>
    %334 = arith.addf %330, %333 : vector<64x512xf32>
    %c0_192 = arith.constant 0 : index
    %c14_193 = arith.constant 14 : index
    %c0_194 = arith.constant 0 : index
    %c0_195 = arith.constant 0 : index
    %335 = vector.load %arg6[%c0_192, %c14_193, %c0_194, %c0_195] : memref<1x16x64x512xf32, #tpu.memory_space<vmem>>, vector<1x1x64x512xf32>
    %336 = vector.shape_cast %335 : vector<1x1x64x512xf32> to vector<64x512xf32>
    %337 = vector.shape_cast %334 : vector<64x512xf32> to vector<1x1x64x512xf32>
    tpu.vector_store %arg6[%c0_192, %c14_193, %c0_194, %c0_195], %337 {strides = array<i32>} : memref<1x16x64x512xf32, #tpu.memory_space<vmem>>, vector<1x1x64x512xf32>,
    %c0_196 = arith.constant 0 : index
    %c15 = arith.constant 15 : index
    %338 = memref.load %arg4[%c0_196, %c15] : memref<4x17xf32, #tpu.memory_space<smem>>
    %339 = vector.broadcast %338 : f32 to vector<64x512xf32>
    %340 = arith.mulf %1, %339 : vector<64x512xf32>
    %341 = arith.index_cast %arg0 : i32 to index
    %c15_197 = arith.constant 15 : index
    %342 = memref.load %arg5[%341, %c15_197] : memref<2x17xf32, #tpu.memory_space<smem>>
    %343 = vector.broadcast %342 : f32 to vector<64x512xf32>
    %344 = arith.addf %340, %343 : vector<64x512xf32>
    %c1_198 = arith.constant 1 : index
    %c15_199 = arith.constant 15 : index
    %345 = memref.load %arg4[%c1_198, %c15_199] : memref<4x17xf32, #tpu.memory_space<smem>>
    %346 = vector.broadcast %345 : f32 to vector<64x512xf32>
    %347 = arith.mulf %3, %346 : vector<64x512xf32>
    %348 = arith.addf %344, %347 : vector<64x512xf32>
    %c2_200 = arith.constant 2 : index
    %c15_201 = arith.constant 15 : index
    %349 = memref.load %arg4[%c2_200, %c15_201] : memref<4x17xf32, #tpu.memory_space<smem>>
    %350 = vector.broadcast %349 : f32 to vector<64x512xf32>
    %351 = arith.mulf %5, %350 : vector<64x512xf32>
    %352 = arith.addf %348, %351 : vector<64x512xf32>
    %c3_202 = arith.constant 3 : index
    %c15_203 = arith.constant 15 : index
    %353 = memref.load %arg4[%c3_202, %c15_203] : memref<4x17xf32, #tpu.memory_space<smem>>
    %354 = vector.broadcast %353 : f32 to vector<64x512xf32>
    %355 = arith.mulf %7, %354 : vector<64x512xf32>
    %356 = arith.addf %352, %355 : vector<64x512xf32>
    %c0_204 = arith.constant 0 : index
    %c15_205 = arith.constant 15 : index
    %c0_206 = arith.constant 0 : index
    %c0_207 = arith.constant 0 : index
    %357 = vector.load %arg6[%c0_204, %c15_205, %c0_206, %c0_207] : memref<1x16x64x512xf32, #tpu.memory_space<vmem>>, vector<1x1x64x512xf32>
    %358 = vector.shape_cast %357 : vector<1x1x64x512xf32> to vector<64x512xf32>
    %359 = vector.shape_cast %356 : vector<64x512xf32> to vector<1x1x64x512xf32>
    tpu.vector_store %arg6[%c0_204, %c15_205, %c0_206, %c0_207], %359 {strides = array<i32>} : memref<1x16x64x512xf32, #tpu.memory_space<vmem>>, vector<1x1x64x512xf32>,
    %c0_208 = arith.constant 0 : index
    %c16 = arith.constant 16 : index
    %360 = memref.load %arg4[%c0_208, %c16] : memref<4x17xf32, #tpu.memory_space<smem>>
    %361 = vector.broadcast %360 : f32 to vector<64x512xf32>
    %362 = arith.mulf %1, %361 : vector<64x512xf32>
    %363 = arith.index_cast %arg0 : i32 to index
    %c16_209 = arith.constant 16 : index
    %364 = memref.load %arg5[%363, %c16_209] : memref<2x17xf32, #tpu.memory_space<smem>>
    %365 = vector.broadcast %364 : f32 to vector<64x512xf32>
    %366 = arith.addf %362, %365 : vector<64x512xf32>
    %c1_210 = arith.constant 1 : index
    %c16_211 = arith.constant 16 : index
    %367 = memref.load %arg4[%c1_210, %c16_211] : memref<4x17xf32, #tpu.memory_space<smem>>
    %368 = vector.broadcast %367 : f32 to vector<64x512xf32>
    %369 = arith.mulf %3, %368 : vector<64x512xf32>
    %370 = arith.addf %366, %369 : vector<64x512xf32>
    %c2_212 = arith.constant 2 : index
    %c16_213 = arith.constant 16 : index
    %371 = memref.load %arg4[%c2_212, %c16_213] : memref<4x17xf32, #tpu.memory_space<smem>>
    %372 = vector.broadcast %371 : f32 to vector<64x512xf32>
    %373 = arith.mulf %5, %372 : vector<64x512xf32>
    %374 = arith.addf %370, %373 : vector<64x512xf32>
    %c3_214 = arith.constant 3 : index
    %c16_215 = arith.constant 16 : index
    %375 = memref.load %arg4[%c3_214, %c16_215] : memref<4x17xf32, #tpu.memory_space<smem>>
    %376 = vector.broadcast %375 : f32 to vector<64x512xf32>
    %377 = arith.mulf %7, %376 : vector<64x512xf32>
    %378 = arith.addf %374, %377 : vector<64x512xf32>
    %c0_216 = arith.constant 0 : index
    %c0_217 = arith.constant 0 : index
    %c0_218 = arith.constant 0 : index
    %c0_219 = arith.constant 0 : index
    %379 = vector.load %arg7[%c0_216, %c0_217, %c0_218, %c0_219] : memref<1x1x64x512xf32, #tpu.memory_space<vmem>>, vector<1x1x64x512xf32>
    %380 = vector.shape_cast %379 : vector<1x1x64x512xf32> to vector<64x512xf32>
    %381 = vector.shape_cast %378 : vector<64x512xf32> to vector<1x1x64x512xf32>
    tpu.vector_store %arg7[%c0_216, %c0_217, %c0_218, %c0_219], %381 {strides = array<i32>} : memref<1x1x64x512xf32, #tpu.memory_space<vmem>>, vector<1x1x64x512xf32>,
    return
  }
  func.func @transform_0(%arg0: i32, %arg1: i32) -> (i32, i32, i32, i32) {
    %c0_i32 = arith.constant 0 : i32
    %c0_i32_0 = arith.constant 0 : i32
    %c0_i32_1 = arith.constant 0 : i32
    return %arg0, %c0_i32, %arg1, %c0_i32_0 : i32, i32, i32, i32
  }
  func.func @transform_1(%arg0: i32, %arg1: i32) -> (i32, i32, i32, i32) {
    %c0_i32 = arith.constant 0 : i32
    %c0_i32_0 = arith.constant 0 : i32
    %c0_i32_1 = arith.constant 0 : i32
    return %arg0, %c0_i32, %arg1, %c0_i32_0 : i32, i32, i32, i32
  }
  func.func @transform_2(%arg0: i32, %arg1: i32) -> (i32, i32) {
    %c0_i32 = arith.constant 0 : i32
    %c0_i32_0 = arith.constant 0 : i32
    %c0_i32_1 = arith.constant 0 : i32
    return %c0_i32, %c0_i32_0 : i32, i32
  }
  func.func @transform_3(%arg0: i32, %arg1: i32) -> (i32, i32) {
    %c0_i32 = arith.constant 0 : i32
    %c0_i32_0 = arith.constant 0 : i32
    %c0_i32_1 = arith.constant 0 : i32
    return %c0_i32, %c0_i32_0 : i32, i32
  }
  func.func @transform_4(%arg0: i32, %arg1: i32) -> (i32, i32, i32, i32) {
    %c0_i32 = arith.constant 0 : i32
    %c0_i32_0 = arith.constant 0 : i32
    %c0_i32_1 = arith.constant 0 : i32
    return %arg0, %c0_i32, %arg1, %c0_i32_0 : i32, i32, i32, i32
  }
  func.func @transform_5(%arg0: i32, %arg1: i32) -> (i32, i32, i32, i32) {
    %c0_i32 = arith.constant 0 : i32
    %c0_i32_0 = arith.constant 0 : i32
    %c0_i32_1 = arith.constant 0 : i32
    return %arg0, %c0_i32, %arg1, %c0_i32_0 : i32, i32, i32, i32
  }
}

</mosaic_0001>

<llo_original>
// kernel: tpu_custom_call.1
$region0: #{tpu_custom_call.1}
  #allocation0 [shape = 'u32[]', space=smem, size = 0x4, offset = 0x4, fixed_abs, tag = 'smem constant byte address 0x4 - core index']
  #allocation1 [shape = 'u32[144,128]{1,0:T(1,128)}', space=vmem, size = 0x12000, scoped, tag = 'internal scratch']
  #allocation14 [shape = 's32[]', space=sflag, size = 0x4, offset = 0, fixed_abs, tag = 'sflag constant byte address 0x0 - dummy sync flag']
  #allocation16 [shape = 's32[]', space=sflag, size = 0x4, offset = 0, fixed_abs, tag = 'sflag constant byte address 0x0 - dummy sync flag']
  %s0 = inlined_call_operand.hbm [shape: f32[2,1,128,512], index: 0, kind: input, shape index: {}]
  %s1 = inlined_call_operand.hbm [shape: f32[2,3,128,512], index: 1, kind: input, shape index: {}]
  %s2 = inlined_call_operand.hbm [shape: f32[4,17], index: 2, kind: input, shape index: {}]
  %s3 = inlined_call_operand.hbm [shape: f32[2,17], index: 3, kind: input, shape index: {}]
  %s4 = inlined_call_operand.hbm [shape: f32[2,16,128,512], index: 4, kind: output, shape index: {0}]
  %s5 = inlined_call_operand.hbm [shape: f32[2,1,128,512], index: 5, kind: output, shape index: {1}]
  %6 = xla_tuple %s4, %s5
  %s7 = sld [smem:[#allocation0]]
  $region73: #{tpu_custom_call.1} parent=0
    _
  %s9 = ssub.s32 1, %s7
  %s10 = scalar_select 0, %s9, %s7
  $region1: #{tpu_custom_call.1} parent=0
    #allocation2 [shape = 'u8[262144]{0}', space=vmem, size = 0x40000, scoped, tag = 'input window, operand 0']
    #allocation3 [shape = 's32[2]{0}', space=sflag, size = 0x8, scoped, tag = 'scoped memory for tpu_custom_call.1']
    #allocation4 [shape = 's32[2]{0}', space=sflag, size = 0x8, scoped, tag = 'scoped memory for tpu_custom_call.1']
    #allocation5 [shape = 's32[2]{0}', space=sflag, size = 0x8, scoped, tag = 'scoped memory for tpu_custom_call.1']
    #allocation6 [shape = 'u8[786432]{0}', space=vmem, size = 0xc0000, scoped, tag = 'input window, operand 1']
    #allocation7 [shape = 's32[2]{0}', space=sflag, size = 0x8, scoped, tag = 'scoped memory for tpu_custom_call.1']
    #allocation8 [shape = 'u8[2048]{0}', space=smem, size = 0x800, scoped, tag = 'input window, operand 2, single buffered']
    #allocation9 [shape = 'u8[1024]{0}', space=smem, size = 0x400, scoped, tag = 'input window, operand 3, single buffered']
    #allocation10 [shape = 's32[1]{0}', space=sflag, size = 0x4, scoped, tag = 'scoped memory for tpu_custom_call.1']
    #allocation11 [shape = 'u8[4194304]{0}', space=vmem, size = 0x400000, scoped, tag = 'output window, operand 0']
    #allocation12 [shape = 'u8[262144]{0}', space=vmem, size = 0x40000, scoped, tag = 'output window, operand 1']
    #allocation13 [shape = 's32[2]{0}', space=sflag, size = 0x8, scoped, tag = 'scoped memory for tpu_custom_call.1']
    %11 = vsyncpa [#allocation3], 0
    %s12 = scalar_lea.sflag [#allocation3], 1
    %13 = vsyncpa %s12, 0
    %14 = vsyncpa [#allocation7], 0
    %s15 = scalar_lea.sflag [#allocation7], 1
    %16 = vsyncpa %s15, 0
    %17 = vsyncpa [#allocation5], 0
    %18 = vsyncpa [#allocation10], 0
    %19 = vsyncpa [#allocation4], 0
    %s20 = scalar_lea.sflag [#allocation4], 1
    %21 = vsyncpa %s20, 0
    %22 = vsyncpa [#allocation13], 0
    %s23 = scalar_lea.sflag [#allocation13], 1
    %24 = vsyncpa %s23, 0
    loop: start=0, step=1, limit=6
    $region2: #{tpu_custom_call.1} parent=1 // loop_pre_header
      _
    $region3: #{tpu_custom_call.1} parent=1 // loop_header
      %s26 = sphi 0, %s30
      %p27 = scmp.ge.s32.totalorder %s26, 6
      %s33 = sphi 0, %s45
      %s34 = sphi 0, %s41
      %s35 = sphi 0, %s33
      %s36 = sphi 0, %s34
      %s37 = sphi 0, %s35
      %s38 = sphi 0, %s36
      %s50 = sphi 0, %s52
      %s53 = sphi 0, %s50
      %s54 = sphi 0, %s53
      %s70 = sphi 0, %s54
      %s78 = sphi 0, %s80
      %s81 = sphi 0, %s78
      %s82 = sphi 0, %s81
      %s98 = sphi 0, %s82
      %s102 = sphi 0, %s102
      %s104 = sphi 0, %s102
      %s105 = sphi 0, %s104
      %s119 = sphi 0, %s105
      %s123 = sphi 0, %s123
      %s125 = sphi 0, %s123
      %s126 = sphi 0, %s125
      %s140 = sphi 0, %s126
      %s148 = sphi 0, %s150
      %s151 = sphi 0, %s148
      %s152 = sphi 0, %s151
      %s168 = sphi 0, %s152
      %s176 = sphi 0, %s178
      %s179 = sphi 0, %s176
      %s180 = sphi 0, %s179
      %s196 = sphi 0, %s180
    $region4: #{tpu_custom_call.1} parent=1 // loop_header_branch
      %29 = sbr.rel (%p27) target = $region8
    $region5: #{tpu_custom_call.1} parent=1 // loop_body
      %s31 = ssub.s32 %s26, 1
      %s32 = ssub.s32 %s26, 2
      %s39 = sadd.s32 1, %s34
      %p40 = scmp.ge.s32.totalorder %s39, 2
      %s41 = scalar_select %p40, 0, %s39
      %s42 = sadd.s32 1, %s33
      %s43 = scalar_select %p40, %s42, %s33
      %p44 = scmp.ge.s32.totalorder %s43, 2
      %s45 = scalar_select %p44, 0, %s43
      %s46 = ssub.s32 %s33, %s45
      %s47 = ssub.s32 %s34, %s41
      %s48 = sor.u32 %s46, %s47
      %p49 = scmp.eq.s32.totalorder %s48, 0
      %s51 = sadd.s32 %s50, 1
      %s52 = scalar_select %p49, %s50, %s51
      %p55 = pneg %p49
      %p56 = scmp.eq.s32.totalorder %s26, 3
      %p57 = por %p55, %p56
      %p58 = scmp.ne.s32.totalorder %s50, %s53
      %p59 = scmp.eq.s32.totalorder %s26, 0
      %p60 = por %p58, %p59
      %p61 = scmp.ne.s32.totalorder %s50, %s53
      %p62 = scmp.eq.s32.totalorder %s31, 3
      %p63 = por %p61, %p62
      %p64 = scmp.ne.s32.totalorder %s53, %s54
      %p65 = scmp.eq.s32.totalorder %s31, 0
      %p66 = por %p64, %p65
      %p67 = scmp.ne.s32.totalorder %s53, %s54
      %p68 = scmp.eq.s32.totalorder %s32, 3
      %p69 = por %p67, %p68
      %p71 = scmp.ne.s32.totalorder %s54, %s70
      %p72 = scmp.eq.s32.totalorder %s32, 0
      %p73 = por %p71, %p72
      %s74 = ssub.s32 %s33, %s45
      %s75 = ssub.s32 %s34, %s41
      %s76 = sor.u32 %s74, %s75
      %p77 = scmp.eq.s32.totalorder %s76, 0
      %s79 = sadd.s32 %s78, 1
      %s80 = scalar_select %p77, %s78, %s79
      %p83 = pneg %p77
      %p84 = scmp.eq.s32.totalorder %s26, 3
      %p85 = por %p83, %p84
      %p86 = scmp.ne.s32.totalorder %s78, %s81
      %p87 = scmp.eq.s32.totalorder %s26, 0
      %p88 = por %p86, %p87
      %p89 = scmp.ne.s32.totalorder %s78, %s81
      %p90 = scmp.eq.s32.totalorder %s31, 3
      %p91 = por %p89, %p90
      %p92 = scmp.ne.s32.totalorder %s81, %s82
      %p93 = scmp.eq.s32.totalorder %s31, 0
      %p94 = por %p92, %p93
      %p95 = scmp.ne.s32.totalorder %s81, %s82
      %p96 = scmp.eq.s32.totalorder %s32, 3
      %p97 = por %p95, %p96
      %p99 = scmp.ne.s32.totalorder %s82, %s98
      %p100 = scmp.eq.s32.totalorder %s32, 0
      %p101 = por %p99, %p100
      %s103 = sadd.s32 %s102, 1
      %p106 = scmp.eq.s32.totalorder %s26, 3
      %p107 = scmp.ne.s32.totalorder %s102, %s104
      %p108 = scmp.eq.s32.totalorder %s26, 0
      %p109 = por %p107, %p108
      %p110 = scmp.ne.s32.totalorder %s102, %s104
      %p111 = scmp.eq.s32.totalorder %s31, 3
      %p112 = por %p110, %p111
      %p113 = scmp.ne.s32.totalorder %s104, %s105
      %p114 = scmp.eq.s32.totalorder %s31, 0
      %p115 = por %p113, %p114
      %p116 = scmp.ne.s32.totalorder %s104, %s105
      %p117 = scmp.eq.s32.totalorder %s32, 3
      %p118 = por %p116, %p117
      %p120 = scmp.ne.s32.totalorder %s105, %s119
      %p121 = scmp.eq.s32.totalorder %s32, 0
      %p122 = por %p120, %p121
      %s124 = sadd.s32 %s123, 1
      %p127 = scmp.eq.s32.totalorder %s26, 3
      %p128 = scmp.ne.s32.totalorder %s123, %s125
      %p129 = scmp.eq.s32.totalorder %s26, 0
      %p130 = por %p128, %p129
      %p131 = scmp.ne.s32.totalorder %s123, %s125
      %p132 = scmp.eq.s32.totalorder %s31, 3
      %p133 = por %p131, %p132
      %p134 = scmp.ne.s32.totalorder %s125, %s126
      %p135 = scmp.eq.s32.totalorder %s31, 0
      %p136 = por %p134, %p135
      %p137 = scmp.ne.s32.totalorder %s125, %s126
      %p138 = scmp.eq.s32.totalorder %s32, 3
      %p139 = por %p137, %p138
      %p141 = scmp.ne.s32.totalorder %s126, %s140
      %p142 = scmp.eq.s32.totalorder %s32, 0
      %p143 = por %p141, %p142
      %s144 = ssub.s32 %s33, %s45
      %s145 = ssub.s32 %s34, %s41
      %s146 = sor.u32 %s144, %s145
      %p147 = scmp.eq.s32.totalorder %s146, 0
      %s149 = sadd.s32 %s148, 1
      %s150 = scalar_select %p147, %s148, %s149
      %p153 = pneg %p147
      %p154 = scmp.eq.s32.totalorder %s26, 3
      %p155 = por %p153, %p154
      %p156 = scmp.ne.s32.totalorder %s148, %s151
      %p157 = scmp.eq.s32.totalorder %s26, 0
      %p158 = por %p156, %p157
      %p159 = scmp.ne.s32.totalorder %s148, %s151
      %p160 = scmp.eq.s32.totalorder %s31, 3
      %p161 = por %p159, %p160
      %p162 = scmp.ne.s32.totalorder %s151, %s152
      %p163 = scmp.eq.s32.totalorder %s31, 0
      %p164 = por %p162, %p163
      %p165 = scmp.ne.s32.totalorder %s151, %s152
      %p166 = scmp.eq.s32.totalorder %s32, 3
      %p167 = por %p165, %p166
      %p169 = scmp.ne.s32.totalorder %s152, %s168
      %p170 = scmp.eq.s32.totalorder %s32, 0
      %p171 = por %p169, %p170
      %s172 = ssub.s32 %s33, %s45
      %s173 = ssub.s32 %s34, %s41
      %s174 = sor.u32 %s172, %s173
      %p175 = scmp.eq.s32.totalorder %s174, 0
      %s177 = sadd.s32 %s176, 1
      %s178 = scalar_select %p175, %s176, %s177
      %p181 = pneg %p175
      %p182 = scmp.eq.s32.totalorder %s26, 3
      %p183 = por %p181, %p182
      %p184 = scmp.ne.s32.totalorder %s176, %s179
      %p185 = scmp.eq.s32.totalorder %s26, 0
      %p186 = por %p184, %p185
      %p187 = scmp.ne.s32.totalorder %s176, %s179
      %p188 = scmp.eq.s32.totalorder %s31, 3
      %p189 = por %p187, %p188
      %p190 = scmp.ne.s32.totalorder %s179, %s180
      %p191 = scmp.eq.s32.totalorder %s31, 0
      %p192 = por %p190, %p191
      %p193 = scmp.ne.s32.totalorder %s179, %s180
      %p194 = scmp.eq.s32.totalorder %s32, 3
      %p195 = por %p193, %p194
      %p197 = scmp.ne.s32.totalorder %s180, %s196
      %p198 = scmp.eq.s32.totalorder %s32, 0
      %p199 = por %p197, %p198
      %p200 = scmp.le.s32.totalorder 1, %s26
      %p201 = scmp.lt.s32.totalorder %s26, 5
      %p202 = pnand %p200, %p201
      %p203 = pneg %p202
      // Predicated region
      $region9: #{tpu_custom_call.1} parent=5 // pred_check
        _
      $region10: #{tpu_custom_call.1} parent=5 // pred_check_branch
        %205 = sbr.rel (%p202) target = $region12
      $region11: #{tpu_custom_call.1} parent=5 // pred_region
        %s206 = ssub.s32 %s26, 1
        // Predicated region
        $region13: #{tpu_custom_call.1} parent=11 // pred_check
          %p207 = pneg %p115
        $region14: #{tpu_custom_call.1} parent=11 // pred_check_branch
          %209 = sbr.rel (%p207) target = $region16
        $region15: #{tpu_custom_call.1} parent=11 // pred_region
          %s211 = ssub.s32 64, 64
          %212 = vsyncadd [#allocation5], %s211
          %215 = dma.hbm_to_smem %s2, 64, [#allocation8], [#allocation5]
        $region16: #{tpu_custom_call.1} parent=11 // pred_fallthru
          _
        // Predicated region
        $region17: #{tpu_custom_call.1} parent=11 // pred_check
          %p216 = pneg %p136
        $region18: #{tpu_custom_call.1} parent=11 // pred_check_branch
          %218 = sbr.rel (%p216) target = $region20
        $region19: #{tpu_custom_call.1} parent=11 // pred_region
          %s220 = ssub.s32 32, 32
          %221 = vsyncadd [#allocation10], %s220
          %224 = dma.hbm_to_smem %s3, 32, [#allocation9], [#allocation10]
        $region20: #{tpu_custom_call.1} parent=11 // pred_fallthru
          _
      $region12: #{tpu_custom_call.1} parent=5 // pred_fallthru
        _
      %p225 = scmp.lt.s32.totalorder %s26, 4
      // Predicated region
      $region21: #{tpu_custom_call.1} parent=5 // pred_check
        %p226 = pneg %p225
      $region22: #{tpu_custom_call.1} parent=5 // pred_check_branch
        %228 = sbr.rel (%p226) target = $region24
      $region23: #{tpu_custom_call.1} parent=5 // pred_region
        // Predicated region
        $region25: #{tpu_custom_call.1} parent=23 // pred_check
          %p229 = pneg %p60
        $region26: #{tpu_custom_call.1} parent=23 // pred_check_branch
          %231 = sbr.rel (%p229) target = $region28
        $region27: #{tpu_custom_call.1} parent=23 // pred_region
          %s232 = sand.u32 %s50, 1
          %s233 = scalar_lea.sflag [#allocation3], %s232
          %s234 = sand.u32 %s50, 1
          %s235 = smul.addr %s234, 256
          %s236 = scalar_lea.vmem [#allocation2], %s235
          %s237 = smul.u32 8, %s34
          %s239 = ssub.s32 4096, 4096
          %240 = vsyncadd %s233, %s239
          %s241 = smul.addr %s237, 4
          %s242 = smul.addr %s33, 64
          %s243 = sadd.s32 %s241, %s242
          %s244 = smul.addr %s243, 128
          %s245 = scalar_lea.hbm %s0, %s244
          %s246 = sshll.u32 %s236, 4
          %s247 = int_to_ptr.vmem [resolvable:$true] %s246
          %252 = dma.hbm_to_vmem [thread:$0]  %s245, 4096, %s247, %s233, 512, 512, 32
        $region28: #{tpu_custom_call.1} parent=23 // pred_fallthru
          _
        // Predicated region
        $region29: #{tpu_custom_call.1} parent=23 // pred_check
          %p253 = pneg %p88
        $region30: #{tpu_custom_call.1} parent=23 // pred_check_branch
          %255 = sbr.rel (%p253) target = $region32
        $region31: #{tpu_custom_call.1} parent=23 // pred_region
          #allocation15 [shape = 'u32[6]{0}', space=smem, size = 0x18, scoped, tag = 'DMA stride descriptor']
          %s256 = sand.u32 %s78, 1
          %s257 = scalar_lea.sflag [#allocation7], %s256
          %s258 = sand.u32 %s78, 1
          %s259 = smul.addr %s258, 768
          %s260 = scalar_lea.vmem [#allocation6], %s259
          %s261 = smul.u32 8, %s34
          %s263 = ssub.s32 12288, 12288
          %264 = vsyncadd %s257, %s263
          %s265 = smul.addr %s261, 4
          %s266 = smul.addr %s33, 192
          %s267 = sadd.s32 %s265, %s266
          %s268 = smul.addr %s267, 128
          %s269 = scalar_lea.hbm %s1, %s268
          %s271 = sshll.u32 1, 14
          %s272 = sxor.u32 4294967295, %s271
          %s274 = sld [smem:[#allocation0]]
          %s275 = sadd.s32 2, %s274
          %s277 = sshll.u32 7, 26
          %s278 = sxor.u32 4294967295, %s277
          %s279 = sand.u32 0, %s278
          %s280 = sshll.u32 %s275, 26
          %s281 = sor.u32 %s279, %s280
          %s282 = sshll.u32 %s260, 4
          %s283 = int_to_ptr.vmem [resolvable:$true] %s282
          %289 = sst [smem:[#allocation15]] 8192
          %s290 = scalar_lea.smem [#allocation15], 1
          %291 = sst [smem:[%s290]] 4096
          %s292 = scalar_lea.smem [#allocation15], 2
          %293 = sst [smem:[%s292]] 8
          %s294 = scalar_lea.smem [#allocation15], 3
          %295 = sst [smem:[%s294]] 512
          %s296 = scalar_lea.smem [#allocation15], 4
          %297 = sst [smem:[%s296]] 512
          %s298 = scalar_lea.smem [#allocation15], 5
          %299 = sst [smem:[%s298]] 32
          %301 = dma.general %s269, 12288, %s283, %s257, [#allocation14], [#allocation15], %s281, 0
        $region32: #{tpu_custom_call.1} parent=23 // pred_fallthru
          _
      $region24: #{tpu_custom_call.1} parent=5 // pred_fallthru
        _
      %p302 = scmp.le.s32.totalorder 1, %s26
      %p303 = scmp.lt.s32.totalorder %s26, 5
      %p304 = pnand %p302, %p303
      %p305 = pneg %p304
      // Predicated region
      $region33: #{tpu_custom_call.1} parent=5 // pred_check
        _
      $region34: #{tpu_custom_call.1} parent=5 // pred_check_branch
        %307 = sbr.rel (%p304) target = $region36
      $region35: #{tpu_custom_call.1} parent=5 // pred_region
        %s308 = ssub.s32 %s26, 1
        %s309 = sand.u32 %s53, 1
        %s310 = scalar_lea.sflag [#allocation3], %s309
        %s311 = sand.u32 %s53, 1
        %s312 = smul.addr %s311, 256
        %s313 = scalar_lea.vmem [#allocation2], %s312
        // Predicated region
        $region37: #{tpu_custom_call.1} parent=35 // pred_check
          %p314 = pneg %p66
        $region38: #{tpu_custom_call.1} parent=35 // pred_check_branch
          %316 = sbr.rel (%p314) target = $region40
        $region39: #{tpu_custom_call.1} parent=35 // pred_region
          %317 = dma.done %s310, 4096
        $region40: #{tpu_custom_call.1} parent=35 // pred_fallthru
          _
        %s318 = sand.u32 %s81, 1
        %s319 = scalar_lea.sflag [#allocation7], %s318
        %s320 = sand.u32 %s81, 1
        %s321 = smul.addr %s320, 768
        %s322 = scalar_lea.vmem [#allocation6], %s321
        // Predicated region
        $region41: #{tpu_custom_call.1} parent=35 // pred_check
          %p323 = pneg %p94
        $region42: #{tpu_custom_call.1} parent=35 // pred_check_branch
          %325 = sbr.rel (%p323) target = $region44
        $region43: #{tpu_custom_call.1} parent=35 // pred_region
          %326 = dma.done %s319, 12288
        $region44: #{tpu_custom_call.1} parent=35 // pred_fallthru
          _
        // Predicated region
        $region45: #{tpu_custom_call.1} parent=35 // pred_check
          %p327 = pneg %p115
        $region46: #{tpu_custom_call.1} parent=35 // pred_check_branch
          %329 = sbr.rel (%p327) target = $region48
        $region47: #{tpu_custom_call.1} parent=35 // pred_region
          %330 = dma.done [#allocation5], 64
        $region48: #{tpu_custom_call.1} parent=35 // pred_fallthru
          _
        // Predicated region
        $region49: #{tpu_custom_call.1} parent=35 // pred_check
          %p331 = pneg %p136
        $region50: #{tpu_custom_call.1} parent=35 // pred_check_branch
          %333 = sbr.rel (%p331) target = $region52
        $region51: #{tpu_custom_call.1} parent=35 // pred_region
          %334 = dma.done [#allocation10], 32
        $region52: #{tpu_custom_call.1} parent=35 // pred_fallthru
          _
        %335 = sfence
        %s336 = sand.u32 %s53, 1
        %s337 = scalar_lea.sflag [#allocation3], %s336
        %s338 = sand.u32 %s53, 1
        %s339 = smul.addr %s338, 256
        %s340 = scalar_lea.vmem [#allocation2], %s339
        %p341 = pneg %p66
        %p342 = pneg %p63
        %s343 = sand.u32 %s81, 1
        %s344 = scalar_lea.sflag [#allocation7], %s343
        %s345 = sand.u32 %s81, 1
        %s346 = smul.addr %s345, 768
        %s347 = scalar_lea.vmem [#allocation6], %s346
        %p348 = pneg %p94
        %p349 = pneg %p91
        %p350 = pneg %p115
        %p351 = pneg %p112
        %p352 = pneg %p136
        %p353 = pneg %p133
        %p354 = pneg %p164
        %p355 = pneg %p161
        %s356 = sand.u32 %s151, 1
        %s357 = scalar_lea.sflag [#allocation4], %s356
        %s358 = sand.u32 %s151, 1
        %s359 = smul.addr %s358, 4096
        %s360 = scalar_lea.vmem [#allocation11], %s359
        %p361 = pneg %p192
        %p362 = pneg %p189
        %s363 = sand.u32 %s179, 1
        %s364 = scalar_lea.sflag [#allocation13], %s363
        %s365 = sand.u32 %s179, 1
        %s366 = smul.addr %s365, 256
        %s367 = scalar_lea.vmem [#allocation12], %s366
        %s368 = smul.u32 8, %s36
        %s369 = smul.u32 8, %s36
        %s370 = smul.u32 8, %s36
        %s371 = smul.u32 8, %s36
        %v372 = vld [vmem:[%s313] sm:$0xff]
        %v373 = vld [vmem:[%s313 + $0x8] sm:$0xff]
        %v374 = vld [vmem:[%s313 + $0x10] sm:$0xff]
        %v375 = vld [vmem:[%s313 + $0x18] sm:$0xff]
        %v376 = vld [vmem:[%s313 + $0x20] sm:$0xff]
        %v377 = vld [vmem:[%s313 + $0x28] sm:$0xff]
        %v378 = vld [vmem:[%s313 + $0x30] sm:$0xff]
        %v379 = vld [vmem:[%s313 + $0x38] sm:$0xff]
        %v380 = vld [vmem:[%s313 + $0x40] sm:$0xff]
        %v381 = vld [vmem:[%s313 + $0x48] sm:$0xff]
        %v382 = vld [vmem:[%s313 + $0x50] sm:$0xff]
        %v383 = vld [vmem:[%s313 + $0x58] sm:$0xff]
        %v384 = vld [vmem:[%s313 + $0x60] sm:$0xff]
        %v385 = vld [vmem:[%s313 + $0x68] sm:$0xff]
        %v386 = vld [vmem:[%s313 + $0x70] sm:$0xff]
        %v387 = vld [vmem:[%s313 + $0x78] sm:$0xff]
        %v388 = vld [vmem:[%s313 + $0x80] sm:$0xff]
        %v389 = vld [vmem:[%s313 + $0x88] sm:$0xff]
        %v390 = vld [vmem:[%s313 + $0x90] sm:$0xff]
        %v391 = vld [vmem:[%s313 + $0x98] sm:$0xff]
        %v392 = vld [vmem:[%s313 + $0xa0] sm:$0xff]
        %v393 = vld [vmem:[%s313 + $0xa8] sm:$0xff]
        %v394 = vld [vmem:[%s313 + $0xb0] sm:$0xff]
        %v395 = vld [vmem:[%s313 + $0xb8] sm:$0xff]
        %v396 = vld [vmem:[%s313 + $0xc0] sm:$0xff]
        %v397 = vld [vmem:[%s313 + $0xc8] sm:$0xff]
        %v398 = vld [vmem:[%s313 + $0xd0] sm:$0xff]
        %v399 = vld [vmem:[%s313 + $0xd8] sm:$0xff]
        %v400 = vld [vmem:[%s313 + $0xe0] sm:$0xff]
        %v401 = vld [vmem:[%s313 + $0xe8] sm:$0xff]
        %v402 = vld [vmem:[%s313 + $0xf0] sm:$0xff]
        %v403 = vld [vmem:[%s313 + $0xf8] sm:$0xff]
        %v404 = vld [vmem:[%s322] sm:$0xff]
        %v405 = vld [vmem:[%s322 + $0x8] sm:$0xff]
        %v406 = vld [vmem:[%s322 + $0x10] sm:$0xff]
        %v407 = vld [vmem:[%s322 + $0x18] sm:$0xff]
        %v408 = vld [vmem:[%s322 + $0x20] sm:$0xff]
        %v409 = vld [vmem:[%s322 + $0x28] sm:$0xff]
        %v410 = vld [vmem:[%s322 + $0x30] sm:$0xff]
        %v411 = vld [vmem:[%s322 + $0x38] sm:$0xff]
        %v412 = vld [vmem:[%s322 + $0x40] sm:$0xff]
        %v413 = vld [vmem:[%s322 + $0x48] sm:$0xff]
        %v414 = vld [vmem:[%s322 + $0x50] sm:$0xff]
        %v415 = vld [vmem:[%s322 + $0x58] sm:$0xff]
        %v416 = vld [vmem:[%s322 + $0x60] sm:$0xff]
        %v417 = vld [vmem:[%s322 + $0x68] sm:$0xff]
        %v418 = vld [vmem:[%s322 + $0x70] sm:$0xff]
        %v419 = vld [vmem:[%s322 + $0x78] sm:$0xff]
        %v420 = vld [vmem:[%s322 + $0x80] sm:$0xff]
        %v421 = vld [vmem:[%s322 + $0x88] sm:$0xff]
        %v422 = vld [vmem:[%s322 + $0x90] sm:$0xff]
        %v423 = vld [vmem:[%s322 + $0x98] sm:$0xff]
        %v424 = vld [vmem:[%s322 + $0xa0] sm:$0xff]
        %v425 = vld [vmem:[%s322 + $0xa8] sm:$0xff]
        %v426 = vld [vmem:[%s322 + $0xb0] sm:$0xff]
        %v427 = vld [vmem:[%s322 + $0xb8] sm:$0xff]
        %v428 = vld [vmem:[%s322 + $0xc0] sm:$0xff]
        %v429 = vld [vmem:[%s322 + $0xc8] sm:$0xff]
        %v430 = vld [vmem:[%s322 + $0xd0] sm:$0xff]
        %v431 = vld [vmem:[%s322 + $0xd8] sm:$0xff]
        %v432 = vld [vmem:[%s322 + $0xe0] sm:$0xff]
        %v433 = vld [vmem:[%s322 + $0xe8] sm:$0xff]
        %v434 = vld [vmem:[%s322 + $0xf0] sm:$0xff]
        %v435 = vld [vmem:[%s322 + $0xf8] sm:$0xff]
        %s436 = scalar_lea.vmem %s322, 256 [#allocation6]
        %v437 = vld [vmem:[%s436] sm:$0xff]
        %v438 = vld [vmem:[%s436 + $0x8] sm:$0xff]
        %v439 = vld [vmem:[%s436 + $0x10] sm:$0xff]
        %v440 = vld [vmem:[%s436 + $0x18] sm:$0xff]
        %v441 = vld [vmem:[%s436 + $0x20] sm:$0xff]
        %v442 = vld [vmem:[%s436 + $0x28] sm:$0xff]
        %v443 = vld [vmem:[%s436 + $0x30] sm:$0xff]
        %v444 = vld [vmem:[%s436 + $0x38] sm:$0xff]
        %v445 = vld [vmem:[%s436 + $0x40] sm:$0xff]
        %v446 = vld [vmem:[%s436 + $0x48] sm:$0xff]
        %v447 = vld [vmem:[%s436 + $0x50] sm:$0xff]
        %v448 = vld [vmem:[%s436 + $0x58] sm:$0xff]
        %v449 = vld [vmem:[%s436 + $0x60] sm:$0xff]
        %v450 = vld [vmem:[%s436 + $0x68] sm:$0xff]
        %v451 = vld [vmem:[%s436 + $0x70] sm:$0xff]
        %v452 = vld [vmem:[%s436 + $0x78] sm:$0xff]
        %v453 = vld [vmem:[%s436 + $0x80] sm:$0xff]
        %v454 = vld [vmem:[%s436 + $0x88] sm:$0xff]
        %v455 = vld [vmem:[%s436 + $0x90] sm:$0xff]
        %v456 = vld [vmem:[%s436 + $0x98] sm:$0xff]
        %v457 = vld [vmem:[%s436 + $0xa0] sm:$0xff]
        %v458 = vld [vmem:[%s436 + $0xa8] sm:$0xff]
        %v459 = vld [vmem:[%s436 + $0xb0] sm:$0xff]
        %v460 = vld [vmem:[%s436 + $0xb8] sm:$0xff]
        %v461 = vld [vmem:[%s436 + $0xc0] sm:$0xff]
        %v462 = vld [vmem:[%s436 + $0xc8] sm:$0xff]
        %v463 = vld [vmem:[%s436 + $0xd0] sm:$0xff]
        %v464 = vld [vmem:[%s436 + $0xd8] sm:$0xff]
        %v465 = vld [vmem:[%s436 + $0xe0] sm:$0xff]
        %v466 = vld [vmem:[%s436 + $0xe8] sm:$0xff]
        %v467 = vld [vmem:[%s436 + $0xf0] sm:$0xff]
        %v468 = vld [vmem:[%s436 + $0xf8] sm:$0xff]
        %s469 = scalar_lea.vmem %s322, 512 [#allocation6]
        %v470 = vld [vmem:[%s469] sm:$0xff]
        %v471 = vld [vmem:[%s469 + $0x8] sm:$0xff]
        %v472 = vld [vmem:[%s469 + $0x10] sm:$0xff]
        %v473 = vld [vmem:[%s469 + $0x18] sm:$0xff]
        %v474 = vld [vmem:[%s469 + $0x20] sm:$0xff]
        %v475 = vld [vmem:[%s469 + $0x28] sm:$0xff]
        %v476 = vld [vmem:[%s469 + $0x30] sm:$0xff]
        %v477 = vld [vmem:[%s469 + $0x38] sm:$0xff]
        %v478 = vld [vmem:[%s469 + $0x40] sm:$0xff]
        %v479 = vld [vmem:[%s469 + $0x48] sm:$0xff]
        %v480 = vld [vmem:[%s469 + $0x50] sm:$0xff]
        %v481 = vld [vmem:[%s469 + $0x58] sm:$0xff]
        %v482 = vld [vmem:[%s469 + $0x60] sm:$0xff]
        %v483 = vld [vmem:[%s469 + $0x68] sm:$0xff]
        %v484 = vld [vmem:[%s469 + $0x70] sm:$0xff]
        %v485 = vld [vmem:[%s469 + $0x78] sm:$0xff]
        %v486 = vld [vmem:[%s469 + $0x80] sm:$0xff]
        %v487 = vld [vmem:[%s469 + $0x88] sm:$0xff]
        %v488 = vld [vmem:[%s469 + $0x90] sm:$0xff]
        %v489 = vld [vmem:[%s469 + $0x98] sm:$0xff]
        %v490 = vld [vmem:[%s469 + $0xa0] sm:$0xff]
        %v491 = vld [vmem:[%s469 + $0xa8] sm:$0xff]
        %v492 = vld [vmem:[%s469 + $0xb0] sm:$0xff]
        %v493 = vld [vmem:[%s469 + $0xb8] sm:$0xff]
        %v494 = vld [vmem:[%s469 + $0xc0] sm:$0xff]
        %v495 = vld [vmem:[%s469 + $0xc8] sm:$0xff]
        %v496 = vld [vmem:[%s469 + $0xd0] sm:$0xff]
        %v497 = vld [vmem:[%s469 + $0xd8] sm:$0xff]
        %v498 = vld [vmem:[%s469 + $0xe0] sm:$0xff]
        %v499 = vld [vmem:[%s469 + $0xe8] sm:$0xff]
        %v500 = vld [vmem:[%s469 + $0xf0] sm:$0xff]
        %v501 = vld [vmem:[%s469 + $0xf8] sm:$0xff]
        %s502 = sld [smem:[#allocation8]]
        %v503 = vstv %s502
        %v504 = vmul.f32 %v372, %v503
        %v505 = vmul.f32 %v373, %v503
        %v506 = vmul.f32 %v374, %v503
        %v507 = vmul.f32 %v375, %v503
        %v508 = vmul.f32 %v376, %v503
        %v509 = vmul.f32 %v377, %v503
        %v510 = vmul.f32 %v378, %v503
        %v511 = vmul.f32 %v379, %v503
        %v512 = vmul.f32 %v380, %v503
        %v513 = vmul.f32 %v381, %v503
        %v514 = vmul.f32 %v382, %v503
        %v515 = vmul.f32 %v383, %v503
        %v516 = vmul.f32 %v384, %v503
        %v517 = vmul.f32 %v385, %v503
        %v518 = vmul.f32 %v386, %v503
        %v519 = vmul.f32 %v387, %v503
        %v520 = vmul.f32 %v388, %v503
        %v521 = vmul.f32 %v389, %v503
        %v522 = vmul.f32 %v390, %v503
        %v523 = vmul.f32 %v391, %v503
        %v524 = vmul.f32 %v392, %v503
        %v525 = vmul.f32 %v393, %v503
        %v526 = vmul.f32 %v394, %v503
        %v527 = vmul.f32 %v395, %v503
        %v528 = vmul.f32 %v396, %v503
        %v529 = vmul.f32 %v397, %v503
        %v530 = vmul.f32 %v398, %v503
        %v531 = vmul.f32 %v399, %v503
        %v532 = vmul.f32 %v400, %v503
        %v533 = vmul.f32 %v401, %v503
        %v534 = vmul.f32 %v402, %v503
        %v535 = vmul.f32 %v403, %v503
        %s536 = smul.u32 %s35, 128
        %s537 = sld [smem:[#allocation9 + %s536]]
        %v538 = vstv %s537
        %v539 = vadd.f32 %v504, %v538
        %v540 = vadd.f32 %v505, %v538
        %v541 = vadd.f32 %v506, %v538
        %v542 = vadd.f32 %v507, %v538
        %v543 = vadd.f32 %v508, %v538
        %v544 = vadd.f32 %v509, %v538
        %v545 = vadd.f32 %v510, %v538
        %v546 = vadd.f32 %v511, %v538
        %v547 = vadd.f32 %v512, %v538
        %v548 = vadd.f32 %v513, %v538
        %v549 = vadd.f32 %v514, %v538
        %v550 = vadd.f32 %v515, %v538
        %v551 = vadd.f32 %v516, %v538
        %v552 = vadd.f32 %v517, %v538
        %v553 = vadd.f32 %v518, %v538
        %v554 = vadd.f32 %v519, %v538
        %v555 = vadd.f32 %v520, %v538
        %v556 = vadd.f32 %v521, %v538
        %v557 = vadd.f32 %v522, %v538
        %v558 = vadd.f32 %v523, %v538
        %v559 = vadd.f32 %v524, %v538
        %v560 = vadd.f32 %v525, %v538
        %v561 = vadd.f32 %v526, %v538
        %v562 = vadd.f32 %v527, %v538
        %v563 = vadd.f32 %v528, %v538
        %v564 = vadd.f32 %v529, %v538
        %v565 = vadd.f32 %v530, %v538
        %v566 = vadd.f32 %v531, %v538
        %v567 = vadd.f32 %v532, %v538
        %v568 = vadd.f32 %v533, %v538
        %v569 = vadd.f32 %v534, %v538
        %v570 = vadd.f32 %v535, %v538
        %s571 = sld [smem:[#allocation8 + $0x80]]
        %v572 = vstv %s571
        %v573 = vmul.f32 %v404, %v572
        %v574 = vmul.f32 %v405, %v572
        %v575 = vmul.f32 %v406, %v572
        %v576 = vmul.f32 %v407, %v572
        %v577 = vmul.f32 %v408, %v572
        %v578 = vmul.f32 %v409, %v572
        %v579 = vmul.f32 %v410, %v572
        %v580 = vmul.f32 %v411, %v572
        %v581 = vmul.f32 %v412, %v572
        %v582 = vmul.f32 %v413, %v572
        %v583 = vmul.f32 %v414, %v572
        %v584 = vmul.f32 %v415, %v572
        %v585 = vmul.f32 %v416, %v572
        %v586 = vmul.f32 %v417, %v572
        %v587 = vmul.f32 %v418, %v572
        %v588 = vmul.f32 %v419, %v572
        %v589 = vmul.f32 %v420, %v572
        %v590 = vmul.f32 %v421, %v572
        %v591 = vmul.f32 %v422, %v572
        %v592 = vmul.f32 %v423, %v572
        %v593 = vmul.f32 %v424, %v572
        %v594 = vmul.f32 %v425, %v572
        %v595 = vmul.f32 %v426, %v572
        %v596 = vmul.f32 %v427, %v572
        %v597 = vmul.f32 %v428, %v572
        %v598 = vmul.f32 %v429, %v572
        %v599 = vmul.f32 %v430, %v572
        %v600 = vmul.f32 %v431, %v572
        %v601 = vmul.f32 %v432, %v572
        %v602 = vmul.f32 %v433, %v572
        %v603 = vmul.f32 %v434, %v572
        %v604 = vmul.f32 %v435, %v572
        %v605 = vadd.f32 %v539, %v573
        %v606 = vadd.f32 %v540, %v574
        %v607 = vadd.f32 %v541, %v575
        %v608 = vadd.f32 %v542, %v576
        %v609 = vadd.f32 %v543, %v577
        %v610 = vadd.f32 %v544, %v578
        %v611 = vadd.f32 %v545, %v579
        %v612 = vadd.f32 %v546, %v580
        %v613 = vadd.f32 %v547, %v581
        %v614 = vadd.f32 %v548, %v582
        %v615 = vadd.f32 %v549, %v583
        %v616 = vadd.f32 %v550, %v584
        %v617 = vadd.f32 %v551, %v585
        %v618 = vadd.f32 %v552, %v586
        %v619 = vadd.f32 %v553, %v587
        %v620 = vadd.f32 %v554, %v588
        %v621 = vadd.f32 %v555, %v589
        %v622 = vadd.f32 %v556, %v590
        %v623 = vadd.f32 %v557, %v591
        %v624 = vadd.f32 %v558, %v592
        %v625 = vadd.f32 %v559, %v593
        %v626 = vadd.f32 %v560, %v594
        %v627 = vadd.f32 %v561, %v595
        %v628 = vadd.f32 %v562, %v596
        %v629 = vadd.f32 %v563, %v597
        %v630 = vadd.f32 %v564, %v598
        %v631 = vadd.f32 %v565, %v599
        %v632 = vadd.f32 %v566, %v600
        %v633 = vadd.f32 %v567, %v601
        %v634 = vadd.f32 %v568, %v602
        %v635 = vadd.f32 %v569, %v603
        %v636 = vadd.f32 %v570, %v604
        %s637 = sld [smem:[#allocation8 + $0x100]]
        %v638 = vstv %s637
        %v639 = vmul.f32 %v437, %v638
        %v640 = vmul.f32 %v438, %v638
        %v641 = vmul.f32 %v439, %v638
        %v642 = vmul.f32 %v440, %v638
        %v643 = vmul.f32 %v441, %v638
        %v644 = vmul.f32 %v442, %v638
        %v645 = vmul.f32 %v443, %v638
        %v646 = vmul.f32 %v444, %v638
        %v647 = vmul.f32 %v445, %v638
        %v648 = vmul.f32 %v446, %v638
        %v649 = vmul.f32 %v447, %v638
        %v650 = vmul.f32 %v448, %v638
        %v651 = vmul.f32 %v449, %v638
        %v652 = vmul.f32 %v450, %v638
        %v653 = vmul.f32 %v451, %v638
        %v654 = vmul.f32 %v452, %v638
        %v655 = vmul.f32 %v453, %v638
        %v656 = vmul.f32 %v454, %v638
        %v657 = vmul.f32 %v455, %v638
        %v658 = vmul.f32 %v456, %v638
        %v659 = vmul.f32 %v457, %v638
        %v660 = vmul.f32 %v458, %v638
        %v661 = vmul.f32 %v459, %v638
        %v662 = vmul.f32 %v460, %v638
        %v663 = vmul.f32 %v461, %v638
        %v664 = vmul.f32 %v462, %v638
        %v665 = vmul.f32 %v463, %v638
        %v666 = vmul.f32 %v464, %v638
        %v667 = vmul.f32 %v465, %v638
        %v668 = vmul.f32 %v466, %v638
        %v669 = vmul.f32 %v467, %v638
        %v670 = vmul.f32 %v468, %v638
        %v671 = vadd.f32 %v605, %v639
        %v672 = vadd.f32 %v606, %v640
        %v673 = vadd.f32 %v607, %v641
        %v674 = vadd.f32 %v608, %v642
        %v675 = vadd.f32 %v609, %v643
        %v676 = vadd.f32 %v610, %v644
        %v677 = vadd.f32 %v611, %v645
        %v678 = vadd.f32 %v612, %v646
        %v679 = vadd.f32 %v613, %v647
        %v680 = vadd.f32 %v614, %v648
        %v681 = vadd.f32 %v615, %v649
        %v682 = vadd.f32 %v616, %v650
        %v683 = vadd.f32 %v617, %v651
        %v684 = vadd.f32 %v618, %v652
        %v685 = vadd.f32 %v619, %v653
        %v686 = vadd.f32 %v620, %v654
        %v687 = vadd.f32 %v621, %v655
        %v688 = vadd.f32 %v622, %v656
        %v689 = vadd.f32 %v623, %v657
        %v690 = vadd.f32 %v624, %v658
        %v691 = vadd.f32 %v625, %v659
        %v692 = vadd.f32 %v626, %v660
        %v693 = vadd.f32 %v627, %v661
        %v694 = vadd.f32 %v628, %v662
        %v695 = vadd.f32 %v629, %v663
        %v696 = vadd.f32 %v630, %v664
        %v697 = vadd.f32 %v631, %v665
        %v698 = vadd.f32 %v632, %v666
        %v699 = vadd.f32 %v633, %v667
        %v700 = vadd.f32 %v634, %v668
        %v701 = vadd.f32 %v635, %v669
        %v702 = vadd.f32 %v636, %v670
        %s703 = sld [smem:[#allocation8 + $0x180]]
        %v704 = vstv %s703
        %v705 = vmul.f32 %v470, %v704
        %v706 = vmul.f32 %v471, %v704
        %v707 = vmul.f32 %v472, %v704
        %v708 = vmul.f32 %v473, %v704
        %v709 = vmul.f32 %v474, %v704
        %v710 = vmul.f32 %v475, %v704
        %v711 = vmul.f32 %v476, %v704
        %v712 = vmul.f32 %v477, %v704
        %v713 = vmul.f32 %v478, %v704
        %v714 = vmul.f32 %v479, %v704
        %v715 = vmul.f32 %v480, %v704
        %v716 = vmul.f32 %v481, %v704
        %v717 = vmul.f32 %v482, %v704
        %v718 = vmul.f32 %v483, %v704
        %v719 = vmul.f32 %v484, %v704
        %v720 = vmul.f32 %v485, %v704
        %v721 = vmul.f32 %v486, %v704
        %v722 = vmul.f32 %v487, %v704
        %v723 = vmul.f32 %v488, %v704
        %v724 = vmul.f32 %v489, %v704
        %v725 = vmul.f32 %v490, %v704
        %v726 = vmul.f32 %v491, %v704
        %v727 = vmul.f32 %v492, %v704
        %v728 = vmul.f32 %v493, %v704
        %v729 = vmul.f32 %v494, %v704
        %v730 = vmul.f32 %v495, %v704
        %v731 = vmul.f32 %v496, %v704
        %v732 = vmul.f32 %v497, %v704
        %v733 = vmul.f32 %v498, %v704
        %v734 = vmul.f32 %v499, %v704
        %v735 = vmul.f32 %v500, %v704
        %v736 = vmul.f32 %v501, %v704
        %v737 = vadd.f32 %v671, %v705
        %v738 = vadd.f32 %v672, %v706
        %v739 = vadd.f32 %v673, %v707
        %v740 = vadd.f32 %v674, %v708
        %v741 = vadd.f32 %v675, %v709
        %v742 = vadd.f32 %v676, %v710
        %v743 = vadd.f32 %v677, %v711
        %v744 = vadd.f32 %v678, %v712
        %v745 = vadd.f32 %v679, %v713
        %v746 = vadd.f32 %v680, %v714
        %v747 = vadd.f32 %v681, %v715
        %v748 = vadd.f32 %v682, %v716
        %v749 = vadd.f32 %v683, %v717
        %v750 = vadd.f32 %v684, %v718
        %v751 = vadd.f32 %v685, %v719
        %v752 = vadd.f32 %v686, %v720
        %v753 = vadd.f32 %v687, %v721
        %v754 = vadd.f32 %v688, %v722
        %v755 = vadd.f32 %v689, %v723
        %v756 = vadd.f32 %v690, %v724
        %v757 = vadd.f32 %v691, %v725
        %v758 = vadd.f32 %v692, %v726
        %v759 = vadd.f32 %v693, %v727
        %v760 = vadd.f32 %v694, %v728
        %v761 = vadd.f32 %v695, %v729
        %v762 = vadd.f32 %v696, %v730
        %v763 = vadd.f32 %v697, %v731
        %v764 = vadd.f32 %v698, %v732
        %v765 = vadd.f32 %v699, %v733
        %v766 = vadd.f32 %v700, %v734
        %v767 = vadd.f32 %v701, %v735
        %v768 = vadd.f32 %v702, %v736
        %769 = vst [vmem:[%s360] sm:$0xff] %v737
        %770 = vst [vmem:[%s360 + $0x8] sm:$0xff] %v738
        %771 = vst [vmem:[%s360 + $0x10] sm:$0xff] %v739
        %772 = vst [vmem:[%s360 + $0x18] sm:$0xff] %v740
        %773 = vst [vmem:[%s360 + $0x20] sm:$0xff] %v741
        %774 = vst [vmem:[%s360 + $0x28] sm:$0xff] %v742
        %775 = vst [vmem:[%s360 + $0x30] sm:$0xff] %v743
        %776 = vst [vmem:[%s360 + $0x38] sm:$0xff] %v744
        %777 = vst [vmem:[%s360 + $0x40] sm:$0xff] %v745
        %778 = vst [vmem:[%s360 + $0x48] sm:$0xff] %v746
        %779 = vst [vmem:[%s360 + $0x50] sm:$0xff] %v747
        %780 = vst [vmem:[%s360 + $0x58] sm:$0xff] %v748
        %781 = vst [vmem:[%s360 + $0x60] sm:$0xff] %v749
        %782 = vst [vmem:[%s360 + $0x68] sm:$0xff] %v750
        %783 = vst [vmem:[%s360 + $0x70] sm:$0xff] %v751
        %784 = vst [vmem:[%s360 + $0x78] sm:$0xff] %v752
        %785 = vst [vmem:[%s360 + $0x80] sm:$0xff] %v753
        %786 = vst [vmem:[%s360 + $0x88] sm:$0xff] %v754
        %787 = vst [vmem:[%s360 + $0x90] sm:$0xff] %v755
        %788 = vst [vmem:[%s360 + $0x98] sm:$0xff] %v756
        %789 = vst [vmem:[%s360 + $0xa0] sm:$0xff] %v757
        %790 = vst [vmem:[%s360 + $0xa8] sm:$0xff] %v758
        %791 = vst [vmem:[%s360 + $0xb0] sm:$0xff] %v759
        %792 = vst [vmem:[%s360 + $0xb8] sm:$0xff] %v760
        %793 = vst [vmem:[%s360 + $0xc0] sm:$0xff] %v761
        %794 = vst [vmem:[%s360 + $0xc8] sm:$0xff] %v762
        %795 = vst [vmem:[%s360 + $0xd0] sm:$0xff] %v763
        %796 = vst [vmem:[%s360 + $0xd8] sm:$0xff] %v764
        %797 = vst [vmem:[%s360 + $0xe0] sm:$0xff] %v765
        %798 = vst [vmem:[%s360 + $0xe8] sm:$0xff] %v766
        %799 = vst [vmem:[%s360 + $0xf0] sm:$0xff] %v767
        %800 = vst [vmem:[%s360 + $0xf8] sm:$0xff] %v768
        %s801 = sld [smem:[#allocation8 + $0x1]]
        %v802 = vstv %s801
        %v803 = vmul.f32 %v372, %v802
        %v804 = vmul.f32 %v373, %v802
        %v805 = vmul.f32 %v374, %v802
        %v806 = vmul.f32 %v375, %v802
        %v807 = vmul.f32 %v376, %v802
        %v808 = vmul.f32 %v377, %v802
        %v809 = vmul.f32 %v378, %v802
        %v810 = vmul.f32 %v379, %v802
        %v811 = vmul.f32 %v380, %v802
        %v812 = vmul.f32 %v381, %v802
        %v813 = vmul.f32 %v382, %v802
        %v814 = vmul.f32 %v383, %v802
        %v815 = vmul.f32 %v384, %v802
        %v816 = vmul.f32 %v385, %v802
        %v817 = vmul.f32 %v386, %v802
        %v818 = vmul.f32 %v387, %v802
        %v819 = vmul.f32 %v388, %v802
        %v820 = vmul.f32 %v389, %v802
        %v821 = vmul.f32 %v390, %v802
        %v822 = vmul.f32 %v391, %v802
        %v823 = vmul.f32 %v392, %v802
        %v824 = vmul.f32 %v393, %v802
        %v825 = vmul.f32 %v394, %v802
        %v826 = vmul.f32 %v395, %v802
        %v827 = vmul.f32 %v396, %v802
        %v828 = vmul.f32 %v397, %v802
        %v829 = vmul.f32 %v398, %v802
        %v830 = vmul.f32 %v399, %v802
        %v831 = vmul.f32 %v400, %v802
        %v832 = vmul.f32 %v401, %v802
        %v833 = vmul.f32 %v402, %v802
        %v834 = vmul.f32 %v403, %v802
        %s835 = sadd.s32 %s536, 1
        %s836 = sld [smem:[#allocation9 + %s835]]
        %v837 = vstv %s836
        %v838 = vadd.f32 %v803, %v837
        %v839 = vadd.f32 %v804, %v837
        %v840 = vadd.f32 %v805, %v837
        %v841 = vadd.f32 %v806, %v837
        %v842 = vadd.f32 %v807, %v837
        %v843 = vadd.f32 %v808, %v837
        %v844 = vadd.f32 %v809, %v837
        %v845 = vadd.f32 %v810, %v837
        %v846 = vadd.f32 %v811, %v837
        %v847 = vadd.f32 %v812, %v837
        %v848 = vadd.f32 %v813, %v837
        %v849 = vadd.f32 %v814, %v837
        %v850 = vadd.f32 %v815, %v837
        %v851 = vadd.f32 %v816, %v837
        %v852 = vadd.f32 %v817, %v837
        %v853 = vadd.f32 %v818, %v837
        %v854 = vadd.f32 %v819, %v837
        %v855 = vadd.f32 %v820, %v837
        %v856 = vadd.f32 %v821, %v837
        %v857 = vadd.f32 %v822, %v837
        %v858 = vadd.f32 %v823, %v837
        %v859 = vadd.f32 %v824, %v837
        %v860 = vadd.f32 %v825, %v837
        %v861 = vadd.f32 %v826, %v837
        %v862 = vadd.f32 %v827, %v837
        %v863 = vadd.f32 %v828, %v837
        %v864 = vadd.f32 %v829, %v837
        %v865 = vadd.f32 %v830, %v837
        %v866 = vadd.f32 %v831, %v837
        %v867 = vadd.f32 %v832, %v837
        %v868 = vadd.f32 %v833, %v837
        %v869 = vadd.f32 %v834, %v837
        %s870 = sld [smem:[#allocation8 + $0x81]]
        %v871 = vstv %s870
        %v872 = vmul.f32 %v404, %v871
        %v873 = vmul.f32 %v405, %v871
        %v874 = vmul.f32 %v406, %v871
        %v875 = vmul.f32 %v407, %v871
        %v876 = vmul.f32 %v408, %v871
        %v877 = vmul.f32 %v409, %v871
        %v878 = vmul.f32 %v410, %v871
        %v879 = vmul.f32 %v411, %v871
        %v880 = vmul.f32 %v412, %v871
        %v881 = vmul.f32 %v413, %v871
        %v882 = vmul.f32 %v414, %v871
        %v883 = vmul.f32 %v415, %v871
        %v884 = vmul.f32 %v416, %v871
        %v885 = vmul.f32 %v417, %v871
        %v886 = vmul.f32 %v418, %v871
        %v887 = vmul.f32 %v419, %v871
        %v888 = vmul.f32 %v420, %v871
        %v889 = vmul.f32 %v421, %v871
        %v890 = vmul.f32 %v422, %v871
        %v891 = vmul.f32 %v423, %v871
        %v892 = vmul.f32 %v424, %v871
        %v893 = vmul.f32 %v425, %v871
        %v894 = vmul.f32 %v426, %v871
        %v895 = vmul.f32 %v427, %v871
        %v896 = vmul.f32 %v428, %v871
        %v897 = vmul.f32 %v429, %v871
        %v898 = vmul.f32 %v430, %v871
        %v899 = vmul.f32 %v431, %v871
        %v900 = vmul.f32 %v432, %v871
        %v901 = vmul.f32 %v433, %v871
        %v902 = vmul.f32 %v434, %v871
        %v903 = vmul.f32 %v435, %v871
        %v904 = vadd.f32 %v838, %v872
        %v905 = vadd.f32 %v839, %v873
        %v906 = vadd.f32 %v840, %v874
        %v907 = vadd.f32 %v841, %v875
        %v908 = vadd.f32 %v842, %v876
        %v909 = vadd.f32 %v843, %v877
        %v910 = vadd.f32 %v844, %v878
        %v911 = vadd.f32 %v845, %v879
        %v912 = vadd.f32 %v846, %v880
        %v913 = vadd.f32 %v847, %v881
        %v914 = vadd.f32 %v848, %v882
        %v915 = vadd.f32 %v849, %v883
        %v916 = vadd.f32 %v850, %v884
        %v917 = vadd.f32 %v851, %v885
        %v918 = vadd.f32 %v852, %v886
        %v919 = vadd.f32 %v853, %v887
        %v920 = vadd.f32 %v854, %v888
        %v921 = vadd.f32 %v855, %v889
        %v922 = vadd.f32 %v856, %v890
        %v923 = vadd.f32 %v857, %v891
        %v924 = vadd.f32 %v858, %v892
        %v925 = vadd.f32 %v859, %v893
        %v926 = vadd.f32 %v860, %v894
        %v927 = vadd.f32 %v861, %v895
        %v928 = vadd.f32 %v862, %v896
        %v929 = vadd.f32 %v863, %v897
        %v930 = vadd.f32 %v864, %v898
        %v931 = vadd.f32 %v865, %v899
        %v932 = vadd.f32 %v866, %v900
        %v933 = vadd.f32 %v867, %v901
        %v934 = vadd.f32 %v868, %v902
        %v935 = vadd.f32 %v869, %v903
        %s936 = sld [smem:[#allocation8 + $0x101]]
        %v937 = vstv %s936
        %v938 = vmul.f32 %v437, %v937
        %v939 = vmul.f32 %v438, %v937
        %v940 = vmul.f32 %v439, %v937
        %v941 = vmul.f32 %v440, %v937
        %v942 = vmul.f32 %v441, %v937
        %v943 = vmul.f32 %v442, %v937
        %v944 = vmul.f32 %v443, %v937
        %v945 = vmul.f32 %v444, %v937
        %v946 = vmul.f32 %v445, %v937
        %v947 = vmul.f32 %v446, %v937
        %v948 = vmul.f32 %v447, %v937
        %v949 = vmul.f32 %v448, %v937
        %v950 = vmul.f32 %v449, %v937
        %v951 = vmul.f32 %v450, %v937
        %v952 = vmul.f32 %v451, %v937
        %v953 = vmul.f32 %v452, %v937
        %v954 = vmul.f32 %v453, %v937
        %v955 = vmul.f32 %v454, %v937
        %v956 = vmul.f32 %v455, %v937
        %v957 = vmul.f32 %v456, %v937
        %v958 = vmul.f32 %v457, %v937
        %v959 = vmul.f32 %v458, %v937
        %v960 = vmul.f32 %v459, %v937
        %v961 = vmul.f32 %v460, %v937
        %v962 = vmul.f32 %v461, %v937
        %v963 = vmul.f32 %v462, %v937
        %v964 = vmul.f32 %v463, %v937
        %v965 = vmul.f32 %v464, %v937
        %v966 = vmul.f32 %v465, %v937
        %v967 = vmul.f32 %v466, %v937
        %v968 = vmul.f32 %v467, %v937
        %v969 = vmul.f32 %v468, %v937
        %v970 = vadd.f32 %v904, %v938
        %v971 = vadd.f32 %v905, %v939
        %v972 = vadd.f32 %v906, %v940
        %v973 = vadd.f32 %v907, %v941
        %v974 = vadd.f32 %v908, %v942
        %v975 = vadd.f32 %v909, %v943
        %v976 = vadd.f32 %v910, %v944
        %v977 = vadd.f32 %v911, %v945
        %v978 = vadd.f32 %v912, %v946
        %v979 = vadd.f32 %v913, %v947
        %v980 = vadd.f32 %v914, %v948
        %v981 = vadd.f32 %v915, %v949
        %v982 = vadd.f32 %v916, %v950
        %v983 = vadd.f32 %v917, %v951
        %v984 = vadd.f32 %v918, %v952
        %v985 = vadd.f32 %v919, %v953
        %v986 = vadd.f32 %v920, %v954
        %v987 = vadd.f32 %v921, %v955
        %v988 = vadd.f32 %v922, %v956
        %v989 = vadd.f32 %v923, %v957
        %v990 = vadd.f32 %v924, %v958
        %v991 = vadd.f32 %v925, %v959
        %v992 = vadd.f32 %v926, %v960
        %v993 = vadd.f32 %v927, %v961
        %v994 = vadd.f32 %v928, %v962
        %v995 = vadd.f32 %v929, %v963
        %v996 = vadd.f32 %v930, %v964
        %v997 = vadd.f32 %v931, %v965
        %v998 = vadd.f32 %v932, %v966
        %v999 = vadd.f32 %v933, %v967
        %v1000 = vadd.f32 %v934, %v968
        %v1001 = vadd.f32 %v935, %v969
        %s1002 = sld [smem:[#allocation8 + $0x181]]
        %v1003 = vstv %s1002
        %v1004 = vmul.f32 %v470, %v1003
        %v1005 = vmul.f32 %v471, %v1003
        %v1006 = vmul.f32 %v472, %v1003
        %v1007 = vmul.f32 %v473, %v1003
        %v1008 = vmul.f32 %v474, %v1003
        %v1009 = vmul.f32 %v475, %v1003
        %v1010 = vmul.f32 %v476, %v1003
        %v1011 = vmul.f32 %v477, %v1003
        %v1012 = vmul.f32 %v478, %v1003
        %v1013 = vmul.f32 %v479, %v1003
        %v1014 = vmul.f32 %v480, %v1003
        %v1015 = vmul.f32 %v481, %v1003
        %v1016 = vmul.f32 %v482, %v1003
        %v1017 = vmul.f32 %v483, %v1003
        %v1018 = vmul.f32 %v484, %v1003
        %v1019 = vmul.f32 %v485, %v1003
        %v1020 = vmul.f32 %v486, %v1003
        %v1021 = vmul.f32 %v487, %v1003
        %v1022 = vmul.f32 %v488, %v1003
        %v1023 = vmul.f32 %v489, %v1003
        %v1024 = vmul.f32 %v490, %v1003
        %v1025 = vmul.f32 %v491, %v1003
        %v1026 = vmul.f32 %v492, %v1003
        %v1027 = vmul.f32 %v493, %v1003
        %v1028 = vmul.f32 %v494, %v1003
        %v1029 = vmul.f32 %v495, %v1003
        %v1030 = vmul.f32 %v496, %v1003
        %v1031 = vmul.f32 %v497, %v1003
        %v1032 = vmul.f32 %v498, %v1003
        %v1033 = vmul.f32 %v499, %v1003
        %v1034 = vmul.f32 %v500, %v1003
        %v1035 = vmul.f32 %v501, %v1003
        %v1036 = vadd.f32 %v970, %v1004
        %v1037 = vadd.f32 %v971, %v1005
        %v1038 = vadd.f32 %v972, %v1006
        %v1039 = vadd.f32 %v973, %v1007
        %v1040 = vadd.f32 %v974, %v1008
        %v1041 = vadd.f32 %v975, %v1009
        %v1042 = vadd.f32 %v976, %v1010
        %v1043 = vadd.f32 %v977, %v1011
        %v1044 = vadd.f32 %v978, %v1012
        %v1045 = vadd.f32 %v979, %v1013
        %v1046 = vadd.f32 %v980, %v1014
        %v1047 = vadd.f32 %v981, %v1015
        %v1048 = vadd.f32 %v982, %v1016
        %v1049 = vadd.f32 %v983, %v1017
        %v1050 = vadd.f32 %v984, %v1018
        %v1051 = vadd.f32 %v985, %v1019
        %v1052 = vadd.f32 %v986, %v1020
        %v1053 = vadd.f32 %v987, %v1021
        %v1054 = vadd.f32 %v988, %v1022
        %v1055 = vadd.f32 %v989, %v1023
        %v1056 = vadd.f32 %v990, %v1024
        %v1057 = vadd.f32 %v991, %v1025
        %v1058 = vadd.f32 %v992, %v1026
        %v1059 = vadd.f32 %v993, %v1027
        %v1060 = vadd.f32 %v994, %v1028
        %v1061 = vadd.f32 %v995, %v1029
        %v1062 = vadd.f32 %v996, %v1030
        %v1063 = vadd.f32 %v997, %v1031
        %v1064 = vadd.f32 %v998, %v1032
        %v1065 = vadd.f32 %v999, %v1033
        %v1066 = vadd.f32 %v1000, %v1034
        %v1067 = vadd.f32 %v1001, %v1035
        %s1068 = scalar_lea.vmem %s360, 256 [#allocation11]
        %1069 = vst [vmem:[%s1068] sm:$0xff] %v1036
        %1070 = vst [vmem:[%s1068 + $0x8] sm:$0xff] %v1037
        %1071 = vst [vmem:[%s1068 + $0x10] sm:$0xff] %v1038
        %1072 = vst [vmem:[%s1068 + $0x18] sm:$0xff] %v1039
        %1073 = vst [vmem:[%s1068 + $0x20] sm:$0xff] %v1040
        %1074 = vst [vmem:[%s1068 + $0x28] sm:$0xff] %v1041
        %1075 = vst [vmem:[%s1068 + $0x30] sm:$0xff] %v1042
        %1076 = vst [vmem:[%s1068 + $0x38] sm:$0xff] %v1043
        %1077 = vst [vmem:[%s1068 + $0x40] sm:$0xff] %v1044
        %1078 = vst [vmem:[%s1068 + $0x48] sm:$0xff] %v1045
        %1079 = vst [vmem:[%s1068 + $0x50] sm:$0xff] %v1046
        %1080 = vst [vmem:[%s1068 + $0x58] sm:$0xff] %v1047
        %1081 = vst [vmem:[%s1068 + $0x60] sm:$0xff] %v1048
        %1082 = vst [vmem:[%s1068 + $0x68] sm:$0xff] %v1049
        %1083 = vst [vmem:[%s1068 + $0x70] sm:$0xff] %v1050
        %1084 = vst [vmem:[%s1068 + $0x78] sm:$0xff] %v1051
        %1085 = vst [vmem:[%s1068 + $0x80] sm:$0xff] %v1052
        %1086 = vst [vmem:[%s1068 + $0x88] sm:$0xff] %v1053
        %1087 = vst [vmem:[%s1068 + $0x90] sm:$0xff] %v1054
        %1088 = vst [vmem:[%s1068 + $0x98] sm:$0xff] %v1055
        %1089 = vst [vmem:[%s1068 + $0xa0] sm:$0xff] %v1056
        %1090 = vst [vmem:[%s1068 + $0xa8] sm:$0xff] %v1057
        %1091 = vst [vmem:[%s1068 + $0xb0] sm:$0xff] %v1058
        %1092 = vst [vmem:[%s1068 + $0xb8] sm:$0xff] %v1059
        %1093 = vst [vmem:[%s1068 + $0xc0] sm:$0xff] %v1060
        %1094 = vst [vmem:[%s1068 + $0xc8] sm:$0xff] %v1061
        %1095 = vst [vmem:[%s1068 + $0xd0] sm:$0xff] %v1062
        %1096 = vst [vmem:[%s1068 + $0xd8] sm:$0xff] %v1063
        %1097 = vst [vmem:[%s1068 + $0xe0] sm:$0xff] %v1064
        %1098 = vst [vmem:[%s1068 + $0xe8] sm:$0xff] %v1065
        %1099 = vst [vmem:[%s1068 + $0xf0] sm:$0xff] %v1066
        %1100 = vst [vmem:[%s1068 + $0xf8] sm:$0xff] %v1067
        %s1101 = sld [smem:[#allocation8 + $0x2]]
        %v1102 = vstv %s1101
        %v1103 = vmul.f32 %v372, %v1102
        %v1104 = vmul.f32 %v373, %v1102
        %v1105 = vmul.f32 %v374, %v1102
        %v1106 = vmul.f32 %v375, %v1102
        %v1107 = vmul.f32 %v376, %v1102
        %v1108 = vmul.f32 %v377, %v1102
        %v1109 = vmul.f32 %v378, %v1102
        %v1110 = vmul.f32 %v379, %v1102
        %v1111 = vmul.f32 %v380, %v1102
        %v1112 = vmul.f32 %v381, %v1102
        %v1113 = vmul.f32 %v382, %v1102
        %v1114 = vmul.f32 %v383, %v1102
        %v1115 = vmul.f32 %v384, %v1102
        %v1116 = vmul.f32 %v385, %v1102
        %v1117 = vmul.f32 %v386, %v1102
        %v1118 = vmul.f32 %v387, %v1102
        %v1119 = vmul.f32 %v388, %v1102
        %v1120 = vmul.f32 %v389, %v1102
        %v1121 = vmul.f32 %v390, %v1102
        %v1122 = vmul.f32 %v391, %v1102
        %v1123 = vmul.f32 %v392, %v1102
        %v1124 = vmul.f32 %v393, %v1102
        %v1125 = vmul.f32 %v394, %v1102
        %v1126 = vmul.f32 %v395, %v1102
        %v1127 = vmul.f32 %v396, %v1102
        %v1128 = vmul.f32 %v397, %v1102
        %v1129 = vmul.f32 %v398, %v1102
        %v1130 = vmul.f32 %v399, %v1102
        %v1131 = vmul.f32 %v400, %v1102
        %v1132 = vmul.f32 %v401, %v1102
        %v1133 = vmul.f32 %v402, %v1102
        %v1134 = vmul.f32 %v403, %v1102
        %s1135 = sadd.s32 %s536, 2
        %s1136 = sld [smem:[#allocation9 + %s1135]]
        %v1137 = vstv %s1136
        %v1138 = vadd.f32 %v1103, %v1137
        %v1139 = vadd.f32 %v1104, %v1137
        %v1140 = vadd.f32 %v1105, %v1137
        %v1141 = vadd.f32 %v1106, %v1137
        %v1142 = vadd.f32 %v1107, %v1137
        %v1143 = vadd.f32 %v1108, %v1137
        %v1144 = vadd.f32 %v1109, %v1137
        %v1145 = vadd.f32 %v1110, %v1137
        %v1146 = vadd.f32 %v1111, %v1137
        %v1147 = vadd.f32 %v1112, %v1137
        %v1148 = vadd.f32 %v1113, %v1137
        %v1149 = vadd.f32 %v1114, %v1137
        %v1150 = vadd.f32 %v1115, %v1137
        %v1151 = vadd.f32 %v1116, %v1137
        %v1152 = vadd.f32 %v1117, %v1137
        %v1153 = vadd.f32 %v1118, %v1137
        %v1154 = vadd.f32 %v1119, %v1137
        %v1155 = vadd.f32 %v1120, %v1137
        %v1156 = vadd.f32 %v1121, %v1137
        %v1157 = vadd.f32 %v1122, %v1137
        %v1158 = vadd.f32 %v1123, %v1137
        %v1159 = vadd.f32 %v1124, %v1137
        %v1160 = vadd.f32 %v1125, %v1137
        %v1161 = vadd.f32 %v1126, %v1137
        %v1162 = vadd.f32 %v1127, %v1137
        %v1163 = vadd.f32 %v1128, %v1137
        %v1164 = vadd.f32 %v1129, %v1137
        %v1165 = vadd.f32 %v1130, %v1137
        %v1166 = vadd.f32 %v1131, %v1137
        %v1167 = vadd.f32 %v1132, %v1137
        %v1168 = vadd.f32 %v1133, %v1137
        %v1169 = vadd.f32 %v1134, %v1137
        %s1170 = sld [smem:[#allocation8 + $0x82]]
        %v1171 = vstv %s1170
        %v1172 = vmul.f32 %v404, %v1171
        %v1173 = vmul.f32 %v405, %v1171
        %v1174 = vmul.f32 %v406, %v1171
        %v1175 = vmul.f32 %v407, %v1171
        %v1176 = vmul.f32 %v408, %v1171
        %v1177 = vmul.f32 %v409, %v1171
        %v1178 = vmul.f32 %v410, %v1171
        %v1179 = vmul.f32 %v411, %v1171
        %v1180 = vmul.f32 %v412, %v1171
        %v1181 = vmul.f32 %v413, %v1171
        %v1182 = vmul.f32 %v414, %v1171
        %v1183 = vmul.f32 %v415, %v1171
        %v1184 = vmul.f32 %v416, %v1171
        %v1185 = vmul.f32 %v417, %v1171
        %v1186 = vmul.f32 %v418, %v1171
        %v1187 = vmul.f32 %v419, %v1171
        %v1188 = vmul.f32 %v420, %v1171
        %v1189 = vmul.f32 %v421, %v1171
        %v1190 = vmul.f32 %v422, %v1171
        %v1191 = vmul.f32 %v423, %v1171
        %v1192 = vmul.f32 %v424, %v1171
        %v1193 = vmul.f32 %v425, %v1171
        %v1194 = vmul.f32 %v426, %v1171
        %v1195 = vmul.f32 %v427, %v1171
        %v1196 = vmul.f32 %v428, %v1171
        %v1197 = vmul.f32 %v429, %v1171
        %v1198 = vmul.f32 %v430, %v1171
        %v1199 = vmul.f32 %v431, %v1171
        %v1200 = vmul.f32 %v432, %v1171
        %v1201 = vmul.f32 %v433, %v1171
        %v1202 = vmul.f32 %v434, %v1171
        %v1203 = vmul.f32 %v435, %v1171
        %v1204 = vadd.f32 %v1138, %v1172
        %v1205 = vadd.f32 %v1139, %v1173
        %v1206 = vadd.f32 %v1140, %v1174
        %v1207 = vadd.f32 %v1141, %v1175
        %v1208 = vadd.f32 %v1142, %v1176
        %v1209 = vadd.f32 %v1143, %v1177
        %v1210 = vadd.f32 %v1144, %v1178
        %v1211 = vadd.f32 %v1145, %v1179
        %v1212 = vadd.f32 %v1146, %v1180
        %v1213 = vadd.f32 %v1147, %v1181
        %v1214 = vadd.f32 %v1148, %v1182
        %v1215 = vadd.f32 %v1149, %v1183
        %v1216 = vadd.f32 %v1150, %v1184
        %v1217 = vadd.f32 %v1151, %v1185
        %v1218 = vadd.f32 %v1152, %v1186
        %v1219 = vadd.f32 %v1153, %v1187
        %v1220 = vadd.f32 %v1154, %v1188
        %v1221 = vadd.f32 %v1155, %v1189
        %v1222 = vadd.f32 %v1156, %v1190
        %v1223 = vadd.f32 %v1157, %v1191
        %v1224 = vadd.f32 %v1158, %v1192
        %v1225 = vadd.f32 %v1159, %v1193
        %v1226 = vadd.f32 %v1160, %v1194
        %v1227 = vadd.f32 %v1161, %v1195
        %v1228 = vadd.f32 %v1162, %v1196
        %v1229 = vadd.f32 %v1163, %v1197
        %v1230 = vadd.f32 %v1164, %v1198
        %v1231 = vadd.f32 %v1165, %v1199
        %v1232 = vadd.f32 %v1166, %v1200
        %v1233 = vadd.f32 %v1167, %v1201
        %v1234 = vadd.f32 %v1168, %v1202
        %v1235 = vadd.f32 %v1169, %v1203
        %s1236 = sld [smem:[#allocation8 + $0x102]]
        %v1237 = vstv %s1236
        %v1238 = vmul.f32 %v437, %v1237
        %v1239 = vmul.f32 %v438, %v1237
        %v1240 = vmul.f32 %v439, %v1237
        %v1241 = vmul.f32 %v440, %v1237
        %v1242 = vmul.f32 %v441, %v1237
        %v1243 = vmul.f32 %v442, %v1237
        %v1244 = vmul.f32 %v443, %v1237
        %v1245 = vmul.f32 %v444, %v1237
        %v1246 = vmul.f32 %v445, %v1237
        %v1247 = vmul.f32 %v446, %v1237
        %v1248 = vmul.f32 %v447, %v1237
        %v1249 = vmul.f32 %v448, %v1237
        %v1250 = vmul.f32 %v449, %v1237
        %v1251 = vmul.f32 %v450, %v1237
        %v1252 = vmul.f32 %v451, %v1237
        %v1253 = vmul.f32 %v452, %v1237
        %v1254 = vmul.f32 %v453, %v1237
        %v1255 = vmul.f32 %v454, %v1237
        %v1256 = vmul.f32 %v455, %v1237
        %v1257 = vmul.f32 %v456, %v1237
        %v1258 = vmul.f32 %v457, %v1237
        %v1259 = vmul.f32 %v458, %v1237
        %v1260 = vmul.f32 %v459, %v1237
        %v1261 = vmul.f32 %v460, %v1237
        %v1262 = vmul.f32 %v461, %v1237
        %v1263 = vmul.f32 %v462, %v1237
        %v1264 = vmul.f32 %v463, %v1237
        %v1265 = vmul.f32 %v464, %v1237
        %v1266 = vmul.f32 %v465, %v1237
        %v1267 = vmul.f32 %v466, %v1237
        %v1268 = vmul.f32 %v467, %v1237
        %v1269 = vmul.f32 %v468, %v1237
        %v1270 = vadd.f32 %v1204, %v1238
        %v1271 = vadd.f32 %v1205, %v1239
        %v1272 = vadd.f32 %v1206, %v1240
        %v1273 = vadd.f32 %v1207, %v1241
        %v1274 = vadd.f32 %v1208, %v1242
        %v1275 = vadd.f32 %v1209, %v1243
        %v1276 = vadd.f32 %v1210, %v1244
        %v1277 = vadd.f32 %v1211, %v1245
        %v1278 = vadd.f32 %v1212, %v1246
        %v1279 = vadd.f32 %v1213, %v1247
        %v1280 = vadd.f32 %v1214, %v1248
        %v1281 = vadd.f32 %v1215, %v1249
        %v1282 = vadd.f32 %v1216, %v1250
        %v1283 = vadd.f32 %v1217, %v1251
        %v1284 = vadd.f32 %v1218, %v1252
        %v1285 = vadd.f32 %v1219, %v1253
        %v1286 = vadd.f32 %v1220, %v1254
        %v1287 = vadd.f32 %v1221, %v1255
        %v1288 = vadd.f32 %v1222, %v1256
        %v1289 = vadd.f32 %v1223, %v1257
        %v1290 = vadd.f32 %v1224, %v1258
        %v1291 = vadd.f32 %v1225, %v1259
        %v1292 = vadd.f32 %v1226, %v1260
        %v1293 = vadd.f32 %v1227, %v1261
        %v1294 = vadd.f32 %v1228, %v1262
        %v1295 = vadd.f32 %v1229, %v1263
        %v1296 = vadd.f32 %v1230, %v1264
        %v1297 = vadd.f32 %v1231, %v1265
        %v1298 = vadd.f32 %v1232, %v1266
        %v1299 = vadd.f32 %v1233, %v1267
        %v1300 = vadd.f32 %v1234, %v1268
        %v1301 = vadd.f32 %v1235, %v1269
        %s1302 = sld [smem:[#allocation8 + $0x182]]
        %v1303 = vstv %s1302
        %v1304 = vmul.f32 %v470, %v1303
        %v1305 = vmul.f32 %v471, %v1303
        %v1306 = vmul.f32 %v472, %v1303
        %v1307 = vmul.f32 %v473, %v1303
        %v1308 = vmul.f32 %v474, %v1303
        %v1309 = vmul.f32 %v475, %v1303
        %v1310 = vmul.f32 %v476, %v1303
        %v1311 = vmul.f32 %v477, %v1303
        %v1312 = vmul.f32 %v478, %v1303
        %v1313 = vmul.f32 %v479, %v1303
        %v1314 = vmul.f32 %v480, %v1303
        %v1315 = vmul.f32 %v481, %v1303
        %v1316 = vmul.f32 %v482, %v1303
        %v1317 = vmul.f32 %v483, %v1303
        %v1318 = vmul.f32 %v484, %v1303
        %v1319 = vmul.f32 %v485, %v1303
        %v1320 = vmul.f32 %v486, %v1303
        %v1321 = vmul.f32 %v487, %v1303
        %v1322 = vmul.f32 %v488, %v1303
        %v1323 = vmul.f32 %v489, %v1303
        %v1324 = vmul.f32 %v490, %v1303
        %v1325 = vmul.f32 %v491, %v1303
        %v1326 = vmul.f32 %v492, %v1303
        %v1327 = vmul.f32 %v493, %v1303
        %v1328 = vmul.f32 %v494, %v1303
        %v1329 = vmul.f32 %v495, %v1303
        %v1330 = vmul.f32 %v496, %v1303
        %v1331 = vmul.f32 %v497, %v1303
        %v1332 = vmul.f32 %v498, %v1303
        %v1333 = vmul.f32 %v499, %v1303
        %v1334 = vmul.f32 %v500, %v1303
        %v1335 = vmul.f32 %v501, %v1303
        %v1336 = vadd.f32 %v1270, %v1304
        %v1337 = vadd.f32 %v1271, %v1305
        %v1338 = vadd.f32 %v1272, %v1306
        %v1339 = vadd.f32 %v1273, %v1307
        %v1340 = vadd.f32 %v1274, %v1308
        %v1341 = vadd.f32 %v1275, %v1309
        %v1342 = vadd.f32 %v1276, %v1310
        %v1343 = vadd.f32 %v1277, %v1311
        %v1344 = vadd.f32 %v1278, %v1312
        %v1345 = vadd.f32 %v1279, %v1313
        %v1346 = vadd.f32 %v1280, %v1314
        %v1347 = vadd.f32 %v1281, %v1315
        %v1348 = vadd.f32 %v1282, %v1316
        %v1349 = vadd.f32 %v1283, %v1317
        %v1350 = vadd.f32 %v1284, %v1318
        %v1351 = vadd.f32 %v1285, %v1319
        %v1352 = vadd.f32 %v1286, %v1320
        %v1353 = vadd.f32 %v1287, %v1321
        %v1354 = vadd.f32 %v1288, %v1322
        %v1355 = vadd.f32 %v1289, %v1323
        %v1356 = vadd.f32 %v1290, %v1324
        %v1357 = vadd.f32 %v1291, %v1325
        %v1358 = vadd.f32 %v1292, %v1326
        %v1359 = vadd.f32 %v1293, %v1327
        %v1360 = vadd.f32 %v1294, %v1328
        %v1361 = vadd.f32 %v1295, %v1329
        %v1362 = vadd.f32 %v1296, %v1330
        %v1363 = vadd.f32 %v1297, %v1331
        %v1364 = vadd.f32 %v1298, %v1332
        %v1365 = vadd.f32 %v1299, %v1333
        %v1366 = vadd.f32 %v1300, %v1334
        %v1367 = vadd.f32 %v1301, %v1335
        %s1368 = scalar_lea.vmem %s360, 512 [#allocation11]
        %1369 = vst [vmem:[%s1368] sm:$0xff] %v1336
        %1370 = vst [vmem:[%s1368 + $0x8] sm:$0xff] %v1337
        %1371 = vst [vmem:[%s1368 + $0x10] sm:$0xff] %v1338
        %1372 = vst [vmem:[%s1368 + $0x18] sm:$0xff] %v1339
        %1373 = vst [vmem:[%s1368 + $0x20] sm:$0xff] %v1340
        %1374 = vst [vmem:[%s1368 + $0x28] sm:$0xff] %v1341
        %1375 = vst [vmem:[%s1368 + $0x30] sm:$0xff] %v1342
        %1376 = vst [vmem:[%s1368 + $0x38] sm:$0xff] %v1343
        %1377 = vst [vmem:[%s1368 + $0x40] sm:$0xff] %v1344
        %1378 = vst [vmem:[%s1368 + $0x48] sm:$0xff] %v1345
        %1379 = vst [vmem:[%s1368 + $0x50] sm:$0xff] %v1346
        %1380 = vst [vmem:[%s1368 + $0x58] sm:$0xff] %v1347
        %1381 = vst [vmem:[%s1368 + $0x60] sm:$0xff] %v1348
        %1382 = vst [vmem:[%s1368 + $0x68] sm:$0xff] %v1349
        %1383 = vst [vmem:[%s1368 + $0x70] sm:$0xff] %v1350
        %1384 = vst [vmem:[%s1368 + $0x78] sm:$0xff] %v1351
        %1385 = vst [vmem:[%s1368 + $0x80] sm:$0xff] %v1352
        %1386 = vst [vmem:[%s1368 + $0x88] sm:$0xff] %v1353
        %1387 = vst [vmem:[%s1368 + $0x90] sm:$0xff] %v1354
        %1388 = vst [vmem:[%s1368 + $0x98] sm:$0xff] %v1355
        %1389 = vst [vmem:[%s1368 + $0xa0] sm:$0xff] %v1356
        %1390 = vst [vmem:[%s1368 + $0xa8] sm:$0xff] %v1357
        %1391 = vst [vmem:[%s1368 + $0xb0] sm:$0xff] %v1358
        %1392 = vst [vmem:[%s1368 + $0xb8] sm:$0xff] %v1359
        %1393 = vst [vmem:[%s1368 + $0xc0] sm:$0xff] %v1360
        %1394 = vst [vmem:[%s1368 + $0xc8] sm:$0xff] %v1361
        %1395 = vst [vmem:[%s1368 + $0xd0] sm:$0xff] %v1362
        %1396 = vst [vmem:[%s1368 + $0xd8] sm:$0xff] %v1363
        %1397 = vst [vmem:[%s1368 + $0xe0] sm:$0xff] %v1364
        %1398 = vst [vmem:[%s1368 + $0xe8] sm:$0xff] %v1365
        %1399 = vst [vmem:[%s1368 + $0xf0] sm:$0xff] %v1366
        %1400 = vst [vmem:[%s1368 + $0xf8] sm:$0xff] %v1367
        %s1401 = sld [smem:[#allocation8 + $0x3]]
        %v1402 = vstv %s1401
        %v1403 = vmul.f32 %v372, %v1402
        %v1404 = vmul.f32 %v373, %v1402
        %v1405 = vmul.f32 %v374, %v1402
        %v1406 = vmul.f32 %v375, %v1402
        %v1407 = vmul.f32 %v376, %v1402
        %v1408 = vmul.f32 %v377, %v1402
        %v1409 = vmul.f32 %v378, %v1402
        %v1410 = vmul.f32 %v379, %v1402
        %v1411 = vmul.f32 %v380, %v1402
        %v1412 = vmul.f32 %v381, %v1402
        %v1413 = vmul.f32 %v382, %v1402
        %v1414 = vmul.f32 %v383, %v1402
        %v1415 = vmul.f32 %v384, %v1402
        %v1416 = vmul.f32 %v385, %v1402
        %v1417 = vmul.f32 %v386, %v1402
        %v1418 = vmul.f32 %v387, %v1402
        %v1419 = vmul.f32 %v388, %v1402
        %v1420 = vmul.f32 %v389, %v1402
        %v1421 = vmul.f32 %v390, %v1402
        %v1422 = vmul.f32 %v391, %v1402
        %v1423 = vmul.f32 %v392, %v1402
        %v1424 = vmul.f32 %v393, %v1402
        %v1425 = vmul.f32 %v394, %v1402
        %v1426 = vmul.f32 %v395, %v1402
        %v1427 = vmul.f32 %v396, %v1402
        %v1428 = vmul.f32 %v397, %v1402
        %v1429 = vmul.f32 %v398, %v1402
        %v1430 = vmul.f32 %v399, %v1402
        %v1431 = vmul.f32 %v400, %v1402
        %v1432 = vmul.f32 %v401, %v1402
        %v1433 = vmul.f32 %v402, %v1402
        %v1434 = vmul.f32 %v403, %v1402
        %s1435 = sadd.s32 %s536, 3
        %s1436 = sld [smem:[#allocation9 + %s1435]]
        %v1437 = vstv %s1436
        %v1438 = vadd.f32 %v1403, %v1437
        %v1439 = vadd.f32 %v1404, %v1437
        %v1440 = vadd.f32 %v1405, %v1437
        %v1441 = vadd.f32 %v1406, %v1437
        %v1442 = vadd.f32 %v1407, %v1437
        %v1443 = vadd.f32 %v1408, %v1437
        %v1444 = vadd.f32 %v1409, %v1437
        %v1445 = vadd.f32 %v1410, %v1437
        %v1446 = vadd.f32 %v1411, %v1437
        %v1447 = vadd.f32 %v1412, %v1437
        %v1448 = vadd.f32 %v1413, %v1437
        %v1449 = vadd.f32 %v1414, %v1437
        %v1450 = vadd.f32 %v1415, %v1437
        %v1451 = vadd.f32 %v1416, %v1437
        %v1452 = vadd.f32 %v1417, %v1437
        %v1453 = vadd.f32 %v1418, %v1437
        %v1454 = vadd.f32 %v1419, %v1437
        %v1455 = vadd.f32 %v1420, %v1437
        %v1456 = vadd.f32 %v1421, %v1437
        %v1457 = vadd.f32 %v1422, %v1437
        %v1458 = vadd.f32 %v1423, %v1437
        %v1459 = vadd.f32 %v1424, %v1437
        %v1460 = vadd.f32 %v1425, %v1437
        %v1461 = vadd.f32 %v1426, %v1437
        %v1462 = vadd.f32 %v1427, %v1437
        %v1463 = vadd.f32 %v1428, %v1437
        %v1464 = vadd.f32 %v1429, %v1437
        %v1465 = vadd.f32 %v1430, %v1437
        %v1466 = vadd.f32 %v1431, %v1437
        %v1467 = vadd.f32 %v1432, %v1437
        %v1468 = vadd.f32 %v1433, %v1437
        %v1469 = vadd.f32 %v1434, %v1437
        %s1470 = sld [smem:[#allocation8 + $0x83]]
        %v1471 = vstv %s1470
        %v1472 = vmul.f32 %v404, %v1471
        %v1473 = vmul.f32 %v405, %v1471
        %v1474 = vmul.f32 %v406, %v1471
        %v1475 = vmul.f32 %v407, %v1471
        %v1476 = vmul.f32 %v408, %v1471
        %v1477 = vmul.f32 %v409, %v1471
        %v1478 = vmul.f32 %v410, %v1471
        %v1479 = vmul.f32 %v411, %v1471
        %v1480 = vmul.f32 %v412, %v1471
        %v1481 = vmul.f32 %v413, %v1471
        %v1482 = vmul.f32 %v414, %v1471
        %v1483 = vmul.f32 %v415, %v1471
        %v1484 = vmul.f32 %v416, %v1471
        %v1485 = vmul.f32 %v417, %v1471
        %v1486 = vmul.f32 %v418, %v1471
        %v1487 = vmul.f32 %v419, %v1471
        %v1488 = vmul.f32 %v420, %v1471
        %v1489 = vmul.f32 %v421, %v1471
        %v1490 = vmul.f32 %v422, %v1471
        %v1491 = vmul.f32 %v423, %v1471
        %v1492 = vmul.f32 %v424, %v1471
        %v1493 = vmul.f32 %v425, %v1471
        %v1494 = vmul.f32 %v426, %v1471
        %v1495 = vmul.f32 %v427, %v1471
        %v1496 = vmul.f32 %v428, %v1471
        %v1497 = vmul.f32 %v429, %v1471
        %v1498 = vmul.f32 %v430, %v1471
        %v1499 = vmul.f32 %v431, %v1471
        %v1500 = vmul.f32 %v432, %v1471
        %v1501 = vmul.f32 %v433, %v1471
        %v1502 = vmul.f32 %v434, %v1471
        %v1503 = vmul.f32 %v435, %v1471
        %v1504 = vadd.f32 %v1438, %v1472
        %v1505 = vadd.f32 %v1439, %v1473
        %v1506 = vadd.f32 %v1440, %v1474
        %v1507 = vadd.f32 %v1441, %v1475
        %v1508 = vadd.f32 %v1442, %v1476
        %v1509 = vadd.f32 %v1443, %v1477
        %v1510 = vadd.f32 %v1444, %v1478
        %v1511 = vadd.f32 %v1445, %v1479
        %v1512 = vadd.f32 %v1446, %v1480
        %v1513 = vadd.f32 %v1447, %v1481
        %v1514 = vadd.f32 %v1448, %v1482
        %v1515 = vadd.f32 %v1449, %v1483
        %v1516 = vadd.f32 %v1450, %v1484
        %v1517 = vadd.f32 %v1451, %v1485
        %v1518 = vadd.f32 %v1452, %v1486
        %v1519 = vadd.f32 %v1453, %v1487
        %v1520 = vadd.f32 %v1454, %v1488
        %v1521 = vadd.f32 %v1455, %v1489
        %v1522 = vadd.f32 %v1456, %v1490
        %v1523 = vadd.f32 %v1457, %v1491
        %v1524 = vadd.f32 %v1458, %v1492
        %v1525 = vadd.f32 %v1459, %v1493
        %v1526 = vadd.f32 %v1460, %v1494
        %v1527 = vadd.f32 %v1461, %v1495
        %v1528 = vadd.f32 %v1462, %v1496
        %v1529 = vadd.f32 %v1463, %v1497
        %v1530 = vadd.f32 %v1464, %v1498
        %v1531 = vadd.f32 %v1465, %v1499
        %v1532 = vadd.f32 %v1466, %v1500
        %v1533 = vadd.f32 %v1467, %v1501
        %v1534 = vadd.f32 %v1468, %v1502
        %v1535 = vadd.f32 %v1469, %v1503
        %s1536 = sld [smem:[#allocation8 + $0x103]]
        %v1537 = vstv %s1536
        %v1538 = vmul.f32 %v437, %v1537
        %v1539 = vmul.f32 %v438, %v1537
        %v1540 = vmul.f32 %v439, %v1537
        %v1541 = vmul.f32 %v440, %v1537
        %v1542 = vmul.f32 %v441, %v1537
        %v1543 = vmul.f32 %v442, %v1537
        %v1544 = vmul.f32 %v443, %v1537
        %v1545 = vmul.f32 %v444, %v1537
        %v1546 = vmul.f32 %v445, %v1537
        %v1547 = vmul.f32 %v446, %v1537
        %v1548 = vmul.f32 %v447, %v1537
        %v1549 = vmul.f32 %v448, %v1537
        %v1550 = vmul.f32 %v449, %v1537
        %v1551 = vmul.f32 %v450, %v1537
        %v1552 = vmul.f32 %v451, %v1537
        %v1553 = vmul.f32 %v452, %v1537
        %v1554 = vmul.f32 %v453, %v1537
        %v1555 = vmul.f32 %v454, %v1537
        %v1556 = vmul.f32 %v455, %v1537
        %v1557 = vmul.f32 %v456, %v1537
        %v1558 = vmul.f32 %v457, %v1537
        %v1559 = vmul.f32 %v458, %v1537
        %v1560 = vmul.f32 %v459, %v1537
        %v1561 = vmul.f32 %v460, %v1537
        %v1562 = vmul.f32 %v461, %v1537
        %v1563 = vmul.f32 %v462, %v1537
        %v1564 = vmul.f32 %v463, %v1537
        %v1565 = vmul.f32 %v464, %v1537
        %v1566 = vmul.f32 %v465, %v1537
        %v1567 = vmul.f32 %v466, %v1537
        %v1568 = vmul.f32 %v467, %v1537
        %v1569 = vmul.f32 %v468, %v1537
        %v1570 = vadd.f32 %v1504, %v1538
        %v1571 = vadd.f32 %v1505, %v1539
        %v1572 = vadd.f32 %v1506, %v1540
        %v1573 = vadd.f32 %v1507, %v1541
        %v1574 = vadd.f32 %v1508, %v1542
        %v1575 = vadd.f32 %v1509, %v1543
        %v1576 = vadd.f32 %v1510, %v1544
        %v1577 = vadd.f32 %v1511, %v1545
        %v1578 = vadd.f32 %v1512, %v1546
        %v1579 = vadd.f32 %v1513, %v1547
        %v1580 = vadd.f32 %v1514, %v1548
        %v1581 = vadd.f32 %v1515, %v1549
        %v1582 = vadd.f32 %v1516, %v1550
        %v1583 = vadd.f32 %v1517, %v1551
        %v1584 = vadd.f32 %v1518, %v1552
        %v1585 = vadd.f32 %v1519, %v1553
        %v1586 = vadd.f32 %v1520, %v1554
        %v1587 = vadd.f32 %v1521, %v1555
        %v1588 = vadd.f32 %v1522, %v1556
        %v1589 = vadd.f32 %v1523, %v1557
        %v1590 = vadd.f32 %v1524, %v1558
        %v1591 = vadd.f32 %v1525, %v1559
        %v1592 = vadd.f32 %v1526, %v1560
        %v1593 = vadd.f32 %v1527, %v1561
        %v1594 = vadd.f32 %v1528, %v1562
        %v1595 = vadd.f32 %v1529, %v1563
        %v1596 = vadd.f32 %v1530, %v1564
        %v1597 = vadd.f32 %v1531, %v1565
        %v1598 = vadd.f32 %v1532, %v1566
        %v1599 = vadd.f32 %v1533, %v1567
        %v1600 = vadd.f32 %v1534, %v1568
        %v1601 = vadd.f32 %v1535, %v1569
        %s1602 = sld [smem:[#allocation8 + $0x183]]
        %v1603 = vstv %s1602
        %v1604 = vmul.f32 %v470, %v1603
        %v1605 = vmul.f32 %v471, %v1603
        %v1606 = vmul.f32 %v472, %v1603
        %v1607 = vmul.f32 %v473, %v1603
        %v1608 = vmul.f32 %v474, %v1603
        %v1609 = vmul.f32 %v475, %v1603
        %v1610 = vmul.f32 %v476, %v1603
        %v1611 = vmul.f32 %v477, %v1603
        %v1612 = vmul.f32 %v478, %v1603
        %v1613 = vmul.f32 %v479, %v1603
        %v1614 = vmul.f32 %v480, %v1603
        %v1615 = vmul.f32 %v481, %v1603
        %v1616 = vmul.f32 %v482, %v1603
        %v1617 = vmul.f32 %v483, %v1603
        %v1618 = vmul.f32 %v484, %v1603
        %v1619 = vmul.f32 %v485, %v1603
        %v1620 = vmul.f32 %v486, %v1603
        %v1621 = vmul.f32 %v487, %v1603
        %v1622 = vmul.f32 %v488, %v1603
        %v1623 = vmul.f32 %v489, %v1603
        %v1624 = vmul.f32 %v490, %v1603
        %v1625 = vmul.f32 %v491, %v1603
        %v1626 = vmul.f32 %v492, %v1603
        %v1627 = vmul.f32 %v493, %v1603
        %v1628 = vmul.f32 %v494, %v1603
        %v1629 = vmul.f32 %v495, %v1603
        %v1630 = vmul.f32 %v496, %v1603
        %v1631 = vmul.f32 %v497, %v1603
        %v1632 = vmul.f32 %v498, %v1603
        %v1633 = vmul.f32 %v499, %v1603
        %v1634 = vmul.f32 %v500, %v1603
        %v1635 = vmul.f32 %v501, %v1603
        %v1636 = vadd.f32 %v1570, %v1604
        %v1637 = vadd.f32 %v1571, %v1605
        %v1638 = vadd.f32 %v1572, %v1606
        %v1639 = vadd.f32 %v1573, %v1607
        %v1640 = vadd.f32 %v1574, %v1608
        %v1641 = vadd.f32 %v1575, %v1609
        %v1642 = vadd.f32 %v1576, %v1610
        %v1643 = vadd.f32 %v1577, %v1611
        %v1644 = vadd.f32 %v1578, %v1612
        %v1645 = vadd.f32 %v1579, %v1613
        %v1646 = vadd.f32 %v1580, %v1614
        %v1647 = vadd.f32 %v1581, %v1615
        %v1648 = vadd.f32 %v1582, %v1616
        %v1649 = vadd.f32 %v1583, %v1617
        %v1650 = vadd.f32 %v1584, %v1618
        %v1651 = vadd.f32 %v1585, %v1619
        %v1652 = vadd.f32 %v1586, %v1620
        %v1653 = vadd.f32 %v1587, %v1621
        %v1654 = vadd.f32 %v1588, %v1622
        %v1655 = vadd.f32 %v1589, %v1623
        %v1656 = vadd.f32 %v1590, %v1624
        %v1657 = vadd.f32 %v1591, %v1625
        %v1658 = vadd.f32 %v1592, %v1626
        %v1659 = vadd.f32 %v1593, %v1627
        %v1660 = vadd.f32 %v1594, %v1628
        %v1661 = vadd.f32 %v1595, %v1629
        %v1662 = vadd.f32 %v1596, %v1630
        %v1663 = vadd.f32 %v1597, %v1631
        %v1664 = vadd.f32 %v1598, %v1632
        %v1665 = vadd.f32 %v1599, %v1633
        %v1666 = vadd.f32 %v1600, %v1634
        %v1667 = vadd.f32 %v1601, %v1635
        %s1668 = scalar_lea.vmem %s360, 768 [#allocation11]
        %1669 = vst [vmem:[%s1668] sm:$0xff] %v1636
        %1670 = vst [vmem:[%s1668 + $0x8] sm:$0xff] %v1637
        %1671 = vst [vmem:[%s1668 + $0x10] sm:$0xff] %v1638
        %1672 = vst [vmem:[%s1668 + $0x18] sm:$0xff] %v1639
        %1673 = vst [vmem:[%s1668 + $0x20] sm:$0xff] %v1640
        %1674 = vst [vmem:[%s1668 + $0x28] sm:$0xff] %v1641
        %1675 = vst [vmem:[%s1668 + $0x30] sm:$0xff] %v1642
        %1676 = vst [vmem:[%s1668 + $0x38] sm:$0xff] %v1643
        %1677 = vst [vmem:[%s1668 + $0x40] sm:$0xff] %v1644
        %1678 = vst [vmem:[%s1668 + $0x48] sm:$0xff] %v1645
        %1679 = vst [vmem:[%s1668 + $0x50] sm:$0xff] %v1646
        %1680 = vst [vmem:[%s1668 + $0x58] sm:$0xff] %v1647
        %1681 = vst [vmem:[%s1668 + $0x60] sm:$0xff] %v1648
        %1682 = vst [vmem:[%s1668 + $0x68] sm:$0xff] %v1649
        %1683 = vst [vmem:[%s1668 + $0x70] sm:$0xff] %v1650
        %1684 = vst [vmem:[%s1668 + $0x78] sm:$0xff] %v1651
        %1685 = vst [vmem:[%s1668 + $0x80] sm:$0xff] %v1652
        %1686 = vst [vmem:[%s1668 + $0x88] sm:$0xff] %v1653
        %1687 = vst [vmem:[%s1668 + $0x90] sm:$0xff] %v1654
        %1688 = vst [vmem:[%s1668 + $0x98] sm:$0xff] %v1655
        %1689 = vst [vmem:[%s1668 + $0xa0] sm:$0xff] %v1656
        %1690 = vst [vmem:[%s1668 + $0xa8] sm:$0xff] %v1657
        %1691 = vst [vmem:[%s1668 + $0xb0] sm:$0xff] %v1658
        %1692 = vst [vmem:[%s1668 + $0xb8] sm:$0xff] %v1659
        %1693 = vst [vmem:[%s1668 + $0xc0] sm:$0xff] %v1660
        %1694 = vst [vmem:[%s1668 + $0xc8] sm:$0xff] %v1661
        %1695 = vst [vmem:[%s1668 + $0xd0] sm:$0xff] %v1662
        %1696 = vst [vmem:[%s1668 + $0xd8] sm:$0xff] %v1663
        %1697 = vst [vmem:[%s1668 + $0xe0] sm:$0xff] %v1664
        %1698 = vst [vmem:[%s1668 + $0xe8] sm:$0xff] %v1665
        %1699 = vst [vmem:[%s1668 + $0xf0] sm:$0xff] %v1666
        %1700 = vst [vmem:[%s1668 + $0xf8] sm:$0xff] %v1667
        %s1701 = sld [smem:[#allocation8 + $0x4]]
        %v1702 = vstv %s1701
        %v1703 = vmul.f32 %v372, %v1702
        %v1704 = vmul.f32 %v373, %v1702
        %v1705 = vmul.f32 %v374, %v1702
        %v1706 = vmul.f32 %v375, %v1702
        %v1707 = vmul.f32 %v376, %v1702
        %v1708 = vmul.f32 %v377, %v1702
        %v1709 = vmul.f32 %v378, %v1702
        %v1710 = vmul.f32 %v379, %v1702
        %v1711 = vmul.f32 %v380, %v1702
        %v1712 = vmul.f32 %v381, %v1702
        %v1713 = vmul.f32 %v382, %v1702
        %v1714 = vmul.f32 %v383, %v1702
        %v1715 = vmul.f32 %v384, %v1702
        %v1716 = vmul.f32 %v385, %v1702
        %v1717 = vmul.f32 %v386, %v1702
        %v1718 = vmul.f32 %v387, %v1702
        %v1719 = vmul.f32 %v388, %v1702
        %v1720 = vmul.f32 %v389, %v1702
        %v1721 = vmul.f32 %v390, %v1702
        %v1722 = vmul.f32 %v391, %v1702
        %v1723 = vmul.f32 %v392, %v1702
        %v1724 = vmul.f32 %v393, %v1702
        %v1725 = vmul.f32 %v394, %v1702
        %v1726 = vmul.f32 %v395, %v1702
        %v1727 = vmul.f32 %v396, %v1702
        %v1728 = vmul.f32 %v397, %v1702
        %v1729 = vmul.f32 %v398, %v1702
        %v1730 = vmul.f32 %v399, %v1702
        %v1731 = vmul.f32 %v400, %v1702
        %v1732 = vmul.f32 %v401, %v1702
        %v1733 = vmul.f32 %v402, %v1702
        %v1734 = vmul.f32 %v403, %v1702
        %s1735 = sadd.s32 %s536, 4
        %s1736 = sld [smem:[#allocation9 + %s1735]]
        %v1737 = vstv %s1736
        %v1738 = vadd.f32 %v1703, %v1737
        %v1739 = vadd.f32 %v1704, %v1737
        %v1740 = vadd.f32 %v1705, %v1737
        %v1741 = vadd.f32 %v1706, %v1737
        %v1742 = vadd.f32 %v1707, %v1737
        %v1743 = vadd.f32 %v1708, %v1737
        %v1744 = vadd.f32 %v1709, %v1737
        %v1745 = vadd.f32 %v1710, %v1737
        %v1746 = vadd.f32 %v1711, %v1737
        %v1747 = vadd.f32 %v1712, %v1737
        %v1748 = vadd.f32 %v1713, %v1737
        %v1749 = vadd.f32 %v1714, %v1737
        %v1750 = vadd.f32 %v1715, %v1737
        %v1751 = vadd.f32 %v1716, %v1737
        %v1752 = vadd.f32 %v1717, %v1737
        %v1753 = vadd.f32 %v1718, %v1737
        %v1754 = vadd.f32 %v1719, %v1737
        %v1755 = vadd.f32 %v1720, %v1737
        %v1756 = vadd.f32 %v1721, %v1737
        %v1757 = vadd.f32 %v1722, %v1737
        %v1758 = vadd.f32 %v1723, %v1737
        %v1759 = vadd.f32 %v1724, %v1737
        %v1760 = vadd.f32 %v1725, %v1737
        %v1761 = vadd.f32 %v1726, %v1737
        %v1762 = vadd.f32 %v1727, %v1737
        %v1763 = vadd.f32 %v1728, %v1737
        %v1764 = vadd.f32 %v1729, %v1737
        %v1765 = vadd.f32 %v1730, %v1737
        %v1766 = vadd.f32 %v1731, %v1737
        %v1767 = vadd.f32 %v1732, %v1737
        %v1768 = vadd.f32 %v1733, %v1737
        %v1769 = vadd.f32 %v1734, %v1737
        %s1770 = sld [smem:[#allocation8 + $0x84]]
        %v1771 = vstv %s1770
        %v1772 = vmul.f32 %v404, %v1771
        %v1773 = vmul.f32 %v405, %v1771
        %v1774 = vmul.f32 %v406, %v1771
        %v1775 = vmul.f32 %v407, %v1771
        %v1776 = vmul.f32 %v408, %v1771
        %v1777 = vmul.f32 %v409, %v1771
        %v1778 = vmul.f32 %v410, %v1771
        %v1779 = vmul.f32 %v411, %v1771
        %v1780 = vmul.f32 %v412, %v1771
        %v1781 = vmul.f32 %v413, %v1771
        %v1782 = vmul.f32 %v414, %v1771
        %v1783 = vmul.f32 %v415, %v1771
        %v1784 = vmul.f32 %v416, %v1771
        %v1785 = vmul.f32 %v417, %v1771
        %v1786 = vmul.f32 %v418, %v1771
        %v1787 = vmul.f32 %v419, %v1771
        %v1788 = vmul.f32 %v420, %v1771
        %v1789 = vmul.f32 %v421, %v1771
        %v1790 = vmul.f32 %v422, %v1771
        %v1791 = vmul.f32 %v423, %v1771
        %v1792 = vmul.f32 %v424, %v1771
        %v1793 = vmul.f32 %v425, %v1771
        %v1794 = vmul.f32 %v426, %v1771
        %v1795 = vmul.f32 %v427, %v1771
        %v1796 = vmul.f32 %v428, %v1771
        %v1797 = vmul.f32 %v429, %v1771
        %v1798 = vmul.f32 %v430, %v1771
        %v1799 = vmul.f32 %v431, %v1771
        %v1800 = vmul.f32 %v432, %v1771
        %v1801 = vmul.f32 %v433, %v1771
        %v1802 = vmul.f32 %v434, %v1771
        %v1803 = vmul.f32 %v435, %v1771
        %v1804 = vadd.f32 %v1738, %v1772
        %v1805 = vadd.f32 %v1739, %v1773
        %v1806 = vadd.f32 %v1740, %v1774
        %v1807 = vadd.f32 %v1741, %v1775
        %v1808 = vadd.f32 %v1742, %v1776
        %v1809 = vadd.f32 %v1743, %v1777
        %v1810 = vadd.f32 %v1744, %v1778
        %v1811 = vadd.f32 %v1745, %v1779
        %v1812 = vadd.f32 %v1746, %v1780
        %v1813 = vadd.f32 %v1747, %v1781
        %v1814 = vadd.f32 %v1748, %v1782
        %v1815 = vadd.f32 %v1749, %v1783
        %v1816 = vadd.f32 %v1750, %v1784
        %v1817 = vadd.f32 %v1751, %v1785
        %v1818 = vadd.f32 %v1752, %v1786
        %v1819 = vadd.f32 %v1753, %v1787
        %v1820 = vadd.f32 %v1754, %v1788
        %v1821 = vadd.f32 %v1755, %v1789
        %v1822 = vadd.f32 %v1756, %v1790
        %v1823 = vadd.f32 %v1757, %v1791
        %v1824 = vadd.f32 %v1758, %v1792
        %v1825 = vadd.f32 %v1759, %v1793
        %v1826 = vadd.f32 %v1760, %v1794
        %v1827 = vadd.f32 %v1761, %v1795
        %v1828 = vadd.f32 %v1762, %v1796
        %v1829 = vadd.f32 %v1763, %v1797
        %v1830 = vadd.f32 %v1764, %v1798
        %v1831 = vadd.f32 %v1765, %v1799
        %v1832 = vadd.f32 %v1766, %v1800
        %v1833 = vadd.f32 %v1767, %v1801
        %v1834 = vadd.f32 %v1768, %v1802
        %v1835 = vadd.f32 %v1769, %v1803
        %s1836 = sld [smem:[#allocation8 + $0x104]]
        %v1837 = vstv %s1836
        %v1838 = vmul.f32 %v437, %v1837
        %v1839 = vmul.f32 %v438, %v1837
        %v1840 = vmul.f32 %v439, %v1837
        %v1841 = vmul.f32 %v440, %v1837
        %v1842 = vmul.f32 %v441, %v1837
        %v1843 = vmul.f32 %v442, %v1837
        %v1844 = vmul.f32 %v443, %v1837
        %v1845 = vmul.f32 %v444, %v1837
        %v1846 = vmul.f32 %v445, %v1837
        %v1847 = vmul.f32 %v446, %v1837
        %v1848 = vmul.f32 %v447, %v1837
        %v1849 = vmul.f32 %v448, %v1837
        %v1850 = vmul.f32 %v449, %v1837
        %v1851 = vmul.f32 %v450, %v1837
        %v1852 = vmul.f32 %v451, %v1837
        %v1853 = vmul.f32 %v452, %v1837
        %v1854 = vmul.f32 %v453, %v1837
        %v1855 = vmul.f32 %v454, %v1837
        %v1856 = vmul.f32 %v455, %v1837
        %v1857 = vmul.f32 %v456, %v1837
        %v1858 = vmul.f32 %v457, %v1837
        %v1859 = vmul.f32 %v458, %v1837
        %v1860 = vmul.f32 %v459, %v1837
        %v1861 = vmul.f32 %v460, %v1837
        %v1862 = vmul.f32 %v461, %v1837
        %v1863 = vmul.f32 %v462, %v1837
        %v1864 = vmul.f32 %v463, %v1837
        %v1865 = vmul.f32 %v464, %v1837
        %v1866 = vmul.f32 %v465, %v1837
        %v1867 = vmul.f32 %v466, %v1837
        %v1868 = vmul.f32 %v467, %v1837
        %v1869 = vmul.f32 %v468, %v1837
        %v1870 = vadd.f32 %v1804, %v1838
        %v1871 = vadd.f32 %v1805, %v1839
        %v1872 = vadd.f32 %v1806, %v1840
        %v1873 = vadd.f32 %v1807, %v1841
        %v1874 = vadd.f32 %v1808, %v1842
        %v1875 = vadd.f32 %v1809, %v1843
        %v1876 = vadd.f32 %v1810, %v1844
        %v1877 = vadd.f32 %v1811, %v1845
        %v1878 = vadd.f32 %v1812, %v1846
        %v1879 = vadd.f32 %v1813, %v1847
        %v1880 = vadd.f32 %v1814, %v1848
        %v1881 = vadd.f32 %v1815, %v1849
        %v1882 = vadd.f32 %v1816, %v1850
        %v1883 = vadd.f32 %v1817, %v1851
        %v1884 = vadd.f32 %v1818, %v1852
        %v1885 = vadd.f32 %v1819, %v1853
        %v1886 = vadd.f32 %v1820, %v1854
        %v1887 = vadd.f32 %v1821, %v1855
        %v1888 = vadd.f32 %v1822, %v1856
        %v1889 = vadd.f32 %v1823, %v1857
        %v1890 = vadd.f32 %v1824, %v1858
        %v1891 = vadd.f32 %v1825, %v1859
        %v1892 = vadd.f32 %v1826, %v1860
        %v1893 = vadd.f32 %v1827, %v1861
        %v1894 = vadd.f32 %v1828, %v1862
        %v1895 = vadd.f32 %v1829, %v1863
        %v1896 = vadd.f32 %v1830, %v1864
        %v1897 = vadd.f32 %v1831, %v1865
        %v1898 = vadd.f32 %v1832, %v1866
        %v1899 = vadd.f32 %v1833, %v1867
        %v1900 = vadd.f32 %v1834, %v1868
        %v1901 = vadd.f32 %v1835, %v1869
        %s1902 = sld [smem:[#allocation8 + $0x184]]
        %v1903 = vstv %s1902
        %v1904 = vmul.f32 %v470, %v1903
        %v1905 = vmul.f32 %v471, %v1903
        %v1906 = vmul.f32 %v472, %v1903
        %v1907 = vmul.f32 %v473, %v1903
        %v1908 = vmul.f32 %v474, %v1903
        %v1909 = vmul.f32 %v475, %v1903
        %v1910 = vmul.f32 %v476, %v1903
        %v1911 = vmul.f32 %v477, %v1903
        %v1912 = vmul.f32 %v478, %v1903
        %v1913 = vmul.f32 %v479, %v1903
        %v1914 = vmul.f32 %v480, %v1903
        %v1915 = vmul.f32 %v481, %v1903
        %v1916 = vmul.f32 %v482, %v1903
        %v1917 = vmul.f32 %v483, %v1903
        %v1918 = vmul.f32 %v484, %v1903
        %v1919 = vmul.f32 %v485, %v1903
        %v1920 = vmul.f32 %v486, %v1903
        %v1921 = vmul.f32 %v487, %v1903
        %v1922 = vmul.f32 %v488, %v1903
        %v1923 = vmul.f32 %v489, %v1903
        %v1924 = vmul.f32 %v490, %v1903
        %v1925 = vmul.f32 %v491, %v1903
        %v1926 = vmul.f32 %v492, %v1903
        %v1927 = vmul.f32 %v493, %v1903
        %v1928 = vmul.f32 %v494, %v1903
        %v1929 = vmul.f32 %v495, %v1903
        %v1930 = vmul.f32 %v496, %v1903
        %v1931 = vmul.f32 %v497, %v1903
        %v1932 = vmul.f32 %v498, %v1903
        %v1933 = vmul.f32 %v499, %v1903
        %v1934 = vmul.f32 %v500, %v1903
        %v1935 = vmul.f32 %v501, %v1903
        %v1936 = vadd.f32 %v1870, %v1904
        %v1937 = vadd.f32 %v1871, %v1905
        %v1938 = vadd.f32 %v1872, %v1906
        %v1939 = vadd.f32 %v1873, %v1907
        %v1940 = vadd.f32 %v1874, %v1908
        %v1941 = vadd.f32 %v1875, %v1909
        %v1942 = vadd.f32 %v1876, %v1910
        %v1943 = vadd.f32 %v1877, %v1911
        %v1944 = vadd.f32 %v1878, %v1912
        %v1945 = vadd.f32 %v1879, %v1913
        %v1946 = vadd.f32 %v1880, %v1914
        %v1947 = vadd.f32 %v1881, %v1915
        %v1948 = vadd.f32 %v1882, %v1916
        %v1949 = vadd.f32 %v1883, %v1917
        %v1950 = vadd.f32 %v1884, %v1918
        %v1951 = vadd.f32 %v1885, %v1919
        %v1952 = vadd.f32 %v1886, %v1920
        %v1953 = vadd.f32 %v1887, %v1921
        %v1954 = vadd.f32 %v1888, %v1922
        %v1955 = vadd.f32 %v1889, %v1923
        %v1956 = vadd.f32 %v1890, %v1924
        %v1957 = vadd.f32 %v1891, %v1925
        %v1958 = vadd.f32 %v1892, %v1926
        %v1959 = vadd.f32 %v1893, %v1927
        %v1960 = vadd.f32 %v1894, %v1928
        %v1961 = vadd.f32 %v1895, %v1929
        %v1962 = vadd.f32 %v1896, %v1930
        %v1963 = vadd.f32 %v1897, %v1931
        %v1964 = vadd.f32 %v1898, %v1932
        %v1965 = vadd.f32 %v1899, %v1933
        %v1966 = vadd.f32 %v1900, %v1934
        %v1967 = vadd.f32 %v1901, %v1935
        %s1968 = scalar_lea.vmem %s360, 1024 [#allocation11]
        %1969 = vst [vmem:[%s1968] sm:$0xff] %v1936
        %1970 = vst [vmem:[%s1968 + $0x8] sm:$0xff] %v1937
        %1971 = vst [vmem:[%s1968 + $0x10] sm:$0xff] %v1938
        %1972 = vst [vmem:[%s1968 + $0x18] sm:$0xff] %v1939
        %1973 = vst [vmem:[%s1968 + $0x20] sm:$0xff] %v1940
        %1974 = vst [vmem:[%s1968 + $0x28] sm:$0xff] %v1941
        %1975 = vst [vmem:[%s1968 + $0x30] sm:$0xff] %v1942
        %1976 = vst [vmem:[%s1968 + $0x38] sm:$0xff] %v1943
        %1977 = vst [vmem:[%s1968 + $0x40] sm:$0xff] %v1944
        %1978 = vst [vmem:[%s1968 + $0x48] sm:$0xff] %v1945
        %1979 = vst [vmem:[%s1968 + $0x50] sm:$0xff] %v1946
        %1980 = vst [vmem:[%s1968 + $0x58] sm:$0xff] %v1947
        %1981 = vst [vmem:[%s1968 + $0x60] sm:$0xff] %v1948
        %1982 = vst [vmem:[%s1968 + $0x68] sm:$0xff] %v1949
        %1983 = vst [vmem:[%s1968 + $0x70] sm:$0xff] %v1950
        %1984 = vst [vmem:[%s1968 + $0x78] sm:$0xff] %v1951
        %1985 = vst [vmem:[%s1968 + $0x80] sm:$0xff] %v1952
        %1986 = vst [vmem:[%s1968 + $0x88] sm:$0xff] %v1953
        %1987 = vst [vmem:[%s1968 + $0x90] sm:$0xff] %v1954
        %1988 = vst [vmem:[%s1968 + $0x98] sm:$0xff] %v1955
        %1989 = vst [vmem:[%s1968 + $0xa0] sm:$0xff] %v1956
        %1990 = vst [vmem:[%s1968 + $0xa8] sm:$0xff] %v1957
        %1991 = vst [vmem:[%s1968 + $0xb0] sm:$0xff] %v1958
        %1992 = vst [vmem:[%s1968 + $0xb8] sm:$0xff] %v1959
        %1993 = vst [vmem:[%s1968 + $0xc0] sm:$0xff] %v1960
        %1994 = vst [vmem:[%s1968 + $0xc8] sm:$0xff] %v1961
        %1995 = vst [vmem:[%s1968 + $0xd0] sm:$0xff] %v1962
        %1996 = vst [vmem:[%s1968 + $0xd8] sm:$0xff] %v1963
        %1997 = vst [vmem:[%s1968 + $0xe0] sm:$0xff] %v1964
        %1998 = vst [vmem:[%s1968 + $0xe8] sm:$0xff] %v1965
        %1999 = vst [vmem:[%s1968 + $0xf0] sm:$0xff] %v1966
        %2000 = vst [vmem:[%s1968 + $0xf8] sm:$0xff] %v1967
        %s2001 = sld [smem:[#allocation8 + $0x5]]
        %v2002 = vstv %s2001
        %v2003 = vmul.f32 %v372, %v2002
        %v2004 = vmul.f32 %v373, %v2002
        %v2005 = vmul.f32 %v374, %v2002
        %v2006 = vmul.f32 %v375, %v2002
        %v2007 = vmul.f32 %v376, %v2002
        %v2008 = vmul.f32 %v377, %v2002
        %v2009 = vmul.f32 %v378, %v2002
        %v2010 = vmul.f32 %v379, %v2002
        %v2011 = vmul.f32 %v380, %v2002
        %v2012 = vmul.f32 %v381, %v2002
        %v2013 = vmul.f32 %v382, %v2002
        %v2014 = vmul.f32 %v383, %v2002
        %v2015 = vmul.f32 %v384, %v2002
        %v2016 = vmul.f32 %v385, %v2002
        %v2017 = vmul.f32 %v386, %v2002
        %v2018 = vmul.f32 %v387, %v2002
        %v2019 = vmul.f32 %v388, %v2002
        %v2020 = vmul.f32 %v389, %v2002
        %v2021 = vmul.f32 %v390, %v2002
        %v2022 = vmul.f32 %v391, %v2002
        %v2023 = vmul.f32 %v392, %v2002
        %v2024 = vmul.f32 %v393, %v2002
        %v2025 = vmul.f32 %v394, %v2002
        %v2026 = vmul.f32 %v395, %v2002
        %v2027 = vmul.f32 %v396, %v2002
        %v2028 = vmul.f32 %v397, %v2002
        %v2029 = vmul.f32 %v398, %v2002
        %v2030 = vmul.f32 %v399, %v2002
        %v2031 = vmul.f32 %v400, %v2002
        %v2032 = vmul.f32 %v401, %v2002
        %v2033 = vmul.f32 %v402, %v2002
        %v2034 = vmul.f32 %v403, %v2002
        %s2035 = sadd.s32 %s536, 5
        %s2036 = sld [smem:[#allocation9 + %s2035]]
        %v2037 = vstv %s2036
        %v2038 = vadd.f32 %v2003, %v2037
        %v2039 = vadd.f32 %v2004, %v2037
        %v2040 = vadd.f32 %v2005, %v2037
        %v2041 = vadd.f32 %v2006, %v2037
        %v2042 = vadd.f32 %v2007, %v2037
        %v2043 = vadd.f32 %v2008, %v2037
        %v2044 = vadd.f32 %v2009, %v2037
        %v2045 = vadd.f32 %v2010, %v2037
        %v2046 = vadd.f32 %v2011, %v2037
        %v2047 = vadd.f32 %v2012, %v2037
        %v2048 = vadd.f32 %v2013, %v2037
        %v2049 = vadd.f32 %v2014, %v2037
        %v2050 = vadd.f32 %v2015, %v2037
        %v2051 = vadd.f32 %v2016, %v2037
        %v2052 = vadd.f32 %v2017, %v2037
        %v2053 = vadd.f32 %v2018, %v2037
        %v2054 = vadd.f32 %v2019, %v2037
        %v2055 = vadd.f32 %v2020, %v2037
        %v2056 = vadd.f32 %v2021, %v2037
        %v2057 = vadd.f32 %v2022, %v2037
        %v2058 = vadd.f32 %v2023, %v2037
        %v2059 = vadd.f32 %v2024, %v2037
        %v2060 = vadd.f32 %v2025, %v2037
        %v2061 = vadd.f32 %v2026, %v2037
        %v2062 = vadd.f32 %v2027, %v2037
        %v2063 = vadd.f32 %v2028, %v2037
        %v2064 = vadd.f32 %v2029, %v2037
        %v2065 = vadd.f32 %v2030, %v2037
        %v2066 = vadd.f32 %v2031, %v2037
        %v2067 = vadd.f32 %v2032, %v2037
        %v2068 = vadd.f32 %v2033, %v2037
        %v2069 = vadd.f32 %v2034, %v2037
        %s2070 = sld [smem:[#allocation8 + $0x85]]
        %v2071 = vstv %s2070
        %v2072 = vmul.f32 %v404, %v2071
        %v2073 = vmul.f32 %v405, %v2071
        %v2074 = vmul.f32 %v406, %v2071
        %v2075 = vmul.f32 %v407, %v2071
        %v2076 = vmul.f32 %v408, %v2071
        %v2077 = vmul.f32 %v409, %v2071
        %v2078 = vmul.f32 %v410, %v2071
        %v2079 = vmul.f32 %v411, %v2071
        %v2080 = vmul.f32 %v412, %v2071
        %v2081 = vmul.f32 %v413, %v2071
        %v2082 = vmul.f32 %v414, %v2071
        %v2083 = vmul.f32 %v415, %v2071
        %v2084 = vmul.f32 %v416, %v2071
        %v2085 = vmul.f32 %v417, %v2071
        %v2086 = vmul.f32 %v418, %v2071
        %v2087 = vmul.f32 %v419, %v2071
        %v2088 = vmul.f32 %v420, %v2071
        %v2089 = vmul.f32 %v421, %v2071
        %v2090 = vmul.f32 %v422, %v2071
        %v2091 = vmul.f32 %v423, %v2071
        %v2092 = vmul.f32 %v424, %v2071
        %v2093 = vmul.f32 %v425, %v2071
        %v2094 = vmul.f32 %v426, %v2071
        %v2095 = vmul.f32 %v427, %v2071
        %v2096 = vmul.f32 %v428, %v2071
        %v2097 = vmul.f32 %v429, %v2071
        %v2098 = vmul.f32 %v430, %v2071
        %v2099 = vmul.f32 %v431, %v2071
        %v2100 = vmul.f32 %v432, %v2071
        %v2101 = vmul.f32 %v433, %v2071
        %v2102 = vmul.f32 %v434, %v2071
        %v2103 = vmul.f32 %v435, %v2071
        %v2104 = vadd.f32 %v2038, %v2072
        %v2105 = vadd.f32 %v2039, %v2073
        %v2106 = vadd.f32 %v2040, %v2074
        %v2107 = vadd.f32 %v2041, %v2075
        %v2108 = vadd.f32 %v2042, %v2076
        %v2109 = vadd.f32 %v2043, %v2077
        %v2110 = vadd.f32 %v2044, %v2078
        %v2111 = vadd.f32 %v2045, %v2079
        %v2112 = vadd.f32 %v2046, %v2080
        %v2113 = vadd.f32 %v2047, %v2081
        %v2114 = vadd.f32 %v2048, %v2082
        %v2115 = vadd.f32 %v2049, %v2083
        %v2116 = vadd.f32 %v2050, %v2084
        %v2117 = vadd.f32 %v2051, %v2085
        %v2118 = vadd.f32 %v2052, %v2086
        %v2119 = vadd.f32 %v2053, %v2087
        %v2120 = vadd.f32 %v2054, %v2088
        %v2121 = vadd.f32 %v2055, %v2089
        %v2122 = vadd.f32 %v2056, %v2090
        %v2123 = vadd.f32 %v2057, %v2091
        %v2124 = vadd.f32 %v2058, %v2092
        %v2125 = vadd.f32 %v2059, %v2093
        %v2126 = vadd.f32 %v2060, %v2094
        %v2127 = vadd.f32 %v2061, %v2095
        %v2128 = vadd.f32 %v2062, %v2096
        %v2129 = vadd.f32 %v2063, %v2097
        %v2130 = vadd.f32 %v2064, %v2098
        %v2131 = vadd.f32 %v2065, %v2099
        %v2132 = vadd.f32 %v2066, %v2100
        %v2133 = vadd.f32 %v2067, %v2101
        %v2134 = vadd.f32 %v2068, %v2102
        %v2135 = vadd.f32 %v2069, %v2103
        %s2136 = sld [smem:[#allocation8 + $0x105]]
        %v2137 = vstv %s2136
        %v2138 = vmul.f32 %v437, %v2137
        %v2139 = vmul.f32 %v438, %v2137
        %v2140 = vmul.f32 %v439, %v2137
        %v2141 = vmul.f32 %v440, %v2137
        %v2142 = vmul.f32 %v441, %v2137
        %v2143 = vmul.f32 %v442, %v2137
        %v2144 = vmul.f32 %v443, %v2137
        %v2145 = vmul.f32 %v444, %v2137
        %v2146 = vmul.f32 %v445, %v2137
        %v2147 = vmul.f32 %v446, %v2137
        %v2148 = vmul.f32 %v447, %v2137
        %v2149 = vmul.f32 %v448, %v2137
        %v2150 = vmul.f32 %v449, %v2137
        %v2151 = vmul.f32 %v450, %v2137
        %v2152 = vmul.f32 %v451, %v2137
        %v2153 = vmul.f32 %v452, %v2137
        %v2154 = vmul.f32 %v453, %v2137
        %v2155 = vmul.f32 %v454, %v2137
        %v2156 = vmul.f32 %v455, %v2137
        %v2157 = vmul.f32 %v456, %v2137
        %v2158 = vmul.f32 %v457, %v2137
        %v2159 = vmul.f32 %v458, %v2137
        %v2160 = vmul.f32 %v459, %v2137
        %v2161 = vmul.f32 %v460, %v2137
        %v2162 = vmul.f32 %v461, %v2137
        %v2163 = vmul.f32 %v462, %v2137
        %v2164 = vmul.f32 %v463, %v2137
        %v2165 = vmul.f32 %v464, %v2137
        %v2166 = vmul.f32 %v465, %v2137
        %v2167 = vmul.f32 %v466, %v2137
        %v2168 = vmul.f32 %v467, %v2137
        %v2169 = vmul.f32 %v468, %v2137
        %v2170 = vadd.f32 %v2104, %v2138
        %v2171 = vadd.f32 %v2105, %v2139
        %v2172 = vadd.f32 %v2106, %v2140
        %v2173 = vadd.f32 %v2107, %v2141
        %v2174 = vadd.f32 %v2108, %v2142
        %v2175 = vadd.f32 %v2109, %v2143
        %v2176 = vadd.f32 %v2110, %v2144
        %v2177 = vadd.f32 %v2111, %v2145
        %v2178 = vadd.f32 %v2112, %v2146
        %v2179 = vadd.f32 %v2113, %v2147
        %v2180 = vadd.f32 %v2114, %v2148
        %v2181 = vadd.f32 %v2115, %v2149
        %v2182 = vadd.f32 %v2116, %v2150
        %v2183 = vadd.f32 %v2117, %v2151
        %v2184 = vadd.f32 %v2118, %v2152
        %v2185 = vadd.f32 %v2119, %v2153
        %v2186 = vadd.f32 %v2120, %v2154
        %v2187 = vadd.f32 %v2121, %v2155
        %v2188 = vadd.f32 %v2122, %v2156
        %v2189 = vadd.f32 %v2123, %v2157
        %v2190 = vadd.f32 %v2124, %v2158
        %v2191 = vadd.f32 %v2125, %v2159
        %v2192 = vadd.f32 %v2126, %v2160
        %v2193 = vadd.f32 %v2127, %v2161
        %v2194 = vadd.f32 %v2128, %v2162
        %v2195 = vadd.f32 %v2129, %v2163
        %v2196 = vadd.f32 %v2130, %v2164
        %v2197 = vadd.f32 %v2131, %v2165
        %v2198 = vadd.f32 %v2132, %v2166
        %v2199 = vadd.f32 %v2133, %v2167
        %v2200 = vadd.f32 %v2134, %v2168
        %v2201 = vadd.f32 %v2135, %v2169
        %s2202 = sld [smem:[#allocation8 + $0x185]]
        %v2203 = vstv %s2202
        %v2204 = vmul.f32 %v470, %v2203
        %v2205 = vmul.f32 %v471, %v2203
        %v2206 = vmul.f32 %v472, %v2203
        %v2207 = vmul.f32 %v473, %v2203
        %v2208 = vmul.f32 %v474, %v2203
        %v2209 = vmul.f32 %v475, %v2203
        %v2210 = vmul.f32 %v476, %v2203
        %v2211 = vmul.f32 %v477, %v2203
        %v2212 = vmul.f32 %v478, %v2203
        %v2213 = vmul.f32 %v479, %v2203
        %v2214 = vmul.f32 %v480, %v2203
        %v2215 = vmul.f32 %v481, %v2203
        %v2216 = vmul.f32 %v482, %v2203
        %v2217 = vmul.f32 %v483, %v2203
        %v2218 = vmul.f32 %v484, %v2203
        %v2219 = vmul.f32 %v485, %v2203
        %v2220 = vmul.f32 %v486, %v2203
        %v2221 = vmul.f32 %v487, %v2203
        %v2222 = vmul.f32 %v488, %v2203
        %v2223 = vmul.f32 %v489, %v2203
        %v2224 = vmul.f32 %v490, %v2203
        %v2225 = vmul.f32 %v491, %v2203
        %v2226 = vmul.f32 %v492, %v2203
        %v2227 = vmul.f32 %v493, %v2203
        %v2228 = vmul.f32 %v494, %v2203
        %v2229 = vmul.f32 %v495, %v2203
        %v2230 = vmul.f32 %v496, %v2203
        %v2231 = vmul.f32 %v497, %v2203
        %v2232 = vmul.f32 %v498, %v2203
        %v2233 = vmul.f32 %v499, %v2203
        %v2234 = vmul.f32 %v500, %v2203
        %v2235 = vmul.f32 %v501, %v2203
        %v2236 = vadd.f32 %v2170, %v2204
        %v2237 = vadd.f32 %v2171, %v2205
        %v2238 = vadd.f32 %v2172, %v2206
        %v2239 = vadd.f32 %v2173, %v2207
        %v2240 = vadd.f32 %v2174, %v2208
        %v2241 = vadd.f32 %v2175, %v2209
        %v2242 = vadd.f32 %v2176, %v2210
        %v2243 = vadd.f32 %v2177, %v2211
        %v2244 = vadd.f32 %v2178, %v2212
        %v2245 = vadd.f32 %v2179, %v2213
        %v2246 = vadd.f32 %v2180, %v2214
        %v2247 = vadd.f32 %v2181, %v2215
        %v2248 = vadd.f32 %v2182, %v2216
        %v2249 = vadd.f32 %v2183, %v2217
        %v2250 = vadd.f32 %v2184, %v2218
        %v2251 = vadd.f32 %v2185, %v2219
        %v2252 = vadd.f32 %v2186, %v2220
        %v2253 = vadd.f32 %v2187, %v2221
        %v2254 = vadd.f32 %v2188, %v2222
        %v2255 = vadd.f32 %v2189, %v2223
        %v2256 = vadd.f32 %v2190, %v2224
        %v2257 = vadd.f32 %v2191, %v2225
        %v2258 = vadd.f32 %v2192, %v2226
        %v2259 = vadd.f32 %v2193, %v2227
        %v2260 = vadd.f32 %v2194, %v2228
        %v2261 = vadd.f32 %v2195, %v2229
        %v2262 = vadd.f32 %v2196, %v2230
        %v2263 = vadd.f32 %v2197, %v2231
        %v2264 = vadd.f32 %v2198, %v2232
        %v2265 = vadd.f32 %v2199, %v2233
        %v2266 = vadd.f32 %v2200, %v2234
        %v2267 = vadd.f32 %v2201, %v2235
        %s2268 = scalar_lea.vmem %s360, 1280 [#allocation11]
        %2269 = vst [vmem:[%s2268] sm:$0xff] %v2236
        %2270 = vst [vmem:[%s2268 + $0x8] sm:$0xff] %v2237
        %2271 = vst [vmem:[%s2268 + $0x10] sm:$0xff] %v2238
        %2272 = vst [vmem:[%s2268 + $0x18] sm:$0xff] %v2239
        %2273 = vst [vmem:[%s2268 + $0x20] sm:$0xff] %v2240
        %2274 = vst [vmem:[%s2268 + $0x28] sm:$0xff] %v2241
        %2275 = vst [vmem:[%s2268 + $0x30] sm:$0xff] %v2242
        %2276 = vst [vmem:[%s2268 + $0x38] sm:$0xff] %v2243
        %2277 = vst [vmem:[%s2268 + $0x40] sm:$0xff] %v2244
        %2278 = vst [vmem:[%s2268 + $0x48] sm:$0xff] %v2245
        %2279 = vst [vmem:[%s2268 + $0x50] sm:$0xff] %v2246
        %2280 = vst [vmem:[%s2268 + $0x58] sm:$0xff] %v2247
        %2281 = vst [vmem:[%s2268 + $0x60] sm:$0xff] %v2248
        %2282 = vst [vmem:[%s2268 + $0x68] sm:$0xff] %v2249
        %2283 = vst [vmem:[%s2268 + $0x70] sm:$0xff] %v2250
        %2284 = vst [vmem:[%s2268 + $0x78] sm:$0xff] %v2251
        %2285 = vst [vmem:[%s2268 + $0x80] sm:$0xff] %v2252
        %2286 = vst [vmem:[%s2268 + $0x88] sm:$0xff] %v2253
        %2287 = vst [vmem:[%s2268 + $0x90] sm:$0xff] %v2254
        %2288 = vst [vmem:[%s2268 + $0x98] sm:$0xff] %v2255
        %2289 = vst [vmem:[%s2268 + $0xa0] sm:$0xff] %v2256
        %2290 = vst [vmem:[%s2268 + $0xa8] sm:$0xff] %v2257
        %2291 = vst [vmem:[%s2268 + $0xb0] sm:$0xff] %v2258
        %2292 = vst [vmem:[%s2268 + $0xb8] sm:$0xff] %v2259
        %2293 = vst [vmem:[%s2268 + $0xc0] sm:$0xff] %v2260
        %2294 = vst [vmem:[%s2268 + $0xc8] sm:$0xff] %v2261
        %2295 = vst [vmem:[%s2268 + $0xd0] sm:$0xff] %v2262
        %2296 = vst [vmem:[%s2268 + $0xd8] sm:$0xff] %v2263
        %2297 = vst [vmem:[%s2268 + $0xe0] sm:$0xff] %v2264
        %2298 = vst [vmem:[%s2268 + $0xe8] sm:$0xff] %v2265
        %2299 = vst [vmem:[%s2268 + $0xf0] sm:$0xff] %v2266
        %2300 = vst [vmem:[%s2268 + $0xf8] sm:$0xff] %v2267
        %s2301 = sld [smem:[#allocation8 + $0x6]]
        %v2302 = vstv %s2301
        %v2303 = vmul.f32 %v372, %v2302
        %v2304 = vmul.f32 %v373, %v2302
        %v2305 = vmul.f32 %v374, %v2302
        %v2306 = vmul.f32 %v375, %v2302
        %v2307 = vmul.f32 %v376, %v2302
        %v2308 = vmul.f32 %v377, %v2302
        %v2309 = vmul.f32 %v378, %v2302
        %v2310 = vmul.f32 %v379, %v2302
        %v2311 = vmul.f32 %v380, %v2302
        %v2312 = vmul.f32 %v381, %v2302
        %v2313 = vmul.f32 %v382, %v2302
        %v2314 = vmul.f32 %v383, %v2302
        %v2315 = vmul.f32 %v384, %v2302
        %v2316 = vmul.f32 %v385, %v2302
        %v2317 = vmul.f32 %v386, %v2302
        %v2318 = vmul.f32 %v387, %v2302
        %v2319 = vmul.f32 %v388, %v2302
        %v2320 = vmul.f32 %v389, %v2302
        %v2321 = vmul.f32 %v390, %v2302
        %v2322 = vmul.f32 %v391, %v2302
        %v2323 = vmul.f32 %v392, %v2302
        %v2324 = vmul.f32 %v393, %v2302
        %v2325 = vmul.f32 %v394, %v2302
        %v2326 = vmul.f32 %v395, %v2302
        %v2327 = vmul.f32 %v396, %v2302
        %v2328 = vmul.f32 %v397, %v2302
        %v2329 = vmul.f32 %v398, %v2302
        %v2330 = vmul.f32 %v399, %v2302
        %v2331 = vmul.f32 %v400, %v2302
        %v2332 = vmul.f32 %v401, %v2302
        %v2333 = vmul.f32 %v402, %v2302
        %v2334 = vmul.f32 %v403, %v2302
        %s2335 = sadd.s32 %s536, 6
        %s2336 = sld [smem:[#allocation9 + %s2335]]
        %v2337 = vstv %s2336
        %v2338 = vadd.f32 %v2303, %v2337
        %v2339 = vadd.f32 %v2304, %v2337
        %v2340 = vadd.f32 %v2305, %v2337
        %v2341 = vadd.f32 %v2306, %v2337
        %v2342 = vadd.f32 %v2307, %v2337
        %v2343 = vadd.f32 %v2308, %v2337
        %v2344 = vadd.f32 %v2309, %v2337
        %v2345 = vadd.f32 %v2310, %v2337
        %v2346 = vadd.f32 %v2311, %v2337
        %v2347 = vadd.f32 %v2312, %v2337
        %v2348 = vadd.f32 %v2313, %v2337
        %v2349 = vadd.f32 %v2314, %v2337
        %v2350 = vadd.f32 %v2315, %v2337
        %v2351 = vadd.f32 %v2316, %v2337
        %v2352 = vadd.f32 %v2317, %v2337
        %v2353 = vadd.f32 %v2318, %v2337
        %v2354 = vadd.f32 %v2319, %v2337
        %v2355 = vadd.f32 %v2320, %v2337
        %v2356 = vadd.f32 %v2321, %v2337
        %v2357 = vadd.f32 %v2322, %v2337
        %v2358 = vadd.f32 %v2323, %v2337
        %v2359 = vadd.f32 %v2324, %v2337
        %v2360 = vadd.f32 %v2325, %v2337
        %v2361 = vadd.f32 %v2326, %v2337
        %v2362 = vadd.f32 %v2327, %v2337
        %v2363 = vadd.f32 %v2328, %v2337
        %v2364 = vadd.f32 %v2329, %v2337
        %v2365 = vadd.f32 %v2330, %v2337
        %v2366 = vadd.f32 %v2331, %v2337
        %v2367 = vadd.f32 %v2332, %v2337
        %v2368 = vadd.f32 %v2333, %v2337
        %v2369 = vadd.f32 %v2334, %v2337
        %s2370 = sld [smem:[#allocation8 + $0x86]]
        %v2371 = vstv %s2370
        %v2372 = vmul.f32 %v404, %v2371
        %v2373 = vmul.f32 %v405, %v2371
        %v2374 = vmul.f32 %v406, %v2371
        %v2375 = vmul.f32 %v407, %v2371
        %v2376 = vmul.f32 %v408, %v2371
        %v2377 = vmul.f32 %v409, %v2371
        %v2378 = vmul.f32 %v410, %v2371
        %v2379 = vmul.f32 %v411, %v2371
        %v2380 = vmul.f32 %v412, %v2371
        %v2381 = vmul.f32 %v413, %v2371
        %v2382 = vmul.f32 %v414, %v2371
        %v2383 = vmul.f32 %v415, %v2371
        %v2384 = vmul.f32 %v416, %v2371
        %v2385 = vmul.f32 %v417, %v2371
        %v2386 = vmul.f32 %v418, %v2371
        %v2387 = vmul.f32 %v419, %v2371
        %v2388 = vmul.f32 %v420, %v2371
        %v2389 = vmul.f32 %v421, %v2371
        %v2390 = vmul.f32 %v422, %v2371
        %v2391 = vmul.f32 %v423, %v2371
        %v2392 = vmul.f32 %v424, %v2371
        %v2393 = vmul.f32 %v425, %v2371
        %v2394 = vmul.f32 %v426, %v2371
        %v2395 = vmul.f32 %v427, %v2371
        %v2396 = vmul.f32 %v428, %v2371
        %v2397 = vmul.f32 %v429, %v2371
        %v2398 = vmul.f32 %v430, %v2371
        %v2399 = vmul.f32 %v431, %v2371
        %v2400 = vmul.f32 %v432, %v2371
        %v2401 = vmul.f32 %v433, %v2371
        %v2402 = vmul.f32 %v434, %v2371
        %v2403 = vmul.f32 %v435, %v2371
        %v2404 = vadd.f32 %v2338, %v2372
        %v2405 = vadd.f32 %v2339, %v2373
        %v2406 = vadd.f32 %v2340, %v2374
        %v2407 = vadd.f32 %v2341, %v2375
        %v2408 = vadd.f32 %v2342, %v2376
        %v2409 = vadd.f32 %v2343, %v2377
        %v2410 = vadd.f32 %v2344, %v2378
        %v2411 = vadd.f32 %v2345, %v2379
        %v2412 = vadd.f32 %v2346, %v2380
        %v2413 = vadd.f32 %v2347, %v2381
        %v2414 = vadd.f32 %v2348, %v2382
        %v2415 = vadd.f32 %v2349, %v2383
        %v2416 = vadd.f32 %v2350, %v2384
        %v2417 = vadd.f32 %v2351, %v2385
        %v2418 = vadd.f32 %v2352, %v2386
        %v2419 = vadd.f32 %v2353, %v2387
        %v2420 = vadd.f32 %v2354, %v2388
        %v2421 = vadd.f32 %v2355, %v2389
        %v2422 = vadd.f32 %v2356, %v2390
        %v2423 = vadd.f32 %v2357, %v2391
        %v2424 = vadd.f32 %v2358, %v2392
        %v2425 = vadd.f32 %v2359, %v2393
        %v2426 = vadd.f32 %v2360, %v2394
        %v2427 = vadd.f32 %v2361, %v2395
        %v2428 = vadd.f32 %v2362, %v2396
        %v2429 = vadd.f32 %v2363, %v2397
        %v2430 = vadd.f32 %v2364, %v2398
        %v2431 = vadd.f32 %v2365, %v2399
        %v2432 = vadd.f32 %v2366, %v2400
        %v2433 = vadd.f32 %v2367, %v2401
        %v2434 = vadd.f32 %v2368, %v2402
        %v2435 = vadd.f32 %v2369, %v2403
        %s2436 = sld [smem:[#allocation8 + $0x106]]
        %v2437 = vstv %s2436
        %v2438 = vmul.f32 %v437, %v2437
        %v2439 = vmul.f32 %v438, %v2437
        %v2440 = vmul.f32 %v439, %v2437
        %v2441 = vmul.f32 %v440, %v2437
        %v2442 = vmul.f32 %v441, %v2437
        %v2443 = vmul.f32 %v442, %v2437
        %v2444 = vmul.f32 %v443, %v2437
        %v2445 = vmul.f32 %v444, %v2437
        %v2446 = vmul.f32 %v445, %v2437
        %v2447 = vmul.f32 %v446, %v2437
        %v2448 = vmul.f32 %v447, %v2437
        %v2449 = vmul.f32 %v448, %v2437
        %v2450 = vmul.f32 %v449, %v2437
        %v2451 = vmul.f32 %v450, %v2437
        %v2452 = vmul.f32 %v451, %v2437
        %v2453 = vmul.f32 %v452, %v2437
        %v2454 = vmul.f32 %v453, %v2437
        %v2455 = vmul.f32 %v454, %v2437
        %v2456 = vmul.f32 %v455, %v2437
        %v2457 = vmul.f32 %v456, %v2437
        %v2458 = vmul.f32 %v457, %v2437
        %v2459 = vmul.f32 %v458, %v2437
        %v2460 = vmul.f32 %v459, %v2437
        %v2461 = vmul.f32 %v460, %v2437
        %v2462 = vmul.f32 %v461, %v2437
        %v2463 = vmul.f32 %v462, %v2437
        %v2464 = vmul.f32 %v463, %v2437
        %v2465 = vmul.f32 %v464, %v2437
        %v2466 = vmul.f32 %v465, %v2437
        %v2467 = vmul.f32 %v466, %v2437
        %v2468 = vmul.f32 %v467, %v2437
        %v2469 = vmul.f32 %v468, %v2437
        %v2470 = vadd.f32 %v2404, %v2438
        %v2471 = vadd.f32 %v2405, %v2439
        %v2472 = vadd.f32 %v2406, %v2440
        %v2473 = vadd.f32 %v2407, %v2441
        %v2474 = vadd.f32 %v2408, %v2442
        %v2475 = vadd.f32 %v2409, %v2443
        %v2476 = vadd.f32 %v2410, %v2444
        %v2477 = vadd.f32 %v2411, %v2445
        %v2478 = vadd.f32 %v2412, %v2446
        %v2479 = vadd.f32 %v2413, %v2447
        %v2480 = vadd.f32 %v2414, %v2448
        %v2481 = vadd.f32 %v2415, %v2449
        %v2482 = vadd.f32 %v2416, %v2450
        %v2483 = vadd.f32 %v2417, %v2451
        %v2484 = vadd.f32 %v2418, %v2452
        %v2485 = vadd.f32 %v2419, %v2453
        %v2486 = vadd.f32 %v2420, %v2454
        %v2487 = vadd.f32 %v2421, %v2455
        %v2488 = vadd.f32 %v2422, %v2456
        %v2489 = vadd.f32 %v2423, %v2457
        %v2490 = vadd.f32 %v2424, %v2458
        %v2491 = vadd.f32 %v2425, %v2459
        %v2492 = vadd.f32 %v2426, %v2460
        %v2493 = vadd.f32 %v2427, %v2461
        %v2494 = vadd.f32 %v2428, %v2462
        %v2495 = vadd.f32 %v2429, %v2463
        %v2496 = vadd.f32 %v2430, %v2464
        %v2497 = vadd.f32 %v2431, %v2465
        %v2498 = vadd.f32 %v2432, %v2466
        %v2499 = vadd.f32 %v2433, %v2467
        %v2500 = vadd.f32 %v2434, %v2468
        %v2501 = vadd.f32 %v2435, %v2469
        %s2502 = sld [smem:[#allocation8 + $0x186]]
        %v2503 = vstv %s2502
        %v2504 = vmul.f32 %v470, %v2503
        %v2505 = vmul.f32 %v471, %v2503
        %v2506 = vmul.f32 %v472, %v2503
        %v2507 = vmul.f32 %v473, %v2503
        %v2508 = vmul.f32 %v474, %v2503
        %v2509 = vmul.f32 %v475, %v2503
        %v2510 = vmul.f32 %v476, %v2503
        %v2511 = vmul.f32 %v477, %v2503
        %v2512 = vmul.f32 %v478, %v2503
        %v2513 = vmul.f32 %v479, %v2503
        %v2514 = vmul.f32 %v480, %v2503
        %v2515 = vmul.f32 %v481, %v2503
        %v2516 = vmul.f32 %v482, %v2503
        %v2517 = vmul.f32 %v483, %v2503
        %v2518 = vmul.f32 %v484, %v2503
        %v2519 = vmul.f32 %v485, %v2503
        %v2520 = vmul.f32 %v486, %v2503
        %v2521 = vmul.f32 %v487, %v2503
        %v2522 = vmul.f32 %v488, %v2503
        %v2523 = vmul.f32 %v489, %v2503
        %v2524 = vmul.f32 %v490, %v2503
        %v2525 = vmul.f32 %v491, %v2503
        %v2526 = vmul.f32 %v492, %v2503
        %v2527 = vmul.f32 %v493, %v2503
        %v2528 = vmul.f32 %v494, %v2503
        %v2529 = vmul.f32 %v495, %v2503
        %v2530 = vmul.f32 %v496, %v2503
        %v2531 = vmul.f32 %v497, %v2503
        %v2532 = vmul.f32 %v498, %v2503
        %v2533 = vmul.f32 %v499, %v2503
        %v2534 = vmul.f32 %v500, %v2503
        %v2535 = vmul.f32 %v501, %v2503
        %v2536 = vadd.f32 %v2470, %v2504
        %v2537 = vadd.f32 %v2471, %v2505
        %v2538 = vadd.f32 %v2472, %v2506
        %v2539 = vadd.f32 %v2473, %v2507
        %v2540 = vadd.f32 %v2474, %v2508
        %v2541 = vadd.f32 %v2475, %v2509
        %v2542 = vadd.f32 %v2476, %v2510
        %v2543 = vadd.f32 %v2477, %v2511
        %v2544 = vadd.f32 %v2478, %v2512
        %v2545 = vadd.f32 %v2479, %v2513
        %v2546 = vadd.f32 %v2480, %v2514
        %v2547 = vadd.f32 %v2481, %v2515
        %v2548 = vadd.f32 %v2482, %v2516
        %v2549 = vadd.f32 %v2483, %v2517
        %v2550 = vadd.f32 %v2484, %v2518
        %v2551 = vadd.f32 %v2485, %v2519
        %v2552 = vadd.f32 %v2486, %v2520
        %v2553 = vadd.f32 %v2487, %v2521
        %v2554 = vadd.f32 %v2488, %v2522
        %v2555 = vadd.f32 %v2489, %v2523
        %v2556 = vadd.f32 %v2490, %v2524
        %v2557 = vadd.f32 %v2491, %v2525
        %v2558 = vadd.f32 %v2492, %v2526
        %v2559 = vadd.f32 %v2493, %v2527
        %v2560 = vadd.f32 %v2494, %v2528
        %v2561 = vadd.f32 %v2495, %v2529
        %v2562 = vadd.f32 %v2496, %v2530
        %v2563 = vadd.f32 %v2497, %v2531
        %v2564 = vadd.f32 %v2498, %v2532
        %v2565 = vadd.f32 %v2499, %v2533
        %v2566 = vadd.f32 %v2500, %v2534
        %v2567 = vadd.f32 %v2501, %v2535
        %s2568 = scalar_lea.vmem %s360, 1536 [#allocation11]
        %2569 = vst [vmem:[%s2568] sm:$0xff] %v2536
        %2570 = vst [vmem:[%s2568 + $0x8] sm:$0xff] %v2537
        %2571 = vst [vmem:[%s2568 + $0x10] sm:$0xff] %v2538
        %2572 = vst [vmem:[%s2568 + $0x18] sm:$0xff] %v2539
        %2573 = vst [vmem:[%s2568 + $0x20] sm:$0xff] %v2540
        %2574 = vst [vmem:[%s2568 + $0x28] sm:$0xff] %v2541
        %2575 = vst [vmem:[%s2568 + $0x30] sm:$0xff] %v2542
        %2576 = vst [vmem:[%s2568 + $0x38] sm:$0xff] %v2543
        %2577 = vst [vmem:[%s2568 + $0x40] sm:$0xff] %v2544
        %2578 = vst [vmem:[%s2568 + $0x48] sm:$0xff] %v2545
        %2579 = vst [vmem:[%s2568 + $0x50] sm:$0xff] %v2546
        %2580 = vst [vmem:[%s2568 + $0x58] sm:$0xff] %v2547
        %2581 = vst [vmem:[%s2568 + $0x60] sm:$0xff] %v2548
        %2582 = vst [vmem:[%s2568 + $0x68] sm:$0xff] %v2549
        %2583 = vst [vmem:[%s2568 + $0x70] sm:$0xff] %v2550
        %2584 = vst [vmem:[%s2568 + $0x78] sm:$0xff] %v2551
        %2585 = vst [vmem:[%s2568 + $0x80] sm:$0xff] %v2552
        %2586 = vst [vmem:[%s2568 + $0x88] sm:$0xff] %v2553
        %2587 = vst [vmem:[%s2568 + $0x90] sm:$0xff] %v2554
        %2588 = vst [vmem:[%s2568 + $0x98] sm:$0xff] %v2555
        %2589 = vst [vmem:[%s2568 + $0xa0] sm:$0xff] %v2556
        %2590 = vst [vmem:[%s2568 + $0xa8] sm:$0xff] %v2557
        %2591 = vst [vmem:[%s2568 + $0xb0] sm:$0xff] %v2558
        %2592 = vst [vmem:[%s2568 + $0xb8] sm:$0xff] %v2559
        %2593 = vst [vmem:[%s2568 + $0xc0] sm:$0xff] %v2560
        %2594 = vst [vmem:[%s2568 + $0xc8] sm:$0xff] %v2561
        %2595 = vst [vmem:[%s2568 + $0xd0] sm:$0xff] %v2562
        %2596 = vst [vmem:[%s2568 + $0xd8] sm:$0xff] %v2563
        %2597 = vst [vmem:[%s2568 + $0xe0] sm:$0xff] %v2564
        %2598 = vst [vmem:[%s2568 + $0xe8] sm:$0xff] %v2565
        %2599 = vst [vmem:[%s2568 + $0xf0] sm:$0xff] %v2566
        %2600 = vst [vmem:[%s2568 + $0xf8] sm:$0xff] %v2567
        %s2601 = sld [smem:[#allocation8 + $0x7]]
        %v2602 = vstv %s2601
        %v2603 = vmul.f32 %v372, %v2602
        %v2604 = vmul.f32 %v373, %v2602
        %v2605 = vmul.f32 %v374, %v2602
        %v2606 = vmul.f32 %v375, %v2602
        %v2607 = vmul.f32 %v376, %v2602
        %v2608 = vmul.f32 %v377, %v2602
        %v2609 = vmul.f32 %v378, %v2602
        %v2610 = vmul.f32 %v379, %v2602
        %v2611 = vmul.f32 %v380, %v2602
        %v2612 = vmul.f32 %v381, %v2602
        %v2613 = vmul.f32 %v382, %v2602
        %v2614 = vmul.f32 %v383, %v2602
        %v2615 = vmul.f32 %v384, %v2602
        %v2616 = vmul.f32 %v385, %v2602
        %v2617 = vmul.f32 %v386, %v2602
        %v2618 = vmul.f32 %v387, %v2602
        %v2619 = vmul.f32 %v388, %v2602
        %v2620 = vmul.f32 %v389, %v2602
        %v2621 = vmul.f32 %v390, %v2602
        %v2622 = vmul.f32 %v391, %v2602
        %v2623 = vmul.f32 %v392, %v2602
        %v2624 = vmul.f32 %v393, %v2602
        %v2625 = vmul.f32 %v394, %v2602
        %v2626 = vmul.f32 %v395, %v2602
        %v2627 = vmul.f32 %v396, %v2602
        %v2628 = vmul.f32 %v397, %v2602
        %v2629 = vmul.f32 %v398, %v2602
        %v2630 = vmul.f32 %v399, %v2602
        %v2631 = vmul.f32 %v400, %v2602
        %v2632 = vmul.f32 %v401, %v2602
        %v2633 = vmul.f32 %v402, %v2602
        %v2634 = vmul.f32 %v403, %v2602
        %s2635 = sadd.s32 %s536, 7
        %s2636 = sld [smem:[#allocation9 + %s2635]]
        %v2637 = vstv %s2636
        %v2638 = vadd.f32 %v2603, %v2637
        %v2639 = vadd.f32 %v2604, %v2637
        %v2640 = vadd.f32 %v2605, %v2637
        %v2641 = vadd.f32 %v2606, %v2637
        %v2642 = vadd.f32 %v2607, %v2637
        %v2643 = vadd.f32 %v2608, %v2637
        %v2644 = vadd.f32 %v2609, %v2637
        %v2645 = vadd.f32 %v2610, %v2637
        %v2646 = vadd.f32 %v2611, %v2637
        %v2647 = vadd.f32 %v2612, %v2637
        %v2648 = vadd.f32 %v2613, %v2637
        %v2649 = vadd.f32 %v2614, %v2637
        %v2650 = vadd.f32 %v2615, %v2637
        %v2651 = vadd.f32 %v2616, %v2637
        %v2652 = vadd.f32 %v2617, %v2637
        %v2653 = vadd.f32 %v2618, %v2637
        %v2654 = vadd.f32 %v2619, %v2637
        %v2655 = vadd.f32 %v2620, %v2637
        %v2656 = vadd.f32 %v2621, %v2637
        %v2657 = vadd.f32 %v2622, %v2637
        %v2658 = vadd.f32 %v2623, %v2637
        %v2659 = vadd.f32 %v2624, %v2637
        %v2660 = vadd.f32 %v2625, %v2637
        %v2661 = vadd.f32 %v2626, %v2637
        %v2662 = vadd.f32 %v2627, %v2637
        %v2663 = vadd.f32 %v2628, %v2637
        %v2664 = vadd.f32 %v2629, %v2637
        %v2665 = vadd.f32 %v2630, %v2637
        %v2666 = vadd.f32 %v2631, %v2637
        %v2667 = vadd.f32 %v2632, %v2637
        %v2668 = vadd.f32 %v2633, %v2637
        %v2669 = vadd.f32 %v2634, %v2637
        %s2670 = sld [smem:[#allocation8 + $0x87]]
        %v2671 = vstv %s2670
        %v2672 = vmul.f32 %v404, %v2671
        %v2673 = vmul.f32 %v405, %v2671
        %v2674 = vmul.f32 %v406, %v2671
        %v2675 = vmul.f32 %v407, %v2671
        %v2676 = vmul.f32 %v408, %v2671
        %v2677 = vmul.f32 %v409, %v2671
        %v2678 = vmul.f32 %v410, %v2671
        %v2679 = vmul.f32 %v411, %v2671
        %v2680 = vmul.f32 %v412, %v2671
        %v2681 = vmul.f32 %v413, %v2671
        %v2682 = vmul.f32 %v414, %v2671
        %v2683 = vmul.f32 %v415, %v2671
        %v2684 = vmul.f32 %v416, %v2671
        %v2685 = vmul.f32 %v417, %v2671
        %v2686 = vmul.f32 %v418, %v2671
        %v2687 = vmul.f32 %v419, %v2671
        %v2688 = vmul.f32 %v420, %v2671
        %v2689 = vmul.f32 %v421, %v2671
        %v2690 = vmul.f32 %v422, %v2671
        %v2691 = vmul.f32 %v423, %v2671
        %v2692 = vmul.f32 %v424, %v2671
        %v2693 = vmul.f32 %v425, %v2671
        %v2694 = vmul.f32 %v426, %v2671
        %v2695 = vmul.f32 %v427, %v2671
        %v2696 = vmul.f32 %v428, %v2671
        %v2697 = vmul.f32 %v429, %v2671
        %v2698 = vmul.f32 %v430, %v2671
        %v2699 = vmul.f32 %v431, %v2671
        %v2700 = vmul.f32 %v432, %v2671
        %v2701 = vmul.f32 %v433, %v2671
        %v2702 = vmul.f32 %v434, %v2671
        %v2703 = vmul.f32 %v435, %v2671
        %v2704 = vadd.f32 %v2638, %v2672
        %v2705 = vadd.f32 %v2639, %v2673
        %v2706 = vadd.f32 %v2640, %v2674
        %v2707 = vadd.f32 %v2641, %v2675
        %v2708 = vadd.f32 %v2642, %v2676
        %v2709 = vadd.f32 %v2643, %v2677
        %v2710 = vadd.f32 %v2644, %v2678
        %v2711 = vadd.f32 %v2645, %v2679
        %v2712 = vadd.f32 %v2646, %v2680
        %v2713 = vadd.f32 %v2647, %v2681
        %v2714 = vadd.f32 %v2648, %v2682
        %v2715 = vadd.f32 %v2649, %v2683
        %v2716 = vadd.f32 %v2650, %v2684
        %v2717 = vadd.f32 %v2651, %v2685
        %v2718 = vadd.f32 %v2652, %v2686
        %v2719 = vadd.f32 %v2653, %v2687
        %v2720 = vadd.f32 %v2654, %v2688
        %v2721 = vadd.f32 %v2655, %v2689
        %v2722 = vadd.f32 %v2656, %v2690
        %v2723 = vadd.f32 %v2657, %v2691
        %v2724 = vadd.f32 %v2658, %v2692
        %v2725 = vadd.f32 %v2659, %v2693
        %v2726 = vadd.f32 %v2660, %v2694
        %v2727 = vadd.f32 %v2661, %v2695
        %v2728 = vadd.f32 %v2662, %v2696
        %v2729 = vadd.f32 %v2663, %v2697
        %v2730 = vadd.f32 %v2664, %v2698
        %v2731 = vadd.f32 %v2665, %v2699
        %v2732 = vadd.f32 %v2666, %v2700
        %v2733 = vadd.f32 %v2667, %v2701
        %v2734 = vadd.f32 %v2668, %v2702
        %v2735 = vadd.f32 %v2669, %v2703
        %s2736 = sld [smem:[#allocation8 + $0x107]]
        %v2737 = vstv %s2736
        %v2738 = vmul.f32 %v437, %v2737
        %v2739 = vmul.f32 %v438, %v2737
        %v2740 = vmul.f32 %v439, %v2737
        %v2741 = vmul.f32 %v440, %v2737
        %v2742 = vmul.f32 %v441, %v2737
        %v2743 = vmul.f32 %v442, %v2737
        %v2744 = vmul.f32 %v443, %v2737
        %v2745 = vmul.f32 %v444, %v2737
        %v2746 = vmul.f32 %v445, %v2737
        %v2747 = vmul.f32 %v446, %v2737
        %v2748 = vmul.f32 %v447, %v2737
        %v2749 = vmul.f32 %v448, %v2737
        %v2750 = vmul.f32 %v449, %v2737
        %v2751 = vmul.f32 %v450, %v2737
        %v2752 = vmul.f32 %v451, %v2737
        %v2753 = vmul.f32 %v452, %v2737
        %v2754 = vmul.f32 %v453, %v2737
        %v2755 = vmul.f32 %v454, %v2737
        %v2756 = vmul.f32 %v455, %v2737
        %v2757 = vmul.f32 %v456, %v2737
        %v2758 = vmul.f32 %v457, %v2737
        %v2759 = vmul.f32 %v458, %v2737
        %v2760 = vmul.f32 %v459, %v2737
        %v2761 = vmul.f32 %v460, %v2737
        %v2762 = vmul.f32 %v461, %v2737
        %v2763 = vmul.f32 %v462, %v2737
        %v2764 = vmul.f32 %v463, %v2737
        %v2765 = vmul.f32 %v464, %v2737
        %v2766 = vmul.f32 %v465, %v2737
        %v2767 = vmul.f32 %v466, %v2737
        %v2768 = vmul.f32 %v467, %v2737
        %v2769 = vmul.f32 %v468, %v2737
        %v2770 = vadd.f32 %v2704, %v2738
        %v2771 = vadd.f32 %v2705, %v2739
        %v2772 = vadd.f32 %v2706, %v2740
        %v2773 = vadd.f32 %v2707, %v2741
        %v2774 = vadd.f32 %v2708, %v2742
        %v2775 = vadd.f32 %v2709, %v2743
        %v2776 = vadd.f32 %v2710, %v2744
        %v2777 = vadd.f32 %v2711, %v2745
        %v2778 = vadd.f32 %v2712, %v2746
        %v2779 = vadd.f32 %v2713, %v2747
        %v2780 = vadd.f32 %v2714, %v2748
        %v2781 = vadd.f32 %v2715, %v2749
        %v2782 = vadd.f32 %v2716, %v2750
        %v2783 = vadd.f32 %v2717, %v2751
        %v2784 = vadd.f32 %v2718, %v2752
        %v2785 = vadd.f32 %v2719, %v2753
        %v2786 = vadd.f32 %v2720, %v2754
        %v2787 = vadd.f32 %v2721, %v2755
        %v2788 = vadd.f32 %v2722, %v2756
        %v2789 = vadd.f32 %v2723, %v2757
        %v2790 = vadd.f32 %v2724, %v2758
        %v2791 = vadd.f32 %v2725, %v2759
        %v2792 = vadd.f32 %v2726, %v2760
        %v2793 = vadd.f32 %v2727, %v2761
        %v2794 = vadd.f32 %v2728, %v2762
        %v2795 = vadd.f32 %v2729, %v2763
        %v2796 = vadd.f32 %v2730, %v2764
        %v2797 = vadd.f32 %v2731, %v2765
        %v2798 = vadd.f32 %v2732, %v2766
        %v2799 = vadd.f32 %v2733, %v2767
        %v2800 = vadd.f32 %v2734, %v2768
        %v2801 = vadd.f32 %v2735, %v2769
        %s2802 = sld [smem:[#allocation8 + $0x187]]
        %v2803 = vstv %s2802
        %v2804 = vmul.f32 %v470, %v2803
        %v2805 = vmul.f32 %v471, %v2803
        %v2806 = vmul.f32 %v472, %v2803
        %v2807 = vmul.f32 %v473, %v2803
        %v2808 = vmul.f32 %v474, %v2803
        %v2809 = vmul.f32 %v475, %v2803
        %v2810 = vmul.f32 %v476, %v2803
        %v2811 = vmul.f32 %v477, %v2803
        %v2812 = vmul.f32 %v478, %v2803
        %v2813 = vmul.f32 %v479, %v2803
        %v2814 = vmul.f32 %v480, %v2803
        %v2815 = vmul.f32 %v481, %v2803
        %v2816 = vmul.f32 %v482, %v2803
        %v2817 = vmul.f32 %v483, %v2803
        %v2818 = vmul.f32 %v484, %v2803
        %v2819 = vmul.f32 %v485, %v2803
        %v2820 = vmul.f32 %v486, %v2803
        %v2821 = vmul.f32 %v487, %v2803
        %v2822 = vmul.f32 %v488, %v2803
        %v2823 = vmul.f32 %v489, %v2803
        %v2824 = vmul.f32 %v490, %v2803
        %v2825 = vmul.f32 %v491, %v2803
        %v2826 = vmul.f32 %v492, %v2803
        %v2827 = vmul.f32 %v493, %v2803
        %v2828 = vmul.f32 %v494, %v2803
        %v2829 = vmul.f32 %v495, %v2803
        %v2830 = vmul.f32 %v496, %v2803
        %v2831 = vmul.f32 %v497, %v2803
        %v2832 = vmul.f32 %v498, %v2803
        %v2833 = vmul.f32 %v499, %v2803
        %v2834 = vmul.f32 %v500, %v2803
        %v2835 = vmul.f32 %v501, %v2803
        %v2836 = vadd.f32 %v2770, %v2804
        %v2837 = vadd.f32 %v2771, %v2805
        %v2838 = vadd.f32 %v2772, %v2806
        %v2839 = vadd.f32 %v2773, %v2807
        %v2840 = vadd.f32 %v2774, %v2808
        %v2841 = vadd.f32 %v2775, %v2809
        %v2842 = vadd.f32 %v2776, %v2810
        %v2843 = vadd.f32 %v2777, %v2811
        %v2844 = vadd.f32 %v2778, %v2812
        %v2845 = vadd.f32 %v2779, %v2813
        %v2846 = vadd.f32 %v2780, %v2814
        %v2847 = vadd.f32 %v2781, %v2815
        %v2848 = vadd.f32 %v2782, %v2816
        %v2849 = vadd.f32 %v2783, %v2817
        %v2850 = vadd.f32 %v2784, %v2818
        %v2851 = vadd.f32 %v2785, %v2819
        %v2852 = vadd.f32 %v2786, %v2820
        %v2853 = vadd.f32 %v2787, %v2821
        %v2854 = vadd.f32 %v2788, %v2822
        %v2855 = vadd.f32 %v2789, %v2823
        %v2856 = vadd.f32 %v2790, %v2824
        %v2857 = vadd.f32 %v2791, %v2825
        %v2858 = vadd.f32 %v2792, %v2826
        %v2859 = vadd.f32 %v2793, %v2827
        %v2860 = vadd.f32 %v2794, %v2828
        %v2861 = vadd.f32 %v2795, %v2829
        %v2862 = vadd.f32 %v2796, %v2830
        %v2863 = vadd.f32 %v2797, %v2831
        %v2864 = vadd.f32 %v2798, %v2832
        %v2865 = vadd.f32 %v2799, %v2833
        %v2866 = vadd.f32 %v2800, %v2834
        %v2867 = vadd.f32 %v2801, %v2835
        %s2868 = scalar_lea.vmem %s360, 1792 [#allocation11]
        %2869 = vst [vmem:[%s2868] sm:$0xff] %v2836
        %2870 = vst [vmem:[%s2868 + $0x8] sm:$0xff] %v2837
        %2871 = vst [vmem:[%s2868 + $0x10] sm:$0xff] %v2838
        %2872 = vst [vmem:[%s2868 + $0x18] sm:$0xff] %v2839
        %2873 = vst [vmem:[%s2868 + $0x20] sm:$0xff] %v2840
        %2874 = vst [vmem:[%s2868 + $0x28] sm:$0xff] %v2841
        %2875 = vst [vmem:[%s2868 + $0x30] sm:$0xff] %v2842
        %2876 = vst [vmem:[%s2868 + $0x38] sm:$0xff] %v2843
        %2877 = vst [vmem:[%s2868 + $0x40] sm:$0xff] %v2844
        %2878 = vst [vmem:[%s2868 + $0x48] sm:$0xff] %v2845
        %2879 = vst [vmem:[%s2868 + $0x50] sm:$0xff] %v2846
        %2880 = vst [vmem:[%s2868 + $0x58] sm:$0xff] %v2847
        %2881 = vst [vmem:[%s2868 + $0x60] sm:$0xff] %v2848
        %2882 = vst [vmem:[%s2868 + $0x68] sm:$0xff] %v2849
        %2883 = vst [vmem:[%s2868 + $0x70] sm:$0xff] %v2850
        %2884 = vst [vmem:[%s2868 + $0x78] sm:$0xff] %v2851
        %2885 = vst [vmem:[%s2868 + $0x80] sm:$0xff] %v2852
        %2886 = vst [vmem:[%s2868 + $0x88] sm:$0xff] %v2853
        %2887 = vst [vmem:[%s2868 + $0x90] sm:$0xff] %v2854
        %2888 = vst [vmem:[%s2868 + $0x98] sm:$0xff] %v2855
        %2889 = vst [vmem:[%s2868 + $0xa0] sm:$0xff] %v2856
        %2890 = vst [vmem:[%s2868 + $0xa8] sm:$0xff] %v2857
        %2891 = vst [vmem:[%s2868 + $0xb0] sm:$0xff] %v2858
        %2892 = vst [vmem:[%s2868 + $0xb8] sm:$0xff] %v2859
        %2893 = vst [vmem:[%s2868 + $0xc0] sm:$0xff] %v2860
        %2894 = vst [vmem:[%s2868 + $0xc8] sm:$0xff] %v2861
        %2895 = vst [vmem:[%s2868 + $0xd0] sm:$0xff] %v2862
        %2896 = vst [vmem:[%s2868 + $0xd8] sm:$0xff] %v2863
        %2897 = vst [vmem:[%s2868 + $0xe0] sm:$0xff] %v2864
        %2898 = vst [vmem:[%s2868 + $0xe8] sm:$0xff] %v2865
        %2899 = vst [vmem:[%s2868 + $0xf0] sm:$0xff] %v2866
        %2900 = vst [vmem:[%s2868 + $0xf8] sm:$0xff] %v2867
        %s2901 = sld [smem:[#allocation8 + $0x8]]
        %v2902 = vstv %s2901
        %v2903 = vmul.f32 %v372, %v2902
        %v2904 = vmul.f32 %v373, %v2902
        %v2905 = vmul.f32 %v374, %v2902
        %v2906 = vmul.f32 %v375, %v2902
        %v2907 = vmul.f32 %v376, %v2902
        %v2908 = vmul.f32 %v377, %v2902
        %v2909 = vmul.f32 %v378, %v2902
        %v2910 = vmul.f32 %v379, %v2902
        %v2911 = vmul.f32 %v380, %v2902
        %v2912 = vmul.f32 %v381, %v2902
        %v2913 = vmul.f32 %v382, %v2902
        %v2914 = vmul.f32 %v383, %v2902
        %v2915 = vmul.f32 %v384, %v2902
        %v2916 = vmul.f32 %v385, %v2902
        %v2917 = vmul.f32 %v386, %v2902
        %v2918 = vmul.f32 %v387, %v2902
        %v2919 = vmul.f32 %v388, %v2902
        %v2920 = vmul.f32 %v389, %v2902
        %v2921 = vmul.f32 %v390, %v2902
        %v2922 = vmul.f32 %v391, %v2902
        %v2923 = vmul.f32 %v392, %v2902
        %v2924 = vmul.f32 %v393, %v2902
        %v2925 = vmul.f32 %v394, %v2902
        %v2926 = vmul.f32 %v395, %v2902
        %v2927 = vmul.f32 %v396, %v2902
        %v2928 = vmul.f32 %v397, %v2902
        %v2929 = vmul.f32 %v398, %v2902
        %v2930 = vmul.f32 %v399, %v2902
        %v2931 = vmul.f32 %v400, %v2902
        %v2932 = vmul.f32 %v401, %v2902
        %v2933 = vmul.f32 %v402, %v2902
        %v2934 = vmul.f32 %v403, %v2902
        %s2935 = sadd.s32 %s536, 8
        %s2936 = sld [smem:[#allocation9 + %s2935]]
        %v2937 = vstv %s2936
        %v2938 = vadd.f32 %v2903, %v2937
        %v2939 = vadd.f32 %v2904, %v2937
        %v2940 = vadd.f32 %v2905, %v2937
        %v2941 = vadd.f32 %v2906, %v2937
        %v2942 = vadd.f32 %v2907, %v2937
        %v2943 = vadd.f32 %v2908, %v2937
        %v2944 = vadd.f32 %v2909, %v2937
        %v2945 = vadd.f32 %v2910, %v2937
        %v2946 = vadd.f32 %v2911, %v2937
        %v2947 = vadd.f32 %v2912, %v2937
        %v2948 = vadd.f32 %v2913, %v2937
        %v2949 = vadd.f32 %v2914, %v2937
        %v2950 = vadd.f32 %v2915, %v2937
        %v2951 = vadd.f32 %v2916, %v2937
        %v2952 = vadd.f32 %v2917, %v2937
        %v2953 = vadd.f32 %v2918, %v2937
        %v2954 = vadd.f32 %v2919, %v2937
        %v2955 = vadd.f32 %v2920, %v2937
        %v2956 = vadd.f32 %v2921, %v2937
        %v2957 = vadd.f32 %v2922, %v2937
        %v2958 = vadd.f32 %v2923, %v2937
        %v2959 = vadd.f32 %v2924, %v2937
        %v2960 = vadd.f32 %v2925, %v2937
        %v2961 = vadd.f32 %v2926, %v2937
        %v2962 = vadd.f32 %v2927, %v2937
        %v2963 = vadd.f32 %v2928, %v2937
        %v2964 = vadd.f32 %v2929, %v2937
        %v2965 = vadd.f32 %v2930, %v2937
        %v2966 = vadd.f32 %v2931, %v2937
        %v2967 = vadd.f32 %v2932, %v2937
        %v2968 = vadd.f32 %v2933, %v2937
        %v2969 = vadd.f32 %v2934, %v2937
        %s2970 = sld [smem:[#allocation8 + $0x88]]
        %v2971 = vstv %s2970
        %v2972 = vmul.f32 %v404, %v2971
        %v2973 = vmul.f32 %v405, %v2971
        %v2974 = vmul.f32 %v406, %v2971
        %v2975 = vmul.f32 %v407, %v2971
        %v2976 = vmul.f32 %v408, %v2971
        %v2977 = vmul.f32 %v409, %v2971
        %v2978 = vmul.f32 %v410, %v2971
        %v2979 = vmul.f32 %v411, %v2971
        %v2980 = vmul.f32 %v412, %v2971
        %v2981 = vmul.f32 %v413, %v2971
        %v2982 = vmul.f32 %v414, %v2971
        %v2983 = vmul.f32 %v415, %v2971
        %v2984 = vmul.f32 %v416, %v2971
        %v2985 = vmul.f32 %v417, %v2971
        %v2986 = vmul.f32 %v418, %v2971
        %v2987 = vmul.f32 %v419, %v2971
        %v2988 = vmul.f32 %v420, %v2971
        %v2989 = vmul.f32 %v421, %v2971
        %v2990 = vmul.f32 %v422, %v2971
        %v2991 = vmul.f32 %v423, %v2971
        %v2992 = vmul.f32 %v424, %v2971
        %v2993 = vmul.f32 %v425, %v2971
        %v2994 = vmul.f32 %v426, %v2971
        %v2995 = vmul.f32 %v427, %v2971
        %v2996 = vmul.f32 %v428, %v2971
        %v2997 = vmul.f32 %v429, %v2971
        %v2998 = vmul.f32 %v430, %v2971
        %v2999 = vmul.f32 %v431, %v2971
        %v3000 = vmul.f32 %v432, %v2971
        %v3001 = vmul.f32 %v433, %v2971
        %v3002 = vmul.f32 %v434, %v2971
        %v3003 = vmul.f32 %v435, %v2971
        %v3004 = vadd.f32 %v2938, %v2972
        %v3005 = vadd.f32 %v2939, %v2973
        %v3006 = vadd.f32 %v2940, %v2974
        %v3007 = vadd.f32 %v2941, %v2975
        %v3008 = vadd.f32 %v2942, %v2976
        %v3009 = vadd.f32 %v2943, %v2977
        %v3010 = vadd.f32 %v2944, %v2978
        %v3011 = vadd.f32 %v2945, %v2979
        %v3012 = vadd.f32 %v2946, %v2980
        %v3013 = vadd.f32 %v2947, %v2981
        %v3014 = vadd.f32 %v2948, %v2982
        %v3015 = vadd.f32 %v2949, %v2983
        %v3016 = vadd.f32 %v2950, %v2984
        %v3017 = vadd.f32 %v2951, %v2985
        %v3018 = vadd.f32 %v2952, %v2986
        %v3019 = vadd.f32 %v2953, %v2987
        %v3020 = vadd.f32 %v2954, %v2988
        %v3021 = vadd.f32 %v2955, %v2989
        %v3022 = vadd.f32 %v2956, %v2990
        %v3023 = vadd.f32 %v2957, %v2991
        %v3024 = vadd.f32 %v2958, %v2992
        %v3025 = vadd.f32 %v2959, %v2993
        %v3026 = vadd.f32 %v2960, %v2994
        %v3027 = vadd.f32 %v2961, %v2995
        %v3028 = vadd.f32 %v2962, %v2996
        %v3029 = vadd.f32 %v2963, %v2997
        %v3030 = vadd.f32 %v2964, %v2998
        %v3031 = vadd.f32 %v2965, %v2999
        %v3032 = vadd.f32 %v2966, %v3000
        %v3033 = vadd.f32 %v2967, %v3001
        %v3034 = vadd.f32 %v2968, %v3002
        %v3035 = vadd.f32 %v2969, %v3003
        %s3036 = sld [smem:[#allocation8 + $0x108]]
        %v3037 = vstv %s3036
        %v3038 = vmul.f32 %v437, %v3037
        %v3039 = vmul.f32 %v438, %v3037
        %v3040 = vmul.f32 %v439, %v3037
        %v3041 = vmul.f32 %v440, %v3037
        %v3042 = vmul.f32 %v441, %v3037
        %v3043 = vmul.f32 %v442, %v3037
        %v3044 = vmul.f32 %v443, %v3037
        %v3045 = vmul.f32 %v444, %v3037
        %v3046 = vmul.f32 %v445, %v3037
        %v3047 = vmul.f32 %v446, %v3037
        %v3048 = vmul.f32 %v447, %v3037
        %v3049 = vmul.f32 %v448, %v3037
        %v3050 = vmul.f32 %v449, %v3037
        %v3051 = vmul.f32 %v450, %v3037
        %v3052 = vmul.f32 %v451, %v3037
        %v3053 = vmul.f32 %v452, %v3037
        %v3054 = vmul.f32 %v453, %v3037
        %v3055 = vmul.f32 %v454, %v3037
        %v3056 = vmul.f32 %v455, %v3037
        %v3057 = vmul.f32 %v456, %v3037
        %v3058 = vmul.f32 %v457, %v3037
        %v3059 = vmul.f32 %v458, %v3037
        %v3060 = vmul.f32 %v459, %v3037
        %v3061 = vmul.f32 %v460, %v3037
        %v3062 = vmul.f32 %v461, %v3037
        %v3063 = vmul.f32 %v462, %v3037
        %v3064 = vmul.f32 %v463, %v3037
        %v3065 = vmul.f32 %v464, %v3037
        %v3066 = vmul.f32 %v465, %v3037
        %v3067 = vmul.f32 %v466, %v3037
        %v3068 = vmul.f32 %v467, %v3037
        %v3069 = vmul.f32 %v468, %v3037
        %v3070 = vadd.f32 %v3004, %v3038
        %v3071 = vadd.f32 %v3005, %v3039
        %v3072 = vadd.f32 %v3006, %v3040
        %v3073 = vadd.f32 %v3007, %v3041
        %v3074 = vadd.f32 %v3008, %v3042
        %v3075 = vadd.f32 %v3009, %v3043
        %v3076 = vadd.f32 %v3010, %v3044
        %v3077 = vadd.f32 %v3011, %v3045
        %v3078 = vadd.f32 %v3012, %v3046
        %v3079 = vadd.f32 %v3013, %v3047
        %v3080 = vadd.f32 %v3014, %v3048
        %v3081 = vadd.f32 %v3015, %v3049
        %v3082 = vadd.f32 %v3016, %v3050
        %v3083 = vadd.f32 %v3017, %v3051
        %v3084 = vadd.f32 %v3018, %v3052
        %v3085 = vadd.f32 %v3019, %v3053
        %v3086 = vadd.f32 %v3020, %v3054
        %v3087 = vadd.f32 %v3021, %v3055
        %v3088 = vadd.f32 %v3022, %v3056
        %v3089 = vadd.f32 %v3023, %v3057
        %v3090 = vadd.f32 %v3024, %v3058
        %v3091 = vadd.f32 %v3025, %v3059
        %v3092 = vadd.f32 %v3026, %v3060
        %v3093 = vadd.f32 %v3027, %v3061
        %v3094 = vadd.f32 %v3028, %v3062
        %v3095 = vadd.f32 %v3029, %v3063
        %v3096 = vadd.f32 %v3030, %v3064
        %v3097 = vadd.f32 %v3031, %v3065
        %v3098 = vadd.f32 %v3032, %v3066
        %v3099 = vadd.f32 %v3033, %v3067
        %v3100 = vadd.f32 %v3034, %v3068
        %v3101 = vadd.f32 %v3035, %v3069
        %s3102 = sld [smem:[#allocation8 + $0x188]]
        %v3103 = vstv %s3102
        %v3104 = vmul.f32 %v470, %v3103
        %v3105 = vmul.f32 %v471, %v3103
        %v3106 = vmul.f32 %v472, %v3103
        %v3107 = vmul.f32 %v473, %v3103
        %v3108 = vmul.f32 %v474, %v3103
        %v3109 = vmul.f32 %v475, %v3103
        %v3110 = vmul.f32 %v476, %v3103
        %v3111 = vmul.f32 %v477, %v3103
        %v3112 = vmul.f32 %v478, %v3103
        %v3113 = vmul.f32 %v479, %v3103
        %v3114 = vmul.f32 %v480, %v3103
        %v3115 = vmul.f32 %v481, %v3103
        %v3116 = vmul.f32 %v482, %v3103
        %v3117 = vmul.f32 %v483, %v3103
        %v3118 = vmul.f32 %v484, %v3103
        %v3119 = vmul.f32 %v485, %v3103
        %v3120 = vmul.f32 %v486, %v3103
        %v3121 = vmul.f32 %v487, %v3103
        %v3122 = vmul.f32 %v488, %v3103
        %v3123 = vmul.f32 %v489, %v3103
        %v3124 = vmul.f32 %v490, %v3103
        %v3125 = vmul.f32 %v491, %v3103
        %v3126 = vmul.f32 %v492, %v3103
        %v3127 = vmul.f32 %v493, %v3103
        %v3128 = vmul.f32 %v494, %v3103
        %v3129 = vmul.f32 %v495, %v3103
        %v3130 = vmul.f32 %v496, %v3103
        %v3131 = vmul.f32 %v497, %v3103
        %v3132 = vmul.f32 %v498, %v3103
        %v3133 = vmul.f32 %v499, %v3103
        %v3134 = vmul.f32 %v500, %v3103
        %v3135 = vmul.f32 %v501, %v3103
        %v3136 = vadd.f32 %v3070, %v3104
        %v3137 = vadd.f32 %v3071, %v3105
        %v3138 = vadd.f32 %v3072, %v3106
        %v3139 = vadd.f32 %v3073, %v3107
        %v3140 = vadd.f32 %v3074, %v3108
        %v3141 = vadd.f32 %v3075, %v3109
        %v3142 = vadd.f32 %v3076, %v3110
        %v3143 = vadd.f32 %v3077, %v3111
        %v3144 = vadd.f32 %v3078, %v3112
        %v3145 = vadd.f32 %v3079, %v3113
        %v3146 = vadd.f32 %v3080, %v3114
        %v3147 = vadd.f32 %v3081, %v3115
        %v3148 = vadd.f32 %v3082, %v3116
        %v3149 = vadd.f32 %v3083, %v3117
        %v3150 = vadd.f32 %v3084, %v3118
        %v3151 = vadd.f32 %v3085, %v3119
        %v3152 = vadd.f32 %v3086, %v3120
        %v3153 = vadd.f32 %v3087, %v3121
        %v3154 = vadd.f32 %v3088, %v3122
        %v3155 = vadd.f32 %v3089, %v3123
        %v3156 = vadd.f32 %v3090, %v3124
        %v3157 = vadd.f32 %v3091, %v3125
        %v3158 = vadd.f32 %v3092, %v3126
        %v3159 = vadd.f32 %v3093, %v3127
        %v3160 = vadd.f32 %v3094, %v3128
        %v3161 = vadd.f32 %v3095, %v3129
        %v3162 = vadd.f32 %v3096, %v3130
        %v3163 = vadd.f32 %v3097, %v3131
        %v3164 = vadd.f32 %v3098, %v3132
        %v3165 = vadd.f32 %v3099, %v3133
        %v3166 = vadd.f32 %v3100, %v3134
        %v3167 = vadd.f32 %v3101, %v3135
        %s3168 = scalar_lea.vmem %s360, 2048 [#allocation11]
        %3169 = vst [vmem:[%s3168] sm:$0xff] %v3136
        %3170 = vst [vmem:[%s3168 + $0x8] sm:$0xff] %v3137
        %3171 = vst [vmem:[%s3168 + $0x10] sm:$0xff] %v3138
        %3172 = vst [vmem:[%s3168 + $0x18] sm:$0xff] %v3139
        %3173 = vst [vmem:[%s3168 + $0x20] sm:$0xff] %v3140
        %3174 = vst [vmem:[%s3168 + $0x28] sm:$0xff] %v3141
        %3175 = vst [vmem:[%s3168 + $0x30] sm:$0xff] %v3142
        %3176 = vst [vmem:[%s3168 + $0x38] sm:$0xff] %v3143
        %3177 = vst [vmem:[%s3168 + $0x40] sm:$0xff] %v3144
        %3178 = vst [vmem:[%s3168 + $0x48] sm:$0xff] %v3145
        %3179 = vst [vmem:[%s3168 + $0x50] sm:$0xff] %v3146
        %3180 = vst [vmem:[%s3168 + $0x58] sm:$0xff] %v3147
        %3181 = vst [vmem:[%s3168 + $0x60] sm:$0xff] %v3148
        %3182 = vst [vmem:[%s3168 + $0x68] sm:$0xff] %v3149
        %3183 = vst [vmem:[%s3168 + $0x70] sm:$0xff] %v3150
        %3184 = vst [vmem:[%s3168 + $0x78] sm:$0xff] %v3151
        %3185 = vst [vmem:[%s3168 + $0x80] sm:$0xff] %v3152
        %3186 = vst [vmem:[%s3168 + $0x88] sm:$0xff] %v3153
        %3187 = vst [vmem:[%s3168 + $0x90] sm:$0xff] %v3154
        %3188 = vst [vmem:[%s3168 + $0x98] sm:$0xff] %v3155
        %3189 = vst [vmem:[%s3168 + $0xa0] sm:$0xff] %v3156
        %3190 = vst [vmem:[%s3168 + $0xa8] sm:$0xff] %v3157
        %3191 = vst [vmem:[%s3168 + $0xb0] sm:$0xff] %v3158
        %3192 = vst [vmem:[%s3168 + $0xb8] sm:$0xff] %v3159
        %3193 = vst [vmem:[%s3168 + $0xc0] sm:$0xff] %v3160
        %3194 = vst [vmem:[%s3168 + $0xc8] sm:$0xff] %v3161
        %3195 = vst [vmem:[%s3168 + $0xd0] sm:$0xff] %v3162
        %3196 = vst [vmem:[%s3168 + $0xd8] sm:$0xff] %v3163
        %3197 = vst [vmem:[%s3168 + $0xe0] sm:$0xff] %v3164
        %3198 = vst [vmem:[%s3168 + $0xe8] sm:$0xff] %v3165
        %3199 = vst [vmem:[%s3168 + $0xf0] sm:$0xff] %v3166
        %3200 = vst [vmem:[%s3168 + $0xf8] sm:$0xff] %v3167
        %s3201 = sld [smem:[#allocation8 + $0x9]]
        %v3202 = vstv %s3201
        %v3203 = vmul.f32 %v372, %v3202
        %v3204 = vmul.f32 %v373, %v3202
        %v3205 = vmul.f32 %v374, %v3202
        %v3206 = vmul.f32 %v375, %v3202
        %v3207 = vmul.f32 %v376, %v3202
        %v3208 = vmul.f32 %v377, %v3202
        %v3209 = vmul.f32 %v378, %v3202
        %v3210 = vmul.f32 %v379, %v3202
        %v3211 = vmul.f32 %v380, %v3202
        %v3212 = vmul.f32 %v381, %v3202
        %v3213 = vmul.f32 %v382, %v3202
        %v3214 = vmul.f32 %v383, %v3202
        %v3215 = vmul.f32 %v384, %v3202
        %v3216 = vmul.f32 %v385, %v3202
        %v3217 = vmul.f32 %v386, %v3202
        %v3218 = vmul.f32 %v387, %v3202
        %v3219 = vmul.f32 %v388, %v3202
        %v3220 = vmul.f32 %v389, %v3202
        %v3221 = vmul.f32 %v390, %v3202
        %v3222 = vmul.f32 %v391, %v3202
        %v3223 = vmul.f32 %v392, %v3202
        %v3224 = vmul.f32 %v393, %v3202
        %v3225 = vmul.f32 %v394, %v3202
        %v3226 = vmul.f32 %v395, %v3202
        %v3227 = vmul.f32 %v396, %v3202
        %v3228 = vmul.f32 %v397, %v3202
        %v3229 = vmul.f32 %v398, %v3202
        %v3230 = vmul.f32 %v399, %v3202
        %v3231 = vmul.f32 %v400, %v3202
        %v3232 = vmul.f32 %v401, %v3202
        %v3233 = vmul.f32 %v402, %v3202
        %v3234 = vmul.f32 %v403, %v3202
        %s3235 = sadd.s32 %s536, 9
        %s3236 = sld [smem:[#allocation9 + %s3235]]
        %v3237 = vstv %s3236
        %v3238 = vadd.f32 %v3203, %v3237
        %v3239 = vadd.f32 %v3204, %v3237
        %v3240 = vadd.f32 %v3205, %v3237
        %v3241 = vadd.f32 %v3206, %v3237
        %v3242 = vadd.f32 %v3207, %v3237
        %v3243 = vadd.f32 %v3208, %v3237
        %v3244 = vadd.f32 %v3209, %v3237
        %v3245 = vadd.f32 %v3210, %v3237
        %v3246 = vadd.f32 %v3211, %v3237
        %v3247 = vadd.f32 %v3212, %v3237
        %v3248 = vadd.f32 %v3213, %v3237
        %v3249 = vadd.f32 %v3214, %v3237
        %v3250 = vadd.f32 %v3215, %v3237
        %v3251 = vadd.f32 %v3216, %v3237
        %v3252 = vadd.f32 %v3217, %v3237
        %v3253 = vadd.f32 %v3218, %v3237
        %v3254 = vadd.f32 %v3219, %v3237
        %v3255 = vadd.f32 %v3220, %v3237
        %v3256 = vadd.f32 %v3221, %v3237
        %v3257 = vadd.f32 %v3222, %v3237
        %v3258 = vadd.f32 %v3223, %v3237
        %v3259 = vadd.f32 %v3224, %v3237
        %v3260 = vadd.f32 %v3225, %v3237
        %v3261 = vadd.f32 %v3226, %v3237
        %v3262 = vadd.f32 %v3227, %v3237
        %v3263 = vadd.f32 %v3228, %v3237
        %v3264 = vadd.f32 %v3229, %v3237
        %v3265 = vadd.f32 %v3230, %v3237
        %v3266 = vadd.f32 %v3231, %v3237
        %v3267 = vadd.f32 %v3232, %v3237
        %v3268 = vadd.f32 %v3233, %v3237
        %v3269 = vadd.f32 %v3234, %v3237
        %s3270 = sld [smem:[#allocation8 + $0x89]]
        %v3271 = vstv %s3270
        %v3272 = vmul.f32 %v404, %v3271
        %v3273 = vmul.f32 %v405, %v3271
        %v3274 = vmul.f32 %v406, %v3271
        %v3275 = vmul.f32 %v407, %v3271
        %v3276 = vmul.f32 %v408, %v3271
        %v3277 = vmul.f32 %v409, %v3271
        %v3278 = vmul.f32 %v410, %v3271
        %v3279 = vmul.f32 %v411, %v3271
        %v3280 = vmul.f32 %v412, %v3271
        %v3281 = vmul.f32 %v413, %v3271
        %v3282 = vmul.f32 %v414, %v3271
        %v3283 = vmul.f32 %v415, %v3271
        %v3284 = vmul.f32 %v416, %v3271
        %v3285 = vmul.f32 %v417, %v3271
        %v3286 = vmul.f32 %v418, %v3271
        %v3287 = vmul.f32 %v419, %v3271
        %v3288 = vmul.f32 %v420, %v3271
        %v3289 = vmul.f32 %v421, %v3271
        %v3290 = vmul.f32 %v422, %v3271
        %v3291 = vmul.f32 %v423, %v3271
        %v3292 = vmul.f32 %v424, %v3271
        %v3293 = vmul.f32 %v425, %v3271
        %v3294 = vmul.f32 %v426, %v3271
        %v3295 = vmul.f32 %v427, %v3271
        %v3296 = vmul.f32 %v428, %v3271
        %v3297 = vmul.f32 %v429, %v3271
        %v3298 = vmul.f32 %v430, %v3271
        %v3299 = vmul.f32 %v431, %v3271
        %v3300 = vmul.f32 %v432, %v3271
        %v3301 = vmul.f32 %v433, %v3271
        %v3302 = vmul.f32 %v434, %v3271
        %v3303 = vmul.f32 %v435, %v3271
        %v3304 = vadd.f32 %v3238, %v3272
        %v3305 = vadd.f32 %v3239, %v3273
        %v3306 = vadd.f32 %v3240, %v3274
        %v3307 = vadd.f32 %v3241, %v3275
        %v3308 = vadd.f32 %v3242, %v3276
        %v3309 = vadd.f32 %v3243, %v3277
        %v3310 = vadd.f32 %v3244, %v3278
        %v3311 = vadd.f32 %v3245, %v3279
        %v3312 = vadd.f32 %v3246, %v3280
        %v3313 = vadd.f32 %v3247, %v3281
        %v3314 = vadd.f32 %v3248, %v3282
        %v3315 = vadd.f32 %v3249, %v3283
        %v3316 = vadd.f32 %v3250, %v3284
        %v3317 = vadd.f32 %v3251, %v3285
        %v3318 = vadd.f32 %v3252, %v3286
        %v3319 = vadd.f32 %v3253, %v3287
        %v3320 = vadd.f32 %v3254, %v3288
        %v3321 = vadd.f32 %v3255, %v3289
        %v3322 = vadd.f32 %v3256, %v3290
        %v3323 = vadd.f32 %v3257, %v3291
        %v3324 = vadd.f32 %v3258, %v3292
        %v3325 = vadd.f32 %v3259, %v3293
        %v3326 = vadd.f32 %v3260, %v3294
        %v3327 = vadd.f32 %v3261, %v3295
        %v3328 = vadd.f32 %v3262, %v3296
        %v3329 = vadd.f32 %v3263, %v3297
        %v3330 = vadd.f32 %v3264, %v3298
        %v3331 = vadd.f32 %v3265, %v3299
        %v3332 = vadd.f32 %v3266, %v3300
        %v3333 = vadd.f32 %v3267, %v3301
        %v3334 = vadd.f32 %v3268, %v3302
        %v3335 = vadd.f32 %v3269, %v3303
        %s3336 = sld [smem:[#allocation8 + $0x109]]
        %v3337 = vstv %s3336
        %v3338 = vmul.f32 %v437, %v3337
        %v3339 = vmul.f32 %v438, %v3337
        %v3340 = vmul.f32 %v439, %v3337
        %v3341 = vmul.f32 %v440, %v3337
        %v3342 = vmul.f32 %v441, %v3337
        %v3343 = vmul.f32 %v442, %v3337
        %v3344 = vmul.f32 %v443, %v3337
        %v3345 = vmul.f32 %v444, %v3337
        %v3346 = vmul.f32 %v445, %v3337
        %v3347 = vmul.f32 %v446, %v3337
        %v3348 = vmul.f32 %v447, %v3337
        %v3349 = vmul.f32 %v448, %v3337
        %v3350 = vmul.f32 %v449, %v3337
        %v3351 = vmul.f32 %v450, %v3337
        %v3352 = vmul.f32 %v451, %v3337
        %v3353 = vmul.f32 %v452, %v3337
        %v3354 = vmul.f32 %v453, %v3337
        %v3355 = vmul.f32 %v454, %v3337
        %v3356 = vmul.f32 %v455, %v3337
        %v3357 = vmul.f32 %v456, %v3337
        %v3358 = vmul.f32 %v457, %v3337
        %v3359 = vmul.f32 %v458, %v3337
        %v3360 = vmul.f32 %v459, %v3337
        %v3361 = vmul.f32 %v460, %v3337
        %v3362 = vmul.f32 %v461, %v3337
        %v3363 = vmul.f32 %v462, %v3337
        %v3364 = vmul.f32 %v463, %v3337
        %v3365 = vmul.f32 %v464, %v3337
        %v3366 = vmul.f32 %v465, %v3337
        %v3367 = vmul.f32 %v466, %v3337
        %v3368 = vmul.f32 %v467, %v3337
        %v3369 = vmul.f32 %v468, %v3337
        %v3370 = vadd.f32 %v3304, %v3338
        %v3371 = vadd.f32 %v3305, %v3339
        %v3372 = vadd.f32 %v3306, %v3340
        %v3373 = vadd.f32 %v3307, %v3341
        %v3374 = vadd.f32 %v3308, %v3342
        %v3375 = vadd.f32 %v3309, %v3343
        %v3376 = vadd.f32 %v3310, %v3344
        %v3377 = vadd.f32 %v3311, %v3345
        %v3378 = vadd.f32 %v3312, %v3346
        %v3379 = vadd.f32 %v3313, %v3347
        %v3380 = vadd.f32 %v3314, %v3348
        %v3381 = vadd.f32 %v3315, %v3349
        %v3382 = vadd.f32 %v3316, %v3350
        %v3383 = vadd.f32 %v3317, %v3351
        %v3384 = vadd.f32 %v3318, %v3352
        %v3385 = vadd.f32 %v3319, %v3353
        %v3386 = vadd.f32 %v3320, %v3354
        %v3387 = vadd.f32 %v3321, %v3355
        %v3388 = vadd.f32 %v3322, %v3356
        %v3389 = vadd.f32 %v3323, %v3357
        %v3390 = vadd.f32 %v3324, %v3358
        %v3391 = vadd.f32 %v3325, %v3359
        %v3392 = vadd.f32 %v3326, %v3360
        %v3393 = vadd.f32 %v3327, %v3361
        %v3394 = vadd.f32 %v3328, %v3362
        %v3395 = vadd.f32 %v3329, %v3363
        %v3396 = vadd.f32 %v3330, %v3364
        %v3397 = vadd.f32 %v3331, %v3365
        %v3398 = vadd.f32 %v3332, %v3366
        %v3399 = vadd.f32 %v3333, %v3367
        %v3400 = vadd.f32 %v3334, %v3368
        %v3401 = vadd.f32 %v3335, %v3369
        %s3402 = sld [smem:[#allocation8 + $0x189]]
        %v3403 = vstv %s3402
        %v3404 = vmul.f32 %v470, %v3403
        %v3405 = vmul.f32 %v471, %v3403
        %v3406 = vmul.f32 %v472, %v3403
        %v3407 = vmul.f32 %v473, %v3403
        %v3408 = vmul.f32 %v474, %v3403
        %v3409 = vmul.f32 %v475, %v3403
        %v3410 = vmul.f32 %v476, %v3403
        %v3411 = vmul.f32 %v477, %v3403
        %v3412 = vmul.f32 %v478, %v3403
        %v3413 = vmul.f32 %v479, %v3403
        %v3414 = vmul.f32 %v480, %v3403
        %v3415 = vmul.f32 %v481, %v3403
        %v3416 = vmul.f32 %v482, %v3403
        %v3417 = vmul.f32 %v483, %v3403
        %v3418 = vmul.f32 %v484, %v3403
        %v3419 = vmul.f32 %v485, %v3403
        %v3420 = vmul.f32 %v486, %v3403
        %v3421 = vmul.f32 %v487, %v3403
        %v3422 = vmul.f32 %v488, %v3403
        %v3423 = vmul.f32 %v489, %v3403
        %v3424 = vmul.f32 %v490, %v3403
        %v3425 = vmul.f32 %v491, %v3403
        %v3426 = vmul.f32 %v492, %v3403
        %v3427 = vmul.f32 %v493, %v3403
        %v3428 = vmul.f32 %v494, %v3403
        %v3429 = vmul.f32 %v495, %v3403
        %v3430 = vmul.f32 %v496, %v3403
        %v3431 = vmul.f32 %v497, %v3403
        %v3432 = vmul.f32 %v498, %v3403
        %v3433 = vmul.f32 %v499, %v3403
        %v3434 = vmul.f32 %v500, %v3403
        %v3435 = vmul.f32 %v501, %v3403
        %v3436 = vadd.f32 %v3370, %v3404
        %v3437 = vadd.f32 %v3371, %v3405
        %v3438 = vadd.f32 %v3372, %v3406
        %v3439 = vadd.f32 %v3373, %v3407
        %v3440 = vadd.f32 %v3374, %v3408
        %v3441 = vadd.f32 %v3375, %v3409
        %v3442 = vadd.f32 %v3376, %v3410
        %v3443 = vadd.f32 %v3377, %v3411
        %v3444 = vadd.f32 %v3378, %v3412
        %v3445 = vadd.f32 %v3379, %v3413
        %v3446 = vadd.f32 %v3380, %v3414
        %v3447 = vadd.f32 %v3381, %v3415
        %v3448 = vadd.f32 %v3382, %v3416
        %v3449 = vadd.f32 %v3383, %v3417
        %v3450 = vadd.f32 %v3384, %v3418
        %v3451 = vadd.f32 %v3385, %v3419
        %v3452 = vadd.f32 %v3386, %v3420
        %v3453 = vadd.f32 %v3387, %v3421
        %v3454 = vadd.f32 %v3388, %v3422
        %v3455 = vadd.f32 %v3389, %v3423
        %v3456 = vadd.f32 %v3390, %v3424
        %v3457 = vadd.f32 %v3391, %v3425
        %v3458 = vadd.f32 %v3392, %v3426
        %v3459 = vadd.f32 %v3393, %v3427
        %v3460 = vadd.f32 %v3394, %v3428
        %v3461 = vadd.f32 %v3395, %v3429
        %v3462 = vadd.f32 %v3396, %v3430
        %v3463 = vadd.f32 %v3397, %v3431
        %v3464 = vadd.f32 %v3398, %v3432
        %v3465 = vadd.f32 %v3399, %v3433
        %v3466 = vadd.f32 %v3400, %v3434
        %v3467 = vadd.f32 %v3401, %v3435
        %s3468 = scalar_lea.vmem %s360, 2304 [#allocation11]
        %3469 = vst [vmem:[%s3468] sm:$0xff] %v3436
        %3470 = vst [vmem:[%s3468 + $0x8] sm:$0xff] %v3437
        %3471 = vst [vmem:[%s3468 + $0x10] sm:$0xff] %v3438
        %3472 = vst [vmem:[%s3468 + $0x18] sm:$0xff] %v3439
        %3473 = vst [vmem:[%s3468 + $0x20] sm:$0xff] %v3440
        %3474 = vst [vmem:[%s3468 + $0x28] sm:$0xff] %v3441
        %3475 = vst [vmem:[%s3468 + $0x30] sm:$0xff] %v3442
        %3476 = vst [vmem:[%s3468 + $0x38] sm:$0xff] %v3443
        %3477 = vst [vmem:[%s3468 + $0x40] sm:$0xff] %v3444
        %3478 = vst [vmem:[%s3468 + $0x48] sm:$0xff] %v3445
        %3479 = vst [vmem:[%s3468 + $0x50] sm:$0xff] %v3446
        %3480 = vst [vmem:[%s3468 + $0x58] sm:$0xff] %v3447
        %3481 = vst [vmem:[%s3468 + $0x60] sm:$0xff] %v3448
        %3482 = vst [vmem:[%s3468 + $0x68] sm:$0xff] %v3449
        %3483 = vst [vmem:[%s3468 + $0x70] sm:$0xff] %v3450
        %3484 = vst [vmem:[%s3468 + $0x78] sm:$0xff] %v3451
        %3485 = vst [vmem:[%s3468 + $0x80] sm:$0xff] %v3452
        %3486 = vst [vmem:[%s3468 + $0x88] sm:$0xff] %v3453
        %3487 = vst [vmem:[%s3468 + $0x90] sm:$0xff] %v3454
        %3488 = vst [vmem:[%s3468 + $0x98] sm:$0xff] %v3455
        %3489 = vst [vmem:[%s3468 + $0xa0] sm:$0xff] %v3456
        %3490 = vst [vmem:[%s3468 + $0xa8] sm:$0xff] %v3457
        %3491 = vst [vmem:[%s3468 + $0xb0] sm:$0xff] %v3458
        %3492 = vst [vmem:[%s3468 + $0xb8] sm:$0xff] %v3459
        %3493 = vst [vmem:[%s3468 + $0xc0] sm:$0xff] %v3460
        %3494 = vst [vmem:[%s3468 + $0xc8] sm:$0xff] %v3461
        %3495 = vst [vmem:[%s3468 + $0xd0] sm:$0xff] %v3462
        %3496 = vst [vmem:[%s3468 + $0xd8] sm:$0xff] %v3463
        %3497 = vst [vmem:[%s3468 + $0xe0] sm:$0xff] %v3464
        %3498 = vst [vmem:[%s3468 + $0xe8] sm:$0xff] %v3465
        %3499 = vst [vmem:[%s3468 + $0xf0] sm:$0xff] %v3466
        %3500 = vst [vmem:[%s3468 + $0xf8] sm:$0xff] %v3467
        %s3501 = sld [smem:[#allocation8 + $0xa]]
        %v3502 = vstv %s3501
        %v3503 = vmul.f32 %v372, %v3502
        %v3504 = vmul.f32 %v373, %v3502
        %v3505 = vmul.f32 %v374, %v3502
        %v3506 = vmul.f32 %v375, %v3502
        %v3507 = vmul.f32 %v376, %v3502
        %v3508 = vmul.f32 %v377, %v3502
        %v3509 = vmul.f32 %v378, %v3502
        %v3510 = vmul.f32 %v379, %v3502
        %v3511 = vmul.f32 %v380, %v3502
        %v3512 = vmul.f32 %v381, %v3502
        %v3513 = vmul.f32 %v382, %v3502
        %v3514 = vmul.f32 %v383, %v3502
        %v3515 = vmul.f32 %v384, %v3502
        %v3516 = vmul.f32 %v385, %v3502
        %v3517 = vmul.f32 %v386, %v3502
        %v3518 = vmul.f32 %v387, %v3502
        %v3519 = vmul.f32 %v388, %v3502
        %v3520 = vmul.f32 %v389, %v3502
        %v3521 = vmul.f32 %v390, %v3502
        %v3522 = vmul.f32 %v391, %v3502
        %v3523 = vmul.f32 %v392, %v3502
        %v3524 = vmul.f32 %v393, %v3502
        %v3525 = vmul.f32 %v394, %v3502
        %v3526 = vmul.f32 %v395, %v3502
        %v3527 = vmul.f32 %v396, %v3502
        %v3528 = vmul.f32 %v397, %v3502
        %v3529 = vmul.f32 %v398, %v3502
        %v3530 = vmul.f32 %v399, %v3502
        %v3531 = vmul.f32 %v400, %v3502
        %v3532 = vmul.f32 %v401, %v3502
        %v3533 = vmul.f32 %v402, %v3502
        %v3534 = vmul.f32 %v403, %v3502
        %s3535 = sadd.s32 %s536, 10
        %s3536 = sld [smem:[#allocation9 + %s3535]]
        %v3537 = vstv %s3536
        %v3538 = vadd.f32 %v3503, %v3537
        %v3539 = vadd.f32 %v3504, %v3537
        %v3540 = vadd.f32 %v3505, %v3537
        %v3541 = vadd.f32 %v3506, %v3537
        %v3542 = vadd.f32 %v3507, %v3537
        %v3543 = vadd.f32 %v3508, %v3537
        %v3544 = vadd.f32 %v3509, %v3537
        %v3545 = vadd.f32 %v3510, %v3537
        %v3546 = vadd.f32 %v3511, %v3537
        %v3547 = vadd.f32 %v3512, %v3537
        %v3548 = vadd.f32 %v3513, %v3537
        %v3549 = vadd.f32 %v3514, %v3537
        %v3550 = vadd.f32 %v3515, %v3537
        %v3551 = vadd.f32 %v3516, %v3537
        %v3552 = vadd.f32 %v3517, %v3537
        %v3553 = vadd.f32 %v3518, %v3537
        %v3554 = vadd.f32 %v3519, %v3537
        %v3555 = vadd.f32 %v3520, %v3537
        %v3556 = vadd.f32 %v3521, %v3537
        %v3557 = vadd.f32 %v3522, %v3537
        %v3558 = vadd.f32 %v3523, %v3537
        %v3559 = vadd.f32 %v3524, %v3537
        %v3560 = vadd.f32 %v3525, %v3537
        %v3561 = vadd.f32 %v3526, %v3537
        %v3562 = vadd.f32 %v3527, %v3537
        %v3563 = vadd.f32 %v3528, %v3537
        %v3564 = vadd.f32 %v3529, %v3537
        %v3565 = vadd.f32 %v3530, %v3537
        %v3566 = vadd.f32 %v3531, %v3537
        %v3567 = vadd.f32 %v3532, %v3537
        %v3568 = vadd.f32 %v3533, %v3537
        %v3569 = vadd.f32 %v3534, %v3537
        %s3570 = sld [smem:[#allocation8 + $0x8a]]
        %v3571 = vstv %s3570
        %v3572 = vmul.f32 %v404, %v3571
        %v3573 = vmul.f32 %v405, %v3571
        %v3574 = vmul.f32 %v406, %v3571
        %v3575 = vmul.f32 %v407, %v3571
        %v3576 = vmul.f32 %v408, %v3571
        %v3577 = vmul.f32 %v409, %v3571
        %v3578 = vmul.f32 %v410, %v3571
        %v3579 = vmul.f32 %v411, %v3571
        %v3580 = vmul.f32 %v412, %v3571
        %v3581 = vmul.f32 %v413, %v3571
        %v3582 = vmul.f32 %v414, %v3571
        %v3583 = vmul.f32 %v415, %v3571
        %v3584 = vmul.f32 %v416, %v3571
        %v3585 = vmul.f32 %v417, %v3571
        %v3586 = vmul.f32 %v418, %v3571
        %v3587 = vmul.f32 %v419, %v3571
        %v3588 = vmul.f32 %v420, %v3571
        %v3589 = vmul.f32 %v421, %v3571
        %v3590 = vmul.f32 %v422, %v3571
        %v3591 = vmul.f32 %v423, %v3571
        %v3592 = vmul.f32 %v424, %v3571
        %v3593 = vmul.f32 %v425, %v3571
        %v3594 = vmul.f32 %v426, %v3571
        %v3595 = vmul.f32 %v427, %v3571
        %v3596 = vmul.f32 %v428, %v3571
        %v3597 = vmul.f32 %v429, %v3571
        %v3598 = vmul.f32 %v430, %v3571
        %v3599 = vmul.f32 %v431, %v3571
        %v3600 = vmul.f32 %v432, %v3571
        %v3601 = vmul.f32 %v433, %v3571
        %v3602 = vmul.f32 %v434, %v3571
        %v3603 = vmul.f32 %v435, %v3571
        %v3604 = vadd.f32 %v3538, %v3572
        %v3605 = vadd.f32 %v3539, %v3573
        %v3606 = vadd.f32 %v3540, %v3574
        %v3607 = vadd.f32 %v3541, %v3575
        %v3608 = vadd.f32 %v3542, %v3576
        %v3609 = vadd.f32 %v3543, %v3577
        %v3610 = vadd.f32 %v3544, %v3578
        %v3611 = vadd.f32 %v3545, %v3579
        %v3612 = vadd.f32 %v3546, %v3580
        %v3613 = vadd.f32 %v3547, %v3581
        %v3614 = vadd.f32 %v3548, %v3582
        %v3615 = vadd.f32 %v3549, %v3583
        %v3616 = vadd.f32 %v3550, %v3584
        %v3617 = vadd.f32 %v3551, %v3585
        %v3618 = vadd.f32 %v3552, %v3586
        %v3619 = vadd.f32 %v3553, %v3587
        %v3620 = vadd.f32 %v3554, %v3588
        %v3621 = vadd.f32 %v3555, %v3589
        %v3622 = vadd.f32 %v3556, %v3590
        %v3623 = vadd.f32 %v3557, %v3591
        %v3624 = vadd.f32 %v3558, %v3592
        %v3625 = vadd.f32 %v3559, %v3593
        %v3626 = vadd.f32 %v3560, %v3594
        %v3627 = vadd.f32 %v3561, %v3595
        %v3628 = vadd.f32 %v3562, %v3596
        %v3629 = vadd.f32 %v3563, %v3597
        %v3630 = vadd.f32 %v3564, %v3598
        %v3631 = vadd.f32 %v3565, %v3599
        %v3632 = vadd.f32 %v3566, %v3600
        %v3633 = vadd.f32 %v3567, %v3601
        %v3634 = vadd.f32 %v3568, %v3602
        %v3635 = vadd.f32 %v3569, %v3603
        %s3636 = sld [smem:[#allocation8 + $0x10a]]
        %v3637 = vstv %s3636
        %v3638 = vmul.f32 %v437, %v3637
        %v3639 = vmul.f32 %v438, %v3637
        %v3640 = vmul.f32 %v439, %v3637
        %v3641 = vmul.f32 %v440, %v3637
        %v3642 = vmul.f32 %v441, %v3637
        %v3643 = vmul.f32 %v442, %v3637
        %v3644 = vmul.f32 %v443, %v3637
        %v3645 = vmul.f32 %v444, %v3637
        %v3646 = vmul.f32 %v445, %v3637
        %v3647 = vmul.f32 %v446, %v3637
        %v3648 = vmul.f32 %v447, %v3637
        %v3649 = vmul.f32 %v448, %v3637
        %v3650 = vmul.f32 %v449, %v3637
        %v3651 = vmul.f32 %v450, %v3637
        %v3652 = vmul.f32 %v451, %v3637
        %v3653 = vmul.f32 %v452, %v3637
        %v3654 = vmul.f32 %v453, %v3637
        %v3655 = vmul.f32 %v454, %v3637
        %v3656 = vmul.f32 %v455, %v3637
        %v3657 = vmul.f32 %v456, %v3637
        %v3658 = vmul.f32 %v457, %v3637
        %v3659 = vmul.f32 %v458, %v3637
        %v3660 = vmul.f32 %v459, %v3637
        %v3661 = vmul.f32 %v460, %v3637
        %v3662 = vmul.f32 %v461, %v3637
        %v3663 = vmul.f32 %v462, %v3637
        %v3664 = vmul.f32 %v463, %v3637
        %v3665 = vmul.f32 %v464, %v3637
        %v3666 = vmul.f32 %v465, %v3637
        %v3667 = vmul.f32 %v466, %v3637
        %v3668 = vmul.f32 %v467, %v3637
        %v3669 = vmul.f32 %v468, %v3637
        %v3670 = vadd.f32 %v3604, %v3638
        %v3671 = vadd.f32 %v3605, %v3639
        %v3672 = vadd.f32 %v3606, %v3640
        %v3673 = vadd.f32 %v3607, %v3641
        %v3674 = vadd.f32 %v3608, %v3642
        %v3675 = vadd.f32 %v3609, %v3643
        %v3676 = vadd.f32 %v3610, %v3644
        %v3677 = vadd.f32 %v3611, %v3645
        %v3678 = vadd.f32 %v3612, %v3646
        %v3679 = vadd.f32 %v3613, %v3647
        %v3680 = vadd.f32 %v3614, %v3648
        %v3681 = vadd.f32 %v3615, %v3649
        %v3682 = vadd.f32 %v3616, %v3650
        %v3683 = vadd.f32 %v3617, %v3651
        %v3684 = vadd.f32 %v3618, %v3652
        %v3685 = vadd.f32 %v3619, %v3653
        %v3686 = vadd.f32 %v3620, %v3654
        %v3687 = vadd.f32 %v3621, %v3655
        %v3688 = vadd.f32 %v3622, %v3656
        %v3689 = vadd.f32 %v3623, %v3657
        %v3690 = vadd.f32 %v3624, %v3658
        %v3691 = vadd.f32 %v3625, %v3659
        %v3692 = vadd.f32 %v3626, %v3660
        %v3693 = vadd.f32 %v3627, %v3661
        %v3694 = vadd.f32 %v3628, %v3662
        %v3695 = vadd.f32 %v3629, %v3663
        %v3696 = vadd.f32 %v3630, %v3664
        %v3697 = vadd.f32 %v3631, %v3665
        %v3698 = vadd.f32 %v3632, %v3666
        %v3699 = vadd.f32 %v3633, %v3667
        %v3700 = vadd.f32 %v3634, %v3668
        %v3701 = vadd.f32 %v3635, %v3669
        %s3702 = sld [smem:[#allocation8 + $0x18a]]
        %v3703 = vstv %s3702
        %v3704 = vmul.f32 %v470, %v3703
        %v3705 = vmul.f32 %v471, %v3703
        %v3706 = vmul.f32 %v472, %v3703
        %v3707 = vmul.f32 %v473, %v3703
        %v3708 = vmul.f32 %v474, %v3703
        %v3709 = vmul.f32 %v475, %v3703
        %v3710 = vmul.f32 %v476, %v3703
        %v3711 = vmul.f32 %v477, %v3703
        %v3712 = vmul.f32 %v478, %v3703
        %v3713 = vmul.f32 %v479, %v3703
        %v3714 = vmul.f32 %v480, %v3703
        %v3715 = vmul.f32 %v481, %v3703
        %v3716 = vmul.f32 %v482, %v3703
        %v3717 = vmul.f32 %v483, %v3703
        %v3718 = vmul.f32 %v484, %v3703
        %v3719 = vmul.f32 %v485, %v3703
        %v3720 = vmul.f32 %v486, %v3703
        %v3721 = vmul.f32 %v487, %v3703
        %v3722 = vmul.f32 %v488, %v3703
        %v3723 = vmul.f32 %v489, %v3703
        %v3724 = vmul.f32 %v490, %v3703
        %v3725 = vmul.f32 %v491, %v3703
        %v3726 = vmul.f32 %v492, %v3703
        %v3727 = vmul.f32 %v493, %v3703
        %v3728 = vmul.f32 %v494, %v3703
        %v3729 = vmul.f32 %v495, %v3703
        %v3730 = vmul.f32 %v496, %v3703
        %v3731 = vmul.f32 %v497, %v3703
        %v3732 = vmul.f32 %v498, %v3703
        %v3733 = vmul.f32 %v499, %v3703
        %v3734 = vmul.f32 %v500, %v3703
        %v3735 = vmul.f32 %v501, %v3703
        %v3736 = vadd.f32 %v3670, %v3704
        %v3737 = vadd.f32 %v3671, %v3705
        %v3738 = vadd.f32 %v3672, %v3706
        %v3739 = vadd.f32 %v3673, %v3707
        %v3740 = vadd.f32 %v3674, %v3708
        %v3741 = vadd.f32 %v3675, %v3709
        %v3742 = vadd.f32 %v3676, %v3710
        %v3743 = vadd.f32 %v3677, %v3711
        %v3744 = vadd.f32 %v3678, %v3712
        %v3745 = vadd.f32 %v3679, %v3713
        %v3746 = vadd.f32 %v3680, %v3714
        %v3747 = vadd.f32 %v3681, %v3715
        %v3748 = vadd.f32 %v3682, %v3716
        %v3749 = vadd.f32 %v3683, %v3717
        %v3750 = vadd.f32 %v3684, %v3718
        %v3751 = vadd.f32 %v3685, %v3719
        %v3752 = vadd.f32 %v3686, %v3720
        %v3753 = vadd.f32 %v3687, %v3721
        %v3754 = vadd.f32 %v3688, %v3722
        %v3755 = vadd.f32 %v3689, %v3723
        %v3756 = vadd.f32 %v3690, %v3724
        %v3757 = vadd.f32 %v3691, %v3725
        %v3758 = vadd.f32 %v3692, %v3726
        %v3759 = vadd.f32 %v3693, %v3727
        %v3760 = vadd.f32 %v3694, %v3728
        %v3761 = vadd.f32 %v3695, %v3729
        %v3762 = vadd.f32 %v3696, %v3730
        %v3763 = vadd.f32 %v3697, %v3731
        %v3764 = vadd.f32 %v3698, %v3732
        %v3765 = vadd.f32 %v3699, %v3733
        %v3766 = vadd.f32 %v3700, %v3734
        %v3767 = vadd.f32 %v3701, %v3735
        %s3768 = scalar_lea.vmem %s360, 2560 [#allocation11]
        %3769 = vst [vmem:[%s3768] sm:$0xff] %v3736
        %3770 = vst [vmem:[%s3768 + $0x8] sm:$0xff] %v3737
        %3771 = vst [vmem:[%s3768 + $0x10] sm:$0xff] %v3738
        %3772 = vst [vmem:[%s3768 + $0x18] sm:$0xff] %v3739
        %3773 = vst [vmem:[%s3768 + $0x20] sm:$0xff] %v3740
        %3774 = vst [vmem:[%s3768 + $0x28] sm:$0xff] %v3741
        %3775 = vst [vmem:[%s3768 + $0x30] sm:$0xff] %v3742
        %3776 = vst [vmem:[%s3768 + $0x38] sm:$0xff] %v3743
        %3777 = vst [vmem:[%s3768 + $0x40] sm:$0xff] %v3744
        %3778 = vst [vmem:[%s3768 + $0x48] sm:$0xff] %v3745
        %3779 = vst [vmem:[%s3768 + $0x50] sm:$0xff] %v3746
        %3780 = vst [vmem:[%s3768 + $0x58] sm:$0xff] %v3747
        %3781 = vst [vmem:[%s3768 + $0x60] sm:$0xff] %v3748
        %3782 = vst [vmem:[%s3768 + $0x68] sm:$0xff] %v3749
        %3783 = vst [vmem:[%s3768 + $0x70] sm:$0xff] %v3750
        %3784 = vst [vmem:[%s3768 + $0x78] sm:$0xff] %v3751
        %3785 = vst [vmem:[%s3768 + $0x80] sm:$0xff] %v3752
        %3786 = vst [vmem:[%s3768 + $0x88] sm:$0xff] %v3753
        %3787 = vst [vmem:[%s3768 + $0x90] sm:$0xff] %v3754
        %3788 = vst [vmem:[%s3768 + $0x98] sm:$0xff] %v3755
        %3789 = vst [vmem:[%s3768 + $0xa0] sm:$0xff] %v3756
        %3790 = vst [vmem:[%s3768 + $0xa8] sm:$0xff] %v3757
        %3791 = vst [vmem:[%s3768 + $0xb0] sm:$0xff] %v3758
        %3792 = vst [vmem:[%s3768 + $0xb8] sm:$0xff] %v3759
        %3793 = vst [vmem:[%s3768 + $0xc0] sm:$0xff] %v3760
        %3794 = vst [vmem:[%s3768 + $0xc8] sm:$0xff] %v3761
        %3795 = vst [vmem:[%s3768 + $0xd0] sm:$0xff] %v3762
        %3796 = vst [vmem:[%s3768 + $0xd8] sm:$0xff] %v3763
        %3797 = vst [vmem:[%s3768 + $0xe0] sm:$0xff] %v3764
        %3798 = vst [vmem:[%s3768 + $0xe8] sm:$0xff] %v3765
        %3799 = vst [vmem:[%s3768 + $0xf0] sm:$0xff] %v3766
        %3800 = vst [vmem:[%s3768 + $0xf8] sm:$0xff] %v3767
        %s3801 = sld [smem:[#allocation8 + $0xb]]
        %v3802 = vstv %s3801
        %v3803 = vmul.f32 %v372, %v3802
        %v3804 = vmul.f32 %v373, %v3802
        %v3805 = vmul.f32 %v374, %v3802
        %v3806 = vmul.f32 %v375, %v3802
        %v3807 = vmul.f32 %v376, %v3802
        %v3808 = vmul.f32 %v377, %v3802
        %v3809 = vmul.f32 %v378, %v3802
        %v3810 = vmul.f32 %v379, %v3802
        %v3811 = vmul.f32 %v380, %v3802
        %v3812 = vmul.f32 %v381, %v3802
        %v3813 = vmul.f32 %v382, %v3802
        %v3814 = vmul.f32 %v383, %v3802
        %v3815 = vmul.f32 %v384, %v3802
        %v3816 = vmul.f32 %v385, %v3802
        %v3817 = vmul.f32 %v386, %v3802
        %v3818 = vmul.f32 %v387, %v3802
        %v3819 = vmul.f32 %v388, %v3802
        %v3820 = vmul.f32 %v389, %v3802
        %v3821 = vmul.f32 %v390, %v3802
        %v3822 = vmul.f32 %v391, %v3802
        %v3823 = vmul.f32 %v392, %v3802
        %v3824 = vmul.f32 %v393, %v3802
        %v3825 = vmul.f32 %v394, %v3802
        %v3826 = vmul.f32 %v395, %v3802
        %v3827 = vmul.f32 %v396, %v3802
        %v3828 = vmul.f32 %v397, %v3802
        %v3829 = vmul.f32 %v398, %v3802
        %v3830 = vmul.f32 %v399, %v3802
        %v3831 = vmul.f32 %v400, %v3802
        %v3832 = vmul.f32 %v401, %v3802
        %v3833 = vmul.f32 %v402, %v3802
        %v3834 = vmul.f32 %v403, %v3802
        %s3835 = sadd.s32 %s536, 11
        %s3836 = sld [smem:[#allocation9 + %s3835]]
        %v3837 = vstv %s3836
        %v3838 = vadd.f32 %v3803, %v3837
        %v3839 = vadd.f32 %v3804, %v3837
        %v3840 = vadd.f32 %v3805, %v3837
        %v3841 = vadd.f32 %v3806, %v3837
        %v3842 = vadd.f32 %v3807, %v3837
        %v3843 = vadd.f32 %v3808, %v3837
        %v3844 = vadd.f32 %v3809, %v3837
        %v3845 = vadd.f32 %v3810, %v3837
        %v3846 = vadd.f32 %v3811, %v3837
        %v3847 = vadd.f32 %v3812, %v3837
        %v3848 = vadd.f32 %v3813, %v3837
        %v3849 = vadd.f32 %v3814, %v3837
        %v3850 = vadd.f32 %v3815, %v3837
        %v3851 = vadd.f32 %v3816, %v3837
        %v3852 = vadd.f32 %v3817, %v3837
        %v3853 = vadd.f32 %v3818, %v3837
        %v3854 = vadd.f32 %v3819, %v3837
        %v3855 = vadd.f32 %v3820, %v3837
        %v3856 = vadd.f32 %v3821, %v3837
        %v3857 = vadd.f32 %v3822, %v3837
        %v3858 = vadd.f32 %v3823, %v3837
        %v3859 = vadd.f32 %v3824, %v3837
        %v3860 = vadd.f32 %v3825, %v3837
        %v3861 = vadd.f32 %v3826, %v3837
        %v3862 = vadd.f32 %v3827, %v3837
        %v3863 = vadd.f32 %v3828, %v3837
        %v3864 = vadd.f32 %v3829, %v3837
        %v3865 = vadd.f32 %v3830, %v3837
        %v3866 = vadd.f32 %v3831, %v3837
        %v3867 = vadd.f32 %v3832, %v3837
        %v3868 = vadd.f32 %v3833, %v3837
        %v3869 = vadd.f32 %v3834, %v3837
        %s3870 = sld [smem:[#allocation8 + $0x8b]]
        %v3871 = vstv %s3870
        %v3872 = vmul.f32 %v404, %v3871
        %v3873 = vmul.f32 %v405, %v3871
        %v3874 = vmul.f32 %v406, %v3871
        %v3875 = vmul.f32 %v407, %v3871
        %v3876 = vmul.f32 %v408, %v3871
        %v3877 = vmul.f32 %v409, %v3871
        %v3878 = vmul.f32 %v410, %v3871
        %v3879 = vmul.f32 %v411, %v3871
        %v3880 = vmul.f32 %v412, %v3871
        %v3881 = vmul.f32 %v413, %v3871
        %v3882 = vmul.f32 %v414, %v3871
        %v3883 = vmul.f32 %v415, %v3871
        %v3884 = vmul.f32 %v416, %v3871
        %v3885 = vmul.f32 %v417, %v3871
        %v3886 = vmul.f32 %v418, %v3871
        %v3887 = vmul.f32 %v419, %v3871
        %v3888 = vmul.f32 %v420, %v3871
        %v3889 = vmul.f32 %v421, %v3871
        %v3890 = vmul.f32 %v422, %v3871
        %v3891 = vmul.f32 %v423, %v3871
        %v3892 = vmul.f32 %v424, %v3871
        %v3893 = vmul.f32 %v425, %v3871
        %v3894 = vmul.f32 %v426, %v3871
        %v3895 = vmul.f32 %v427, %v3871
        %v3896 = vmul.f32 %v428, %v3871
        %v3897 = vmul.f32 %v429, %v3871
        %v3898 = vmul.f32 %v430, %v3871
        %v3899 = vmul.f32 %v431, %v3871
        %v3900 = vmul.f32 %v432, %v3871
        %v3901 = vmul.f32 %v433, %v3871
        %v3902 = vmul.f32 %v434, %v3871
        %v3903 = vmul.f32 %v435, %v3871
        %v3904 = vadd.f32 %v3838, %v3872
        %v3905 = vadd.f32 %v3839, %v3873
        %v3906 = vadd.f32 %v3840, %v3874
        %v3907 = vadd.f32 %v3841, %v3875
        %v3908 = vadd.f32 %v3842, %v3876
        %v3909 = vadd.f32 %v3843, %v3877
        %v3910 = vadd.f32 %v3844, %v3878
        %v3911 = vadd.f32 %v3845, %v3879
        %v3912 = vadd.f32 %v3846, %v3880
        %v3913 = vadd.f32 %v3847, %v3881
        %v3914 = vadd.f32 %v3848, %v3882
        %v3915 = vadd.f32 %v3849, %v3883
        %v3916 = vadd.f32 %v3850, %v3884
        %v3917 = vadd.f32 %v3851, %v3885
        %v3918 = vadd.f32 %v3852, %v3886
        %v3919 = vadd.f32 %v3853, %v3887
        %v3920 = vadd.f32 %v3854, %v3888
        %v3921 = vadd.f32 %v3855, %v3889
        %v3922 = vadd.f32 %v3856, %v3890
        %v3923 = vadd.f32 %v3857, %v3891
        %v3924 = vadd.f32 %v3858, %v3892
        %v3925 = vadd.f32 %v3859, %v3893
        %v3926 = vadd.f32 %v3860, %v3894
        %v3927 = vadd.f32 %v3861, %v3895
        %v3928 = vadd.f32 %v3862, %v3896
        %v3929 = vadd.f32 %v3863, %v3897
        %v3930 = vadd.f32 %v3864, %v3898
        %v3931 = vadd.f32 %v3865, %v3899
        %v3932 = vadd.f32 %v3866, %v3900
        %v3933 = vadd.f32 %v3867, %v3901
        %v3934 = vadd.f32 %v3868, %v3902
        %v3935 = vadd.f32 %v3869, %v3903
        %s3936 = sld [smem:[#allocation8 + $0x10b]]
        %v3937 = vstv %s3936
        %v3938 = vmul.f32 %v437, %v3937
        %v3939 = vmul.f32 %v438, %v3937
        %v3940 = vmul.f32 %v439, %v3937
        %v3941 = vmul.f32 %v440, %v3937
        %v3942 = vmul.f32 %v441, %v3937
        %v3943 = vmul.f32 %v442, %v3937
        %v3944 = vmul.f32 %v443, %v3937
        %v3945 = vmul.f32 %v444, %v3937
        %v3946 = vmul.f32 %v445, %v3937
        %v3947 = vmul.f32 %v446, %v3937
        %v3948 = vmul.f32 %v447, %v3937
        %v3949 = vmul.f32 %v448, %v3937
        %v3950 = vmul.f32 %v449, %v3937
        %v3951 = vmul.f32 %v450, %v3937
        %v3952 = vmul.f32 %v451, %v3937
        %v3953 = vmul.f32 %v452, %v3937
        %v3954 = vmul.f32 %v453, %v3937
        %v3955 = vmul.f32 %v454, %v3937
        %v3956 = vmul.f32 %v455, %v3937
        %v3957 = vmul.f32 %v456, %v3937
        %v3958 = vmul.f32 %v457, %v3937
        %v3959 = vmul.f32 %v458, %v3937
        %v3960 = vmul.f32 %v459, %v3937
        %v3961 = vmul.f32 %v460, %v3937
        %v3962 = vmul.f32 %v461, %v3937
        %v3963 = vmul.f32 %v462, %v3937
        %v3964 = vmul.f32 %v463, %v3937
        %v3965 = vmul.f32 %v464, %v3937
        %v3966 = vmul.f32 %v465, %v3937
        %v3967 = vmul.f32 %v466, %v3937
        %v3968 = vmul.f32 %v467, %v3937
        %v3969 = vmul.f32 %v468, %v3937
        %v3970 = vadd.f32 %v3904, %v3938
        %v3971 = vadd.f32 %v3905, %v3939
        %v3972 = vadd.f32 %v3906, %v3940
        %v3973 = vadd.f32 %v3907, %v3941
        %v3974 = vadd.f32 %v3908, %v3942
        %v3975 = vadd.f32 %v3909, %v3943
        %v3976 = vadd.f32 %v3910, %v3944
        %v3977 = vadd.f32 %v3911, %v3945
        %v3978 = vadd.f32 %v3912, %v3946
        %v3979 = vadd.f32 %v3913, %v3947
        %v3980 = vadd.f32 %v3914, %v3948
        %v3981 = vadd.f32 %v3915, %v3949
        %v3982 = vadd.f32 %v3916, %v3950
        %v3983 = vadd.f32 %v3917, %v3951
        %v3984 = vadd.f32 %v3918, %v3952
        %v3985 = vadd.f32 %v3919, %v3953
        %v3986 = vadd.f32 %v3920, %v3954
        %v3987 = vadd.f32 %v3921, %v3955
        %v3988 = vadd.f32 %v3922, %v3956
        %v3989 = vadd.f32 %v3923, %v3957
        %v3990 = vadd.f32 %v3924, %v3958
        %v3991 = vadd.f32 %v3925, %v3959
        %v3992 = vadd.f32 %v3926, %v3960
        %v3993 = vadd.f32 %v3927, %v3961
        %v3994 = vadd.f32 %v3928, %v3962
        %v3995 = vadd.f32 %v3929, %v3963
        %v3996 = vadd.f32 %v3930, %v3964
        %v3997 = vadd.f32 %v3931, %v3965
        %v3998 = vadd.f32 %v3932, %v3966
        %v3999 = vadd.f32 %v3933, %v3967
        %v4000 = vadd.f32 %v3934, %v3968
        %v4001 = vadd.f32 %v3935, %v3969
        %s4002 = sld [smem:[#allocation8 + $0x18b]]
        %v4003 = vstv %s4002
        %v4004 = vmul.f32 %v470, %v4003
        %v4005 = vmul.f32 %v471, %v4003
        %v4006 = vmul.f32 %v472, %v4003
        %v4007 = vmul.f32 %v473, %v4003
        %v4008 = vmul.f32 %v474, %v4003
        %v4009 = vmul.f32 %v475, %v4003
        %v4010 = vmul.f32 %v476, %v4003
        %v4011 = vmul.f32 %v477, %v4003
        %v4012 = vmul.f32 %v478, %v4003
        %v4013 = vmul.f32 %v479, %v4003
        %v4014 = vmul.f32 %v480, %v4003
        %v4015 = vmul.f32 %v481, %v4003
        %v4016 = vmul.f32 %v482, %v4003
        %v4017 = vmul.f32 %v483, %v4003
        %v4018 = vmul.f32 %v484, %v4003
        %v4019 = vmul.f32 %v485, %v4003
        %v4020 = vmul.f32 %v486, %v4003
        %v4021 = vmul.f32 %v487, %v4003
        %v4022 = vmul.f32 %v488, %v4003
        %v4023 = vmul.f32 %v489, %v4003
        %v4024 = vmul.f32 %v490, %v4003
        %v4025 = vmul.f32 %v491, %v4003
        %v4026 = vmul.f32 %v492, %v4003
        %v4027 = vmul.f32 %v493, %v4003
        %v4028 = vmul.f32 %v494, %v4003
        %v4029 = vmul.f32 %v495, %v4003
        %v4030 = vmul.f32 %v496, %v4003
        %v4031 = vmul.f32 %v497, %v4003
        %v4032 = vmul.f32 %v498, %v4003
        %v4033 = vmul.f32 %v499, %v4003
        %v4034 = vmul.f32 %v500, %v4003
        %v4035 = vmul.f32 %v501, %v4003
        %v4036 = vadd.f32 %v3970, %v4004
        %v4037 = vadd.f32 %v3971, %v4005
        %v4038 = vadd.f32 %v3972, %v4006
        %v4039 = vadd.f32 %v3973, %v4007
        %v4040 = vadd.f32 %v3974, %v4008
        %v4041 = vadd.f32 %v3975, %v4009
        %v4042 = vadd.f32 %v3976, %v4010
        %v4043 = vadd.f32 %v3977, %v4011
        %v4044 = vadd.f32 %v3978, %v4012
        %v4045 = vadd.f32 %v3979, %v4013
        %v4046 = vadd.f32 %v3980, %v4014
        %v4047 = vadd.f32 %v3981, %v4015
        %v4048 = vadd.f32 %v3982, %v4016
        %v4049 = vadd.f32 %v3983, %v4017
        %v4050 = vadd.f32 %v3984, %v4018
        %v4051 = vadd.f32 %v3985, %v4019
        %v4052 = vadd.f32 %v3986, %v4020
        %v4053 = vadd.f32 %v3987, %v4021
        %v4054 = vadd.f32 %v3988, %v4022
        %v4055 = vadd.f32 %v3989, %v4023
        %v4056 = vadd.f32 %v3990, %v4024
        %v4057 = vadd.f32 %v3991, %v4025
        %v4058 = vadd.f32 %v3992, %v4026
        %v4059 = vadd.f32 %v3993, %v4027
        %v4060 = vadd.f32 %v3994, %v4028
        %v4061 = vadd.f32 %v3995, %v4029
        %v4062 = vadd.f32 %v3996, %v4030
        %v4063 = vadd.f32 %v3997, %v4031
        %v4064 = vadd.f32 %v3998, %v4032
        %v4065 = vadd.f32 %v3999, %v4033
        %v4066 = vadd.f32 %v4000, %v4034
        %v4067 = vadd.f32 %v4001, %v4035
        %s4068 = scalar_lea.vmem %s360, 2816 [#allocation11]
        %4069 = vst [vmem:[%s4068] sm:$0xff] %v4036
        %4070 = vst [vmem:[%s4068 + $0x8] sm:$0xff] %v4037
        %4071 = vst [vmem:[%s4068 + $0x10] sm:$0xff] %v4038
        %4072 = vst [vmem:[%s4068 + $0x18] sm:$0xff] %v4039
        %4073 = vst [vmem:[%s4068 + $0x20] sm:$0xff] %v4040
        %4074 = vst [vmem:[%s4068 + $0x28] sm:$0xff] %v4041
        %4075 = vst [vmem:[%s4068 + $0x30] sm:$0xff] %v4042
        %4076 = vst [vmem:[%s4068 + $0x38] sm:$0xff] %v4043
        %4077 = vst [vmem:[%s4068 + $0x40] sm:$0xff] %v4044
        %4078 = vst [vmem:[%s4068 + $0x48] sm:$0xff] %v4045
        %4079 = vst [vmem:[%s4068 + $0x50] sm:$0xff] %v4046
        %4080 = vst [vmem:[%s4068 + $0x58] sm:$0xff] %v4047
        %4081 = vst [vmem:[%s4068 + $0x60] sm:$0xff] %v4048
        %4082 = vst [vmem:[%s4068 + $0x68] sm:$0xff] %v4049
        %4083 = vst [vmem:[%s4068 + $0x70] sm:$0xff] %v4050
        %4084 = vst [vmem:[%s4068 + $0x78] sm:$0xff] %v4051
        %4085 = vst [vmem:[%s4068 + $0x80] sm:$0xff] %v4052
        %4086 = vst [vmem:[%s4068 + $0x88] sm:$0xff] %v4053
        %4087 = vst [vmem:[%s4068 + $0x90] sm:$0xff] %v4054
        %4088 = vst [vmem:[%s4068 + $0x98] sm:$0xff] %v4055
        %4089 = vst [vmem:[%s4068 + $0xa0] sm:$0xff] %v4056
        %4090 = vst [vmem:[%s4068 + $0xa8] sm:$0xff] %v4057
        %4091 = vst [vmem:[%s4068 + $0xb0] sm:$0xff] %v4058
        %4092 = vst [vmem:[%s4068 + $0xb8] sm:$0xff] %v4059
        %4093 = vst [vmem:[%s4068 + $0xc0] sm:$0xff] %v4060
        %4094 = vst [vmem:[%s4068 + $0xc8] sm:$0xff] %v4061
        %4095 = vst [vmem:[%s4068 + $0xd0] sm:$0xff] %v4062
        %4096 = vst [vmem:[%s4068 + $0xd8] sm:$0xff] %v4063
        %4097 = vst [vmem:[%s4068 + $0xe0] sm:$0xff] %v4064
        %4098 = vst [vmem:[%s4068 + $0xe8] sm:$0xff] %v4065
        %4099 = vst [vmem:[%s4068 + $0xf0] sm:$0xff] %v4066
        %4100 = vst [vmem:[%s4068 + $0xf8] sm:$0xff] %v4067
        %s4101 = sld [smem:[#allocation8 + $0xc]]
        %v4102 = vstv %s4101
        %v4103 = vmul.f32 %v372, %v4102
        %v4104 = vmul.f32 %v373, %v4102
        %v4105 = vmul.f32 %v374, %v4102
        %v4106 = vmul.f32 %v375, %v4102
        %v4107 = vmul.f32 %v376, %v4102
        %v4108 = vmul.f32 %v377, %v4102
        %v4109 = vmul.f32 %v378, %v4102
        %v4110 = vmul.f32 %v379, %v4102
        %v4111 = vmul.f32 %v380, %v4102
        %v4112 = vmul.f32 %v381, %v4102
        %v4113 = vmul.f32 %v382, %v4102
        %v4114 = vmul.f32 %v383, %v4102
        %v4115 = vmul.f32 %v384, %v4102
        %v4116 = vmul.f32 %v385, %v4102
        %v4117 = vmul.f32 %v386, %v4102
        %v4118 = vmul.f32 %v387, %v4102
        %v4119 = vmul.f32 %v388, %v4102
        %v4120 = vmul.f32 %v389, %v4102
        %v4121 = vmul.f32 %v390, %v4102
        %v4122 = vmul.f32 %v391, %v4102
        %v4123 = vmul.f32 %v392, %v4102
        %v4124 = vmul.f32 %v393, %v4102
        %v4125 = vmul.f32 %v394, %v4102
        %v4126 = vmul.f32 %v395, %v4102
        %v4127 = vmul.f32 %v396, %v4102
        %v4128 = vmul.f32 %v397, %v4102
        %v4129 = vmul.f32 %v398, %v4102
        %v4130 = vmul.f32 %v399, %v4102
        %v4131 = vmul.f32 %v400, %v4102
        %v4132 = vmul.f32 %v401, %v4102
        %v4133 = vmul.f32 %v402, %v4102
        %v4134 = vmul.f32 %v403, %v4102
        %s4135 = sadd.s32 %s536, 12
        %s4136 = sld [smem:[#allocation9 + %s4135]]
        %v4137 = vstv %s4136
        %v4138 = vadd.f32 %v4103, %v4137
        %v4139 = vadd.f32 %v4104, %v4137
        %v4140 = vadd.f32 %v4105, %v4137
        %v4141 = vadd.f32 %v4106, %v4137
        %v4142 = vadd.f32 %v4107, %v4137
        %v4143 = vadd.f32 %v4108, %v4137
        %v4144 = vadd.f32 %v4109, %v4137
        %v4145 = vadd.f32 %v4110, %v4137
        %v4146 = vadd.f32 %v4111, %v4137
        %v4147 = vadd.f32 %v4112, %v4137
        %v4148 = vadd.f32 %v4113, %v4137
        %v4149 = vadd.f32 %v4114, %v4137
        %v4150 = vadd.f32 %v4115, %v4137
        %v4151 = vadd.f32 %v4116, %v4137
        %v4152 = vadd.f32 %v4117, %v4137
        %v4153 = vadd.f32 %v4118, %v4137
        %v4154 = vadd.f32 %v4119, %v4137
        %v4155 = vadd.f32 %v4120, %v4137
        %v4156 = vadd.f32 %v4121, %v4137
        %v4157 = vadd.f32 %v4122, %v4137
        %v4158 = vadd.f32 %v4123, %v4137
        %v4159 = vadd.f32 %v4124, %v4137
        %v4160 = vadd.f32 %v4125, %v4137
        %v4161 = vadd.f32 %v4126, %v4137
        %v4162 = vadd.f32 %v4127, %v4137
        %v4163 = vadd.f32 %v4128, %v4137
        %v4164 = vadd.f32 %v4129, %v4137
        %v4165 = vadd.f32 %v4130, %v4137
        %v4166 = vadd.f32 %v4131, %v4137
        %v4167 = vadd.f32 %v4132, %v4137
        %v4168 = vadd.f32 %v4133, %v4137
        %v4169 = vadd.f32 %v4134, %v4137
        %s4170 = sld [smem:[#allocation8 + $0x8c]]
        %v4171 = vstv %s4170
        %v4172 = vmul.f32 %v404, %v4171
        %v4173 = vmul.f32 %v405, %v4171
        %v4174 = vmul.f32 %v406, %v4171
        %v4175 = vmul.f32 %v407, %v4171
        %v4176 = vmul.f32 %v408, %v4171
        %v4177 = vmul.f32 %v409, %v4171
        %v4178 = vmul.f32 %v410, %v4171
        %v4179 = vmul.f32 %v411, %v4171
        %v4180 = vmul.f32 %v412, %v4171
        %v4181 = vmul.f32 %v413, %v4171
        %v4182 = vmul.f32 %v414, %v4171
        %v4183 = vmul.f32 %v415, %v4171
        %v4184 = vmul.f32 %v416, %v4171
        %v4185 = vmul.f32 %v417, %v4171
        %v4186 = vmul.f32 %v418, %v4171
        %v4187 = vmul.f32 %v419, %v4171
        %v4188 = vmul.f32 %v420, %v4171
        %v4189 = vmul.f32 %v421, %v4171
        %v4190 = vmul.f32 %v422, %v4171
        %v4191 = vmul.f32 %v423, %v4171
        %v4192 = vmul.f32 %v424, %v4171
        %v4193 = vmul.f32 %v425, %v4171
        %v4194 = vmul.f32 %v426, %v4171
        %v4195 = vmul.f32 %v427, %v4171
        %v4196 = vmul.f32 %v428, %v4171
        %v4197 = vmul.f32 %v429, %v4171
        %v4198 = vmul.f32 %v430, %v4171
        %v4199 = vmul.f32 %v431, %v4171
        %v4200 = vmul.f32 %v432, %v4171
        %v4201 = vmul.f32 %v433, %v4171
        %v4202 = vmul.f32 %v434, %v4171
        %v4203 = vmul.f32 %v435, %v4171
        %v4204 = vadd.f32 %v4138, %v4172
        %v4205 = vadd.f32 %v4139, %v4173
        %v4206 = vadd.f32 %v4140, %v4174
        %v4207 = vadd.f32 %v4141, %v4175
        %v4208 = vadd.f32 %v4142, %v4176
        %v4209 = vadd.f32 %v4143, %v4177
        %v4210 = vadd.f32 %v4144, %v4178
        %v4211 = vadd.f32 %v4145, %v4179
        %v4212 = vadd.f32 %v4146, %v4180
        %v4213 = vadd.f32 %v4147, %v4181
        %v4214 = vadd.f32 %v4148, %v4182
        %v4215 = vadd.f32 %v4149, %v4183
        %v4216 = vadd.f32 %v4150, %v4184
        %v4217 = vadd.f32 %v4151, %v4185
        %v4218 = vadd.f32 %v4152, %v4186
        %v4219 = vadd.f32 %v4153, %v4187
        %v4220 = vadd.f32 %v4154, %v4188
        %v4221 = vadd.f32 %v4155, %v4189
        %v4222 = vadd.f32 %v4156, %v4190
        %v4223 = vadd.f32 %v4157, %v4191
        %v4224 = vadd.f32 %v4158, %v4192
        %v4225 = vadd.f32 %v4159, %v4193
        %v4226 = vadd.f32 %v4160, %v4194
        %v4227 = vadd.f32 %v4161, %v4195
        %v4228 = vadd.f32 %v4162, %v4196
        %v4229 = vadd.f32 %v4163, %v4197
        %v4230 = vadd.f32 %v4164, %v4198
        %v4231 = vadd.f32 %v4165, %v4199
        %v4232 = vadd.f32 %v4166, %v4200
        %v4233 = vadd.f32 %v4167, %v4201
        %v4234 = vadd.f32 %v4168, %v4202
        %v4235 = vadd.f32 %v4169, %v4203
        %s4236 = sld [smem:[#allocation8 + $0x10c]]
        %v4237 = vstv %s4236
        %v4238 = vmul.f32 %v437, %v4237
        %v4239 = vmul.f32 %v438, %v4237
        %v4240 = vmul.f32 %v439, %v4237
        %v4241 = vmul.f32 %v440, %v4237
        %v4242 = vmul.f32 %v441, %v4237
        %v4243 = vmul.f32 %v442, %v4237
        %v4244 = vmul.f32 %v443, %v4237
        %v4245 = vmul.f32 %v444, %v4237
        %v4246 = vmul.f32 %v445, %v4237
        %v4247 = vmul.f32 %v446, %v4237
        %v4248 = vmul.f32 %v447, %v4237
        %v4249 = vmul.f32 %v448, %v4237
        %v4250 = vmul.f32 %v449, %v4237
        %v4251 = vmul.f32 %v450, %v4237
        %v4252 = vmul.f32 %v451, %v4237
        %v4253 = vmul.f32 %v452, %v4237
        %v4254 = vmul.f32 %v453, %v4237
        %v4255 = vmul.f32 %v454, %v4237
        %v4256 = vmul.f32 %v455, %v4237
        %v4257 = vmul.f32 %v456, %v4237
        %v4258 = vmul.f32 %v457, %v4237
        %v4259 = vmul.f32 %v458, %v4237
        %v4260 = vmul.f32 %v459, %v4237
        %v4261 = vmul.f32 %v460, %v4237
        %v4262 = vmul.f32 %v461, %v4237
        %v4263 = vmul.f32 %v462, %v4237
        %v4264 = vmul.f32 %v463, %v4237
        %v4265 = vmul.f32 %v464, %v4237
        %v4266 = vmul.f32 %v465, %v4237
        %v4267 = vmul.f32 %v466, %v4237
        %v4268 = vmul.f32 %v467, %v4237
        %v4269 = vmul.f32 %v468, %v4237
        %v4270 = vadd.f32 %v4204, %v4238
        %v4271 = vadd.f32 %v4205, %v4239
        %v4272 = vadd.f32 %v4206, %v4240
        %v4273 = vadd.f32 %v4207, %v4241
        %v4274 = vadd.f32 %v4208, %v4242
        %v4275 = vadd.f32 %v4209, %v4243
        %v4276 = vadd.f32 %v4210, %v4244
        %v4277 = vadd.f32 %v4211, %v4245
        %v4278 = vadd.f32 %v4212, %v4246
        %v4279 = vadd.f32 %v4213, %v4247
        %v4280 = vadd.f32 %v4214, %v4248
        %v4281 = vadd.f32 %v4215, %v4249
        %v4282 = vadd.f32 %v4216, %v4250
        %v4283 = vadd.f32 %v4217, %v4251
        %v4284 = vadd.f32 %v4218, %v4252
        %v4285 = vadd.f32 %v4219, %v4253
        %v4286 = vadd.f32 %v4220, %v4254
        %v4287 = vadd.f32 %v4221, %v4255
        %v4288 = vadd.f32 %v4222, %v4256
        %v4289 = vadd.f32 %v4223, %v4257
        %v4290 = vadd.f32 %v4224, %v4258
        %v4291 = vadd.f32 %v4225, %v4259
        %v4292 = vadd.f32 %v4226, %v4260
        %v4293 = vadd.f32 %v4227, %v4261
        %v4294 = vadd.f32 %v4228, %v4262
        %v4295 = vadd.f32 %v4229, %v4263
        %v4296 = vadd.f32 %v4230, %v4264
        %v4297 = vadd.f32 %v4231, %v4265
        %v4298 = vadd.f32 %v4232, %v4266
        %v4299 = vadd.f32 %v4233, %v4267
        %v4300 = vadd.f32 %v4234, %v4268
        %v4301 = vadd.f32 %v4235, %v4269
        %s4302 = sld [smem:[#allocation8 + $0x18c]]
        %v4303 = vstv %s4302
        %v4304 = vmul.f32 %v470, %v4303
        %v4305 = vmul.f32 %v471, %v4303
        %v4306 = vmul.f32 %v472, %v4303
        %v4307 = vmul.f32 %v473, %v4303
        %v4308 = vmul.f32 %v474, %v4303
        %v4309 = vmul.f32 %v475, %v4303
        %v4310 = vmul.f32 %v476, %v4303
        %v4311 = vmul.f32 %v477, %v4303
        %v4312 = vmul.f32 %v478, %v4303
        %v4313 = vmul.f32 %v479, %v4303
        %v4314 = vmul.f32 %v480, %v4303
        %v4315 = vmul.f32 %v481, %v4303
        %v4316 = vmul.f32 %v482, %v4303
        %v4317 = vmul.f32 %v483, %v4303
        %v4318 = vmul.f32 %v484, %v4303
        %v4319 = vmul.f32 %v485, %v4303
        %v4320 = vmul.f32 %v486, %v4303
        %v4321 = vmul.f32 %v487, %v4303
        %v4322 = vmul.f32 %v488, %v4303
        %v4323 = vmul.f32 %v489, %v4303
        %v4324 = vmul.f32 %v490, %v4303
        %v4325 = vmul.f32 %v491, %v4303
        %v4326 = vmul.f32 %v492, %v4303
        %v4327 = vmul.f32 %v493, %v4303
        %v4328 = vmul.f32 %v494, %v4303
        %v4329 = vmul.f32 %v495, %v4303
        %v4330 = vmul.f32 %v496, %v4303
        %v4331 = vmul.f32 %v497, %v4303
        %v4332 = vmul.f32 %v498, %v4303
        %v4333 = vmul.f32 %v499, %v4303
        %v4334 = vmul.f32 %v500, %v4303
        %v4335 = vmul.f32 %v501, %v4303
        %v4336 = vadd.f32 %v4270, %v4304
        %v4337 = vadd.f32 %v4271, %v4305
        %v4338 = vadd.f32 %v4272, %v4306
        %v4339 = vadd.f32 %v4273, %v4307
        %v4340 = vadd.f32 %v4274, %v4308
        %v4341 = vadd.f32 %v4275, %v4309
        %v4342 = vadd.f32 %v4276, %v4310
        %v4343 = vadd.f32 %v4277, %v4311
        %v4344 = vadd.f32 %v4278, %v4312
        %v4345 = vadd.f32 %v4279, %v4313
        %v4346 = vadd.f32 %v4280, %v4314
        %v4347 = vadd.f32 %v4281, %v4315
        %v4348 = vadd.f32 %v4282, %v4316
        %v4349 = vadd.f32 %v4283, %v4317
        %v4350 = vadd.f32 %v4284, %v4318
        %v4351 = vadd.f32 %v4285, %v4319
        %v4352 = vadd.f32 %v4286, %v4320
        %v4353 = vadd.f32 %v4287, %v4321
        %v4354 = vadd.f32 %v4288, %v4322
        %v4355 = vadd.f32 %v4289, %v4323
        %v4356 = vadd.f32 %v4290, %v4324
        %v4357 = vadd.f32 %v4291, %v4325
        %v4358 = vadd.f32 %v4292, %v4326
        %v4359 = vadd.f32 %v4293, %v4327
        %v4360 = vadd.f32 %v4294, %v4328
        %v4361 = vadd.f32 %v4295, %v4329
        %v4362 = vadd.f32 %v4296, %v4330
        %v4363 = vadd.f32 %v4297, %v4331
        %v4364 = vadd.f32 %v4298, %v4332
        %v4365 = vadd.f32 %v4299, %v4333
        %v4366 = vadd.f32 %v4300, %v4334
        %v4367 = vadd.f32 %v4301, %v4335
        %s4368 = scalar_lea.vmem %s360, 3072 [#allocation11]
        %4369 = vst [vmem:[%s4368] sm:$0xff] %v4336
        %4370 = vst [vmem:[%s4368 + $0x8] sm:$0xff] %v4337
        %4371 = vst [vmem:[%s4368 + $0x10] sm:$0xff] %v4338
        %4372 = vst [vmem:[%s4368 + $0x18] sm:$0xff] %v4339
        %4373 = vst [vmem:[%s4368 + $0x20] sm:$0xff] %v4340
        %4374 = vst [vmem:[%s4368 + $0x28] sm:$0xff] %v4341
        %4375 = vst [vmem:[%s4368 + $0x30] sm:$0xff] %v4342
        %4376 = vst [vmem:[%s4368 + $0x38] sm:$0xff] %v4343
        %4377 = vst [vmem:[%s4368 + $0x40] sm:$0xff] %v4344
        %4378 = vst [vmem:[%s4368 + $0x48] sm:$0xff] %v4345
        %4379 = vst [vmem:[%s4368 + $0x50] sm:$0xff] %v4346
        %4380 = vst [vmem:[%s4368 + $0x58] sm:$0xff] %v4347
        %4381 = vst [vmem:[%s4368 + $0x60] sm:$0xff] %v4348
        %4382 = vst [vmem:[%s4368 + $0x68] sm:$0xff] %v4349
        %4383 = vst [vmem:[%s4368 + $0x70] sm:$0xff] %v4350
        %4384 = vst [vmem:[%s4368 + $0x78] sm:$0xff] %v4351
        %4385 = vst [vmem:[%s4368 + $0x80] sm:$0xff] %v4352
        %4386 = vst [vmem:[%s4368 + $0x88] sm:$0xff] %v4353
        %4387 = vst [vmem:[%s4368 + $0x90] sm:$0xff] %v4354
        %4388 = vst [vmem:[%s4368 + $0x98] sm:$0xff] %v4355
        %4389 = vst [vmem:[%s4368 + $0xa0] sm:$0xff] %v4356
        %4390 = vst [vmem:[%s4368 + $0xa8] sm:$0xff] %v4357
        %4391 = vst [vmem:[%s4368 + $0xb0] sm:$0xff] %v4358
        %4392 = vst [vmem:[%s4368 + $0xb8] sm:$0xff] %v4359
        %4393 = vst [vmem:[%s4368 + $0xc0] sm:$0xff] %v4360
        %4394 = vst [vmem:[%s4368 + $0xc8] sm:$0xff] %v4361
        %4395 = vst [vmem:[%s4368 + $0xd0] sm:$0xff] %v4362
        %4396 = vst [vmem:[%s4368 + $0xd8] sm:$0xff] %v4363
        %4397 = vst [vmem:[%s4368 + $0xe0] sm:$0xff] %v4364
        %4398 = vst [vmem:[%s4368 + $0xe8] sm:$0xff] %v4365
        %4399 = vst [vmem:[%s4368 + $0xf0] sm:$0xff] %v4366
        %4400 = vst [vmem:[%s4368 + $0xf8] sm:$0xff] %v4367
        %s4401 = sld [smem:[#allocation8 + $0xd]]
        %v4402 = vstv %s4401
        %v4403 = vmul.f32 %v372, %v4402
        %v4404 = vmul.f32 %v373, %v4402
        %v4405 = vmul.f32 %v374, %v4402
        %v4406 = vmul.f32 %v375, %v4402
        %v4407 = vmul.f32 %v376, %v4402
        %v4408 = vmul.f32 %v377, %v4402
        %v4409 = vmul.f32 %v378, %v4402
        %v4410 = vmul.f32 %v379, %v4402
        %v4411 = vmul.f32 %v380, %v4402
        %v4412 = vmul.f32 %v381, %v4402
        %v4413 = vmul.f32 %v382, %v4402
        %v4414 = vmul.f32 %v383, %v4402
        %v4415 = vmul.f32 %v384, %v4402
        %v4416 = vmul.f32 %v385, %v4402
        %v4417 = vmul.f32 %v386, %v4402
        %v4418 = vmul.f32 %v387, %v4402
        %v4419 = vmul.f32 %v388, %v4402
        %v4420 = vmul.f32 %v389, %v4402
        %v4421 = vmul.f32 %v390, %v4402
        %v4422 = vmul.f32 %v391, %v4402
        %v4423 = vmul.f32 %v392, %v4402
        %v4424 = vmul.f32 %v393, %v4402
        %v4425 = vmul.f32 %v394, %v4402
        %v4426 = vmul.f32 %v395, %v4402
        %v4427 = vmul.f32 %v396, %v4402
        %v4428 = vmul.f32 %v397, %v4402
        %v4429 = vmul.f32 %v398, %v4402
        %v4430 = vmul.f32 %v399, %v4402
        %v4431 = vmul.f32 %v400, %v4402
        %v4432 = vmul.f32 %v401, %v4402
        %v4433 = vmul.f32 %v402, %v4402
        %v4434 = vmul.f32 %v403, %v4402
        %s4435 = sadd.s32 %s536, 13
        %s4436 = sld [smem:[#allocation9 + %s4435]]
        %v4437 = vstv %s4436
        %v4438 = vadd.f32 %v4403, %v4437
        %v4439 = vadd.f32 %v4404, %v4437
        %v4440 = vadd.f32 %v4405, %v4437
        %v4441 = vadd.f32 %v4406, %v4437
        %v4442 = vadd.f32 %v4407, %v4437
        %v4443 = vadd.f32 %v4408, %v4437
        %v4444 = vadd.f32 %v4409, %v4437
        %v4445 = vadd.f32 %v4410, %v4437
        %v4446 = vadd.f32 %v4411, %v4437
        %v4447 = vadd.f32 %v4412, %v4437
        %v4448 = vadd.f32 %v4413, %v4437
        %v4449 = vadd.f32 %v4414, %v4437
        %v4450 = vadd.f32 %v4415, %v4437
        %v4451 = vadd.f32 %v4416, %v4437
        %v4452 = vadd.f32 %v4417, %v4437
        %v4453 = vadd.f32 %v4418, %v4437
        %v4454 = vadd.f32 %v4419, %v4437
        %v4455 = vadd.f32 %v4420, %v4437
        %v4456 = vadd.f32 %v4421, %v4437
        %v4457 = vadd.f32 %v4422, %v4437
        %v4458 = vadd.f32 %v4423, %v4437
        %v4459 = vadd.f32 %v4424, %v4437
        %v4460 = vadd.f32 %v4425, %v4437
        %v4461 = vadd.f32 %v4426, %v4437
        %v4462 = vadd.f32 %v4427, %v4437
        %v4463 = vadd.f32 %v4428, %v4437
        %v4464 = vadd.f32 %v4429, %v4437
        %v4465 = vadd.f32 %v4430, %v4437
        %v4466 = vadd.f32 %v4431, %v4437
        %v4467 = vadd.f32 %v4432, %v4437
        %v4468 = vadd.f32 %v4433, %v4437
        %v4469 = vadd.f32 %v4434, %v4437
        %s4470 = sld [smem:[#allocation8 + $0x8d]]
        %v4471 = vstv %s4470
        %v4472 = vmul.f32 %v404, %v4471
        %v4473 = vmul.f32 %v405, %v4471
        %v4474 = vmul.f32 %v406, %v4471
        %v4475 = vmul.f32 %v407, %v4471
        %v4476 = vmul.f32 %v408, %v4471
        %v4477 = vmul.f32 %v409, %v4471
        %v4478 = vmul.f32 %v410, %v4471
        %v4479 = vmul.f32 %v411, %v4471
        %v4480 = vmul.f32 %v412, %v4471
        %v4481 = vmul.f32 %v413, %v4471
        %v4482 = vmul.f32 %v414, %v4471
        %v4483 = vmul.f32 %v415, %v4471
        %v4484 = vmul.f32 %v416, %v4471
        %v4485 = vmul.f32 %v417, %v4471
        %v4486 = vmul.f32 %v418, %v4471
        %v4487 = vmul.f32 %v419, %v4471
        %v4488 = vmul.f32 %v420, %v4471
        %v4489 = vmul.f32 %v421, %v4471
        %v4490 = vmul.f32 %v422, %v4471
        %v4491 = vmul.f32 %v423, %v4471
        %v4492 = vmul.f32 %v424, %v4471
        %v4493 = vmul.f32 %v425, %v4471
        %v4494 = vmul.f32 %v426, %v4471
        %v4495 = vmul.f32 %v427, %v4471
        %v4496 = vmul.f32 %v428, %v4471
        %v4497 = vmul.f32 %v429, %v4471
        %v4498 = vmul.f32 %v430, %v4471
        %v4499 = vmul.f32 %v431, %v4471
        %v4500 = vmul.f32 %v432, %v4471
        %v4501 = vmul.f32 %v433, %v4471
        %v4502 = vmul.f32 %v434, %v4471
        %v4503 = vmul.f32 %v435, %v4471
        %v4504 = vadd.f32 %v4438, %v4472
        %v4505 = vadd.f32 %v4439, %v4473
        %v4506 = vadd.f32 %v4440, %v4474
        %v4507 = vadd.f32 %v4441, %v4475
        %v4508 = vadd.f32 %v4442, %v4476
        %v4509 = vadd.f32 %v4443, %v4477
        %v4510 = vadd.f32 %v4444, %v4478
        %v4511 = vadd.f32 %v4445, %v4479
        %v4512 = vadd.f32 %v4446, %v4480
        %v4513 = vadd.f32 %v4447, %v4481
        %v4514 = vadd.f32 %v4448, %v4482
        %v4515 = vadd.f32 %v4449, %v4483
        %v4516 = vadd.f32 %v4450, %v4484
        %v4517 = vadd.f32 %v4451, %v4485
        %v4518 = vadd.f32 %v4452, %v4486
        %v4519 = vadd.f32 %v4453, %v4487
        %v4520 = vadd.f32 %v4454, %v4488
        %v4521 = vadd.f32 %v4455, %v4489
        %v4522 = vadd.f32 %v4456, %v4490
        %v4523 = vadd.f32 %v4457, %v4491
        %v4524 = vadd.f32 %v4458, %v4492
        %v4525 = vadd.f32 %v4459, %v4493
        %v4526 = vadd.f32 %v4460, %v4494
        %v4527 = vadd.f32 %v4461, %v4495
        %v4528 = vadd.f32 %v4462, %v4496
        %v4529 = vadd.f32 %v4463, %v4497
        %v4530 = vadd.f32 %v4464, %v4498
        %v4531 = vadd.f32 %v4465, %v4499
        %v4532 = vadd.f32 %v4466, %v4500
        %v4533 = vadd.f32 %v4467, %v4501
        %v4534 = vadd.f32 %v4468, %v4502
        %v4535 = vadd.f32 %v4469, %v4503
        %s4536 = sld [smem:[#allocation8 + $0x10d]]
        %v4537 = vstv %s4536
        %v4538 = vmul.f32 %v437, %v4537
        %v4539 = vmul.f32 %v438, %v4537
        %v4540 = vmul.f32 %v439, %v4537
        %v4541 = vmul.f32 %v440, %v4537
        %v4542 = vmul.f32 %v441, %v4537
        %v4543 = vmul.f32 %v442, %v4537
        %v4544 = vmul.f32 %v443, %v4537
        %v4545 = vmul.f32 %v444, %v4537
        %v4546 = vmul.f32 %v445, %v4537
        %v4547 = vmul.f32 %v446, %v4537
        %v4548 = vmul.f32 %v447, %v4537
        %v4549 = vmul.f32 %v448, %v4537
        %v4550 = vmul.f32 %v449, %v4537
        %v4551 = vmul.f32 %v450, %v4537
        %v4552 = vmul.f32 %v451, %v4537
        %v4553 = vmul.f32 %v452, %v4537
        %v4554 = vmul.f32 %v453, %v4537
        %v4555 = vmul.f32 %v454, %v4537
        %v4556 = vmul.f32 %v455, %v4537
        %v4557 = vmul.f32 %v456, %v4537
        %v4558 = vmul.f32 %v457, %v4537
        %v4559 = vmul.f32 %v458, %v4537
        %v4560 = vmul.f32 %v459, %v4537
        %v4561 = vmul.f32 %v460, %v4537
        %v4562 = vmul.f32 %v461, %v4537
        %v4563 = vmul.f32 %v462, %v4537
        %v4564 = vmul.f32 %v463, %v4537
        %v4565 = vmul.f32 %v464, %v4537
        %v4566 = vmul.f32 %v465, %v4537
        %v4567 = vmul.f32 %v466, %v4537
        %v4568 = vmul.f32 %v467, %v4537
        %v4569 = vmul.f32 %v468, %v4537
        %v4570 = vadd.f32 %v4504, %v4538
        %v4571 = vadd.f32 %v4505, %v4539
        %v4572 = vadd.f32 %v4506, %v4540
        %v4573 = vadd.f32 %v4507, %v4541
        %v4574 = vadd.f32 %v4508, %v4542
        %v4575 = vadd.f32 %v4509, %v4543
        %v4576 = vadd.f32 %v4510, %v4544
        %v4577 = vadd.f32 %v4511, %v4545
        %v4578 = vadd.f32 %v4512, %v4546
        %v4579 = vadd.f32 %v4513, %v4547
        %v4580 = vadd.f32 %v4514, %v4548
        %v4581 = vadd.f32 %v4515, %v4549
        %v4582 = vadd.f32 %v4516, %v4550
        %v4583 = vadd.f32 %v4517, %v4551
        %v4584 = vadd.f32 %v4518, %v4552
        %v4585 = vadd.f32 %v4519, %v4553
        %v4586 = vadd.f32 %v4520, %v4554
        %v4587 = vadd.f32 %v4521, %v4555
        %v4588 = vadd.f32 %v4522, %v4556
        %v4589 = vadd.f32 %v4523, %v4557
        %v4590 = vadd.f32 %v4524, %v4558
        %v4591 = vadd.f32 %v4525, %v4559
        %v4592 = vadd.f32 %v4526, %v4560
        %v4593 = vadd.f32 %v4527, %v4561
        %v4594 = vadd.f32 %v4528, %v4562
        %v4595 = vadd.f32 %v4529, %v4563
        %v4596 = vadd.f32 %v4530, %v4564
        %v4597 = vadd.f32 %v4531, %v4565
        %v4598 = vadd.f32 %v4532, %v4566
        %v4599 = vadd.f32 %v4533, %v4567
        %v4600 = vadd.f32 %v4534, %v4568
        %v4601 = vadd.f32 %v4535, %v4569
        %s4602 = sld [smem:[#allocation8 + $0x18d]]
        %v4603 = vstv %s4602
        %v4604 = vmul.f32 %v470, %v4603
        %v4605 = vmul.f32 %v471, %v4603
        %v4606 = vmul.f32 %v472, %v4603
        %v4607 = vmul.f32 %v473, %v4603
        %v4608 = vmul.f32 %v474, %v4603
        %v4609 = vmul.f32 %v475, %v4603
        %v4610 = vmul.f32 %v476, %v4603
        %v4611 = vmul.f32 %v477, %v4603
        %v4612 = vmul.f32 %v478, %v4603
        %v4613 = vmul.f32 %v479, %v4603
        %v4614 = vmul.f32 %v480, %v4603
        %v4615 = vmul.f32 %v481, %v4603
        %v4616 = vmul.f32 %v482, %v4603
        %v4617 = vmul.f32 %v483, %v4603
        %v4618 = vmul.f32 %v484, %v4603
        %v4619 = vmul.f32 %v485, %v4603
        %v4620 = vmul.f32 %v486, %v4603
        %v4621 = vmul.f32 %v487, %v4603
        %v4622 = vmul.f32 %v488, %v4603
        %v4623 = vmul.f32 %v489, %v4603
        %v4624 = vmul.f32 %v490, %v4603
        %v4625 = vmul.f32 %v491, %v4603
        %v4626 = vmul.f32 %v492, %v4603
        %v4627 = vmul.f32 %v493, %v4603
        %v4628 = vmul.f32 %v494, %v4603
        %v4629 = vmul.f32 %v495, %v4603
        %v4630 = vmul.f32 %v496, %v4603
        %v4631 = vmul.f32 %v497, %v4603
        %v4632 = vmul.f32 %v498, %v4603
        %v4633 = vmul.f32 %v499, %v4603
        %v4634 = vmul.f32 %v500, %v4603
        %v4635 = vmul.f32 %v501, %v4603
        %v4636 = vadd.f32 %v4570, %v4604
        %v4637 = vadd.f32 %v4571, %v4605
        %v4638 = vadd.f32 %v4572, %v4606
        %v4639 = vadd.f32 %v4573, %v4607
        %v4640 = vadd.f32 %v4574, %v4608
        %v4641 = vadd.f32 %v4575, %v4609
        %v4642 = vadd.f32 %v4576, %v4610
        %v4643 = vadd.f32 %v4577, %v4611
        %v4644 = vadd.f32 %v4578, %v4612
        %v4645 = vadd.f32 %v4579, %v4613
        %v4646 = vadd.f32 %v4580, %v4614
        %v4647 = vadd.f32 %v4581, %v4615
        %v4648 = vadd.f32 %v4582, %v4616
        %v4649 = vadd.f32 %v4583, %v4617
        %v4650 = vadd.f32 %v4584, %v4618
        %v4651 = vadd.f32 %v4585, %v4619
        %v4652 = vadd.f32 %v4586, %v4620
        %v4653 = vadd.f32 %v4587, %v4621
        %v4654 = vadd.f32 %v4588, %v4622
        %v4655 = vadd.f32 %v4589, %v4623
        %v4656 = vadd.f32 %v4590, %v4624
        %v4657 = vadd.f32 %v4591, %v4625
        %v4658 = vadd.f32 %v4592, %v4626
        %v4659 = vadd.f32 %v4593, %v4627
        %v4660 = vadd.f32 %v4594, %v4628
        %v4661 = vadd.f32 %v4595, %v4629
        %v4662 = vadd.f32 %v4596, %v4630
        %v4663 = vadd.f32 %v4597, %v4631
        %v4664 = vadd.f32 %v4598, %v4632
        %v4665 = vadd.f32 %v4599, %v4633
        %v4666 = vadd.f32 %v4600, %v4634
        %v4667 = vadd.f32 %v4601, %v4635
        %s4668 = scalar_lea.vmem %s360, 3328 [#allocation11]
        %4669 = vst [vmem:[%s4668] sm:$0xff] %v4636
        %4670 = vst [vmem:[%s4668 + $0x8] sm:$0xff] %v4637
        %4671 = vst [vmem:[%s4668 + $0x10] sm:$0xff] %v4638
        %4672 = vst [vmem:[%s4668 + $0x18] sm:$0xff] %v4639
        %4673 = vst [vmem:[%s4668 + $0x20] sm:$0xff] %v4640
        %4674 = vst [vmem:[%s4668 + $0x28] sm:$0xff] %v4641
        %4675 = vst [vmem:[%s4668 + $0x30] sm:$0xff] %v4642
        %4676 = vst [vmem:[%s4668 + $0x38] sm:$0xff] %v4643
        %4677 = vst [vmem:[%s4668 + $0x40] sm:$0xff] %v4644
        %4678 = vst [vmem:[%s4668 + $0x48] sm:$0xff] %v4645
        %4679 = vst [vmem:[%s4668 + $0x50] sm:$0xff] %v4646
        %4680 = vst [vmem:[%s4668 + $0x58] sm:$0xff] %v4647
        %4681 = vst [vmem:[%s4668 + $0x60] sm:$0xff] %v4648
        %4682 = vst [vmem:[%s4668 + $0x68] sm:$0xff] %v4649
        %4683 = vst [vmem:[%s4668 + $0x70] sm:$0xff] %v4650
        %4684 = vst [vmem:[%s4668 + $0x78] sm:$0xff] %v4651
        %4685 = vst [vmem:[%s4668 + $0x80] sm:$0xff] %v4652
        %4686 = vst [vmem:[%s4668 + $0x88] sm:$0xff] %v4653
        %4687 = vst [vmem:[%s4668 + $0x90] sm:$0xff] %v4654
        %4688 = vst [vmem:[%s4668 + $0x98] sm:$0xff] %v4655
        %4689 = vst [vmem:[%s4668 + $0xa0] sm:$0xff] %v4656
        %4690 = vst [vmem:[%s4668 + $0xa8] sm:$0xff] %v4657
        %4691 = vst [vmem:[%s4668 + $0xb0] sm:$0xff] %v4658
        %4692 = vst [vmem:[%s4668 + $0xb8] sm:$0xff] %v4659
        %4693 = vst [vmem:[%s4668 + $0xc0] sm:$0xff] %v4660
        %4694 = vst [vmem:[%s4668 + $0xc8] sm:$0xff] %v4661
        %4695 = vst [vmem:[%s4668 + $0xd0] sm:$0xff] %v4662
        %4696 = vst [vmem:[%s4668 + $0xd8] sm:$0xff] %v4663
        %4697 = vst [vmem:[%s4668 + $0xe0] sm:$0xff] %v4664
        %4698 = vst [vmem:[%s4668 + $0xe8] sm:$0xff] %v4665
        %4699 = vst [vmem:[%s4668 + $0xf0] sm:$0xff] %v4666
        %4700 = vst [vmem:[%s4668 + $0xf8] sm:$0xff] %v4667
        %s4701 = sld [smem:[#allocation8 + $0xe]]
        %v4702 = vstv %s4701
        %v4703 = vmul.f32 %v372, %v4702
        %v4704 = vmul.f32 %v373, %v4702
        %v4705 = vmul.f32 %v374, %v4702
        %v4706 = vmul.f32 %v375, %v4702
        %v4707 = vmul.f32 %v376, %v4702
        %v4708 = vmul.f32 %v377, %v4702
        %v4709 = vmul.f32 %v378, %v4702
        %v4710 = vmul.f32 %v379, %v4702
        %v4711 = vmul.f32 %v380, %v4702
        %v4712 = vmul.f32 %v381, %v4702
        %v4713 = vmul.f32 %v382, %v4702
        %v4714 = vmul.f32 %v383, %v4702
        %v4715 = vmul.f32 %v384, %v4702
        %v4716 = vmul.f32 %v385, %v4702
        %v4717 = vmul.f32 %v386, %v4702
        %v4718 = vmul.f32 %v387, %v4702
        %v4719 = vmul.f32 %v388, %v4702
        %v4720 = vmul.f32 %v389, %v4702
        %v4721 = vmul.f32 %v390, %v4702
        %v4722 = vmul.f32 %v391, %v4702
        %v4723 = vmul.f32 %v392, %v4702
        %v4724 = vmul.f32 %v393, %v4702
        %v4725 = vmul.f32 %v394, %v4702
        %v4726 = vmul.f32 %v395, %v4702
        %v4727 = vmul.f32 %v396, %v4702
        %v4728 = vmul.f32 %v397, %v4702
        %v4729 = vmul.f32 %v398, %v4702
        %v4730 = vmul.f32 %v399, %v4702
        %v4731 = vmul.f32 %v400, %v4702
        %v4732 = vmul.f32 %v401, %v4702
        %v4733 = vmul.f32 %v402, %v4702
        %v4734 = vmul.f32 %v403, %v4702
        %s4735 = sadd.s32 %s536, 14
        %s4736 = sld [smem:[#allocation9 + %s4735]]
        %v4737 = vstv %s4736
        %v4738 = vadd.f32 %v4703, %v4737
        %v4739 = vadd.f32 %v4704, %v4737
        %v4740 = vadd.f32 %v4705, %v4737
        %v4741 = vadd.f32 %v4706, %v4737
        %v4742 = vadd.f32 %v4707, %v4737
        %v4743 = vadd.f32 %v4708, %v4737
        %v4744 = vadd.f32 %v4709, %v4737
        %v4745 = vadd.f32 %v4710, %v4737
        %v4746 = vadd.f32 %v4711, %v4737
        %v4747 = vadd.f32 %v4712, %v4737
        %v4748 = vadd.f32 %v4713, %v4737
        %v4749 = vadd.f32 %v4714, %v4737
        %v4750 = vadd.f32 %v4715, %v4737
        %v4751 = vadd.f32 %v4716, %v4737
        %v4752 = vadd.f32 %v4717, %v4737
        %v4753 = vadd.f32 %v4718, %v4737
        %v4754 = vadd.f32 %v4719, %v4737
        %v4755 = vadd.f32 %v4720, %v4737
        %v4756 = vadd.f32 %v4721, %v4737
        %v4757 = vadd.f32 %v4722, %v4737
        %v4758 = vadd.f32 %v4723, %v4737
        %v4759 = vadd.f32 %v4724, %v4737
        %v4760 = vadd.f32 %v4725, %v4737
        %v4761 = vadd.f32 %v4726, %v4737
        %v4762 = vadd.f32 %v4727, %v4737
        %v4763 = vadd.f32 %v4728, %v4737
        %v4764 = vadd.f32 %v4729, %v4737
        %v4765 = vadd.f32 %v4730, %v4737
        %v4766 = vadd.f32 %v4731, %v4737
        %v4767 = vadd.f32 %v4732, %v4737
        %v4768 = vadd.f32 %v4733, %v4737
        %v4769 = vadd.f32 %v4734, %v4737
        %s4770 = sld [smem:[#allocation8 + $0x8e]]
        %v4771 = vstv %s4770
        %v4772 = vmul.f32 %v404, %v4771
        %v4773 = vmul.f32 %v405, %v4771
        %v4774 = vmul.f32 %v406, %v4771
        %v4775 = vmul.f32 %v407, %v4771
        %v4776 = vmul.f32 %v408, %v4771
        %v4777 = vmul.f32 %v409, %v4771
        %v4778 = vmul.f32 %v410, %v4771
        %v4779 = vmul.f32 %v411, %v4771
        %v4780 = vmul.f32 %v412, %v4771
        %v4781 = vmul.f32 %v413, %v4771
        %v4782 = vmul.f32 %v414, %v4771
        %v4783 = vmul.f32 %v415, %v4771
        %v4784 = vmul.f32 %v416, %v4771
        %v4785 = vmul.f32 %v417, %v4771
        %v4786 = vmul.f32 %v418, %v4771
        %v4787 = vmul.f32 %v419, %v4771
        %v4788 = vmul.f32 %v420, %v4771
        %v4789 = vmul.f32 %v421, %v4771
        %v4790 = vmul.f32 %v422, %v4771
        %v4791 = vmul.f32 %v423, %v4771
        %v4792 = vmul.f32 %v424, %v4771
        %v4793 = vmul.f32 %v425, %v4771
        %v4794 = vmul.f32 %v426, %v4771
        %v4795 = vmul.f32 %v427, %v4771
        %v4796 = vmul.f32 %v428, %v4771
        %v4797 = vmul.f32 %v429, %v4771
        %v4798 = vmul.f32 %v430, %v4771
        %v4799 = vmul.f32 %v431, %v4771
        %v4800 = vmul.f32 %v432, %v4771
        %v4801 = vmul.f32 %v433, %v4771
        %v4802 = vmul.f32 %v434, %v4771
        %v4803 = vmul.f32 %v435, %v4771
        %v4804 = vadd.f32 %v4738, %v4772
        %v4805 = vadd.f32 %v4739, %v4773
        %v4806 = vadd.f32 %v4740, %v4774
        %v4807 = vadd.f32 %v4741, %v4775
        %v4808 = vadd.f32 %v4742, %v4776
        %v4809 = vadd.f32 %v4743, %v4777
        %v4810 = vadd.f32 %v4744, %v4778
        %v4811 = vadd.f32 %v4745, %v4779
        %v4812 = vadd.f32 %v4746, %v4780
        %v4813 = vadd.f32 %v4747, %v4781
        %v4814 = vadd.f32 %v4748, %v4782
        %v4815 = vadd.f32 %v4749, %v4783
        %v4816 = vadd.f32 %v4750, %v4784
        %v4817 = vadd.f32 %v4751, %v4785
        %v4818 = vadd.f32 %v4752, %v4786
        %v4819 = vadd.f32 %v4753, %v4787
        %v4820 = vadd.f32 %v4754, %v4788
        %v4821 = vadd.f32 %v4755, %v4789
        %v4822 = vadd.f32 %v4756, %v4790
        %v4823 = vadd.f32 %v4757, %v4791
        %v4824 = vadd.f32 %v4758, %v4792
        %v4825 = vadd.f32 %v4759, %v4793
        %v4826 = vadd.f32 %v4760, %v4794
        %v4827 = vadd.f32 %v4761, %v4795
        %v4828 = vadd.f32 %v4762, %v4796
        %v4829 = vadd.f32 %v4763, %v4797
        %v4830 = vadd.f32 %v4764, %v4798
        %v4831 = vadd.f32 %v4765, %v4799
        %v4832 = vadd.f32 %v4766, %v4800
        %v4833 = vadd.f32 %v4767, %v4801
        %v4834 = vadd.f32 %v4768, %v4802
        %v4835 = vadd.f32 %v4769, %v4803
        %s4836 = sld [smem:[#allocation8 + $0x10e]]
        %v4837 = vstv %s4836
        %v4838 = vmul.f32 %v437, %v4837
        %v4839 = vmul.f32 %v438, %v4837
        %v4840 = vmul.f32 %v439, %v4837
        %v4841 = vmul.f32 %v440, %v4837
        %v4842 = vmul.f32 %v441, %v4837
        %v4843 = vmul.f32 %v442, %v4837
        %v4844 = vmul.f32 %v443, %v4837
        %v4845 = vmul.f32 %v444, %v4837
        %v4846 = vmul.f32 %v445, %v4837
        %v4847 = vmul.f32 %v446, %v4837
        %v4848 = vmul.f32 %v447, %v4837
        %v4849 = vmul.f32 %v448, %v4837
        %v4850 = vmul.f32 %v449, %v4837
        %v4851 = vmul.f32 %v450, %v4837
        %v4852 = vmul.f32 %v451, %v4837
        %v4853 = vmul.f32 %v452, %v4837
        %v4854 = vmul.f32 %v453, %v4837
        %v4855 = vmul.f32 %v454, %v4837
        %v4856 = vmul.f32 %v455, %v4837
        %v4857 = vmul.f32 %v456, %v4837
        %v4858 = vmul.f32 %v457, %v4837
        %v4859 = vmul.f32 %v458, %v4837
        %v4860 = vmul.f32 %v459, %v4837
        %v4861 = vmul.f32 %v460, %v4837
        %v4862 = vmul.f32 %v461, %v4837
        %v4863 = vmul.f32 %v462, %v4837
        %v4864 = vmul.f32 %v463, %v4837
        %v4865 = vmul.f32 %v464, %v4837
        %v4866 = vmul.f32 %v465, %v4837
        %v4867 = vmul.f32 %v466, %v4837
        %v4868 = vmul.f32 %v467, %v4837
        %v4869 = vmul.f32 %v468, %v4837
        %v4870 = vadd.f32 %v4804, %v4838
        %v4871 = vadd.f32 %v4805, %v4839
        %v4872 = vadd.f32 %v4806, %v4840
        %v4873 = vadd.f32 %v4807, %v4841
        %v4874 = vadd.f32 %v4808, %v4842
        %v4875 = vadd.f32 %v4809, %v4843
        %v4876 = vadd.f32 %v4810, %v4844
        %v4877 = vadd.f32 %v4811, %v4845
        %v4878 = vadd.f32 %v4812, %v4846
        %v4879 = vadd.f32 %v4813, %v4847
        %v4880 = vadd.f32 %v4814, %v4848
        %v4881 = vadd.f32 %v4815, %v4849
        %v4882 = vadd.f32 %v4816, %v4850
        %v4883 = vadd.f32 %v4817, %v4851
        %v4884 = vadd.f32 %v4818, %v4852
        %v4885 = vadd.f32 %v4819, %v4853
        %v4886 = vadd.f32 %v4820, %v4854
        %v4887 = vadd.f32 %v4821, %v4855
        %v4888 = vadd.f32 %v4822, %v4856
        %v4889 = vadd.f32 %v4823, %v4857
        %v4890 = vadd.f32 %v4824, %v4858
        %v4891 = vadd.f32 %v4825, %v4859
        %v4892 = vadd.f32 %v4826, %v4860
        %v4893 = vadd.f32 %v4827, %v4861
        %v4894 = vadd.f32 %v4828, %v4862
        %v4895 = vadd.f32 %v4829, %v4863
        %v4896 = vadd.f32 %v4830, %v4864
        %v4897 = vadd.f32 %v4831, %v4865
        %v4898 = vadd.f32 %v4832, %v4866
        %v4899 = vadd.f32 %v4833, %v4867
        %v4900 = vadd.f32 %v4834, %v4868
        %v4901 = vadd.f32 %v4835, %v4869
        %s4902 = sld [smem:[#allocation8 + $0x18e]]
        %v4903 = vstv %s4902
        %v4904 = vmul.f32 %v470, %v4903
        %v4905 = vmul.f32 %v471, %v4903
        %v4906 = vmul.f32 %v472, %v4903
        %v4907 = vmul.f32 %v473, %v4903
        %v4908 = vmul.f32 %v474, %v4903
        %v4909 = vmul.f32 %v475, %v4903
        %v4910 = vmul.f32 %v476, %v4903
        %v4911 = vmul.f32 %v477, %v4903
        %v4912 = vmul.f32 %v478, %v4903
        %v4913 = vmul.f32 %v479, %v4903
        %v4914 = vmul.f32 %v480, %v4903
        %v4915 = vmul.f32 %v481, %v4903
        %v4916 = vmul.f32 %v482, %v4903
        %v4917 = vmul.f32 %v483, %v4903
        %v4918 = vmul.f32 %v484, %v4903
        %v4919 = vmul.f32 %v485, %v4903
        %v4920 = vmul.f32 %v486, %v4903
        %v4921 = vmul.f32 %v487, %v4903
        %v4922 = vmul.f32 %v488, %v4903
        %v4923 = vmul.f32 %v489, %v4903
        %v4924 = vmul.f32 %v490, %v4903
        %v4925 = vmul.f32 %v491, %v4903
        %v4926 = vmul.f32 %v492, %v4903
        %v4927 = vmul.f32 %v493, %v4903
        %v4928 = vmul.f32 %v494, %v4903
        %v4929 = vmul.f32 %v495, %v4903
        %v4930 = vmul.f32 %v496, %v4903
        %v4931 = vmul.f32 %v497, %v4903
        %v4932 = vmul.f32 %v498, %v4903
        %v4933 = vmul.f32 %v499, %v4903
        %v4934 = vmul.f32 %v500, %v4903
        %v4935 = vmul.f32 %v501, %v4903
        %v4936 = vadd.f32 %v4870, %v4904
        %v4937 = vadd.f32 %v4871, %v4905
        %v4938 = vadd.f32 %v4872, %v4906
        %v4939 = vadd.f32 %v4873, %v4907
        %v4940 = vadd.f32 %v4874, %v4908
        %v4941 = vadd.f32 %v4875, %v4909
        %v4942 = vadd.f32 %v4876, %v4910
        %v4943 = vadd.f32 %v4877, %v4911
        %v4944 = vadd.f32 %v4878, %v4912
        %v4945 = vadd.f32 %v4879, %v4913
        %v4946 = vadd.f32 %v4880, %v4914
        %v4947 = vadd.f32 %v4881, %v4915
        %v4948 = vadd.f32 %v4882, %v4916
        %v4949 = vadd.f32 %v4883, %v4917
        %v4950 = vadd.f32 %v4884, %v4918
        %v4951 = vadd.f32 %v4885, %v4919
        %v4952 = vadd.f32 %v4886, %v4920
        %v4953 = vadd.f32 %v4887, %v4921
        %v4954 = vadd.f32 %v4888, %v4922
        %v4955 = vadd.f32 %v4889, %v4923
        %v4956 = vadd.f32 %v4890, %v4924
        %v4957 = vadd.f32 %v4891, %v4925
        %v4958 = vadd.f32 %v4892, %v4926
        %v4959 = vadd.f32 %v4893, %v4927
        %v4960 = vadd.f32 %v4894, %v4928
        %v4961 = vadd.f32 %v4895, %v4929
        %v4962 = vadd.f32 %v4896, %v4930
        %v4963 = vadd.f32 %v4897, %v4931
        %v4964 = vadd.f32 %v4898, %v4932
        %v4965 = vadd.f32 %v4899, %v4933
        %v4966 = vadd.f32 %v4900, %v4934
        %v4967 = vadd.f32 %v4901, %v4935
        %s4968 = scalar_lea.vmem %s360, 3584 [#allocation11]
        %4969 = vst [vmem:[%s4968] sm:$0xff] %v4936
        %4970 = vst [vmem:[%s4968 + $0x8] sm:$0xff] %v4937
        %4971 = vst [vmem:[%s4968 + $0x10] sm:$0xff] %v4938
        %4972 = vst [vmem:[%s4968 + $0x18] sm:$0xff] %v4939
        %4973 = vst [vmem:[%s4968 + $0x20] sm:$0xff] %v4940
        %4974 = vst [vmem:[%s4968 + $0x28] sm:$0xff] %v4941
        %4975 = vst [vmem:[%s4968 + $0x30] sm:$0xff] %v4942
        %4976 = vst [vmem:[%s4968 + $0x38] sm:$0xff] %v4943
        %4977 = vst [vmem:[%s4968 + $0x40] sm:$0xff] %v4944
        %4978 = vst [vmem:[%s4968 + $0x48] sm:$0xff] %v4945
        %4979 = vst [vmem:[%s4968 + $0x50] sm:$0xff] %v4946
        %4980 = vst [vmem:[%s4968 + $0x58] sm:$0xff] %v4947
        %4981 = vst [vmem:[%s4968 + $0x60] sm:$0xff] %v4948
        %4982 = vst [vmem:[%s4968 + $0x68] sm:$0xff] %v4949
        %4983 = vst [vmem:[%s4968 + $0x70] sm:$0xff] %v4950
        %4984 = vst [vmem:[%s4968 + $0x78] sm:$0xff] %v4951
        %4985 = vst [vmem:[%s4968 + $0x80] sm:$0xff] %v4952
        %4986 = vst [vmem:[%s4968 + $0x88] sm:$0xff] %v4953
        %4987 = vst [vmem:[%s4968 + $0x90] sm:$0xff] %v4954
        %4988 = vst [vmem:[%s4968 + $0x98] sm:$0xff] %v4955
        %4989 = vst [vmem:[%s4968 + $0xa0] sm:$0xff] %v4956
        %4990 = vst [vmem:[%s4968 + $0xa8] sm:$0xff] %v4957
        %4991 = vst [vmem:[%s4968 + $0xb0] sm:$0xff] %v4958
        %4992 = vst [vmem:[%s4968 + $0xb8] sm:$0xff] %v4959
        %4993 = vst [vmem:[%s4968 + $0xc0] sm:$0xff] %v4960
        %4994 = vst [vmem:[%s4968 + $0xc8] sm:$0xff] %v4961
        %4995 = vst [vmem:[%s4968 + $0xd0] sm:$0xff] %v4962
        %4996 = vst [vmem:[%s4968 + $0xd8] sm:$0xff] %v4963
        %4997 = vst [vmem:[%s4968 + $0xe0] sm:$0xff] %v4964
        %4998 = vst [vmem:[%s4968 + $0xe8] sm:$0xff] %v4965
        %4999 = vst [vmem:[%s4968 + $0xf0] sm:$0xff] %v4966
        %5000 = vst [vmem:[%s4968 + $0xf8] sm:$0xff] %v4967
        %s5001 = sld [smem:[#allocation8 + $0xf]]
        %v5002 = vstv %s5001
        %v5003 = vmul.f32 %v372, %v5002
        %v5004 = vmul.f32 %v373, %v5002
        %v5005 = vmul.f32 %v374, %v5002
        %v5006 = vmul.f32 %v375, %v5002
        %v5007 = vmul.f32 %v376, %v5002
        %v5008 = vmul.f32 %v377, %v5002
        %v5009 = vmul.f32 %v378, %v5002
        %v5010 = vmul.f32 %v379, %v5002
        %v5011 = vmul.f32 %v380, %v5002
        %v5012 = vmul.f32 %v381, %v5002
        %v5013 = vmul.f32 %v382, %v5002
        %v5014 = vmul.f32 %v383, %v5002
        %v5015 = vmul.f32 %v384, %v5002
        %v5016 = vmul.f32 %v385, %v5002
        %v5017 = vmul.f32 %v386, %v5002
        %v5018 = vmul.f32 %v387, %v5002
        %v5019 = vmul.f32 %v388, %v5002
        %v5020 = vmul.f32 %v389, %v5002
        %v5021 = vmul.f32 %v390, %v5002
        %v5022 = vmul.f32 %v391, %v5002
        %v5023 = vmul.f32 %v392, %v5002
        %v5024 = vmul.f32 %v393, %v5002
        %v5025 = vmul.f32 %v394, %v5002
        %v5026 = vmul.f32 %v395, %v5002
        %v5027 = vmul.f32 %v396, %v5002
        %v5028 = vmul.f32 %v397, %v5002
        %v5029 = vmul.f32 %v398, %v5002
        %v5030 = vmul.f32 %v399, %v5002
        %v5031 = vmul.f32 %v400, %v5002
        %v5032 = vmul.f32 %v401, %v5002
        %v5033 = vmul.f32 %v402, %v5002
        %v5034 = vmul.f32 %v403, %v5002
        %s5035 = sadd.s32 %s536, 15
        %s5036 = sld [smem:[#allocation9 + %s5035]]
        %v5037 = vstv %s5036
        %v5038 = vadd.f32 %v5003, %v5037
        %v5039 = vadd.f32 %v5004, %v5037
        %v5040 = vadd.f32 %v5005, %v5037
        %v5041 = vadd.f32 %v5006, %v5037
        %v5042 = vadd.f32 %v5007, %v5037
        %v5043 = vadd.f32 %v5008, %v5037
        %v5044 = vadd.f32 %v5009, %v5037
        %v5045 = vadd.f32 %v5010, %v5037
        %v5046 = vadd.f32 %v5011, %v5037
        %v5047 = vadd.f32 %v5012, %v5037
        %v5048 = vadd.f32 %v5013, %v5037
        %v5049 = vadd.f32 %v5014, %v5037
        %v5050 = vadd.f32 %v5015, %v5037
        %v5051 = vadd.f32 %v5016, %v5037
        %v5052 = vadd.f32 %v5017, %v5037
        %v5053 = vadd.f32 %v5018, %v5037
        %v5054 = vadd.f32 %v5019, %v5037
        %v5055 = vadd.f32 %v5020, %v5037
        %v5056 = vadd.f32 %v5021, %v5037
        %v5057 = vadd.f32 %v5022, %v5037
        %v5058 = vadd.f32 %v5023, %v5037
        %v5059 = vadd.f32 %v5024, %v5037
        %v5060 = vadd.f32 %v5025, %v5037
        %v5061 = vadd.f32 %v5026, %v5037
        %v5062 = vadd.f32 %v5027, %v5037
        %v5063 = vadd.f32 %v5028, %v5037
        %v5064 = vadd.f32 %v5029, %v5037
        %v5065 = vadd.f32 %v5030, %v5037
        %v5066 = vadd.f32 %v5031, %v5037
        %v5067 = vadd.f32 %v5032, %v5037
        %v5068 = vadd.f32 %v5033, %v5037
        %v5069 = vadd.f32 %v5034, %v5037
        %s5070 = sld [smem:[#allocation8 + $0x8f]]
        %v5071 = vstv %s5070
        %v5072 = vmul.f32 %v404, %v5071
        %v5073 = vmul.f32 %v405, %v5071
        %v5074 = vmul.f32 %v406, %v5071
        %v5075 = vmul.f32 %v407, %v5071
        %v5076 = vmul.f32 %v408, %v5071
        %v5077 = vmul.f32 %v409, %v5071
        %v5078 = vmul.f32 %v410, %v5071
        %v5079 = vmul.f32 %v411, %v5071
        %v5080 = vmul.f32 %v412, %v5071
        %v5081 = vmul.f32 %v413, %v5071
        %v5082 = vmul.f32 %v414, %v5071
        %v5083 = vmul.f32 %v415, %v5071
        %v5084 = vmul.f32 %v416, %v5071
        %v5085 = vmul.f32 %v417, %v5071
        %v5086 = vmul.f32 %v418, %v5071
        %v5087 = vmul.f32 %v419, %v5071
        %v5088 = vmul.f32 %v420, %v5071
        %v5089 = vmul.f32 %v421, %v5071
        %v5090 = vmul.f32 %v422, %v5071
        %v5091 = vmul.f32 %v423, %v5071
        %v5092 = vmul.f32 %v424, %v5071
        %v5093 = vmul.f32 %v425, %v5071
        %v5094 = vmul.f32 %v426, %v5071
        %v5095 = vmul.f32 %v427, %v5071
        %v5096 = vmul.f32 %v428, %v5071
        %v5097 = vmul.f32 %v429, %v5071
        %v5098 = vmul.f32 %v430, %v5071
        %v5099 = vmul.f32 %v431, %v5071
        %v5100 = vmul.f32 %v432, %v5071
        %v5101 = vmul.f32 %v433, %v5071
        %v5102 = vmul.f32 %v434, %v5071
        %v5103 = vmul.f32 %v435, %v5071
        %v5104 = vadd.f32 %v5038, %v5072
        %v5105 = vadd.f32 %v5039, %v5073
        %v5106 = vadd.f32 %v5040, %v5074
        %v5107 = vadd.f32 %v5041, %v5075
        %v5108 = vadd.f32 %v5042, %v5076
        %v5109 = vadd.f32 %v5043, %v5077
        %v5110 = vadd.f32 %v5044, %v5078
        %v5111 = vadd.f32 %v5045, %v5079
        %v5112 = vadd.f32 %v5046, %v5080
        %v5113 = vadd.f32 %v5047, %v5081
        %v5114 = vadd.f32 %v5048, %v5082
        %v5115 = vadd.f32 %v5049, %v5083
        %v5116 = vadd.f32 %v5050, %v5084
        %v5117 = vadd.f32 %v5051, %v5085
        %v5118 = vadd.f32 %v5052, %v5086
        %v5119 = vadd.f32 %v5053, %v5087
        %v5120 = vadd.f32 %v5054, %v5088
        %v5121 = vadd.f32 %v5055, %v5089
        %v5122 = vadd.f32 %v5056, %v5090
        %v5123 = vadd.f32 %v5057, %v5091
        %v5124 = vadd.f32 %v5058, %v5092
        %v5125 = vadd.f32 %v5059, %v5093
        %v5126 = vadd.f32 %v5060, %v5094
        %v5127 = vadd.f32 %v5061, %v5095
        %v5128 = vadd.f32 %v5062, %v5096
        %v5129 = vadd.f32 %v5063, %v5097
        %v5130 = vadd.f32 %v5064, %v5098
        %v5131 = vadd.f32 %v5065, %v5099
        %v5132 = vadd.f32 %v5066, %v5100
        %v5133 = vadd.f32 %v5067, %v5101
        %v5134 = vadd.f32 %v5068, %v5102
        %v5135 = vadd.f32 %v5069, %v5103
        %s5136 = sld [smem:[#allocation8 + $0x10f]]
        %v5137 = vstv %s5136
        %v5138 = vmul.f32 %v437, %v5137
        %v5139 = vmul.f32 %v438, %v5137
        %v5140 = vmul.f32 %v439, %v5137
        %v5141 = vmul.f32 %v440, %v5137
        %v5142 = vmul.f32 %v441, %v5137
        %v5143 = vmul.f32 %v442, %v5137
        %v5144 = vmul.f32 %v443, %v5137
        %v5145 = vmul.f32 %v444, %v5137
        %v5146 = vmul.f32 %v445, %v5137
        %v5147 = vmul.f32 %v446, %v5137
        %v5148 = vmul.f32 %v447, %v5137
        %v5149 = vmul.f32 %v448, %v5137
        %v5150 = vmul.f32 %v449, %v5137
        %v5151 = vmul.f32 %v450, %v5137
        %v5152 = vmul.f32 %v451, %v5137
        %v5153 = vmul.f32 %v452, %v5137
        %v5154 = vmul.f32 %v453, %v5137
        %v5155 = vmul.f32 %v454, %v5137
        %v5156 = vmul.f32 %v455, %v5137
        %v5157 = vmul.f32 %v456, %v5137
        %v5158 = vmul.f32 %v457, %v5137
        %v5159 = vmul.f32 %v458, %v5137
        %v5160 = vmul.f32 %v459, %v5137
        %v5161 = vmul.f32 %v460, %v5137
        %v5162 = vmul.f32 %v461, %v5137
        %v5163 = vmul.f32 %v462, %v5137
        %v5164 = vmul.f32 %v463, %v5137
        %v5165 = vmul.f32 %v464, %v5137
        %v5166 = vmul.f32 %v465, %v5137
        %v5167 = vmul.f32 %v466, %v5137
        %v5168 = vmul.f32 %v467, %v5137
        %v5169 = vmul.f32 %v468, %v5137
        %v5170 = vadd.f32 %v5104, %v5138
        %v5171 = vadd.f32 %v5105, %v5139
        %v5172 = vadd.f32 %v5106, %v5140
        %v5173 = vadd.f32 %v5107, %v5141
        %v5174 = vadd.f32 %v5108, %v5142
        %v5175 = vadd.f32 %v5109, %v5143
        %v5176 = vadd.f32 %v5110, %v5144
        %v5177 = vadd.f32 %v5111, %v5145
        %v5178 = vadd.f32 %v5112, %v5146
        %v5179 = vadd.f32 %v5113, %v5147
        %v5180 = vadd.f32 %v5114, %v5148
        %v5181 = vadd.f32 %v5115, %v5149
        %v5182 = vadd.f32 %v5116, %v5150
        %v5183 = vadd.f32 %v5117, %v5151
        %v5184 = vadd.f32 %v5118, %v5152
        %v5185 = vadd.f32 %v5119, %v5153
        %v5186 = vadd.f32 %v5120, %v5154
        %v5187 = vadd.f32 %v5121, %v5155
        %v5188 = vadd.f32 %v5122, %v5156
        %v5189 = vadd.f32 %v5123, %v5157
        %v5190 = vadd.f32 %v5124, %v5158
        %v5191 = vadd.f32 %v5125, %v5159
        %v5192 = vadd.f32 %v5126, %v5160
        %v5193 = vadd.f32 %v5127, %v5161
        %v5194 = vadd.f32 %v5128, %v5162
        %v5195 = vadd.f32 %v5129, %v5163
        %v5196 = vadd.f32 %v5130, %v5164
        %v5197 = vadd.f32 %v5131, %v5165
        %v5198 = vadd.f32 %v5132, %v5166
        %v5199 = vadd.f32 %v5133, %v5167
        %v5200 = vadd.f32 %v5134, %v5168
        %v5201 = vadd.f32 %v5135, %v5169
        %s5202 = sld [smem:[#allocation8 + $0x18f]]
        %v5203 = vstv %s5202
        %v5204 = vmul.f32 %v470, %v5203
        %v5205 = vmul.f32 %v471, %v5203
        %v5206 = vmul.f32 %v472, %v5203
        %v5207 = vmul.f32 %v473, %v5203
        %v5208 = vmul.f32 %v474, %v5203
        %v5209 = vmul.f32 %v475, %v5203
        %v5210 = vmul.f32 %v476, %v5203
        %v5211 = vmul.f32 %v477, %v5203
        %v5212 = vmul.f32 %v478, %v5203
        %v5213 = vmul.f32 %v479, %v5203
        %v5214 = vmul.f32 %v480, %v5203
        %v5215 = vmul.f32 %v481, %v5203
        %v5216 = vmul.f32 %v482, %v5203
        %v5217 = vmul.f32 %v483, %v5203
        %v5218 = vmul.f32 %v484, %v5203
        %v5219 = vmul.f32 %v485, %v5203
        %v5220 = vmul.f32 %v486, %v5203
        %v5221 = vmul.f32 %v487, %v5203
        %v5222 = vmul.f32 %v488, %v5203
        %v5223 = vmul.f32 %v489, %v5203
        %v5224 = vmul.f32 %v490, %v5203
        %v5225 = vmul.f32 %v491, %v5203
        %v5226 = vmul.f32 %v492, %v5203
        %v5227 = vmul.f32 %v493, %v5203
        %v5228 = vmul.f32 %v494, %v5203
        %v5229 = vmul.f32 %v495, %v5203
        %v5230 = vmul.f32 %v496, %v5203
        %v5231 = vmul.f32 %v497, %v5203
        %v5232 = vmul.f32 %v498, %v5203
        %v5233 = vmul.f32 %v499, %v5203
        %v5234 = vmul.f32 %v500, %v5203
        %v5235 = vmul.f32 %v501, %v5203
        %v5236 = vadd.f32 %v5170, %v5204
        %v5237 = vadd.f32 %v5171, %v5205
        %v5238 = vadd.f32 %v5172, %v5206
        %v5239 = vadd.f32 %v5173, %v5207
        %v5240 = vadd.f32 %v5174, %v5208
        %v5241 = vadd.f32 %v5175, %v5209
        %v5242 = vadd.f32 %v5176, %v5210
        %v5243 = vadd.f32 %v5177, %v5211
        %v5244 = vadd.f32 %v5178, %v5212
        %v5245 = vadd.f32 %v5179, %v5213
        %v5246 = vadd.f32 %v5180, %v5214
        %v5247 = vadd.f32 %v5181, %v5215
        %v5248 = vadd.f32 %v5182, %v5216
        %v5249 = vadd.f32 %v5183, %v5217
        %v5250 = vadd.f32 %v5184, %v5218
        %v5251 = vadd.f32 %v5185, %v5219
        %v5252 = vadd.f32 %v5186, %v5220
        %v5253 = vadd.f32 %v5187, %v5221
        %v5254 = vadd.f32 %v5188, %v5222
        %v5255 = vadd.f32 %v5189, %v5223
        %v5256 = vadd.f32 %v5190, %v5224
        %v5257 = vadd.f32 %v5191, %v5225
        %v5258 = vadd.f32 %v5192, %v5226
        %v5259 = vadd.f32 %v5193, %v5227
        %v5260 = vadd.f32 %v5194, %v5228
        %v5261 = vadd.f32 %v5195, %v5229
        %v5262 = vadd.f32 %v5196, %v5230
        %v5263 = vadd.f32 %v5197, %v5231
        %v5264 = vadd.f32 %v5198, %v5232
        %v5265 = vadd.f32 %v5199, %v5233
        %v5266 = vadd.f32 %v5200, %v5234
        %v5267 = vadd.f32 %v5201, %v5235
        %s5268 = scalar_lea.vmem %s360, 3840 [#allocation11]
        %5269 = vst [vmem:[%s5268] sm:$0xff] %v5236
        %5270 = vst [vmem:[%s5268 + $0x8] sm:$0xff] %v5237
        %5271 = vst [vmem:[%s5268 + $0x10] sm:$0xff] %v5238
        %5272 = vst [vmem:[%s5268 + $0x18] sm:$0xff] %v5239
        %5273 = vst [vmem:[%s5268 + $0x20] sm:$0xff] %v5240
        %5274 = vst [vmem:[%s5268 + $0x28] sm:$0xff] %v5241
        %5275 = vst [vmem:[%s5268 + $0x30] sm:$0xff] %v5242
        %5276 = vst [vmem:[%s5268 + $0x38] sm:$0xff] %v5243
        %5277 = vst [vmem:[%s5268 + $0x40] sm:$0xff] %v5244
        %5278 = vst [vmem:[%s5268 + $0x48] sm:$0xff] %v5245
        %5279 = vst [vmem:[%s5268 + $0x50] sm:$0xff] %v5246
        %5280 = vst [vmem:[%s5268 + $0x58] sm:$0xff] %v5247
        %5281 = vst [vmem:[%s5268 + $0x60] sm:$0xff] %v5248
        %5282 = vst [vmem:[%s5268 + $0x68] sm:$0xff] %v5249
        %5283 = vst [vmem:[%s5268 + $0x70] sm:$0xff] %v5250
        %5284 = vst [vmem:[%s5268 + $0x78] sm:$0xff] %v5251
        %5285 = vst [vmem:[%s5268 + $0x80] sm:$0xff] %v5252
        %5286 = vst [vmem:[%s5268 + $0x88] sm:$0xff] %v5253
        %5287 = vst [vmem:[%s5268 + $0x90] sm:$0xff] %v5254
        %5288 = vst [vmem:[%s5268 + $0x98] sm:$0xff] %v5255
        %5289 = vst [vmem:[%s5268 + $0xa0] sm:$0xff] %v5256
        %5290 = vst [vmem:[%s5268 + $0xa8] sm:$0xff] %v5257
        %5291 = vst [vmem:[%s5268 + $0xb0] sm:$0xff] %v5258
        %5292 = vst [vmem:[%s5268 + $0xb8] sm:$0xff] %v5259
        %5293 = vst [vmem:[%s5268 + $0xc0] sm:$0xff] %v5260
        %5294 = vst [vmem:[%s5268 + $0xc8] sm:$0xff] %v5261
        %5295 = vst [vmem:[%s5268 + $0xd0] sm:$0xff] %v5262
        %5296 = vst [vmem:[%s5268 + $0xd8] sm:$0xff] %v5263
        %5297 = vst [vmem:[%s5268 + $0xe0] sm:$0xff] %v5264
        %5298 = vst [vmem:[%s5268 + $0xe8] sm:$0xff] %v5265
        %5299 = vst [vmem:[%s5268 + $0xf0] sm:$0xff] %v5266
        %5300 = vst [vmem:[%s5268 + $0xf8] sm:$0xff] %v5267
        %s5301 = sld [smem:[#allocation8 + $0x10]]
        %v5302 = vstv %s5301
        %v5303 = vmul.f32 %v372, %v5302
        %v5304 = vmul.f32 %v373, %v5302
        %v5305 = vmul.f32 %v374, %v5302
        %v5306 = vmul.f32 %v375, %v5302
        %v5307 = vmul.f32 %v376, %v5302
        %v5308 = vmul.f32 %v377, %v5302
        %v5309 = vmul.f32 %v378, %v5302
        %v5310 = vmul.f32 %v379, %v5302
        %v5311 = vmul.f32 %v380, %v5302
        %v5312 = vmul.f32 %v381, %v5302
        %v5313 = vmul.f32 %v382, %v5302
        %v5314 = vmul.f32 %v383, %v5302
        %v5315 = vmul.f32 %v384, %v5302
        %v5316 = vmul.f32 %v385, %v5302
        %v5317 = vmul.f32 %v386, %v5302
        %v5318 = vmul.f32 %v387, %v5302
        %v5319 = vmul.f32 %v388, %v5302
        %v5320 = vmul.f32 %v389, %v5302
        %v5321 = vmul.f32 %v390, %v5302
        %v5322 = vmul.f32 %v391, %v5302
        %v5323 = vmul.f32 %v392, %v5302
        %v5324 = vmul.f32 %v393, %v5302
        %v5325 = vmul.f32 %v394, %v5302
        %v5326 = vmul.f32 %v395, %v5302
        %v5327 = vmul.f32 %v396, %v5302
        %v5328 = vmul.f32 %v397, %v5302
        %v5329 = vmul.f32 %v398, %v5302
        %v5330 = vmul.f32 %v399, %v5302
        %v5331 = vmul.f32 %v400, %v5302
        %v5332 = vmul.f32 %v401, %v5302
        %v5333 = vmul.f32 %v402, %v5302
        %v5334 = vmul.f32 %v403, %v5302
        %s5335 = sadd.s32 %s536, 16
        %s5336 = sld [smem:[#allocation9 + %s5335]]
        %v5337 = vstv %s5336
        %v5338 = vadd.f32 %v5303, %v5337
        %v5339 = vadd.f32 %v5304, %v5337
        %v5340 = vadd.f32 %v5305, %v5337
        %v5341 = vadd.f32 %v5306, %v5337
        %v5342 = vadd.f32 %v5307, %v5337
        %v5343 = vadd.f32 %v5308, %v5337
        %v5344 = vadd.f32 %v5309, %v5337
        %v5345 = vadd.f32 %v5310, %v5337
        %v5346 = vadd.f32 %v5311, %v5337
        %v5347 = vadd.f32 %v5312, %v5337
        %v5348 = vadd.f32 %v5313, %v5337
        %v5349 = vadd.f32 %v5314, %v5337
        %v5350 = vadd.f32 %v5315, %v5337
        %v5351 = vadd.f32 %v5316, %v5337
        %v5352 = vadd.f32 %v5317, %v5337
        %v5353 = vadd.f32 %v5318, %v5337
        %v5354 = vadd.f32 %v5319, %v5337
        %v5355 = vadd.f32 %v5320, %v5337
        %v5356 = vadd.f32 %v5321, %v5337
        %v5357 = vadd.f32 %v5322, %v5337
        %v5358 = vadd.f32 %v5323, %v5337
        %v5359 = vadd.f32 %v5324, %v5337
        %v5360 = vadd.f32 %v5325, %v5337
        %v5361 = vadd.f32 %v5326, %v5337
        %v5362 = vadd.f32 %v5327, %v5337
        %v5363 = vadd.f32 %v5328, %v5337
        %v5364 = vadd.f32 %v5329, %v5337
        %v5365 = vadd.f32 %v5330, %v5337
        %v5366 = vadd.f32 %v5331, %v5337
        %v5367 = vadd.f32 %v5332, %v5337
        %v5368 = vadd.f32 %v5333, %v5337
        %v5369 = vadd.f32 %v5334, %v5337
        %s5370 = sld [smem:[#allocation8 + $0x90]]
        %v5371 = vstv %s5370
        %v5372 = vmul.f32 %v404, %v5371
        %v5373 = vmul.f32 %v405, %v5371
        %v5374 = vmul.f32 %v406, %v5371
        %v5375 = vmul.f32 %v407, %v5371
        %v5376 = vmul.f32 %v408, %v5371
        %v5377 = vmul.f32 %v409, %v5371
        %v5378 = vmul.f32 %v410, %v5371
        %v5379 = vmul.f32 %v411, %v5371
        %v5380 = vmul.f32 %v412, %v5371
        %v5381 = vmul.f32 %v413, %v5371
        %v5382 = vmul.f32 %v414, %v5371
        %v5383 = vmul.f32 %v415, %v5371
        %v5384 = vmul.f32 %v416, %v5371
        %v5385 = vmul.f32 %v417, %v5371
        %v5386 = vmul.f32 %v418, %v5371
        %v5387 = vmul.f32 %v419, %v5371
        %v5388 = vmul.f32 %v420, %v5371
        %v5389 = vmul.f32 %v421, %v5371
        %v5390 = vmul.f32 %v422, %v5371
        %v5391 = vmul.f32 %v423, %v5371
        %v5392 = vmul.f32 %v424, %v5371
        %v5393 = vmul.f32 %v425, %v5371
        %v5394 = vmul.f32 %v426, %v5371
        %v5395 = vmul.f32 %v427, %v5371
        %v5396 = vmul.f32 %v428, %v5371
        %v5397 = vmul.f32 %v429, %v5371
        %v5398 = vmul.f32 %v430, %v5371
        %v5399 = vmul.f32 %v431, %v5371
        %v5400 = vmul.f32 %v432, %v5371
        %v5401 = vmul.f32 %v433, %v5371
        %v5402 = vmul.f32 %v434, %v5371
        %v5403 = vmul.f32 %v435, %v5371
        %v5404 = vadd.f32 %v5338, %v5372
        %v5405 = vadd.f32 %v5339, %v5373
        %v5406 = vadd.f32 %v5340, %v5374
        %v5407 = vadd.f32 %v5341, %v5375
        %v5408 = vadd.f32 %v5342, %v5376
        %v5409 = vadd.f32 %v5343, %v5377
        %v5410 = vadd.f32 %v5344, %v5378
        %v5411 = vadd.f32 %v5345, %v5379
        %v5412 = vadd.f32 %v5346, %v5380
        %v5413 = vadd.f32 %v5347, %v5381
        %v5414 = vadd.f32 %v5348, %v5382
        %v5415 = vadd.f32 %v5349, %v5383
        %v5416 = vadd.f32 %v5350, %v5384
        %v5417 = vadd.f32 %v5351, %v5385
        %v5418 = vadd.f32 %v5352, %v5386
        %v5419 = vadd.f32 %v5353, %v5387
        %v5420 = vadd.f32 %v5354, %v5388
        %v5421 = vadd.f32 %v5355, %v5389
        %v5422 = vadd.f32 %v5356, %v5390
        %v5423 = vadd.f32 %v5357, %v5391
        %v5424 = vadd.f32 %v5358, %v5392
        %v5425 = vadd.f32 %v5359, %v5393
        %v5426 = vadd.f32 %v5360, %v5394
        %v5427 = vadd.f32 %v5361, %v5395
        %v5428 = vadd.f32 %v5362, %v5396
        %v5429 = vadd.f32 %v5363, %v5397
        %v5430 = vadd.f32 %v5364, %v5398
        %v5431 = vadd.f32 %v5365, %v5399
        %v5432 = vadd.f32 %v5366, %v5400
        %v5433 = vadd.f32 %v5367, %v5401
        %v5434 = vadd.f32 %v5368, %v5402
        %v5435 = vadd.f32 %v5369, %v5403
        %s5436 = sld [smem:[#allocation8 + $0x110]]
        %v5437 = vstv %s5436
        %v5438 = vmul.f32 %v437, %v5437
        %v5439 = vmul.f32 %v438, %v5437
        %v5440 = vmul.f32 %v439, %v5437
        %v5441 = vmul.f32 %v440, %v5437
        %v5442 = vmul.f32 %v441, %v5437
        %v5443 = vmul.f32 %v442, %v5437
        %v5444 = vmul.f32 %v443, %v5437
        %v5445 = vmul.f32 %v444, %v5437
        %v5446 = vmul.f32 %v445, %v5437
        %v5447 = vmul.f32 %v446, %v5437
        %v5448 = vmul.f32 %v447, %v5437
        %v5449 = vmul.f32 %v448, %v5437
        %v5450 = vmul.f32 %v449, %v5437
        %v5451 = vmul.f32 %v450, %v5437
        %v5452 = vmul.f32 %v451, %v5437
        %v5453 = vmul.f32 %v452, %v5437
        %v5454 = vmul.f32 %v453, %v5437
        %v5455 = vmul.f32 %v454, %v5437
        %v5456 = vmul.f32 %v455, %v5437
        %v5457 = vmul.f32 %v456, %v5437
        %v5458 = vmul.f32 %v457, %v5437
        %v5459 = vmul.f32 %v458, %v5437
        %v5460 = vmul.f32 %v459, %v5437
        %v5461 = vmul.f32 %v460, %v5437
        %v5462 = vmul.f32 %v461, %v5437
        %v5463 = vmul.f32 %v462, %v5437
        %v5464 = vmul.f32 %v463, %v5437
        %v5465 = vmul.f32 %v464, %v5437
        %v5466 = vmul.f32 %v465, %v5437
        %v5467 = vmul.f32 %v466, %v5437
        %v5468 = vmul.f32 %v467, %v5437
        %v5469 = vmul.f32 %v468, %v5437
        %v5470 = vadd.f32 %v5404, %v5438
        %v5471 = vadd.f32 %v5405, %v5439
        %v5472 = vadd.f32 %v5406, %v5440
        %v5473 = vadd.f32 %v5407, %v5441
        %v5474 = vadd.f32 %v5408, %v5442
        %v5475 = vadd.f32 %v5409, %v5443
        %v5476 = vadd.f32 %v5410, %v5444
        %v5477 = vadd.f32 %v5411, %v5445
        %v5478 = vadd.f32 %v5412, %v5446
        %v5479 = vadd.f32 %v5413, %v5447
        %v5480 = vadd.f32 %v5414, %v5448
        %v5481 = vadd.f32 %v5415, %v5449
        %v5482 = vadd.f32 %v5416, %v5450
        %v5483 = vadd.f32 %v5417, %v5451
        %v5484 = vadd.f32 %v5418, %v5452
        %v5485 = vadd.f32 %v5419, %v5453
        %v5486 = vadd.f32 %v5420, %v5454
        %v5487 = vadd.f32 %v5421, %v5455
        %v5488 = vadd.f32 %v5422, %v5456
        %v5489 = vadd.f32 %v5423, %v5457
        %v5490 = vadd.f32 %v5424, %v5458
        %v5491 = vadd.f32 %v5425, %v5459
        %v5492 = vadd.f32 %v5426, %v5460
        %v5493 = vadd.f32 %v5427, %v5461
        %v5494 = vadd.f32 %v5428, %v5462
        %v5495 = vadd.f32 %v5429, %v5463
        %v5496 = vadd.f32 %v5430, %v5464
        %v5497 = vadd.f32 %v5431, %v5465
        %v5498 = vadd.f32 %v5432, %v5466
        %v5499 = vadd.f32 %v5433, %v5467
        %v5500 = vadd.f32 %v5434, %v5468
        %v5501 = vadd.f32 %v5435, %v5469
        %s5502 = sld [smem:[#allocation8 + $0x190]]
        %v5503 = vstv %s5502
        %v5504 = vmul.f32 %v470, %v5503
        %v5505 = vmul.f32 %v471, %v5503
        %v5506 = vmul.f32 %v472, %v5503
        %v5507 = vmul.f32 %v473, %v5503
        %v5508 = vmul.f32 %v474, %v5503
        %v5509 = vmul.f32 %v475, %v5503
        %v5510 = vmul.f32 %v476, %v5503
        %v5511 = vmul.f32 %v477, %v5503
        %v5512 = vmul.f32 %v478, %v5503
        %v5513 = vmul.f32 %v479, %v5503
        %v5514 = vmul.f32 %v480, %v5503
        %v5515 = vmul.f32 %v481, %v5503
        %v5516 = vmul.f32 %v482, %v5503
        %v5517 = vmul.f32 %v483, %v5503
        %v5518 = vmul.f32 %v484, %v5503
        %v5519 = vmul.f32 %v485, %v5503
        %v5520 = vmul.f32 %v486, %v5503
        %v5521 = vmul.f32 %v487, %v5503
        %v5522 = vmul.f32 %v488, %v5503
        %v5523 = vmul.f32 %v489, %v5503
        %v5524 = vmul.f32 %v490, %v5503
        %v5525 = vmul.f32 %v491, %v5503
        %v5526 = vmul.f32 %v492, %v5503
        %v5527 = vmul.f32 %v493, %v5503
        %v5528 = vmul.f32 %v494, %v5503
        %v5529 = vmul.f32 %v495, %v5503
        %v5530 = vmul.f32 %v496, %v5503
        %v5531 = vmul.f32 %v497, %v5503
        %v5532 = vmul.f32 %v498, %v5503
        %v5533 = vmul.f32 %v499, %v5503
        %v5534 = vmul.f32 %v500, %v5503
        %v5535 = vmul.f32 %v501, %v5503
        %v5536 = vadd.f32 %v5470, %v5504
        %v5537 = vadd.f32 %v5471, %v5505
        %v5538 = vadd.f32 %v5472, %v5506
        %v5539 = vadd.f32 %v5473, %v5507
        %v5540 = vadd.f32 %v5474, %v5508
        %v5541 = vadd.f32 %v5475, %v5509
        %v5542 = vadd.f32 %v5476, %v5510
        %v5543 = vadd.f32 %v5477, %v5511
        %v5544 = vadd.f32 %v5478, %v5512
        %v5545 = vadd.f32 %v5479, %v5513
        %v5546 = vadd.f32 %v5480, %v5514
        %v5547 = vadd.f32 %v5481, %v5515
        %v5548 = vadd.f32 %v5482, %v5516
        %v5549 = vadd.f32 %v5483, %v5517
        %v5550 = vadd.f32 %v5484, %v5518
        %v5551 = vadd.f32 %v5485, %v5519
        %v5552 = vadd.f32 %v5486, %v5520
        %v5553 = vadd.f32 %v5487, %v5521
        %v5554 = vadd.f32 %v5488, %v5522
        %v5555 = vadd.f32 %v5489, %v5523
        %v5556 = vadd.f32 %v5490, %v5524
        %v5557 = vadd.f32 %v5491, %v5525
        %v5558 = vadd.f32 %v5492, %v5526
        %v5559 = vadd.f32 %v5493, %v5527
        %v5560 = vadd.f32 %v5494, %v5528
        %v5561 = vadd.f32 %v5495, %v5529
        %v5562 = vadd.f32 %v5496, %v5530
        %v5563 = vadd.f32 %v5497, %v5531
        %v5564 = vadd.f32 %v5498, %v5532
        %v5565 = vadd.f32 %v5499, %v5533
        %v5566 = vadd.f32 %v5500, %v5534
        %v5567 = vadd.f32 %v5501, %v5535
        %5568 = vst [vmem:[%s367] sm:$0xff] %v5536
        %5569 = vst [vmem:[%s367 + $0x8] sm:$0xff] %v5537
        %5570 = vst [vmem:[%s367 + $0x10] sm:$0xff] %v5538
        %5571 = vst [vmem:[%s367 + $0x18] sm:$0xff] %v5539
        %5572 = vst [vmem:[%s367 + $0x20] sm:$0xff] %v5540
        %5573 = vst [vmem:[%s367 + $0x28] sm:$0xff] %v5541
        %5574 = vst [vmem:[%s367 + $0x30] sm:$0xff] %v5542
        %5575 = vst [vmem:[%s367 + $0x38] sm:$0xff] %v5543
        %5576 = vst [vmem:[%s367 + $0x40] sm:$0xff] %v5544
        %5577 = vst [vmem:[%s367 + $0x48] sm:$0xff] %v5545
        %5578 = vst [vmem:[%s367 + $0x50] sm:$0xff] %v5546
        %5579 = vst [vmem:[%s367 + $0x58] sm:$0xff] %v5547
        %5580 = vst [vmem:[%s367 + $0x60] sm:$0xff] %v5548
        %5581 = vst [vmem:[%s367 + $0x68] sm:$0xff] %v5549
        %5582 = vst [vmem:[%s367 + $0x70] sm:$0xff] %v5550
        %5583 = vst [vmem:[%s367 + $0x78] sm:$0xff] %v5551
        %5584 = vst [vmem:[%s367 + $0x80] sm:$0xff] %v5552
        %5585 = vst [vmem:[%s367 + $0x88] sm:$0xff] %v5553
        %5586 = vst [vmem:[%s367 + $0x90] sm:$0xff] %v5554
        %5587 = vst [vmem:[%s367 + $0x98] sm:$0xff] %v5555
        %5588 = vst [vmem:[%s367 + $0xa0] sm:$0xff] %v5556
        %5589 = vst [vmem:[%s367 + $0xa8] sm:$0xff] %v5557
        %5590 = vst [vmem:[%s367 + $0xb0] sm:$0xff] %v5558
        %5591 = vst [vmem:[%s367 + $0xb8] sm:$0xff] %v5559
        %5592 = vst [vmem:[%s367 + $0xc0] sm:$0xff] %v5560
        %5593 = vst [vmem:[%s367 + $0xc8] sm:$0xff] %v5561
        %5594 = vst [vmem:[%s367 + $0xd0] sm:$0xff] %v5562
        %5595 = vst [vmem:[%s367 + $0xd8] sm:$0xff] %v5563
        %5596 = vst [vmem:[%s367 + $0xe0] sm:$0xff] %v5564
        %5597 = vst [vmem:[%s367 + $0xe8] sm:$0xff] %v5565
        %5598 = vst [vmem:[%s367 + $0xf0] sm:$0xff] %v5566
        %5599 = vst [vmem:[%s367 + $0xf8] sm:$0xff] %v5567
        %s5600 = sand.u32 %s151, 1
        %s5601 = scalar_lea.sflag [#allocation4], %s5600
        %s5602 = sand.u32 %s151, 1
        %s5603 = smul.addr %s5602, 4096
        %s5604 = scalar_lea.vmem [#allocation11], %s5603
        %s5605 = sand.u32 %s179, 1
        %s5606 = scalar_lea.sflag [#allocation13], %s5605
        %s5607 = sand.u32 %s179, 1
        %s5608 = smul.addr %s5607, 256
        %s5609 = scalar_lea.vmem [#allocation12], %s5608
        // Predicated region
        $region53: #{tpu_custom_call.1} parent=35 // pred_check
          %p5610 = pneg %p161
        $region54: #{tpu_custom_call.1} parent=35 // pred_check_branch
          %5612 = sbr.rel (%p5610) target = $region56
        $region55: #{tpu_custom_call.1} parent=35 // pred_region
          #allocation17 [shape = 'u32[6]{0}', space=smem, size = 0x18, scoped, tag = 'DMA stride descriptor']
          %s5613 = smul.u32 8, %s36
          %s5615 = ssub.s32 65536, 65536
          %5616 = vsyncadd %s5601, %s5615
          %s5617 = smul.addr %s5613, 4
          %s5618 = smul.addr %s35, 1024
          %s5619 = sadd.s32 %s5617, %s5618
          %s5620 = smul.addr %s5619, 128
          %s5621 = scalar_lea.hbm %s4, %s5620
          %s5623 = sshll.u32 1, 14
          %s5624 = sxor.u32 4294967295, %s5623
          %s5627 = sshll.u32 7, 18
          %s5628 = sxor.u32 4294967295, %s5627
          %s5629 = sand.u32 0, %s5628
          %s5631 = sor.u32 %s5629, 0
          %s5633 = sshll.u32 3, 24
          %s5634 = sxor.u32 4294967295, %s5633
          %s5635 = sand.u32 %s5631, %s5634
          %s5637 = sor.u32 %s5635, 0
          %s5638 = sshll.u32 %s5604, 4
          %s5639 = int_to_ptr.vmem [resolvable:$true] %s5638
          %5645 = sst [smem:[#allocation17]] 4096
          %s5646 = scalar_lea.smem [#allocation17], 1
          %5647 = sst [smem:[%s5646]] 8192
          %s5648 = scalar_lea.smem [#allocation17], 2
          %5649 = sst [smem:[%s5648]] 8
          %s5650 = scalar_lea.smem [#allocation17], 3
          %5651 = sst [smem:[%s5650]] 512
          %s5652 = scalar_lea.smem [#allocation17], 4
          %5653 = sst [smem:[%s5652]] 512
          %s5654 = scalar_lea.smem [#allocation17], 5
          %5655 = sst [smem:[%s5654]] 32
          %5657 = dma.general %s5639, 65536, %s5621, %s5601, [#allocation16], [#allocation17], %s5637, 0
        $region56: #{tpu_custom_call.1} parent=35 // pred_fallthru
          _
        // Predicated region
        $region57: #{tpu_custom_call.1} parent=35 // pred_check
          %p5658 = pneg %p189
        $region58: #{tpu_custom_call.1} parent=35 // pred_check_branch
          %5660 = sbr.rel (%p5658) target = $region60
        $region59: #{tpu_custom_call.1} parent=35 // pred_region
          %s5661 = smul.u32 8, %s36
          %s5663 = ssub.s32 4096, 4096
          %5664 = vsyncadd %s5606, %s5663
          %s5665 = smul.addr %s5661, 4
          %s5666 = smul.addr %s35, 64
          %s5667 = sadd.s32 %s5665, %s5666
          %s5668 = smul.addr %s5667, 128
          %s5669 = scalar_lea.hbm %s5, %s5668
          %s5670 = sshll.u32 %s5609, 4
          %s5671 = int_to_ptr.vmem [resolvable:$true] %s5670
          %5676 = dma.vmem_to_hbm [thread:$0]  %s5671, 4096, %s5669, %s5606, 512, 512, 32
        $region60: #{tpu_custom_call.1} parent=35 // pred_fallthru
          _
      $region36: #{tpu_custom_call.1} parent=5 // pred_fallthru
        _
      %p5677 = scmp.le.s32.totalorder 2, %s26
      // Predicated region
      $region61: #{tpu_custom_call.1} parent=5 // pred_check
        %p5678 = pneg %p5677
      $region62: #{tpu_custom_call.1} parent=5 // pred_check_branch
        %5680 = sbr.rel (%p5678) target = $region64
      $region63: #{tpu_custom_call.1} parent=5 // pred_region
        %s5681 = ssub.s32 %s26, 2
        // Predicated region
        $region65: #{tpu_custom_call.1} parent=63 // pred_check
          %p5682 = pneg %p167
        $region66: #{tpu_custom_call.1} parent=63 // pred_check_branch
          %5684 = sbr.rel (%p5682) target = $region68
        $region67: #{tpu_custom_call.1} parent=63 // pred_region
          %s5685 = sand.u32 %s152, 1
          %s5686 = scalar_lea.sflag [#allocation4], %s5685
          %s5687 = sand.u32 %s152, 1
          %s5688 = smul.addr %s5687, 4096
          %s5689 = scalar_lea.vmem [#allocation11], %s5688
          %5690 = dma.done %s5686, 65536
        $region68: #{tpu_custom_call.1} parent=63 // pred_fallthru
          _
        // Predicated region
        $region69: #{tpu_custom_call.1} parent=63 // pred_check
          %p5691 = pneg %p195
        $region70: #{tpu_custom_call.1} parent=63 // pred_check_branch
          %5693 = sbr.rel (%p5691) target = $region72
        $region71: #{tpu_custom_call.1} parent=63 // pred_region
          %s5694 = sand.u32 %s180, 1
          %s5695 = scalar_lea.sflag [#allocation13], %s5694
          %s5696 = sand.u32 %s180, 1
          %s5697 = smul.addr %s5696, 256
          %s5698 = scalar_lea.vmem [#allocation12], %s5697
          %5699 = dma.done %s5695, 4096
        $region72: #{tpu_custom_call.1} parent=63 // pred_fallthru
          _
      $region64: #{tpu_custom_call.1} parent=5 // pred_fallthru
        _
    $region6: #{tpu_custom_call.1} parent=1 // loop_footer
      %s30 = sadd.s32 1, %s26
    $region7: #{tpu_custom_call.1} parent=1 // loop_footer_branch
      %25 = sbr.rel target = $region3
    $region8: #{tpu_custom_call.1} parent=1 // loop_exit
      _
    %5700 = vsyncpa [#allocation3], 1
    %s5701 = scalar_lea.sflag [#allocation3], 1
    %5702 = vsyncpa %s5701, 1
    %5703 = vsyncpa [#allocation7], 1
    %s5704 = scalar_lea.sflag [#allocation7], 1
    %5705 = vsyncpa %s5704, 1
    %5706 = vsyncpa [#allocation4], 1
    %s5707 = scalar_lea.sflag [#allocation4], 1
    %5708 = vsyncpa %s5707, 1
    %5709 = vsyncpa [#allocation13], 1
    %s5710 = scalar_lea.sflag [#allocation13], 1
    %5711 = vsyncpa %s5710, 1
    %5712 = vsyncpa [#allocation5], 1
    %s5713 = scalar_lea.sflag [#allocation5], 1
    %5714 = vsyncpa %s5713, 1
    %5715 = vsyncpa [#allocation10], 1

</llo_original>
